<compile_context>
chip_gen: v7x
topology: tpu7x:2x2x1
jax: 0.10.0
libtpu: 0.0.40
codegen_flags: <defaults>
</compile_context>

<pallas_src>
import math

import jax
import jax.numpy as jnp
from jax.experimental import pallas as pl
from jax.experimental.pallas import tpu as pltpu

# ----- static model config: SwinStage(embed_dim=32, num_heads=4, depth=2, window_size=4) -----
EMBED_DIM = 32
NUM_HEADS = 4
HEAD_DIM = EMBED_DIM // NUM_HEADS
WINDOW_SIZE = 4
DEPTH = 2
MLP_RATIO = 4
LN_EPS = 1e-5
WIN_SEQ = WINDOW_SIZE * WINDOW_SIZE  # tokens per window

PARAM_ORDER = ("g1", "b1", "wqkv", "bqkv", "wproj", "bproj",
               "g2", "b2", "w1", "bb1", "w2", "bb2")


# --------------------------- fused stage kernel ------------------------------

def _make_stage_kernel(Hh, Ww):
    ws = WINDOW_SIZE
    nwh, nww = Hh // ws, Ww // ws
    nwin = nwh * nww
    ntok = Hh * Ww
    C = EMBED_DIM
    scale = 1.0 / math.sqrt(HEAD_DIM)

    def _partition(xg):
        # (Hh, Ww, C) grid -> (ntok, C) tokens in window-major (wi, wj, r, c) order.
        pieces = []
        for wi in range(nwh):
            for wj in range(nww):
                blk = xg[wi * ws:(wi + 1) * ws, wj * ws:(wj + 1) * ws, :]  # (ws, ws, C)
                for r in range(ws):
                    pieces.append(blk[r])                                   # (ws, C)
        return jnp.concatenate(pieces, axis=0)                              # (ntok, C)

    def _reverse(tw):
        # (ntok, C) window-major tokens -> (Hh, Ww, C) grid.
        pieces = []
        for h in range(Hh):
            wi, r = h // ws, h % ws
            for wj in range(nww):
                base = (wi * nww + wj) * (ws * ws) + r * ws
                pieces.append(tw[base:base + ws, :])                        # (ws, C)
        return jnp.concatenate(pieces, axis=0).reshape(Hh, Ww, C)

    def _layernorm(t, g, b):
        mu = jnp.mean(t, axis=-1, keepdims=True)
        var = jnp.mean(jnp.square(t - mu), axis=-1, keepdims=True)
        return (t - mu) * jax.lax.rsqrt(var + LN_EPS) * g + b

    def kernel(x_ref, g1_ref, b1_ref, wqkv_ref, bqkv_ref, wproj_ref, bproj_ref,
               g2_ref, b2_ref, w1_ref, bb1_ref, w2_ref, bb2_ref, o_ref):
        xg = x_ref[0]                                  # (Hh, Ww, C) f32, VMEM resident
        for d in range(DEPTH):                         # whole stage fused (static unroll)
            shift = (d % 2) * (WINDOW_SIZE // 2)

            # ---- cyclic shift by (-shift, -shift) on (H, W), in VMEM ----
            if shift > 0:
                xg = jnp.concatenate([xg[shift:], xg[:shift]], axis=0)
                xg = jnp.concatenate([xg[:, shift:, :], xg[:, :shift, :]], axis=1)

            # ---- window partition -> flat window-major token slab ----
            t = _partition(xg)                          # (ntok, C)

            # ---- LN1 + windowed MHSA + output proj + residual (all windows batched) ----
            tn = _layernorm(t, g1_ref[d], b1_ref[d])
            qkv = jnp.dot(tn, wqkv_ref[d],
                          preferred_element_type=jnp.float32) + bqkv_ref[d]  # (ntok, 3C)
            q = qkv[:, :C].reshape(nwin, WIN_SEQ, C)
            k = qkv[:, C:2 * C].reshape(nwin, WIN_SEQ, C)
            v = qkv[:, 2 * C:].reshape(nwin, WIN_SEQ, C)
            wproj = wproj_ref[d]                        # (C, C)

            acc = jnp.zeros((ntok, C), jnp.float32)
            for h in range(NUM_HEADS):                  # heads stay on the lane axis
                lo, hi = h * HEAD_DIM, (h + 1) * HEAD_DIM
                qh, kh, vh = q[:, :, lo:hi], k[:, :, lo:hi], v[:, :, lo:hi]
                s = jnp.einsum("bqd,bkd->bqk", qh, kh,
                               preferred_element_type=jnp.float32) * scale   # (nwin, S, S)
                s = s - jnp.max(s, axis=-1, keepdims=True)
                p = jnp.exp(s)
                p = p / jnp.sum(p, axis=-1, keepdims=True)
                oh = jnp.einsum("bqk,bkd->bqd", p, vh,
                                preferred_element_type=jnp.float32)          # (nwin, S, D)
                # fold the output projection into the head loop: sum_h o_h @ Wproj[h]
                acc = acc + jnp.dot(oh.reshape(ntok, HEAD_DIM), wproj[lo:hi, :],
                                    preferred_element_type=jnp.float32)
            t = t + acc + bproj_ref[d]

            # ---- LN2 + MLP + residual (per-token; window order is irrelevant) ----
            tn = _layernorm(t, g2_ref[d], b2_ref[d])
            hmid = jnp.dot(tn, w1_ref[d], preferred_element_type=jnp.float32) + bb1_ref[d]
            hmid = jax.nn.gelu(hmid, approximate=True)
            t = t + jnp.dot(hmid, w2_ref[d], preferred_element_type=jnp.float32) + bb2_ref[d]

            # ---- window reverse + inverse cyclic shift ----
            xg = _reverse(t)
            if shift > 0:
                xg = jnp.concatenate([xg[-shift:], xg[:-shift]], axis=0)
                xg = jnp.concatenate([xg[:, -shift:, :], xg[:, :-shift, :]], axis=1)

        o_ref[0] = xg

    return kernel


# --------------------------- pallas_call wrapper ------------------------------

@jax.jit
def swin_stage_forward(x, params):
    """x: (B, H, W, C) channels-last token grid; runs the whole stage in one kernel."""
    B, Hh, Ww, C = x.shape
    assert C == EMBED_DIM and Hh % WINDOW_SIZE == 0 and Ww % WINDOW_SIZE == 0
    assert Ww % 8 == 0  # sublane-tile aligned in-kernel reshapes

    kernel = _make_stage_kernel(Hh, Ww)

    def _const_spec(shape):  # weights: same block every step -> DMA'd once
        return pl.BlockSpec(shape, lambda b: (0,) * len(shape))

    in_specs = [pl.BlockSpec((1, Hh, Ww, C), lambda b: (b, 0, 0, 0))]
    in_specs += [_const_spec(params[name].shape) for name in PARAM_ORDER]

    return pl.pallas_call(
        kernel,
        out_shape=jax.ShapeDtypeStruct((B, Hh, Ww, C), x.dtype),
        grid=(B,),
        in_specs=in_specs,
        out_specs=pl.BlockSpec((1, Hh, Ww, C), lambda b: (b, 0, 0, 0)),
        compiler_params=pltpu.CompilerParams(
            dimension_semantics=("parallel",)),        # B >= 2 keeps both v7x TCs busy
    )(x, *[params[name] for name in PARAM_ORDER])


# --------------------------- pure-JAX reference -------------------------------

def _reference_stage(x, params):
    PREC = jax.lax.Precision.HIGHEST
    B, Hh, Ww, C = x.shape
    ws = WINDOW_SIZE
    for d in range(DEPTH):
        p = {k: v[d] for k, v in params.items()}
        shift = (d % 2) * (WINDOW_SIZE // 2)
        xs = jnp.roll(x, (-shift, -shift), axis=(1, 2)) if shift else x
        xw = xs.reshape(B, Hh // ws, ws, Ww // ws, ws, C)
        xw = jnp.transpose(xw, (0, 1, 3, 2, 4, 5)).reshape(-1, ws * ws, C)
        # LN1 + window MHSA + proj + residual
        mu = xw.mean(-1, keepdims=True)
        var = ((xw - mu) ** 2).mean(-1, keepdims=True)
        xn = (xw - mu) / jnp.sqrt(var + LN_EPS) * p["g1"] + p["b1"]
        qkv = jnp.dot(xn, p["wqkv"], precision=PREC) + p["bqkv"]
        q, k, v = qkv[..., :C], qkv[..., C:2 * C], qkv[..., 2 * C:]
        nw = q.shape[0]
        heads = lambda a: a.reshape(nw, ws * ws, NUM_HEADS, HEAD_DIM).transpose(0, 2, 1, 3)
        q, k, v = heads(q), heads(k), heads(v)
        s = jnp.einsum("whqd,whkd->whqk", q, k, precision=PREC) / math.sqrt(HEAD_DIM)
        a = jax.nn.softmax(s, axis=-1)
        o = jnp.einsum("whqk,whkd->whqd", a, v, precision=PREC)
        o = o.transpose(0, 2, 1, 3).reshape(nw, ws * ws, C)
        xw = xw + jnp.dot(o, p["wproj"], precision=PREC) + p["bproj"]
        xs = xw.reshape(B, Hh // ws, Ww // ws, ws, ws, C)
        xs = jnp.transpose(xs, (0, 1, 3, 2, 4, 5)).reshape(B, Hh, Ww, C)
        x = jnp.roll(xs, (shift, shift), axis=(1, 2)) if shift else xs
        # LN2 + MLP + residual
        t = x.reshape(-1, C)
        mu = t.mean(-1, keepdims=True)
        var = ((t - mu) ** 2).mean(-1, keepdims=True)
        tn = (t - mu) / jnp.sqrt(var + LN_EPS) * p["g2"] + p["b2"]
        hmid = jax.nn.gelu(jnp.dot(tn, p["w1"], precision=PREC) + p["bb1"], approximate=True)
        t = t + jnp.dot(hmid, p["w2"], precision=PREC) + p["bb2"]
        x = t.reshape(B, Hh, Ww, C)
    return x


# --------------------------- deterministic params ----------------------------

def init_stage_params(key, C=EMBED_DIM, depth=DEPTH):
    Hd = MLP_RATIO * C
    k = jax.random.split(key, 4)
    s = 0.02
    return {
        "g1": jnp.ones((depth, 1, C), jnp.float32),
        "b1": jnp.zeros((depth, 1, C), jnp.float32),
        "wqkv": s * jax.random.normal(k[0], (depth, C, 3 * C), jnp.float32),
        "bqkv": jnp.zeros((depth, 1, 3 * C), jnp.float32),
        "wproj": s * jax.random.normal(k[1], (depth, C, C), jnp.float32),
        "bproj": jnp.zeros((depth, 1, C), jnp.float32),
        "g2": jnp.ones((depth, 1, C), jnp.float32),
        "b2": jnp.zeros((depth, 1, C), jnp.float32),
        "w1": s * jax.random.normal(k[2], (depth, C, Hd), jnp.float32),
        "bb1": jnp.zeros((depth, 1, Hd), jnp.float32),
        "w2": s * jax.random.normal(k[3], (depth, Hd, C), jnp.float32),
        "bb2": jnp.zeros((depth, 1, C), jnp.float32),
    }


if __name__ == "__main__":
    key = jax.random.PRNGKey(0)
    kx, kp = jax.random.split(key)

    B, Hh, Ww, C = 2, 8, 8, EMBED_DIM          # H, W divisible by window_size
    x = jax.random.normal(kx, (B, Hh, Ww, C), jnp.float32)
    params = init_stage_params(kp)

    out = swin_stage_forward(x, params)
    jax.block_until_ready(out)
    assert out.shape == (B, Hh, Ww, C) and out.dtype == jnp.float32
    assert bool(jnp.all(jnp.isfinite(out)))

    ref = _reference_stage(x, params)
    max_err = float(jnp.max(jnp.abs(out - ref)))
    assert bool(jnp.allclose(out, ref, atol=2e-3, rtol=2e-3)), max_err

    print("KERNEL_OK")
</pallas_src>

<mosaic_0001>
module attributes {stable_mosaic.version = 11 : i64} {
  func.func @kernel(%arg0: i32, %arg1: memref<1x8x8x32xf32, #tpu.memory_space<vmem>>, %arg2: memref<2x1x32xf32, #tpu.memory_space<vmem>>, %arg3: memref<2x1x32xf32, #tpu.memory_space<vmem>>, %arg4: memref<2x32x96xf32, #tpu.memory_space<vmem>>, %arg5: memref<2x1x96xf32, #tpu.memory_space<vmem>>, %arg6: memref<2x32x32xf32, #tpu.memory_space<vmem>>, %arg7: memref<2x1x32xf32, #tpu.memory_space<vmem>>, %arg8: memref<2x1x32xf32, #tpu.memory_space<vmem>>, %arg9: memref<2x1x32xf32, #tpu.memory_space<vmem>>, %arg10: memref<2x32x128xf32, #tpu.memory_space<vmem>>, %arg11: memref<2x1x128xf32, #tpu.memory_space<vmem>>, %arg12: memref<2x128x32xf32, #tpu.memory_space<vmem>>, %arg13: memref<2x1x32xf32, #tpu.memory_space<vmem>>, %arg14: memref<1x8x8x32xf32, #tpu.memory_space<vmem>>) attributes {dimension_semantics = [#tpu.dimension_semantics<parallel>], iteration_bounds = array<i64: 2>, scalar_prefetch = 0 : i64, scratch_operands = 0 : i64, tpu.core_type = #tpu.core_type<tc>, window_params = [{transform_indices = @transform_0, window_bounds = array<i64: 1, 8, 8, 32>}, {pipeline_mode = #tpu.pipeline_mode<synchronous>, transform_indices = @transform_1, window_bounds = array<i64: 2, 1, 32>}, {pipeline_mode = #tpu.pipeline_mode<synchronous>, transform_indices = @transform_2, window_bounds = array<i64: 2, 1, 32>}, {pipeline_mode = #tpu.pipeline_mode<synchronous>, transform_indices = @transform_3, window_bounds = array<i64: 2, 32, 96>}, {pipeline_mode = #tpu.pipeline_mode<synchronous>, transform_indices = @transform_4, window_bounds = array<i64: 2, 1, 96>}, {pipeline_mode = #tpu.pipeline_mode<synchronous>, transform_indices = @transform_5, window_bounds = array<i64: 2, 32, 32>}, {pipeline_mode = #tpu.pipeline_mode<synchronous>, transform_indices = @transform_6, window_bounds = array<i64: 2, 1, 32>}, {pipeline_mode = #tpu.pipeline_mode<synchronous>, transform_indices = @transform_7, window_bounds = array<i64: 2, 1, 32>}, {pipeline_mode = #tpu.pipeline_mode<synchronous>, transform_indices = @transform_8, window_bounds = array<i64: 2, 1, 32>}, {pipeline_mode = #tpu.pipeline_mode<synchronous>, transform_indices = @transform_9, window_bounds = array<i64: 2, 32, 128>}, {pipeline_mode = #tpu.pipeline_mode<synchronous>, transform_indices = @transform_10, window_bounds = array<i64: 2, 1, 128>}, {pipeline_mode = #tpu.pipeline_mode<synchronous>, transform_indices = @transform_11, window_bounds = array<i64: 2, 128, 32>}, {pipeline_mode = #tpu.pipeline_mode<synchronous>, transform_indices = @transform_12, window_bounds = array<i64: 2, 1, 32>}, {transform_indices = @transform_13, window_bounds = array<i64: 1, 8, 8, 32>}]} {
    %c0 = arith.constant 0 : index
    %c0_0 = arith.constant 0 : index
    %c0_1 = arith.constant 0 : index
    %c0_2 = arith.constant 0 : index
    %0 = vector.load %arg1[%c0, %c0_0, %c0_1, %c0_2] : memref<1x8x8x32xf32, #tpu.memory_space<vmem>>, vector<1x8x8x32xf32>
    %1 = vector.shape_cast %0 : vector<1x8x8x32xf32> to vector<8x8x32xf32>
    %2 = vector.extract_strided_slice %1 {offsets = [0, 0, 0], sizes = [4, 4, 32], strides = [1, 1, 1]} : vector<8x8x32xf32> to vector<4x4x32xf32>
    %3 = vector.extract_strided_slice %2 {offsets = [0, 0, 0], sizes = [1, 4, 32], strides = [1, 1, 1]} : vector<4x4x32xf32> to vector<1x4x32xf32>
    %4 = vector.shape_cast %3 : vector<1x4x32xf32> to vector<4x32xf32>
    %5 = vector.extract_strided_slice %2 {offsets = [1, 0, 0], sizes = [1, 4, 32], strides = [1, 1, 1]} : vector<4x4x32xf32> to vector<1x4x32xf32>
    %6 = vector.shape_cast %5 : vector<1x4x32xf32> to vector<4x32xf32>
    %7 = vector.extract_strided_slice %2 {offsets = [2, 0, 0], sizes = [1, 4, 32], strides = [1, 1, 1]} : vector<4x4x32xf32> to vector<1x4x32xf32>
    %8 = vector.shape_cast %7 : vector<1x4x32xf32> to vector<4x32xf32>
    %9 = vector.extract_strided_slice %2 {offsets = [3, 0, 0], sizes = [1, 4, 32], strides = [1, 1, 1]} : vector<4x4x32xf32> to vector<1x4x32xf32>
    %10 = vector.shape_cast %9 : vector<1x4x32xf32> to vector<4x32xf32>
    %11 = vector.extract_strided_slice %1 {offsets = [0, 4, 0], sizes = [4, 4, 32], strides = [1, 1, 1]} : vector<8x8x32xf32> to vector<4x4x32xf32>
    %12 = vector.extract_strided_slice %11 {offsets = [0, 0, 0], sizes = [1, 4, 32], strides = [1, 1, 1]} : vector<4x4x32xf32> to vector<1x4x32xf32>
    %13 = vector.shape_cast %12 : vector<1x4x32xf32> to vector<4x32xf32>
    %14 = vector.extract_strided_slice %11 {offsets = [1, 0, 0], sizes = [1, 4, 32], strides = [1, 1, 1]} : vector<4x4x32xf32> to vector<1x4x32xf32>
    %15 = vector.shape_cast %14 : vector<1x4x32xf32> to vector<4x32xf32>
    %16 = vector.extract_strided_slice %11 {offsets = [2, 0, 0], sizes = [1, 4, 32], strides = [1, 1, 1]} : vector<4x4x32xf32> to vector<1x4x32xf32>
    %17 = vector.shape_cast %16 : vector<1x4x32xf32> to vector<4x32xf32>
    %18 = vector.extract_strided_slice %11 {offsets = [3, 0, 0], sizes = [1, 4, 32], strides = [1, 1, 1]} : vector<4x4x32xf32> to vector<1x4x32xf32>
    %19 = vector.shape_cast %18 : vector<1x4x32xf32> to vector<4x32xf32>
    %20 = vector.extract_strided_slice %1 {offsets = [4, 0, 0], sizes = [4, 4, 32], strides = [1, 1, 1]} : vector<8x8x32xf32> to vector<4x4x32xf32>
    %21 = vector.extract_strided_slice %20 {offsets = [0, 0, 0], sizes = [1, 4, 32], strides = [1, 1, 1]} : vector<4x4x32xf32> to vector<1x4x32xf32>
    %22 = vector.shape_cast %21 : vector<1x4x32xf32> to vector<4x32xf32>
    %23 = vector.extract_strided_slice %20 {offsets = [1, 0, 0], sizes = [1, 4, 32], strides = [1, 1, 1]} : vector<4x4x32xf32> to vector<1x4x32xf32>
    %24 = vector.shape_cast %23 : vector<1x4x32xf32> to vector<4x32xf32>
    %25 = vector.extract_strided_slice %20 {offsets = [2, 0, 0], sizes = [1, 4, 32], strides = [1, 1, 1]} : vector<4x4x32xf32> to vector<1x4x32xf32>
    %26 = vector.shape_cast %25 : vector<1x4x32xf32> to vector<4x32xf32>
    %27 = vector.extract_strided_slice %20 {offsets = [3, 0, 0], sizes = [1, 4, 32], strides = [1, 1, 1]} : vector<4x4x32xf32> to vector<1x4x32xf32>
    %28 = vector.shape_cast %27 : vector<1x4x32xf32> to vector<4x32xf32>
    %29 = vector.extract_strided_slice %1 {offsets = [4, 4, 0], sizes = [4, 4, 32], strides = [1, 1, 1]} : vector<8x8x32xf32> to vector<4x4x32xf32>
    %30 = vector.extract_strided_slice %29 {offsets = [0, 0, 0], sizes = [1, 4, 32], strides = [1, 1, 1]} : vector<4x4x32xf32> to vector<1x4x32xf32>
    %31 = vector.shape_cast %30 : vector<1x4x32xf32> to vector<4x32xf32>
    %32 = vector.extract_strided_slice %29 {offsets = [1, 0, 0], sizes = [1, 4, 32], strides = [1, 1, 1]} : vector<4x4x32xf32> to vector<1x4x32xf32>
    %33 = vector.shape_cast %32 : vector<1x4x32xf32> to vector<4x32xf32>
    %34 = vector.extract_strided_slice %29 {offsets = [2, 0, 0], sizes = [1, 4, 32], strides = [1, 1, 1]} : vector<4x4x32xf32> to vector<1x4x32xf32>
    %35 = vector.shape_cast %34 : vector<1x4x32xf32> to vector<4x32xf32>
    %36 = vector.extract_strided_slice %29 {offsets = [3, 0, 0], sizes = [1, 4, 32], strides = [1, 1, 1]} : vector<4x4x32xf32> to vector<1x4x32xf32>
    %37 = vector.shape_cast %36 : vector<1x4x32xf32> to vector<4x32xf32>
    %38 = tpu.concatenate %4, %6, %8, %10, %13, %15, %17, %19, %22, %24, %26, %28, %31, %33, %35, %37 in 0 : vector<4x32xf32>, vector<4x32xf32>, vector<4x32xf32>, vector<4x32xf32>, vector<4x32xf32>, vector<4x32xf32>, vector<4x32xf32>, vector<4x32xf32>, vector<4x32xf32>, vector<4x32xf32>, vector<4x32xf32>, vector<4x32xf32>, vector<4x32xf32>, vector<4x32xf32>, vector<4x32xf32>, vector<4x32xf32> -> vector<64x32xf32>
    %c0_3 = arith.constant 0 : index
    %c0_4 = arith.constant 0 : index
    %c0_5 = arith.constant 0 : index
    %39 = vector.load %arg2[%c0_3, %c0_4, %c0_5] : memref<2x1x32xf32, #tpu.memory_space<vmem>>, vector<1x1x32xf32>
    %40 = vector.shape_cast %39 : vector<1x1x32xf32> to vector<1x32xf32>
    %c0_6 = arith.constant 0 : index
    %c0_7 = arith.constant 0 : index
    %c0_8 = arith.constant 0 : index
    %41 = vector.load %arg3[%c0_6, %c0_7, %c0_8] : memref<2x1x32xf32, #tpu.memory_space<vmem>>, vector<1x1x32xf32>
    %42 = vector.shape_cast %41 : vector<1x1x32xf32> to vector<1x32xf32>
    %cst = arith.constant dense<0.000000e+00> : vector<64xf32>
    %43 = vector.multi_reduction <add>, %38, %cst [1] : vector<64x32xf32> to vector<64xf32>
    %44 = vector.shape_cast %43 : vector<64xf32> to vector<64x1xf32>
    %cst_9 = arith.constant 3.200000e+01 : f32
    %45 = vector.broadcast %cst_9 : f32 to vector<64x1xf32>
    %46 = arith.divf %44, %45 : vector<64x1xf32>
    %47 = vector.broadcast %46 : vector<64x1xf32> to vector<64x32xf32>
    %48 = arith.subf %38, %47 : vector<64x32xf32>
    %49 = arith.mulf %48, %48 : vector<64x32xf32>
    %cst_10 = arith.constant dense<0.000000e+00> : vector<64xf32>
    %50 = vector.multi_reduction <add>, %49, %cst_10 [1] : vector<64x32xf32> to vector<64xf32>
    %51 = vector.shape_cast %50 : vector<64xf32> to vector<64x1xf32>
    %cst_11 = arith.constant 3.200000e+01 : f32
    %52 = vector.broadcast %cst_11 : f32 to vector<64x1xf32>
    %53 = arith.divf %51, %52 : vector<64x1xf32>
    %54 = vector.broadcast %46 : vector<64x1xf32> to vector<64x32xf32>
    %55 = arith.subf %38, %54 : vector<64x32xf32>
    %cst_12 = arith.constant 9.99999974E-6 : f32
    %56 = vector.broadcast %cst_12 : f32 to vector<64x1xf32>
    %57 = arith.addf %53, %56 : vector<64x1xf32>
    %58 = math.rsqrt %57 : vector<64x1xf32>
    %59 = vector.broadcast %58 : vector<64x1xf32> to vector<64x32xf32>
    %60 = arith.mulf %55, %59 : vector<64x32xf32>
    %61 = vector.broadcast %40 : vector<1x32xf32> to vector<64x32xf32>
    %62 = arith.mulf %60, %61 : vector<64x32xf32>
    %63 = vector.broadcast %42 : vector<1x32xf32> to vector<64x32xf32>
    %64 = arith.addf %62, %63 : vector<64x32xf32>
    %c0_13 = arith.constant 0 : index
    %c0_14 = arith.constant 0 : index
    %c0_15 = arith.constant 0 : index
    %65 = vector.load %arg4[%c0_13, %c0_14, %c0_15] : memref<2x32x96xf32, #tpu.memory_space<vmem>>, vector<1x32x96xf32>
    %66 = vector.shape_cast %65 : vector<1x32x96xf32> to vector<32x96xf32>
    %cst_16 = arith.constant dense<0.000000e+00> : vector<64x96xf32>
    %67 = tpu.matmul %64, %66, %cst_16 {dimension_numbers = #tpu.dot_dimension_numbers<[1], [0], [0], [1], [0, 0, 1, 1], [], []>} : vector<64x32xf32>, vector<32x96xf32>, vector<64x96xf32> -> vector<64x96xf32>
    %c0_17 = arith.constant 0 : index
    %c0_18 = arith.constant 0 : index
    %c0_19 = arith.constant 0 : index
    %68 = vector.load %arg5[%c0_17, %c0_18, %c0_19] : memref<2x1x96xf32, #tpu.memory_space<vmem>>, vector<1x1x96xf32>
    %69 = vector.shape_cast %68 : vector<1x1x96xf32> to vector<1x96xf32>
    %70 = vector.broadcast %69 : vector<1x96xf32> to vector<64x96xf32>
    %71 = arith.addf %67, %70 : vector<64x96xf32>
    %72 = vector.extract_strided_slice %71 {offsets = [0, 0], sizes = [64, 32], strides = [1, 1]} : vector<64x96xf32> to vector<64x32xf32>
    %73 = vector.shape_cast %72 : vector<64x32xf32> to vector<4x16x32xf32>
    %74 = vector.extract_strided_slice %71 {offsets = [0, 32], sizes = [64, 32], strides = [1, 1]} : vector<64x96xf32> to vector<64x32xf32>
    %75 = vector.shape_cast %74 : vector<64x32xf32> to vector<4x16x32xf32>
    %76 = vector.extract_strided_slice %71 {offsets = [0, 64], sizes = [64, 32], strides = [1, 1]} : vector<64x96xf32> to vector<64x32xf32>
    %77 = vector.shape_cast %76 : vector<64x32xf32> to vector<4x16x32xf32>
    %c0_20 = arith.constant 0 : index
    %c0_21 = arith.constant 0 : index
    %c0_22 = arith.constant 0 : index
    %78 = vector.load %arg6[%c0_20, %c0_21, %c0_22] : memref<2x32x32xf32, #tpu.memory_space<vmem>>, vector<1x32x32xf32>
    %79 = vector.shape_cast %78 : vector<1x32x32xf32> to vector<32x32xf32>
    %cst_23 = arith.constant 0.000000e+00 : f32
    %80 = vector.broadcast %cst_23 : f32 to vector<64x32xf32>
    %81 = vector.extract_strided_slice %73 {offsets = [0, 0, 0], sizes = [4, 16, 8], strides = [1, 1, 1]} : vector<4x16x32xf32> to vector<4x16x8xf32>
    %82 = vector.extract_strided_slice %75 {offsets = [0, 0, 0], sizes = [4, 16, 8], strides = [1, 1, 1]} : vector<4x16x32xf32> to vector<4x16x8xf32>
    %83 = vector.extract_strided_slice %77 {offsets = [0, 0, 0], sizes = [4, 16, 8], strides = [1, 1, 1]} : vector<4x16x32xf32> to vector<4x16x8xf32>
    "tpu.trace_start"() <{level = 10 : i32, message = "bqd,bkd->bqk"}> : () -> ()
    %cst_24 = arith.constant dense<0.000000e+00> : vector<4x16x16xf32>
    %84 = tpu.matmul %81, %82, %cst_24 {dimension_numbers = #tpu.dot_dimension_numbers<[2], [2], [1], [1], [0, 0, 0, 1, 1, 1], [0], [0]>} : vector<4x16x8xf32>, vector<4x16x8xf32>, vector<4x16x16xf32> -> vector<4x16x16xf32>
    "tpu.trace_stop"() : () -> ()
    %cst_25 = arith.constant 0.353553385 : f32
    %85 = vector.broadcast %cst_25 : f32 to vector<4x16x16xf32>
    %86 = arith.mulf %84, %85 : vector<4x16x16xf32>
    %cst_26 = arith.constant dense<0xFF800000> : vector<4x16xf32>
    %87 = vector.multi_reduction <maximumf>, %86, %cst_26 [2] : vector<4x16x16xf32> to vector<4x16xf32>
    %88 = vector.shape_cast %87 : vector<4x16xf32> to vector<4x16x1xf32>
    %89 = vector.broadcast %88 : vector<4x16x1xf32> to vector<4x16x16xf32>
    %90 = arith.subf %86, %89 : vector<4x16x16xf32>
    %91 = math.exp %90 : vector<4x16x16xf32>
    %cst_27 = arith.constant dense<0.000000e+00> : vector<4x16xf32>
    %92 = vector.multi_reduction <add>, %91, %cst_27 [2] : vector<4x16x16xf32> to vector<4x16xf32>
    %93 = vector.shape_cast %92 : vector<4x16xf32> to vector<4x16x1xf32>
    %94 = vector.broadcast %93 : vector<4x16x1xf32> to vector<4x16x16xf32>
    %95 = arith.divf %91, %94 : vector<4x16x16xf32>
    "tpu.trace_start"() <{level = 10 : i32, message = "bqk,bkd->bqd"}> : () -> ()
    %cst_28 = arith.constant dense<0.000000e+00> : vector<4x16x8xf32>
    %96 = tpu.matmul %95, %83, %cst_28 {dimension_numbers = #tpu.dot_dimension_numbers<[2], [1], [1], [2], [0, 0, 0, 1, 1, 2], [0], [0]>} : vector<4x16x16xf32>, vector<4x16x8xf32>, vector<4x16x8xf32> -> vector<4x16x8xf32>
    "tpu.trace_stop"() : () -> ()
    %97 = vector.shape_cast %96 : vector<4x16x8xf32> to vector<64x8xf32>
    %98 = vector.extract_strided_slice %79 {offsets = [0, 0], sizes = [8, 32], strides = [1, 1]} : vector<32x32xf32> to vector<8x32xf32>
    %cst_29 = arith.constant dense<0.000000e+00> : vector<64x32xf32>
    %99 = tpu.matmul %97, %98, %cst_29 {dimension_numbers = #tpu.dot_dimension_numbers<[1], [0], [0], [1], [0, 0, 1, 1], [], []>} : vector<64x8xf32>, vector<8x32xf32>, vector<64x32xf32> -> vector<64x32xf32>
    %100 = arith.addf %80, %99 : vector<64x32xf32>
    %101 = vector.extract_strided_slice %73 {offsets = [0, 0, 8], sizes = [4, 16, 8], strides = [1, 1, 1]} : vector<4x16x32xf32> to vector<4x16x8xf32>
    %102 = vector.extract_strided_slice %75 {offsets = [0, 0, 8], sizes = [4, 16, 8], strides = [1, 1, 1]} : vector<4x16x32xf32> to vector<4x16x8xf32>
    %103 = vector.extract_strided_slice %77 {offsets = [0, 0, 8], sizes = [4, 16, 8], strides = [1, 1, 1]} : vector<4x16x32xf32> to vector<4x16x8xf32>
    "tpu.trace_start"() <{level = 10 : i32, message = "bqd,bkd->bqk"}> : () -> ()
    %cst_30 = arith.constant dense<0.000000e+00> : vector<4x16x16xf32>
    %104 = tpu.matmul %101, %102, %cst_30 {dimension_numbers = #tpu.dot_dimension_numbers<[2], [2], [1], [1], [0, 0, 0, 1, 1, 1], [0], [0]>} : vector<4x16x8xf32>, vector<4x16x8xf32>, vector<4x16x16xf32> -> vector<4x16x16xf32>
    "tpu.trace_stop"() : () -> ()
    %cst_31 = arith.constant 0.353553385 : f32
    %105 = vector.broadcast %cst_31 : f32 to vector<4x16x16xf32>
    %106 = arith.mulf %104, %105 : vector<4x16x16xf32>
    %cst_32 = arith.constant dense<0xFF800000> : vector<4x16xf32>
    %107 = vector.multi_reduction <maximumf>, %106, %cst_32 [2] : vector<4x16x16xf32> to vector<4x16xf32>
    %108 = vector.shape_cast %107 : vector<4x16xf32> to vector<4x16x1xf32>
    %109 = vector.broadcast %108 : vector<4x16x1xf32> to vector<4x16x16xf32>
    %110 = arith.subf %106, %109 : vector<4x16x16xf32>
    %111 = math.exp %110 : vector<4x16x16xf32>
    %cst_33 = arith.constant dense<0.000000e+00> : vector<4x16xf32>
    %112 = vector.multi_reduction <add>, %111, %cst_33 [2] : vector<4x16x16xf32> to vector<4x16xf32>
    %113 = vector.shape_cast %112 : vector<4x16xf32> to vector<4x16x1xf32>
    %114 = vector.broadcast %113 : vector<4x16x1xf32> to vector<4x16x16xf32>
    %115 = arith.divf %111, %114 : vector<4x16x16xf32>
    "tpu.trace_start"() <{level = 10 : i32, message = "bqk,bkd->bqd"}> : () -> ()
    %cst_34 = arith.constant dense<0.000000e+00> : vector<4x16x8xf32>
    %116 = tpu.matmul %115, %103, %cst_34 {dimension_numbers = #tpu.dot_dimension_numbers<[2], [1], [1], [2], [0, 0, 0, 1, 1, 2], [0], [0]>} : vector<4x16x16xf32>, vector<4x16x8xf32>, vector<4x16x8xf32> -> vector<4x16x8xf32>
    "tpu.trace_stop"() : () -> ()
    %117 = vector.shape_cast %116 : vector<4x16x8xf32> to vector<64x8xf32>
    %118 = vector.extract_strided_slice %79 {offsets = [8, 0], sizes = [8, 32], strides = [1, 1]} : vector<32x32xf32> to vector<8x32xf32>
    %cst_35 = arith.constant dense<0.000000e+00> : vector<64x32xf32>
    %119 = tpu.matmul %117, %118, %cst_35 {dimension_numbers = #tpu.dot_dimension_numbers<[1], [0], [0], [1], [0, 0, 1, 1], [], []>} : vector<64x8xf32>, vector<8x32xf32>, vector<64x32xf32> -> vector<64x32xf32>
    %120 = arith.addf %100, %119 : vector<64x32xf32>
    %121 = vector.extract_strided_slice %73 {offsets = [0, 0, 16], sizes = [4, 16, 8], strides = [1, 1, 1]} : vector<4x16x32xf32> to vector<4x16x8xf32>
    %122 = vector.extract_strided_slice %75 {offsets = [0, 0, 16], sizes = [4, 16, 8], strides = [1, 1, 1]} : vector<4x16x32xf32> to vector<4x16x8xf32>
    %123 = vector.extract_strided_slice %77 {offsets = [0, 0, 16], sizes = [4, 16, 8], strides = [1, 1, 1]} : vector<4x16x32xf32> to vector<4x16x8xf32>
    "tpu.trace_start"() <{level = 10 : i32, message = "bqd,bkd->bqk"}> : () -> ()
    %cst_36 = arith.constant dense<0.000000e+00> : vector<4x16x16xf32>
    %124 = tpu.matmul %121, %122, %cst_36 {dimension_numbers = #tpu.dot_dimension_numbers<[2], [2], [1], [1], [0, 0, 0, 1, 1, 1], [0], [0]>} : vector<4x16x8xf32>, vector<4x16x8xf32>, vector<4x16x16xf32> -> vector<4x16x16xf32>
    "tpu.trace_stop"() : () -> ()
    %cst_37 = arith.constant 0.353553385 : f32
    %125 = vector.broadcast %cst_37 : f32 to vector<4x16x16xf32>
    %126 = arith.mulf %124, %125 : vector<4x16x16xf32>
    %cst_38 = arith.constant dense<0xFF800000> : vector<4x16xf32>
    %127 = vector.multi_reduction <maximumf>, %126, %cst_38 [2] : vector<4x16x16xf32> to vector<4x16xf32>
    %128 = vector.shape_cast %127 : vector<4x16xf32> to vector<4x16x1xf32>
    %129 = vector.broadcast %128 : vector<4x16x1xf32> to vector<4x16x16xf32>
    %130 = arith.subf %126, %129 : vector<4x16x16xf32>
    %131 = math.exp %130 : vector<4x16x16xf32>
    %cst_39 = arith.constant dense<0.000000e+00> : vector<4x16xf32>
    %132 = vector.multi_reduction <add>, %131, %cst_39 [2] : vector<4x16x16xf32> to vector<4x16xf32>
    %133 = vector.shape_cast %132 : vector<4x16xf32> to vector<4x16x1xf32>
    %134 = vector.broadcast %133 : vector<4x16x1xf32> to vector<4x16x16xf32>
    %135 = arith.divf %131, %134 : vector<4x16x16xf32>
    "tpu.trace_start"() <{level = 10 : i32, message = "bqk,bkd->bqd"}> : () -> ()
    %cst_40 = arith.constant dense<0.000000e+00> : vector<4x16x8xf32>
    %136 = tpu.matmul %135, %123, %cst_40 {dimension_numbers = #tpu.dot_dimension_numbers<[2], [1], [1], [2], [0, 0, 0, 1, 1, 2], [0], [0]>} : vector<4x16x16xf32>, vector<4x16x8xf32>, vector<4x16x8xf32> -> vector<4x16x8xf32>
    "tpu.trace_stop"() : () -> ()
    %137 = vector.shape_cast %136 : vector<4x16x8xf32> to vector<64x8xf32>
    %138 = vector.extract_strided_slice %79 {offsets = [16, 0], sizes = [8, 32], strides = [1, 1]} : vector<32x32xf32> to vector<8x32xf32>
    %cst_41 = arith.constant dense<0.000000e+00> : vector<64x32xf32>
    %139 = tpu.matmul %137, %138, %cst_41 {dimension_numbers = #tpu.dot_dimension_numbers<[1], [0], [0], [1], [0, 0, 1, 1], [], []>} : vector<64x8xf32>, vector<8x32xf32>, vector<64x32xf32> -> vector<64x32xf32>
    %140 = arith.addf %120, %139 : vector<64x32xf32>
    %141 = vector.extract_strided_slice %73 {offsets = [0, 0, 24], sizes = [4, 16, 8], strides = [1, 1, 1]} : vector<4x16x32xf32> to vector<4x16x8xf32>
    %142 = vector.extract_strided_slice %75 {offsets = [0, 0, 24], sizes = [4, 16, 8], strides = [1, 1, 1]} : vector<4x16x32xf32> to vector<4x16x8xf32>
    %143 = vector.extract_strided_slice %77 {offsets = [0, 0, 24], sizes = [4, 16, 8], strides = [1, 1, 1]} : vector<4x16x32xf32> to vector<4x16x8xf32>
    "tpu.trace_start"() <{level = 10 : i32, message = "bqd,bkd->bqk"}> : () -> ()
    %cst_42 = arith.constant dense<0.000000e+00> : vector<4x16x16xf32>
    %144 = tpu.matmul %141, %142, %cst_42 {dimension_numbers = #tpu.dot_dimension_numbers<[2], [2], [1], [1], [0, 0, 0, 1, 1, 1], [0], [0]>} : vector<4x16x8xf32>, vector<4x16x8xf32>, vector<4x16x16xf32> -> vector<4x16x16xf32>
    "tpu.trace_stop"() : () -> ()
    %cst_43 = arith.constant 0.353553385 : f32
    %145 = vector.broadcast %cst_43 : f32 to vector<4x16x16xf32>
    %146 = arith.mulf %144, %145 : vector<4x16x16xf32>
    %cst_44 = arith.constant dense<0xFF800000> : vector<4x16xf32>
    %147 = vector.multi_reduction <maximumf>, %146, %cst_44 [2] : vector<4x16x16xf32> to vector<4x16xf32>
    %148 = vector.shape_cast %147 : vector<4x16xf32> to vector<4x16x1xf32>
    %149 = vector.broadcast %148 : vector<4x16x1xf32> to vector<4x16x16xf32>
    %150 = arith.subf %146, %149 : vector<4x16x16xf32>
    %151 = math.exp %150 : vector<4x16x16xf32>
    %cst_45 = arith.constant dense<0.000000e+00> : vector<4x16xf32>
    %152 = vector.multi_reduction <add>, %151, %cst_45 [2] : vector<4x16x16xf32> to vector<4x16xf32>
    %153 = vector.shape_cast %152 : vector<4x16xf32> to vector<4x16x1xf32>
    %154 = vector.broadcast %153 : vector<4x16x1xf32> to vector<4x16x16xf32>
    %155 = arith.divf %151, %154 : vector<4x16x16xf32>
    "tpu.trace_start"() <{level = 10 : i32, message = "bqk,bkd->bqd"}> : () -> ()
    %cst_46 = arith.constant dense<0.000000e+00> : vector<4x16x8xf32>
    %156 = tpu.matmul %155, %143, %cst_46 {dimension_numbers = #tpu.dot_dimension_numbers<[2], [1], [1], [2], [0, 0, 0, 1, 1, 2], [0], [0]>} : vector<4x16x16xf32>, vector<4x16x8xf32>, vector<4x16x8xf32> -> vector<4x16x8xf32>
    "tpu.trace_stop"() : () -> ()
    %157 = vector.shape_cast %156 : vector<4x16x8xf32> to vector<64x8xf32>
    %158 = vector.extract_strided_slice %79 {offsets = [24, 0], sizes = [8, 32], strides = [1, 1]} : vector<32x32xf32> to vector<8x32xf32>
    %cst_47 = arith.constant dense<0.000000e+00> : vector<64x32xf32>
    %159 = tpu.matmul %157, %158, %cst_47 {dimension_numbers = #tpu.dot_dimension_numbers<[1], [0], [0], [1], [0, 0, 1, 1], [], []>} : vector<64x8xf32>, vector<8x32xf32>, vector<64x32xf32> -> vector<64x32xf32>
    %160 = arith.addf %140, %159 : vector<64x32xf32>
    %161 = arith.addf %38, %160 : vector<64x32xf32>
    %c0_48 = arith.constant 0 : index
    %c0_49 = arith.constant 0 : index
    %c0_50 = arith.constant 0 : index
    %162 = vector.load %arg7[%c0_48, %c0_49, %c0_50] : memref<2x1x32xf32, #tpu.memory_space<vmem>>, vector<1x1x32xf32>
    %163 = vector.shape_cast %162 : vector<1x1x32xf32> to vector<1x32xf32>
    %164 = vector.broadcast %163 : vector<1x32xf32> to vector<64x32xf32>
    %165 = arith.addf %161, %164 : vector<64x32xf32>
    %c0_51 = arith.constant 0 : index
    %c0_52 = arith.constant 0 : index
    %c0_53 = arith.constant 0 : index
    %166 = vector.load %arg8[%c0_51, %c0_52, %c0_53] : memref<2x1x32xf32, #tpu.memory_space<vmem>>, vector<1x1x32xf32>
    %167 = vector.shape_cast %166 : vector<1x1x32xf32> to vector<1x32xf32>
    %c0_54 = arith.constant 0 : index
    %c0_55 = arith.constant 0 : index
    %c0_56 = arith.constant 0 : index
    %168 = vector.load %arg9[%c0_54, %c0_55, %c0_56] : memref<2x1x32xf32, #tpu.memory_space<vmem>>, vector<1x1x32xf32>
    %169 = vector.shape_cast %168 : vector<1x1x32xf32> to vector<1x32xf32>
    %cst_57 = arith.constant dense<0.000000e+00> : vector<64xf32>
    %170 = vector.multi_reduction <add>, %165, %cst_57 [1] : vector<64x32xf32> to vector<64xf32>
    %171 = vector.shape_cast %170 : vector<64xf32> to vector<64x1xf32>
    %cst_58 = arith.constant 3.200000e+01 : f32
    %172 = vector.broadcast %cst_58 : f32 to vector<64x1xf32>
    %173 = arith.divf %171, %172 : vector<64x1xf32>
    %174 = vector.broadcast %173 : vector<64x1xf32> to vector<64x32xf32>
    %175 = arith.subf %165, %174 : vector<64x32xf32>
    %176 = arith.mulf %175, %175 : vector<64x32xf32>
    %cst_59 = arith.constant dense<0.000000e+00> : vector<64xf32>
    %177 = vector.multi_reduction <add>, %176, %cst_59 [1] : vector<64x32xf32> to vector<64xf32>
    %178 = vector.shape_cast %177 : vector<64xf32> to vector<64x1xf32>
    %cst_60 = arith.constant 3.200000e+01 : f32
    %179 = vector.broadcast %cst_60 : f32 to vector<64x1xf32>
    %180 = arith.divf %178, %179 : vector<64x1xf32>
    %181 = vector.broadcast %173 : vector<64x1xf32> to vector<64x32xf32>
    %182 = arith.subf %165, %181 : vector<64x32xf32>
    %cst_61 = arith.constant 9.99999974E-6 : f32
    %183 = vector.broadcast %cst_61 : f32 to vector<64x1xf32>
    %184 = arith.addf %180, %183 : vector<64x1xf32>
    %185 = math.rsqrt %184 : vector<64x1xf32>
    %186 = vector.broadcast %185 : vector<64x1xf32> to vector<64x32xf32>
    %187 = arith.mulf %182, %186 : vector<64x32xf32>
    %188 = vector.broadcast %167 : vector<1x32xf32> to vector<64x32xf32>
    %189 = arith.mulf %187, %188 : vector<64x32xf32>
    %190 = vector.broadcast %169 : vector<1x32xf32> to vector<64x32xf32>
    %191 = arith.addf %189, %190 : vector<64x32xf32>
    %c0_62 = arith.constant 0 : index
    %c0_63 = arith.constant 0 : index
    %c0_64 = arith.constant 0 : index
    %192 = vector.load %arg10[%c0_62, %c0_63, %c0_64] : memref<2x32x128xf32, #tpu.memory_space<vmem>>, vector<1x32x128xf32>
    %193 = vector.shape_cast %192 : vector<1x32x128xf32> to vector<32x128xf32>
    %cst_65 = arith.constant dense<0.000000e+00> : vector<64x128xf32>
    %194 = tpu.matmul %191, %193, %cst_65 {dimension_numbers = #tpu.dot_dimension_numbers<[1], [0], [0], [1], [0, 0, 1, 1], [], []>} : vector<64x32xf32>, vector<32x128xf32>, vector<64x128xf32> -> vector<64x128xf32>
    %c0_66 = arith.constant 0 : index
    %c0_67 = arith.constant 0 : index
    %c0_68 = arith.constant 0 : index
    %195 = vector.load %arg11[%c0_66, %c0_67, %c0_68] : memref<2x1x128xf32, #tpu.memory_space<vmem>>, vector<1x1x128xf32>
    %196 = vector.shape_cast %195 : vector<1x1x128xf32> to vector<1x128xf32>
    %197 = vector.broadcast %196 : vector<1x128xf32> to vector<64x128xf32>
    %198 = arith.addf %194, %197 : vector<64x128xf32>
    %199 = arith.mulf %198, %198 : vector<64x128xf32>
    %200 = arith.mulf %198, %199 : vector<64x128xf32>
    %cst_69 = arith.constant 4.471500e-02 : f32
    %201 = vector.broadcast %cst_69 : f32 to vector<64x128xf32>
    %202 = arith.mulf %201, %200 : vector<64x128xf32>
    %203 = arith.addf %198, %202 : vector<64x128xf32>
    %cst_70 = arith.constant 0.797884583 : f32
    %204 = vector.broadcast %cst_70 : f32 to vector<64x128xf32>
    %205 = arith.mulf %204, %203 : vector<64x128xf32>
    %206 = math.tanh %205 : vector<64x128xf32>
    %cst_71 = arith.constant 1.000000e+00 : f32
    %207 = vector.broadcast %cst_71 : f32 to vector<64x128xf32>
    %208 = arith.addf %207, %206 : vector<64x128xf32>
    %cst_72 = arith.constant 5.000000e-01 : f32
    %209 = vector.broadcast %cst_72 : f32 to vector<64x128xf32>
    %210 = arith.mulf %209, %208 : vector<64x128xf32>
    %211 = arith.mulf %198, %210 : vector<64x128xf32>
    %c0_73 = arith.constant 0 : index
    %c0_74 = arith.constant 0 : index
    %c0_75 = arith.constant 0 : index
    %212 = vector.load %arg12[%c0_73, %c0_74, %c0_75] : memref<2x128x32xf32, #tpu.memory_space<vmem>>, vector<1x128x32xf32>
    %213 = vector.shape_cast %212 : vector<1x128x32xf32> to vector<128x32xf32>
    %cst_76 = arith.constant dense<0.000000e+00> : vector<64x32xf32>
    %214 = tpu.matmul %211, %213, %cst_76 {dimension_numbers = #tpu.dot_dimension_numbers<[1], [0], [0], [1], [0, 0, 1, 1], [], []>} : vector<64x128xf32>, vector<128x32xf32>, vector<64x32xf32> -> vector<64x32xf32>
    %215 = arith.addf %165, %214 : vector<64x32xf32>
    %c0_77 = arith.constant 0 : index
    %c0_78 = arith.constant 0 : index
    %c0_79 = arith.constant 0 : index
    %216 = vector.load %arg13[%c0_77, %c0_78, %c0_79] : memref<2x1x32xf32, #tpu.memory_space<vmem>>, vector<1x1x32xf32>
    %217 = vector.shape_cast %216 : vector<1x1x32xf32> to vector<1x32xf32>
    %218 = vector.broadcast %217 : vector<1x32xf32> to vector<64x32xf32>
    %219 = arith.addf %215, %218 : vector<64x32xf32>
    %220 = vector.extract_strided_slice %219 {offsets = [0, 0], sizes = [4, 32], strides = [1, 1]} : vector<64x32xf32> to vector<4x32xf32>
    %221 = vector.extract_strided_slice %219 {offsets = [16, 0], sizes = [4, 32], strides = [1, 1]} : vector<64x32xf32> to vector<4x32xf32>
    %222 = vector.extract_strided_slice %219 {offsets = [4, 0], sizes = [4, 32], strides = [1, 1]} : vector<64x32xf32> to vector<4x32xf32>
    %223 = vector.extract_strided_slice %219 {offsets = [20, 0], sizes = [4, 32], strides = [1, 1]} : vector<64x32xf32> to vector<4x32xf32>
    %224 = vector.extract_strided_slice %219 {offsets = [8, 0], sizes = [4, 32], strides = [1, 1]} : vector<64x32xf32> to vector<4x32xf32>
    %225 = vector.extract_strided_slice %219 {offsets = [24, 0], sizes = [4, 32], strides = [1, 1]} : vector<64x32xf32> to vector<4x32xf32>
    %226 = vector.extract_strided_slice %219 {offsets = [12, 0], sizes = [4, 32], strides = [1, 1]} : vector<64x32xf32> to vector<4x32xf32>
    %227 = vector.extract_strided_slice %219 {offsets = [28, 0], sizes = [4, 32], strides = [1, 1]} : vector<64x32xf32> to vector<4x32xf32>
    %228 = vector.extract_strided_slice %219 {offsets = [32, 0], sizes = [4, 32], strides = [1, 1]} : vector<64x32xf32> to vector<4x32xf32>
    %229 = vector.extract_strided_slice %219 {offsets = [48, 0], sizes = [4, 32], strides = [1, 1]} : vector<64x32xf32> to vector<4x32xf32>
    %230 = vector.extract_strided_slice %219 {offsets = [36, 0], sizes = [4, 32], strides = [1, 1]} : vector<64x32xf32> to vector<4x32xf32>
    %231 = vector.extract_strided_slice %219 {offsets = [52, 0], sizes = [4, 32], strides = [1, 1]} : vector<64x32xf32> to vector<4x32xf32>
    %232 = vector.extract_strided_slice %219 {offsets = [40, 0], sizes = [4, 32], strides = [1, 1]} : vector<64x32xf32> to vector<4x32xf32>
    %233 = vector.extract_strided_slice %219 {offsets = [56, 0], sizes = [4, 32], strides = [1, 1]} : vector<64x32xf32> to vector<4x32xf32>
    %234 = vector.extract_strided_slice %219 {offsets = [44, 0], sizes = [4, 32], strides = [1, 1]} : vector<64x32xf32> to vector<4x32xf32>
    %235 = vector.extract_strided_slice %219 {offsets = [60, 0], sizes = [4, 32], strides = [1, 1]} : vector<64x32xf32> to vector<4x32xf32>
    %236 = tpu.concatenate %220, %221, %222, %223, %224, %225, %226, %227, %228, %229, %230, %231, %232, %233, %234, %235 in 0 : vector<4x32xf32>, vector<4x32xf32>, vector<4x32xf32>, vector<4x32xf32>, vector<4x32xf32>, vector<4x32xf32>, vector<4x32xf32>, vector<4x32xf32>, vector<4x32xf32>, vector<4x32xf32>, vector<4x32xf32>, vector<4x32xf32>, vector<4x32xf32>, vector<4x32xf32>, vector<4x32xf32>, vector<4x32xf32> -> vector<64x32xf32>
    %237 = vector.shape_cast %236 : vector<64x32xf32> to vector<8x8x32xf32>
    %238 = vector.extract_strided_slice %237 {offsets = [2, 0, 0], sizes = [6, 8, 32], strides = [1, 1, 1]} : vector<8x8x32xf32> to vector<6x8x32xf32>
    %239 = vector.extract_strided_slice %237 {offsets = [0, 0, 0], sizes = [2, 8, 32], strides = [1, 1, 1]} : vector<8x8x32xf32> to vector<2x8x32xf32>
    %240 = tpu.concatenate %238, %239 in 0 : vector<6x8x32xf32>, vector<2x8x32xf32> -> vector<8x8x32xf32>
    %241 = vector.extract_strided_slice %240 {offsets = [0, 2, 0], sizes = [8, 6, 32], strides = [1, 1, 1]} : vector<8x8x32xf32> to vector<8x6x32xf32>
    %242 = vector.extract_strided_slice %240 {offsets = [0, 0, 0], sizes = [8, 2, 32], strides = [1, 1, 1]} : vector<8x8x32xf32> to vector<8x2x32xf32>
    %243 = tpu.concatenate %241, %242 in 1 : vector<8x6x32xf32>, vector<8x2x32xf32> -> vector<8x8x32xf32>
    %244 = vector.extract_strided_slice %243 {offsets = [0, 0, 0], sizes = [4, 4, 32], strides = [1, 1, 1]} : vector<8x8x32xf32> to vector<4x4x32xf32>
    %245 = vector.extract_strided_slice %244 {offsets = [0, 0, 0], sizes = [1, 4, 32], strides = [1, 1, 1]} : vector<4x4x32xf32> to vector<1x4x32xf32>
    %246 = vector.shape_cast %245 : vector<1x4x32xf32> to vector<4x32xf32>
    %247 = vector.extract_strided_slice %244 {offsets = [1, 0, 0], sizes = [1, 4, 32], strides = [1, 1, 1]} : vector<4x4x32xf32> to vector<1x4x32xf32>
    %248 = vector.shape_cast %247 : vector<1x4x32xf32> to vector<4x32xf32>
    %249 = vector.extract_strided_slice %244 {offsets = [2, 0, 0], sizes = [1, 4, 32], strides = [1, 1, 1]} : vector<4x4x32xf32> to vector<1x4x32xf32>
    %250 = vector.shape_cast %249 : vector<1x4x32xf32> to vector<4x32xf32>
    %251 = vector.extract_strided_slice %244 {offsets = [3, 0, 0], sizes = [1, 4, 32], strides = [1, 1, 1]} : vector<4x4x32xf32> to vector<1x4x32xf32>
    %252 = vector.shape_cast %251 : vector<1x4x32xf32> to vector<4x32xf32>
    %253 = vector.extract_strided_slice %243 {offsets = [0, 4, 0], sizes = [4, 4, 32], strides = [1, 1, 1]} : vector<8x8x32xf32> to vector<4x4x32xf32>
    %254 = vector.extract_strided_slice %253 {offsets = [0, 0, 0], sizes = [1, 4, 32], strides = [1, 1, 1]} : vector<4x4x32xf32> to vector<1x4x32xf32>
    %255 = vector.shape_cast %254 : vector<1x4x32xf32> to vector<4x32xf32>
    %256 = vector.extract_strided_slice %253 {offsets = [1, 0, 0], sizes = [1, 4, 32], strides = [1, 1, 1]} : vector<4x4x32xf32> to vector<1x4x32xf32>
    %257 = vector.shape_cast %256 : vector<1x4x32xf32> to vector<4x32xf32>
    %258 = vector.extract_strided_slice %253 {offsets = [2, 0, 0], sizes = [1, 4, 32], strides = [1, 1, 1]} : vector<4x4x32xf32> to vector<1x4x32xf32>
    %259 = vector.shape_cast %258 : vector<1x4x32xf32> to vector<4x32xf32>
    %260 = vector.extract_strided_slice %253 {offsets = [3, 0, 0], sizes = [1, 4, 32], strides = [1, 1, 1]} : vector<4x4x32xf32> to vector<1x4x32xf32>
    %261 = vector.shape_cast %260 : vector<1x4x32xf32> to vector<4x32xf32>
    %262 = vector.extract_strided_slice %243 {offsets = [4, 0, 0], sizes = [4, 4, 32], strides = [1, 1, 1]} : vector<8x8x32xf32> to vector<4x4x32xf32>
    %263 = vector.extract_strided_slice %262 {offsets = [0, 0, 0], sizes = [1, 4, 32], strides = [1, 1, 1]} : vector<4x4x32xf32> to vector<1x4x32xf32>
    %264 = vector.shape_cast %263 : vector<1x4x32xf32> to vector<4x32xf32>
    %265 = vector.extract_strided_slice %262 {offsets = [1, 0, 0], sizes = [1, 4, 32], strides = [1, 1, 1]} : vector<4x4x32xf32> to vector<1x4x32xf32>
    %266 = vector.shape_cast %265 : vector<1x4x32xf32> to vector<4x32xf32>
    %267 = vector.extract_strided_slice %262 {offsets = [2, 0, 0], sizes = [1, 4, 32], strides = [1, 1, 1]} : vector<4x4x32xf32> to vector<1x4x32xf32>
    %268 = vector.shape_cast %267 : vector<1x4x32xf32> to vector<4x32xf32>
    %269 = vector.extract_strided_slice %262 {offsets = [3, 0, 0], sizes = [1, 4, 32], strides = [1, 1, 1]} : vector<4x4x32xf32> to vector<1x4x32xf32>
    %270 = vector.shape_cast %269 : vector<1x4x32xf32> to vector<4x32xf32>
    %271 = vector.extract_strided_slice %243 {offsets = [4, 4, 0], sizes = [4, 4, 32], strides = [1, 1, 1]} : vector<8x8x32xf32> to vector<4x4x32xf32>
    %272 = vector.extract_strided_slice %271 {offsets = [0, 0, 0], sizes = [1, 4, 32], strides = [1, 1, 1]} : vector<4x4x32xf32> to vector<1x4x32xf32>
    %273 = vector.shape_cast %272 : vector<1x4x32xf32> to vector<4x32xf32>
    %274 = vector.extract_strided_slice %271 {offsets = [1, 0, 0], sizes = [1, 4, 32], strides = [1, 1, 1]} : vector<4x4x32xf32> to vector<1x4x32xf32>
    %275 = vector.shape_cast %274 : vector<1x4x32xf32> to vector<4x32xf32>
    %276 = vector.extract_strided_slice %271 {offsets = [2, 0, 0], sizes = [1, 4, 32], strides = [1, 1, 1]} : vector<4x4x32xf32> to vector<1x4x32xf32>
    %277 = vector.shape_cast %276 : vector<1x4x32xf32> to vector<4x32xf32>
    %278 = vector.extract_strided_slice %271 {offsets = [3, 0, 0], sizes = [1, 4, 32], strides = [1, 1, 1]} : vector<4x4x32xf32> to vector<1x4x32xf32>
    %279 = vector.shape_cast %278 : vector<1x4x32xf32> to vector<4x32xf32>
    %280 = tpu.concatenate %246, %248, %250, %252, %255, %257, %259, %261, %264, %266, %268, %270, %273, %275, %277, %279 in 0 : vector<4x32xf32>, vector<4x32xf32>, vector<4x32xf32>, vector<4x32xf32>, vector<4x32xf32>, vector<4x32xf32>, vector<4x32xf32>, vector<4x32xf32>, vector<4x32xf32>, vector<4x32xf32>, vector<4x32xf32>, vector<4x32xf32>, vector<4x32xf32>, vector<4x32xf32>, vector<4x32xf32>, vector<4x32xf32> -> vector<64x32xf32>
    %c1 = arith.constant 1 : index
    %c0_80 = arith.constant 0 : index
    %c0_81 = arith.constant 0 : index
    %281 = vector.load %arg2[%c1, %c0_80, %c0_81] : memref<2x1x32xf32, #tpu.memory_space<vmem>>, vector<1x1x32xf32>
    %282 = vector.shape_cast %281 : vector<1x1x32xf32> to vector<1x32xf32>
    %c1_82 = arith.constant 1 : index
    %c0_83 = arith.constant 0 : index
    %c0_84 = arith.constant 0 : index
    %283 = vector.load %arg3[%c1_82, %c0_83, %c0_84] : memref<2x1x32xf32, #tpu.memory_space<vmem>>, vector<1x1x32xf32>
    %284 = vector.shape_cast %283 : vector<1x1x32xf32> to vector<1x32xf32>
    %cst_85 = arith.constant dense<0.000000e+00> : vector<64xf32>
    %285 = vector.multi_reduction <add>, %280, %cst_85 [1] : vector<64x32xf32> to vector<64xf32>
    %286 = vector.shape_cast %285 : vector<64xf32> to vector<64x1xf32>
    %cst_86 = arith.constant 3.200000e+01 : f32
    %287 = vector.broadcast %cst_86 : f32 to vector<64x1xf32>
    %288 = arith.divf %286, %287 : vector<64x1xf32>
    %289 = vector.broadcast %288 : vector<64x1xf32> to vector<64x32xf32>
    %290 = arith.subf %280, %289 : vector<64x32xf32>
    %291 = arith.mulf %290, %290 : vector<64x32xf32>
    %cst_87 = arith.constant dense<0.000000e+00> : vector<64xf32>
    %292 = vector.multi_reduction <add>, %291, %cst_87 [1] : vector<64x32xf32> to vector<64xf32>
    %293 = vector.shape_cast %292 : vector<64xf32> to vector<64x1xf32>
    %cst_88 = arith.constant 3.200000e+01 : f32
    %294 = vector.broadcast %cst_88 : f32 to vector<64x1xf32>
    %295 = arith.divf %293, %294 : vector<64x1xf32>
    %296 = vector.broadcast %288 : vector<64x1xf32> to vector<64x32xf32>
    %297 = arith.subf %280, %296 : vector<64x32xf32>
    %cst_89 = arith.constant 9.99999974E-6 : f32
    %298 = vector.broadcast %cst_89 : f32 to vector<64x1xf32>
    %299 = arith.addf %295, %298 : vector<64x1xf32>
    %300 = math.rsqrt %299 : vector<64x1xf32>
    %301 = vector.broadcast %300 : vector<64x1xf32> to vector<64x32xf32>
    %302 = arith.mulf %297, %301 : vector<64x32xf32>
    %303 = vector.broadcast %282 : vector<1x32xf32> to vector<64x32xf32>
    %304 = arith.mulf %302, %303 : vector<64x32xf32>
    %305 = vector.broadcast %284 : vector<1x32xf32> to vector<64x32xf32>
    %306 = arith.addf %304, %305 : vector<64x32xf32>
    %c1_90 = arith.constant 1 : index
    %c0_91 = arith.constant 0 : index
    %c0_92 = arith.constant 0 : index
    %307 = vector.load %arg4[%c1_90, %c0_91, %c0_92] : memref<2x32x96xf32, #tpu.memory_space<vmem>>, vector<1x32x96xf32>
    %308 = vector.shape_cast %307 : vector<1x32x96xf32> to vector<32x96xf32>
    %cst_93 = arith.constant dense<0.000000e+00> : vector<64x96xf32>
    %309 = tpu.matmul %306, %308, %cst_93 {dimension_numbers = #tpu.dot_dimension_numbers<[1], [0], [0], [1], [0, 0, 1, 1], [], []>} : vector<64x32xf32>, vector<32x96xf32>, vector<64x96xf32> -> vector<64x96xf32>
    %c1_94 = arith.constant 1 : index
    %c0_95 = arith.constant 0 : index
    %c0_96 = arith.constant 0 : index
    %310 = vector.load %arg5[%c1_94, %c0_95, %c0_96] : memref<2x1x96xf32, #tpu.memory_space<vmem>>, vector<1x1x96xf32>
    %311 = vector.shape_cast %310 : vector<1x1x96xf32> to vector<1x96xf32>
    %312 = vector.broadcast %311 : vector<1x96xf32> to vector<64x96xf32>
    %313 = arith.addf %309, %312 : vector<64x96xf32>
    %314 = vector.extract_strided_slice %313 {offsets = [0, 0], sizes = [64, 32], strides = [1, 1]} : vector<64x96xf32> to vector<64x32xf32>
    %315 = vector.shape_cast %314 : vector<64x32xf32> to vector<4x16x32xf32>
    %316 = vector.extract_strided_slice %313 {offsets = [0, 32], sizes = [64, 32], strides = [1, 1]} : vector<64x96xf32> to vector<64x32xf32>
    %317 = vector.shape_cast %316 : vector<64x32xf32> to vector<4x16x32xf32>
    %318 = vector.extract_strided_slice %313 {offsets = [0, 64], sizes = [64, 32], strides = [1, 1]} : vector<64x96xf32> to vector<64x32xf32>
    %319 = vector.shape_cast %318 : vector<64x32xf32> to vector<4x16x32xf32>
    %c1_97 = arith.constant 1 : index
    %c0_98 = arith.constant 0 : index
    %c0_99 = arith.constant 0 : index
    %320 = vector.load %arg6[%c1_97, %c0_98, %c0_99] : memref<2x32x32xf32, #tpu.memory_space<vmem>>, vector<1x32x32xf32>
    %321 = vector.shape_cast %320 : vector<1x32x32xf32> to vector<32x32xf32>
    %cst_100 = arith.constant 0.000000e+00 : f32
    %322 = vector.broadcast %cst_100 : f32 to vector<64x32xf32>
    %323 = vector.extract_strided_slice %315 {offsets = [0, 0, 0], sizes = [4, 16, 8], strides = [1, 1, 1]} : vector<4x16x32xf32> to vector<4x16x8xf32>
    %324 = vector.extract_strided_slice %317 {offsets = [0, 0, 0], sizes = [4, 16, 8], strides = [1, 1, 1]} : vector<4x16x32xf32> to vector<4x16x8xf32>
    %325 = vector.extract_strided_slice %319 {offsets = [0, 0, 0], sizes = [4, 16, 8], strides = [1, 1, 1]} : vector<4x16x32xf32> to vector<4x16x8xf32>
    "tpu.trace_start"() <{level = 10 : i32, message = "bqd,bkd->bqk"}> : () -> ()
    %cst_101 = arith.constant dense<0.000000e+00> : vector<4x16x16xf32>
    %326 = tpu.matmul %323, %324, %cst_101 {dimension_numbers = #tpu.dot_dimension_numbers<[2], [2], [1], [1], [0, 0, 0, 1, 1, 1], [0], [0]>} : vector<4x16x8xf32>, vector<4x16x8xf32>, vector<4x16x16xf32> -> vector<4x16x16xf32>
    "tpu.trace_stop"() : () -> ()
    %cst_102 = arith.constant 0.353553385 : f32
    %327 = vector.broadcast %cst_102 : f32 to vector<4x16x16xf32>
    %328 = arith.mulf %326, %327 : vector<4x16x16xf32>
    %cst_103 = arith.constant dense<0xFF800000> : vector<4x16xf32>
    %329 = vector.multi_reduction <maximumf>, %328, %cst_103 [2] : vector<4x16x16xf32> to vector<4x16xf32>
    %330 = vector.shape_cast %329 : vector<4x16xf32> to vector<4x16x1xf32>
    %331 = vector.broadcast %330 : vector<4x16x1xf32> to vector<4x16x16xf32>
    %332 = arith.subf %328, %331 : vector<4x16x16xf32>
    %333 = math.exp %332 : vector<4x16x16xf32>
    %cst_104 = arith.constant dense<0.000000e+00> : vector<4x16xf32>
    %334 = vector.multi_reduction <add>, %333, %cst_104 [2] : vector<4x16x16xf32> to vector<4x16xf32>
    %335 = vector.shape_cast %334 : vector<4x16xf32> to vector<4x16x1xf32>
    %336 = vector.broadcast %335 : vector<4x16x1xf32> to vector<4x16x16xf32>
    %337 = arith.divf %333, %336 : vector<4x16x16xf32>
    "tpu.trace_start"() <{level = 10 : i32, message = "bqk,bkd->bqd"}> : () -> ()
    %cst_105 = arith.constant dense<0.000000e+00> : vector<4x16x8xf32>
    %338 = tpu.matmul %337, %325, %cst_105 {dimension_numbers = #tpu.dot_dimension_numbers<[2], [1], [1], [2], [0, 0, 0, 1, 1, 2], [0], [0]>} : vector<4x16x16xf32>, vector<4x16x8xf32>, vector<4x16x8xf32> -> vector<4x16x8xf32>
    "tpu.trace_stop"() : () -> ()
    %339 = vector.shape_cast %338 : vector<4x16x8xf32> to vector<64x8xf32>
    %340 = vector.extract_strided_slice %321 {offsets = [0, 0], sizes = [8, 32], strides = [1, 1]} : vector<32x32xf32> to vector<8x32xf32>
    %cst_106 = arith.constant dense<0.000000e+00> : vector<64x32xf32>
    %341 = tpu.matmul %339, %340, %cst_106 {dimension_numbers = #tpu.dot_dimension_numbers<[1], [0], [0], [1], [0, 0, 1, 1], [], []>} : vector<64x8xf32>, vector<8x32xf32>, vector<64x32xf32> -> vector<64x32xf32>
    %342 = arith.addf %322, %341 : vector<64x32xf32>
    %343 = vector.extract_strided_slice %315 {offsets = [0, 0, 8], sizes = [4, 16, 8], strides = [1, 1, 1]} : vector<4x16x32xf32> to vector<4x16x8xf32>
    %344 = vector.extract_strided_slice %317 {offsets = [0, 0, 8], sizes = [4, 16, 8], strides = [1, 1, 1]} : vector<4x16x32xf32> to vector<4x16x8xf32>
    %345 = vector.extract_strided_slice %319 {offsets = [0, 0, 8], sizes = [4, 16, 8], strides = [1, 1, 1]} : vector<4x16x32xf32> to vector<4x16x8xf32>
    "tpu.trace_start"() <{level = 10 : i32, message = "bqd,bkd->bqk"}> : () -> ()
    %cst_107 = arith.constant dense<0.000000e+00> : vector<4x16x16xf32>
    %346 = tpu.matmul %343, %344, %cst_107 {dimension_numbers = #tpu.dot_dimension_numbers<[2], [2], [1], [1], [0, 0, 0, 1, 1, 1], [0], [0]>} : vector<4x16x8xf32>, vector<4x16x8xf32>, vector<4x16x16xf32> -> vector<4x16x16xf32>
    "tpu.trace_stop"() : () -> ()
    %cst_108 = arith.constant 0.353553385 : f32
    %347 = vector.broadcast %cst_108 : f32 to vector<4x16x16xf32>
    %348 = arith.mulf %346, %347 : vector<4x16x16xf32>
    %cst_109 = arith.constant dense<0xFF800000> : vector<4x16xf32>
    %349 = vector.multi_reduction <maximumf>, %348, %cst_109 [2] : vector<4x16x16xf32> to vector<4x16xf32>
    %350 = vector.shape_cast %349 : vector<4x16xf32> to vector<4x16x1xf32>
    %351 = vector.broadcast %350 : vector<4x16x1xf32> to vector<4x16x16xf32>
    %352 = arith.subf %348, %351 : vector<4x16x16xf32>
    %353 = math.exp %352 : vector<4x16x16xf32>
    %cst_110 = arith.constant dense<0.000000e+00> : vector<4x16xf32>
    %354 = vector.multi_reduction <add>, %353, %cst_110 [2] : vector<4x16x16xf32> to vector<4x16xf32>
    %355 = vector.shape_cast %354 : vector<4x16xf32> to vector<4x16x1xf32>
    %356 = vector.broadcast %355 : vector<4x16x1xf32> to vector<4x16x16xf32>
    %357 = arith.divf %353, %356 : vector<4x16x16xf32>
    "tpu.trace_start"() <{level = 10 : i32, message = "bqk,bkd->bqd"}> : () -> ()
    %cst_111 = arith.constant dense<0.000000e+00> : vector<4x16x8xf32>
    %358 = tpu.matmul %357, %345, %cst_111 {dimension_numbers = #tpu.dot_dimension_numbers<[2], [1], [1], [2], [0, 0, 0, 1, 1, 2], [0], [0]>} : vector<4x16x16xf32>, vector<4x16x8xf32>, vector<4x16x8xf32> -> vector<4x16x8xf32>
    "tpu.trace_stop"() : () -> ()
    %359 = vector.shape_cast %358 : vector<4x16x8xf32> to vector<64x8xf32>
    %360 = vector.extract_strided_slice %321 {offsets = [8, 0], sizes = [8, 32], strides = [1, 1]} : vector<32x32xf32> to vector<8x32xf32>
    %cst_112 = arith.constant dense<0.000000e+00> : vector<64x32xf32>
    %361 = tpu.matmul %359, %360, %cst_112 {dimension_numbers = #tpu.dot_dimension_numbers<[1], [0], [0], [1], [0, 0, 1, 1], [], []>} : vector<64x8xf32>, vector<8x32xf32>, vector<64x32xf32> -> vector<64x32xf32>
    %362 = arith.addf %342, %361 : vector<64x32xf32>
    %363 = vector.extract_strided_slice %315 {offsets = [0, 0, 16], sizes = [4, 16, 8], strides = [1, 1, 1]} : vector<4x16x32xf32> to vector<4x16x8xf32>
    %364 = vector.extract_strided_slice %317 {offsets = [0, 0, 16], sizes = [4, 16, 8], strides = [1, 1, 1]} : vector<4x16x32xf32> to vector<4x16x8xf32>
    %365 = vector.extract_strided_slice %319 {offsets = [0, 0, 16], sizes = [4, 16, 8], strides = [1, 1, 1]} : vector<4x16x32xf32> to vector<4x16x8xf32>
    "tpu.trace_start"() <{level = 10 : i32, message = "bqd,bkd->bqk"}> : () -> ()
    %cst_113 = arith.constant dense<0.000000e+00> : vector<4x16x16xf32>
    %366 = tpu.matmul %363, %364, %cst_113 {dimension_numbers = #tpu.dot_dimension_numbers<[2], [2], [1], [1], [0, 0, 0, 1, 1, 1], [0], [0]>} : vector<4x16x8xf32>, vector<4x16x8xf32>, vector<4x16x16xf32> -> vector<4x16x16xf32>
    "tpu.trace_stop"() : () -> ()
    %cst_114 = arith.constant 0.353553385 : f32
    %367 = vector.broadcast %cst_114 : f32 to vector<4x16x16xf32>
    %368 = arith.mulf %366, %367 : vector<4x16x16xf32>
    %cst_115 = arith.constant dense<0xFF800000> : vector<4x16xf32>
    %369 = vector.multi_reduction <maximumf>, %368, %cst_115 [2] : vector<4x16x16xf32> to vector<4x16xf32>
    %370 = vector.shape_cast %369 : vector<4x16xf32> to vector<4x16x1xf32>
    %371 = vector.broadcast %370 : vector<4x16x1xf32> to vector<4x16x16xf32>
    %372 = arith.subf %368, %371 : vector<4x16x16xf32>
    %373 = math.exp %372 : vector<4x16x16xf32>
    %cst_116 = arith.constant dense<0.000000e+00> : vector<4x16xf32>
    %374 = vector.multi_reduction <add>, %373, %cst_116 [2] : vector<4x16x16xf32> to vector<4x16xf32>
    %375 = vector.shape_cast %374 : vector<4x16xf32> to vector<4x16x1xf32>
    %376 = vector.broadcast %375 : vector<4x16x1xf32> to vector<4x16x16xf32>
    %377 = arith.divf %373, %376 : vector<4x16x16xf32>
    "tpu.trace_start"() <{level = 10 : i32, message = "bqk,bkd->bqd"}> : () -> ()
    %cst_117 = arith.constant dense<0.000000e+00> : vector<4x16x8xf32>
    %378 = tpu.matmul %377, %365, %cst_117 {dimension_numbers = #tpu.dot_dimension_numbers<[2], [1], [1], [2], [0, 0, 0, 1, 1, 2], [0], [0]>} : vector<4x16x16xf32>, vector<4x16x8xf32>, vector<4x16x8xf32> -> vector<4x16x8xf32>
    "tpu.trace_stop"() : () -> ()
    %379 = vector.shape_cast %378 : vector<4x16x8xf32> to vector<64x8xf32>
    %380 = vector.extract_strided_slice %321 {offsets = [16, 0], sizes = [8, 32], strides = [1, 1]} : vector<32x32xf32> to vector<8x32xf32>
    %cst_118 = arith.constant dense<0.000000e+00> : vector<64x32xf32>
    %381 = tpu.matmul %379, %380, %cst_118 {dimension_numbers = #tpu.dot_dimension_numbers<[1], [0], [0], [1], [0, 0, 1, 1], [], []>} : vector<64x8xf32>, vector<8x32xf32>, vector<64x32xf32> -> vector<64x32xf32>
    %382 = arith.addf %362, %381 : vector<64x32xf32>
    %383 = vector.extract_strided_slice %315 {offsets = [0, 0, 24], sizes = [4, 16, 8], strides = [1, 1, 1]} : vector<4x16x32xf32> to vector<4x16x8xf32>
    %384 = vector.extract_strided_slice %317 {offsets = [0, 0, 24], sizes = [4, 16, 8], strides = [1, 1, 1]} : vector<4x16x32xf32> to vector<4x16x8xf32>
    %385 = vector.extract_strided_slice %319 {offsets = [0, 0, 24], sizes = [4, 16, 8], strides = [1, 1, 1]} : vector<4x16x32xf32> to vector<4x16x8xf32>
    "tpu.trace_start"() <{level = 10 : i32, message = "bqd,bkd->bqk"}> : () -> ()
    %cst_119 = arith.constant dense<0.000000e+00> : vector<4x16x16xf32>
    %386 = tpu.matmul %383, %384, %cst_119 {dimension_numbers = #tpu.dot_dimension_numbers<[2], [2], [1], [1], [0, 0, 0, 1, 1, 1], [0], [0]>} : vector<4x16x8xf32>, vector<4x16x8xf32>, vector<4x16x16xf32> -> vector<4x16x16xf32>
    "tpu.trace_stop"() : () -> ()
    %cst_120 = arith.constant 0.353553385 : f32
    %387 = vector.broadcast %cst_120 : f32 to vector<4x16x16xf32>
    %388 = arith.mulf %386, %387 : vector<4x16x16xf32>
    %cst_121 = arith.constant dense<0xFF800000> : vector<4x16xf32>
    %389 = vector.multi_reduction <maximumf>, %388, %cst_121 [2] : vector<4x16x16xf32> to vector<4x16xf32>
    %390 = vector.shape_cast %389 : vector<4x16xf32> to vector<4x16x1xf32>
    %391 = vector.broadcast %390 : vector<4x16x1xf32> to vector<4x16x16xf32>
    %392 = arith.subf %388, %391 : vector<4x16x16xf32>
    %393 = math.exp %392 : vector<4x16x16xf32>
    %cst_122 = arith.constant dense<0.000000e+00> : vector<4x16xf32>
    %394 = vector.multi_reduction <add>, %393, %cst_122 [2] : vector<4x16x16xf32> to vector<4x16xf32>
    %395 = vector.shape_cast %394 : vector<4x16xf32> to vector<4x16x1xf32>
    %396 = vector.broadcast %395 : vector<4x16x1xf32> to vector<4x16x16xf32>
    %397 = arith.divf %393, %396 : vector<4x16x16xf32>
    "tpu.trace_start"() <{level = 10 : i32, message = "bqk,bkd->bqd"}> : () -> ()
    %cst_123 = arith.constant dense<0.000000e+00> : vector<4x16x8xf32>
    %398 = tpu.matmul %397, %385, %cst_123 {dimension_numbers = #tpu.dot_dimension_numbers<[2], [1], [1], [2], [0, 0, 0, 1, 1, 2], [0], [0]>} : vector<4x16x16xf32>, vector<4x16x8xf32>, vector<4x16x8xf32> -> vector<4x16x8xf32>
    "tpu.trace_stop"() : () -> ()
    %399 = vector.shape_cast %398 : vector<4x16x8xf32> to vector<64x8xf32>
    %400 = vector.extract_strided_slice %321 {offsets = [24, 0], sizes = [8, 32], strides = [1, 1]} : vector<32x32xf32> to vector<8x32xf32>
    %cst_124 = arith.constant dense<0.000000e+00> : vector<64x32xf32>
    %401 = tpu.matmul %399, %400, %cst_124 {dimension_numbers = #tpu.dot_dimension_numbers<[1], [0], [0], [1], [0, 0, 1, 1], [], []>} : vector<64x8xf32>, vector<8x32xf32>, vector<64x32xf32> -> vector<64x32xf32>
    %402 = arith.addf %382, %401 : vector<64x32xf32>
    %403 = arith.addf %280, %402 : vector<64x32xf32>
    %c1_125 = arith.constant 1 : index
    %c0_126 = arith.constant 0 : index
    %c0_127 = arith.constant 0 : index
    %404 = vector.load %arg7[%c1_125, %c0_126, %c0_127] : memref<2x1x32xf32, #tpu.memory_space<vmem>>, vector<1x1x32xf32>
    %405 = vector.shape_cast %404 : vector<1x1x32xf32> to vector<1x32xf32>
    %406 = vector.broadcast %405 : vector<1x32xf32> to vector<64x32xf32>
    %407 = arith.addf %403, %406 : vector<64x32xf32>
    %c1_128 = arith.constant 1 : index
    %c0_129 = arith.constant 0 : index
    %c0_130 = arith.constant 0 : index
    %408 = vector.load %arg8[%c1_128, %c0_129, %c0_130] : memref<2x1x32xf32, #tpu.memory_space<vmem>>, vector<1x1x32xf32>
    %409 = vector.shape_cast %408 : vector<1x1x32xf32> to vector<1x32xf32>
    %c1_131 = arith.constant 1 : index
    %c0_132 = arith.constant 0 : index
    %c0_133 = arith.constant 0 : index
    %410 = vector.load %arg9[%c1_131, %c0_132, %c0_133] : memref<2x1x32xf32, #tpu.memory_space<vmem>>, vector<1x1x32xf32>
    %411 = vector.shape_cast %410 : vector<1x1x32xf32> to vector<1x32xf32>
    %cst_134 = arith.constant dense<0.000000e+00> : vector<64xf32>
    %412 = vector.multi_reduction <add>, %407, %cst_134 [1] : vector<64x32xf32> to vector<64xf32>
    %413 = vector.shape_cast %412 : vector<64xf32> to vector<64x1xf32>
    %cst_135 = arith.constant 3.200000e+01 : f32
    %414 = vector.broadcast %cst_135 : f32 to vector<64x1xf32>
    %415 = arith.divf %413, %414 : vector<64x1xf32>
    %416 = vector.broadcast %415 : vector<64x1xf32> to vector<64x32xf32>
    %417 = arith.subf %407, %416 : vector<64x32xf32>
    %418 = arith.mulf %417, %417 : vector<64x32xf32>
    %cst_136 = arith.constant dense<0.000000e+00> : vector<64xf32>
    %419 = vector.multi_reduction <add>, %418, %cst_136 [1] : vector<64x32xf32> to vector<64xf32>
    %420 = vector.shape_cast %419 : vector<64xf32> to vector<64x1xf32>
    %cst_137 = arith.constant 3.200000e+01 : f32
    %421 = vector.broadcast %cst_137 : f32 to vector<64x1xf32>
    %422 = arith.divf %420, %421 : vector<64x1xf32>
    %423 = vector.broadcast %415 : vector<64x1xf32> to vector<64x32xf32>
    %424 = arith.subf %407, %423 : vector<64x32xf32>
    %cst_138 = arith.constant 9.99999974E-6 : f32
    %425 = vector.broadcast %cst_138 : f32 to vector<64x1xf32>
    %426 = arith.addf %422, %425 : vector<64x1xf32>
    %427 = math.rsqrt %426 : vector<64x1xf32>
    %428 = vector.broadcast %427 : vector<64x1xf32> to vector<64x32xf32>
    %429 = arith.mulf %424, %428 : vector<64x32xf32>
    %430 = vector.broadcast %409 : vector<1x32xf32> to vector<64x32xf32>
    %431 = arith.mulf %429, %430 : vector<64x32xf32>
    %432 = vector.broadcast %411 : vector<1x32xf32> to vector<64x32xf32>
    %433 = arith.addf %431, %432 : vector<64x32xf32>
    %c1_139 = arith.constant 1 : index
    %c0_140 = arith.constant 0 : index
    %c0_141 = arith.constant 0 : index
    %434 = vector.load %arg10[%c1_139, %c0_140, %c0_141] : memref<2x32x128xf32, #tpu.memory_space<vmem>>, vector<1x32x128xf32>
    %435 = vector.shape_cast %434 : vector<1x32x128xf32> to vector<32x128xf32>
    %cst_142 = arith.constant dense<0.000000e+00> : vector<64x128xf32>
    %436 = tpu.matmul %433, %435, %cst_142 {dimension_numbers = #tpu.dot_dimension_numbers<[1], [0], [0], [1], [0, 0, 1, 1], [], []>} : vector<64x32xf32>, vector<32x128xf32>, vector<64x128xf32> -> vector<64x128xf32>
    %c1_143 = arith.constant 1 : index
    %c0_144 = arith.constant 0 : index
    %c0_145 = arith.constant 0 : index
    %437 = vector.load %arg11[%c1_143, %c0_144, %c0_145] : memref<2x1x128xf32, #tpu.memory_space<vmem>>, vector<1x1x128xf32>
    %438 = vector.shape_cast %437 : vector<1x1x128xf32> to vector<1x128xf32>
    %439 = vector.broadcast %438 : vector<1x128xf32> to vector<64x128xf32>
    %440 = arith.addf %436, %439 : vector<64x128xf32>
    %441 = arith.mulf %440, %440 : vector<64x128xf32>
    %442 = arith.mulf %440, %441 : vector<64x128xf32>
    %cst_146 = arith.constant 4.471500e-02 : f32
    %443 = vector.broadcast %cst_146 : f32 to vector<64x128xf32>
    %444 = arith.mulf %443, %442 : vector<64x128xf32>
    %445 = arith.addf %440, %444 : vector<64x128xf32>
    %cst_147 = arith.constant 0.797884583 : f32
    %446 = vector.broadcast %cst_147 : f32 to vector<64x128xf32>
    %447 = arith.mulf %446, %445 : vector<64x128xf32>
    %448 = math.tanh %447 : vector<64x128xf32>
    %cst_148 = arith.constant 1.000000e+00 : f32
    %449 = vector.broadcast %cst_148 : f32 to vector<64x128xf32>
    %450 = arith.addf %449, %448 : vector<64x128xf32>
    %cst_149 = arith.constant 5.000000e-01 : f32
    %451 = vector.broadcast %cst_149 : f32 to vector<64x128xf32>
    %452 = arith.mulf %451, %450 : vector<64x128xf32>
    %453 = arith.mulf %440, %452 : vector<64x128xf32>
    %c1_150 = arith.constant 1 : index
    %c0_151 = arith.constant 0 : index
    %c0_152 = arith.constant 0 : index
    %454 = vector.load %arg12[%c1_150, %c0_151, %c0_152] : memref<2x128x32xf32, #tpu.memory_space<vmem>>, vector<1x128x32xf32>
    %455 = vector.shape_cast %454 : vector<1x128x32xf32> to vector<128x32xf32>
    %cst_153 = arith.constant dense<0.000000e+00> : vector<64x32xf32>
    %456 = tpu.matmul %453, %455, %cst_153 {dimension_numbers = #tpu.dot_dimension_numbers<[1], [0], [0], [1], [0, 0, 1, 1], [], []>} : vector<64x128xf32>, vector<128x32xf32>, vector<64x32xf32> -> vector<64x32xf32>
    %457 = arith.addf %407, %456 : vector<64x32xf32>
    %c1_154 = arith.constant 1 : index
    %c0_155 = arith.constant 0 : index
    %c0_156 = arith.constant 0 : index
    %458 = vector.load %arg13[%c1_154, %c0_155, %c0_156] : memref<2x1x32xf32, #tpu.memory_space<vmem>>, vector<1x1x32xf32>
    %459 = vector.shape_cast %458 : vector<1x1x32xf32> to vector<1x32xf32>
    %460 = vector.broadcast %459 : vector<1x32xf32> to vector<64x32xf32>
    %461 = arith.addf %457, %460 : vector<64x32xf32>
    %462 = vector.extract_strided_slice %461 {offsets = [0, 0], sizes = [4, 32], strides = [1, 1]} : vector<64x32xf32> to vector<4x32xf32>
    %463 = vector.extract_strided_slice %461 {offsets = [16, 0], sizes = [4, 32], strides = [1, 1]} : vector<64x32xf32> to vector<4x32xf32>
    %464 = vector.extract_strided_slice %461 {offsets = [4, 0], sizes = [4, 32], strides = [1, 1]} : vector<64x32xf32> to vector<4x32xf32>
    %465 = vector.extract_strided_slice %461 {offsets = [20, 0], sizes = [4, 32], strides = [1, 1]} : vector<64x32xf32> to vector<4x32xf32>
    %466 = vector.extract_strided_slice %461 {offsets = [8, 0], sizes = [4, 32], strides = [1, 1]} : vector<64x32xf32> to vector<4x32xf32>
    %467 = vector.extract_strided_slice %461 {offsets = [24, 0], sizes = [4, 32], strides = [1, 1]} : vector<64x32xf32> to vector<4x32xf32>
    %468 = vector.extract_strided_slice %461 {offsets = [12, 0], sizes = [4, 32], strides = [1, 1]} : vector<64x32xf32> to vector<4x32xf32>
    %469 = vector.extract_strided_slice %461 {offsets = [28, 0], sizes = [4, 32], strides = [1, 1]} : vector<64x32xf32> to vector<4x32xf32>
    %470 = vector.extract_strided_slice %461 {offsets = [32, 0], sizes = [4, 32], strides = [1, 1]} : vector<64x32xf32> to vector<4x32xf32>
    %471 = vector.extract_strided_slice %461 {offsets = [48, 0], sizes = [4, 32], strides = [1, 1]} : vector<64x32xf32> to vector<4x32xf32>
    %472 = vector.extract_strided_slice %461 {offsets = [36, 0], sizes = [4, 32], strides = [1, 1]} : vector<64x32xf32> to vector<4x32xf32>
    %473 = vector.extract_strided_slice %461 {offsets = [52, 0], sizes = [4, 32], strides = [1, 1]} : vector<64x32xf32> to vector<4x32xf32>
    %474 = vector.extract_strided_slice %461 {offsets = [40, 0], sizes = [4, 32], strides = [1, 1]} : vector<64x32xf32> to vector<4x32xf32>
    %475 = vector.extract_strided_slice %461 {offsets = [56, 0], sizes = [4, 32], strides = [1, 1]} : vector<64x32xf32> to vector<4x32xf32>
    %476 = vector.extract_strided_slice %461 {offsets = [44, 0], sizes = [4, 32], strides = [1, 1]} : vector<64x32xf32> to vector<4x32xf32>
    %477 = vector.extract_strided_slice %461 {offsets = [60, 0], sizes = [4, 32], strides = [1, 1]} : vector<64x32xf32> to vector<4x32xf32>
    %478 = tpu.concatenate %462, %463, %464, %465, %466, %467, %468, %469, %470, %471, %472, %473, %474, %475, %476, %477 in 0 : vector<4x32xf32>, vector<4x32xf32>, vector<4x32xf32>, vector<4x32xf32>, vector<4x32xf32>, vector<4x32xf32>, vector<4x32xf32>, vector<4x32xf32>, vector<4x32xf32>, vector<4x32xf32>, vector<4x32xf32>, vector<4x32xf32>, vector<4x32xf32>, vector<4x32xf32>, vector<4x32xf32>, vector<4x32xf32> -> vector<64x32xf32>
    %479 = vector.shape_cast %478 : vector<64x32xf32> to vector<8x8x32xf32>
    %480 = vector.extract_strided_slice %479 {offsets = [6, 0, 0], sizes = [2, 8, 32], strides = [1, 1, 1]} : vector<8x8x32xf32> to vector<2x8x32xf32>
    %481 = vector.extract_strided_slice %479 {offsets = [0, 0, 0], sizes = [6, 8, 32], strides = [1, 1, 1]} : vector<8x8x32xf32> to vector<6x8x32xf32>
    %482 = tpu.concatenate %480, %481 in 0 : vector<2x8x32xf32>, vector<6x8x32xf32> -> vector<8x8x32xf32>
    %483 = vector.extract_strided_slice %482 {offsets = [0, 6, 0], sizes = [8, 2, 32], strides = [1, 1, 1]} : vector<8x8x32xf32> to vector<8x2x32xf32>
    %484 = vector.extract_strided_slice %482 {offsets = [0, 0, 0], sizes = [8, 6, 32], strides = [1, 1, 1]} : vector<8x8x32xf32> to vector<8x6x32xf32>
    %485 = tpu.concatenate %483, %484 in 1 : vector<8x2x32xf32>, vector<8x6x32xf32> -> vector<8x8x32xf32>
    %c0_157 = arith.constant 0 : index
    %c0_158 = arith.constant 0 : index
    %c0_159 = arith.constant 0 : index
    %c0_160 = arith.constant 0 : index
    %486 = vector.load %arg14[%c0_157, %c0_158, %c0_159, %c0_160] : memref<1x8x8x32xf32, #tpu.memory_space<vmem>>, vector<1x8x8x32xf32>
    %487 = vector.shape_cast %486 : vector<1x8x8x32xf32> to vector<8x8x32xf32>
    %488 = vector.shape_cast %485 : vector<8x8x32xf32> to vector<1x8x8x32xf32>
    tpu.vector_store %arg14[%c0_157, %c0_158, %c0_159, %c0_160], %488 {strides = array<i32>} : memref<1x8x8x32xf32, #tpu.memory_space<vmem>>, vector<1x8x8x32xf32>,
    return
  }
  func.func @transform_0(%arg0: i32) -> (i32, i32, i32, i32) {
    %c0_i32 = arith.constant 0 : i32
    %c0_i32_0 = arith.constant 0 : i32
    %c0_i32_1 = arith.constant 0 : i32
    %c0_i32_2 = arith.constant 0 : i32
    return %arg0, %c0_i32, %c0_i32_0, %c0_i32_1 : i32, i32, i32, i32
  }
  func.func @transform_1(%arg0: i32) -> (i32, i32, i32) {
    %c0_i32 = arith.constant 0 : i32
    %c0_i32_0 = arith.constant 0 : i32
    %c0_i32_1 = arith.constant 0 : i32
    %c0_i32_2 = arith.constant 0 : i32
    return %c0_i32, %c0_i32_0, %c0_i32_1 : i32, i32, i32
  }
  func.func @transform_2(%arg0: i32) -> (i32, i32, i32) {
    %c0_i32 = arith.constant 0 : i32
    %c0_i32_0 = arith.constant 0 : i32
    %c0_i32_1 = arith.constant 0 : i32
    %c0_i32_2 = arith.constant 0 : i32
    return %c0_i32, %c0_i32_0, %c0_i32_1 : i32, i32, i32
  }
  func.func @transform_3(%arg0: i32) -> (i32, i32, i32) {
    %c0_i32 = arith.constant 0 : i32
    %c0_i32_0 = arith.constant 0 : i32
    %c0_i32_1 = arith.constant 0 : i32
    %c0_i32_2 = arith.constant 0 : i32
    return %c0_i32, %c0_i32_0, %c0_i32_1 : i32, i32, i32
  }
  func.func @transform_4(%arg0: i32) -> (i32, i32, i32) {
    %c0_i32 = arith.constant 0 : i32
    %c0_i32_0 = arith.constant 0 : i32
    %c0_i32_1 = arith.constant 0 : i32
    %c0_i32_2 = arith.constant 0 : i32
    return %c0_i32, %c0_i32_0, %c0_i32_1 : i32, i32, i32
  }
  func.func @transform_5(%arg0: i32) -> (i32, i32, i32) {
    %c0_i32 = arith.constant 0 : i32
    %c0_i32_0 = arith.constant 0 : i32
    %c0_i32_1 = arith.constant 0 : i32
    %c0_i32_2 = arith.constant 0 : i32
    return %c0_i32, %c0_i32_0, %c0_i32_1 : i32, i32, i32
  }
  func.func @transform_6(%arg0: i32) -> (i32, i32, i32) {
    %c0_i32 = arith.constant 0 : i32
    %c0_i32_0 = arith.constant 0 : i32
    %c0_i32_1 = arith.constant 0 : i32
    %c0_i32_2 = arith.constant 0 : i32
    return %c0_i32, %c0_i32_0, %c0_i32_1 : i32, i32, i32
  }
  func.func @transform_7(%arg0: i32) -> (i32, i32, i32) {
    %c0_i32 = arith.constant 0 : i32
    %c0_i32_0 = arith.constant 0 : i32
    %c0_i32_1 = arith.constant 0 : i32
    %c0_i32_2 = arith.constant 0 : i32
    return %c0_i32, %c0_i32_0, %c0_i32_1 : i32, i32, i32
  }
  func.func @transform_8(%arg0: i32) -> (i32, i32, i32) {
    %c0_i32 = arith.constant 0 : i32
    %c0_i32_0 = arith.constant 0 : i32
    %c0_i32_1 = arith.constant 0 : i32
    %c0_i32_2 = arith.constant 0 : i32
    return %c0_i32, %c0_i32_0, %c0_i32_1 : i32, i32, i32
  }
  func.func @transform_9(%arg0: i32) -> (i32, i32, i32) {
    %c0_i32 = arith.constant 0 : i32
    %c0_i32_0 = arith.constant 0 : i32
    %c0_i32_1 = arith.constant 0 : i32
    %c0_i32_2 = arith.constant 0 : i32
    return %c0_i32, %c0_i32_0, %c0_i32_1 : i32, i32, i32
  }
  func.func @transform_10(%arg0: i32) -> (i32, i32, i32) {
    %c0_i32 = arith.constant 0 : i32
    %c0_i32_0 = arith.constant 0 : i32
    %c0_i32_1 = arith.constant 0 : i32
    %c0_i32_2 = arith.constant 0 : i32
    return %c0_i32, %c0_i32_0, %c0_i32_1 : i32, i32, i32
  }
  func.func @transform_11(%arg0: i32) -> (i32, i32, i32) {
    %c0_i32 = arith.constant 0 : i32
    %c0_i32_0 = arith.constant 0 : i32
    %c0_i32_1 = arith.constant 0 : i32
    %c0_i32_2 = arith.constant 0 : i32
    return %c0_i32, %c0_i32_0, %c0_i32_1 : i32, i32, i32
  }
  func.func @transform_12(%arg0: i32) -> (i32, i32, i32) {
    %c0_i32 = arith.constant 0 : i32
    %c0_i32_0 = arith.constant 0 : i32
    %c0_i32_1 = arith.constant 0 : i32
    %c0_i32_2 = arith.constant 0 : i32
    return %c0_i32, %c0_i32_0, %c0_i32_1 : i32, i32, i32
  }
  func.func @transform_13(%arg0: i32) -> (i32, i32, i32, i32) {
    %c0_i32 = arith.constant 0 : i32
    %c0_i32_0 = arith.constant 0 : i32
    %c0_i32_1 = arith.constant 0 : i32
    %c0_i32_2 = arith.constant 0 : i32
    return %arg0, %c0_i32, %c0_i32_0, %c0_i32_1 : i32, i32, i32, i32
  }
}

</mosaic_0001>

<llo_original>
// kernel: swin_stage_forward.1
$region0: #{swin_stage_forward.1}
  #allocation0 [shape = 'u32[]', space=smem, size = 0x4, offset = 0x4, fixed_abs, tag = 'smem constant byte address 0x4 - core index']
  #allocation1 [shape = 'u32[144,128]{1,0:T(1,128)}', space=vmem, size = 0x12000, scoped, tag = 'internal scratch']
  %s0 = inlined_call_operand.vmem [shape: f32[2,8,8,32], index: 0, kind: input, shape index: {}]
  %s1 = inlined_call_operand.vmem [shape: f32[2,1,32], index: 1, kind: input, shape index: {}]
  %s2 = inlined_call_operand.hbm [shape: f32[2,1,32], index: 2, kind: input, shape index: {}]
  %s3 = inlined_call_operand.vmem [shape: f32[2,32,96], index: 3, kind: input, shape index: {}]
  %s4 = inlined_call_operand.vmem [shape: f32[2,1,96], index: 4, kind: input, shape index: {}]
  %s5 = inlined_call_operand.vmem [shape: f32[2,32,32], index: 5, kind: input, shape index: {}]
  %s6 = inlined_call_operand.vmem [shape: f32[2,1,32], index: 6, kind: input, shape index: {}]
  %s7 = inlined_call_operand.vmem [shape: f32[2,1,32], index: 7, kind: input, shape index: {}]
  %s8 = inlined_call_operand.hbm [shape: f32[2,1,32], index: 8, kind: input, shape index: {}]
  %s9 = inlined_call_operand.vmem [shape: f32[2,32,128], index: 9, kind: input, shape index: {}]
  %s10 = inlined_call_operand.vmem [shape: f32[2,1,128], index: 10, kind: input, shape index: {}]
  %s11 = inlined_call_operand.vmem [shape: f32[2,128,32], index: 11, kind: input, shape index: {}]
  %s12 = inlined_call_operand.vmem [shape: f32[2,1,32], index: 12, kind: input, shape index: {}]
  %s13 = inlined_call_operand.hbm [shape: f32[2,8,8,32], index: 13, kind: output, shape index: {}]
  %s14 = sld [smem:[#allocation0]]
  $region93: #{swin_stage_forward.1} parent=0
    _
  %s16 = ssub.s32 1, %s14
  %s17 = scalar_select 0, %s16, %s14
  $region1: #{swin_stage_forward.1} parent=0
    #allocation2 [shape = 'u8[1024]{0}', space=vmem, size = 0x400, scoped, tag = 'input window, operand 2, single buffered']
    #allocation3 [shape = 's32[2]{0}', space=sflag, size = 0x8, scoped, tag = 'scoped memory for swin_stage_forward.1']
    #allocation4 [shape = 's32[2]{0}', space=sflag, size = 0x8, scoped, tag = 'scoped memory for swin_stage_forward.1']
    #allocation5 [shape = 'u8[1024]{0}', space=vmem, size = 0x400, scoped, tag = 'input window, operand 8, single buffered']
    #allocation6 [shape = 's32[1]{0}', space=sflag, size = 0x4, scoped, tag = 'scoped memory for swin_stage_forward.1']
    #allocation7 [shape = 'u8[65536]{0}', space=vmem, size = 0x10000, scoped, tag = 'output window, operand 0']
    %18 = vsyncpa [#allocation3], 0
    %19 = vsyncpa [#allocation6], 0
    %20 = vsyncpa [#allocation4], 0
    %s21 = scalar_lea.sflag [#allocation4], 1
    %22 = vsyncpa %s21, 0
    loop: start=0, step=1, limit=4
    $region2: #{swin_stage_forward.1} parent=1 // loop_pre_header
      _
    $region3: #{swin_stage_forward.1} parent=1 // loop_header
      %s24 = sphi 0, %s28
      %p25 = scmp.ge.s32.totalorder %s24, 4
      %s34 = sphi 0, %s36
      %s37 = sphi 0, %s34
      %s38 = sphi 0, %s37
      %s54 = sphi 0, %s38
      %s58 = sphi 0, %s58
      %s60 = sphi 0, %s58
      %s61 = sphi 0, %s60
      %s75 = sphi 0, %s61
      %s79 = sphi 0, %s79
      %s81 = sphi 0, %s79
      %s82 = sphi 0, %s81
      %s96 = sphi 0, %s82
      %s100 = sphi 0, %s100
      %s102 = sphi 0, %s100
      %s103 = sphi 0, %s102
      %s117 = sphi 0, %s103
      %s121 = sphi 0, %s121
      %s123 = sphi 0, %s121
      %s124 = sphi 0, %s123
      %s138 = sphi 0, %s124
      %s142 = sphi 0, %s142
      %s144 = sphi 0, %s142
      %s145 = sphi 0, %s144
      %s159 = sphi 0, %s145
      %s163 = sphi 0, %s163
      %s165 = sphi 0, %s163
      %s166 = sphi 0, %s165
      %s180 = sphi 0, %s166
      %s184 = sphi 0, %s184
      %s186 = sphi 0, %s184
      %s187 = sphi 0, %s186
      %s201 = sphi 0, %s187
      %s205 = sphi 0, %s205
      %s207 = sphi 0, %s205
      %s208 = sphi 0, %s207
      %s222 = sphi 0, %s208
      %s226 = sphi 0, %s226
      %s228 = sphi 0, %s226
      %s229 = sphi 0, %s228
      %s243 = sphi 0, %s229
      %s247 = sphi 0, %s247
      %s249 = sphi 0, %s247
      %s250 = sphi 0, %s249
      %s264 = sphi 0, %s250
      %s268 = sphi 0, %s268
      %s270 = sphi 0, %s268
      %s271 = sphi 0, %s270
      %s285 = sphi 0, %s271
      %s289 = sphi 0, %s289
      %s291 = sphi 0, %s289
      %s292 = sphi 0, %s291
      %s306 = sphi 0, %s292
      %s312 = sphi 0, %s314
      %s315 = sphi 0, %s312
      %s316 = sphi 0, %s315
      %s332 = sphi 0, %s316
    $region4: #{swin_stage_forward.1} parent=1 // loop_header_branch
      %27 = sbr.rel (%p25) target = $region8
    $region5: #{swin_stage_forward.1} parent=1 // loop_body
      %s29 = ssub.s32 %s24, 1
      %s30 = ssub.s32 %s24, 2
      %s31 = sadd.s32 %s24, 1
      %s32 = ssub.s32 %s24, %s31
      %p33 = scmp.eq.s32.totalorder %s32, 0
      %s35 = sadd.s32 %s34, 1
      %s36 = scalar_select %p33, %s34, %s35
      %p39 = pneg %p33
      %p40 = scmp.eq.s32.totalorder %s24, 1
      %p41 = por %p39, %p40
      %p42 = scmp.ne.s32.totalorder %s34, %s37
      %p43 = scmp.eq.s32.totalorder %s24, 0
      %p44 = por %p42, %p43
      %p45 = scmp.ne.s32.totalorder %s34, %s37
      %p46 = scmp.eq.s32.totalorder %s29, 1
      %p47 = por %p45, %p46
      %p48 = scmp.ne.s32.totalorder %s37, %s38
      %p49 = scmp.eq.s32.totalorder %s29, 0
      %p50 = por %p48, %p49
      %p51 = scmp.ne.s32.totalorder %s37, %s38
      %p52 = scmp.eq.s32.totalorder %s30, 1
      %p53 = por %p51, %p52
      %p55 = scmp.ne.s32.totalorder %s38, %s54
      %p56 = scmp.eq.s32.totalorder %s30, 0
      %p57 = por %p55, %p56
      %s59 = sadd.s32 %s58, 1
      %p62 = scmp.eq.s32.totalorder %s24, 1
      %p63 = scmp.ne.s32.totalorder %s58, %s60
      %p64 = scmp.eq.s32.totalorder %s24, 0
      %p65 = por %p63, %p64
      %p66 = scmp.ne.s32.totalorder %s58, %s60
      %p67 = scmp.eq.s32.totalorder %s29, 1
      %p68 = por %p66, %p67
      %p69 = scmp.ne.s32.totalorder %s60, %s61
      %p70 = scmp.eq.s32.totalorder %s29, 0
      %p71 = por %p69, %p70
      %p72 = scmp.ne.s32.totalorder %s60, %s61
      %p73 = scmp.eq.s32.totalorder %s30, 1
      %p74 = por %p72, %p73
      %p76 = scmp.ne.s32.totalorder %s61, %s75
      %p77 = scmp.eq.s32.totalorder %s30, 0
      %p78 = por %p76, %p77
      %s80 = sadd.s32 %s79, 1
      %p83 = scmp.eq.s32.totalorder %s24, 1
      %p84 = scmp.ne.s32.totalorder %s79, %s81
      %p85 = scmp.eq.s32.totalorder %s24, 0
      %p86 = por %p84, %p85
      %p87 = scmp.ne.s32.totalorder %s79, %s81
      %p88 = scmp.eq.s32.totalorder %s29, 1
      %p89 = por %p87, %p88
      %p90 = scmp.ne.s32.totalorder %s81, %s82
      %p91 = scmp.eq.s32.totalorder %s29, 0
      %p92 = por %p90, %p91
      %p93 = scmp.ne.s32.totalorder %s81, %s82
      %p94 = scmp.eq.s32.totalorder %s30, 1
      %p95 = por %p93, %p94
      %p97 = scmp.ne.s32.totalorder %s82, %s96
      %p98 = scmp.eq.s32.totalorder %s30, 0
      %p99 = por %p97, %p98
      %s101 = sadd.s32 %s100, 1
      %p104 = scmp.eq.s32.totalorder %s24, 1
      %p105 = scmp.ne.s32.totalorder %s100, %s102
      %p106 = scmp.eq.s32.totalorder %s24, 0
      %p107 = por %p105, %p106
      %p108 = scmp.ne.s32.totalorder %s100, %s102
      %p109 = scmp.eq.s32.totalorder %s29, 1
      %p110 = por %p108, %p109
      %p111 = scmp.ne.s32.totalorder %s102, %s103
      %p112 = scmp.eq.s32.totalorder %s29, 0
      %p113 = por %p111, %p112
      %p114 = scmp.ne.s32.totalorder %s102, %s103
      %p115 = scmp.eq.s32.totalorder %s30, 1
      %p116 = por %p114, %p115
      %p118 = scmp.ne.s32.totalorder %s103, %s117
      %p119 = scmp.eq.s32.totalorder %s30, 0
      %p120 = por %p118, %p119
      %s122 = sadd.s32 %s121, 1
      %p125 = scmp.eq.s32.totalorder %s24, 1
      %p126 = scmp.ne.s32.totalorder %s121, %s123
      %p127 = scmp.eq.s32.totalorder %s24, 0
      %p128 = por %p126, %p127
      %p129 = scmp.ne.s32.totalorder %s121, %s123
      %p130 = scmp.eq.s32.totalorder %s29, 1
      %p131 = por %p129, %p130
      %p132 = scmp.ne.s32.totalorder %s123, %s124
      %p133 = scmp.eq.s32.totalorder %s29, 0
      %p134 = por %p132, %p133
      %p135 = scmp.ne.s32.totalorder %s123, %s124
      %p136 = scmp.eq.s32.totalorder %s30, 1
      %p137 = por %p135, %p136
      %p139 = scmp.ne.s32.totalorder %s124, %s138
      %p140 = scmp.eq.s32.totalorder %s30, 0
      %p141 = por %p139, %p140
      %s143 = sadd.s32 %s142, 1
      %p146 = scmp.eq.s32.totalorder %s24, 1
      %p147 = scmp.ne.s32.totalorder %s142, %s144
      %p148 = scmp.eq.s32.totalorder %s24, 0
      %p149 = por %p147, %p148
      %p150 = scmp.ne.s32.totalorder %s142, %s144
      %p151 = scmp.eq.s32.totalorder %s29, 1
      %p152 = por %p150, %p151
      %p153 = scmp.ne.s32.totalorder %s144, %s145
      %p154 = scmp.eq.s32.totalorder %s29, 0
      %p155 = por %p153, %p154
      %p156 = scmp.ne.s32.totalorder %s144, %s145
      %p157 = scmp.eq.s32.totalorder %s30, 1
      %p158 = por %p156, %p157
      %p160 = scmp.ne.s32.totalorder %s145, %s159
      %p161 = scmp.eq.s32.totalorder %s30, 0
      %p162 = por %p160, %p161
      %s164 = sadd.s32 %s163, 1
      %p167 = scmp.eq.s32.totalorder %s24, 1
      %p168 = scmp.ne.s32.totalorder %s163, %s165
      %p169 = scmp.eq.s32.totalorder %s24, 0
      %p170 = por %p168, %p169
      %p171 = scmp.ne.s32.totalorder %s163, %s165
      %p172 = scmp.eq.s32.totalorder %s29, 1
      %p173 = por %p171, %p172
      %p174 = scmp.ne.s32.totalorder %s165, %s166
      %p175 = scmp.eq.s32.totalorder %s29, 0
      %p176 = por %p174, %p175
      %p177 = scmp.ne.s32.totalorder %s165, %s166
      %p178 = scmp.eq.s32.totalorder %s30, 1
      %p179 = por %p177, %p178
      %p181 = scmp.ne.s32.totalorder %s166, %s180
      %p182 = scmp.eq.s32.totalorder %s30, 0
      %p183 = por %p181, %p182
      %s185 = sadd.s32 %s184, 1
      %p188 = scmp.eq.s32.totalorder %s24, 1
      %p189 = scmp.ne.s32.totalorder %s184, %s186
      %p190 = scmp.eq.s32.totalorder %s24, 0
      %p191 = por %p189, %p190
      %p192 = scmp.ne.s32.totalorder %s184, %s186
      %p193 = scmp.eq.s32.totalorder %s29, 1
      %p194 = por %p192, %p193
      %p195 = scmp.ne.s32.totalorder %s186, %s187
      %p196 = scmp.eq.s32.totalorder %s29, 0
      %p197 = por %p195, %p196
      %p198 = scmp.ne.s32.totalorder %s186, %s187
      %p199 = scmp.eq.s32.totalorder %s30, 1
      %p200 = por %p198, %p199
      %p202 = scmp.ne.s32.totalorder %s187, %s201
      %p203 = scmp.eq.s32.totalorder %s30, 0
      %p204 = por %p202, %p203
      %s206 = sadd.s32 %s205, 1
      %p209 = scmp.eq.s32.totalorder %s24, 1
      %p210 = scmp.ne.s32.totalorder %s205, %s207
      %p211 = scmp.eq.s32.totalorder %s24, 0
      %p212 = por %p210, %p211
      %p213 = scmp.ne.s32.totalorder %s205, %s207
      %p214 = scmp.eq.s32.totalorder %s29, 1
      %p215 = por %p213, %p214
      %p216 = scmp.ne.s32.totalorder %s207, %s208
      %p217 = scmp.eq.s32.totalorder %s29, 0
      %p218 = por %p216, %p217
      %p219 = scmp.ne.s32.totalorder %s207, %s208
      %p220 = scmp.eq.s32.totalorder %s30, 1
      %p221 = por %p219, %p220
      %p223 = scmp.ne.s32.totalorder %s208, %s222
      %p224 = scmp.eq.s32.totalorder %s30, 0
      %p225 = por %p223, %p224
      %s227 = sadd.s32 %s226, 1
      %p230 = scmp.eq.s32.totalorder %s24, 1
      %p231 = scmp.ne.s32.totalorder %s226, %s228
      %p232 = scmp.eq.s32.totalorder %s24, 0
      %p233 = por %p231, %p232
      %p234 = scmp.ne.s32.totalorder %s226, %s228
      %p235 = scmp.eq.s32.totalorder %s29, 1
      %p236 = por %p234, %p235
      %p237 = scmp.ne.s32.totalorder %s228, %s229
      %p238 = scmp.eq.s32.totalorder %s29, 0
      %p239 = por %p237, %p238
      %p240 = scmp.ne.s32.totalorder %s228, %s229
      %p241 = scmp.eq.s32.totalorder %s30, 1
      %p242 = por %p240, %p241
      %p244 = scmp.ne.s32.totalorder %s229, %s243
      %p245 = scmp.eq.s32.totalorder %s30, 0
      %p246 = por %p244, %p245
      %s248 = sadd.s32 %s247, 1
      %p251 = scmp.eq.s32.totalorder %s24, 1
      %p252 = scmp.ne.s32.totalorder %s247, %s249
      %p253 = scmp.eq.s32.totalorder %s24, 0
      %p254 = por %p252, %p253
      %p255 = scmp.ne.s32.totalorder %s247, %s249
      %p256 = scmp.eq.s32.totalorder %s29, 1
      %p257 = por %p255, %p256
      %p258 = scmp.ne.s32.totalorder %s249, %s250
      %p259 = scmp.eq.s32.totalorder %s29, 0
      %p260 = por %p258, %p259
      %p261 = scmp.ne.s32.totalorder %s249, %s250
      %p262 = scmp.eq.s32.totalorder %s30, 1
      %p263 = por %p261, %p262
      %p265 = scmp.ne.s32.totalorder %s250, %s264
      %p266 = scmp.eq.s32.totalorder %s30, 0
      %p267 = por %p265, %p266
      %s269 = sadd.s32 %s268, 1
      %p272 = scmp.eq.s32.totalorder %s24, 1
      %p273 = scmp.ne.s32.totalorder %s268, %s270
      %p274 = scmp.eq.s32.totalorder %s24, 0
      %p275 = por %p273, %p274
      %p276 = scmp.ne.s32.totalorder %s268, %s270
      %p277 = scmp.eq.s32.totalorder %s29, 1
      %p278 = por %p276, %p277
      %p279 = scmp.ne.s32.totalorder %s270, %s271
      %p280 = scmp.eq.s32.totalorder %s29, 0
      %p281 = por %p279, %p280
      %p282 = scmp.ne.s32.totalorder %s270, %s271
      %p283 = scmp.eq.s32.totalorder %s30, 1
      %p284 = por %p282, %p283
      %p286 = scmp.ne.s32.totalorder %s271, %s285
      %p287 = scmp.eq.s32.totalorder %s30, 0
      %p288 = por %p286, %p287
      %s290 = sadd.s32 %s289, 1
      %p293 = scmp.eq.s32.totalorder %s24, 1
      %p294 = scmp.ne.s32.totalorder %s289, %s291
      %p295 = scmp.eq.s32.totalorder %s24, 0
      %p296 = por %p294, %p295
      %p297 = scmp.ne.s32.totalorder %s289, %s291
      %p298 = scmp.eq.s32.totalorder %s29, 1
      %p299 = por %p297, %p298
      %p300 = scmp.ne.s32.totalorder %s291, %s292
      %p301 = scmp.eq.s32.totalorder %s29, 0
      %p302 = por %p300, %p301
      %p303 = scmp.ne.s32.totalorder %s291, %s292
      %p304 = scmp.eq.s32.totalorder %s30, 1
      %p305 = por %p303, %p304
      %p307 = scmp.ne.s32.totalorder %s292, %s306
      %p308 = scmp.eq.s32.totalorder %s30, 0
      %p309 = por %p307, %p308
      %s310 = ssub.s32 %s24, %s31
      %p311 = scmp.eq.s32.totalorder %s310, 0
      %s313 = sadd.s32 %s312, 1
      %s314 = scalar_select %p311, %s312, %s313
      %p317 = pneg %p311
      %p318 = scmp.eq.s32.totalorder %s24, 1
      %p319 = por %p317, %p318
      %p320 = scmp.ne.s32.totalorder %s312, %s315
      %p321 = scmp.eq.s32.totalorder %s24, 0
      %p322 = por %p320, %p321
      %p323 = scmp.ne.s32.totalorder %s312, %s315
      %p324 = scmp.eq.s32.totalorder %s29, 1
      %p325 = por %p323, %p324
      %p326 = scmp.ne.s32.totalorder %s315, %s316
      %p327 = scmp.eq.s32.totalorder %s29, 0
      %p328 = por %p326, %p327
      %p329 = scmp.ne.s32.totalorder %s315, %s316
      %p330 = scmp.eq.s32.totalorder %s30, 1
      %p331 = por %p329, %p330
      %p333 = scmp.ne.s32.totalorder %s316, %s332
      %p334 = scmp.eq.s32.totalorder %s30, 0
      %p335 = por %p333, %p334
      %p336 = scmp.le.s32.totalorder 1, %s24
      %p337 = scmp.lt.s32.totalorder %s24, 3
      %p338 = pnand %p336, %p337
      %p339 = pneg %p338
      // Predicated region
      $region9: #{swin_stage_forward.1} parent=5 // pred_check
        _
      $region10: #{swin_stage_forward.1} parent=5 // pred_check_branch
        %341 = sbr.rel (%p338) target = $region12
      $region11: #{swin_stage_forward.1} parent=5 // pred_region
        %s342 = ssub.s32 %s24, 1
        // Predicated region
        $region13: #{swin_stage_forward.1} parent=11 // pred_check
          %p343 = pneg %p71
        $region14: #{swin_stage_forward.1} parent=11 // pred_check_branch
          %345 = sbr.rel (%p343) target = $region16
        $region15: #{swin_stage_forward.1} parent=11 // pred_region
          _
        $region16: #{swin_stage_forward.1} parent=11 // pred_fallthru
          _
        // Predicated region
        $region17: #{swin_stage_forward.1} parent=11 // pred_check
          %p346 = pneg %p92
        $region18: #{swin_stage_forward.1} parent=11 // pred_check_branch
          %348 = sbr.rel (%p346) target = $region20
        $region19: #{swin_stage_forward.1} parent=11 // pred_region
          %s350 = ssub.s32 32, 32
          %351 = vsyncadd [#allocation3], %s350
          %s352 = sshll.u32 [#allocation2], 4
          %s353 = int_to_ptr.vmem [resolvable:$true] %s352
          %358 = dma.hbm_to_vmem [thread:$0]  %s2, 32, %s353, [#allocation3], 16, 16, 1
        $region20: #{swin_stage_forward.1} parent=11 // pred_fallthru
          _
        // Predicated region
        $region21: #{swin_stage_forward.1} parent=11 // pred_check
          %p359 = pneg %p113
        $region22: #{swin_stage_forward.1} parent=11 // pred_check_branch
          %361 = sbr.rel (%p359) target = $region24
        $region23: #{swin_stage_forward.1} parent=11 // pred_region
          _
        $region24: #{swin_stage_forward.1} parent=11 // pred_fallthru
          _
        // Predicated region
        $region25: #{swin_stage_forward.1} parent=11 // pred_check
          %p362 = pneg %p134
        $region26: #{swin_stage_forward.1} parent=11 // pred_check_branch
          %364 = sbr.rel (%p362) target = $region28
        $region27: #{swin_stage_forward.1} parent=11 // pred_region
          _
        $region28: #{swin_stage_forward.1} parent=11 // pred_fallthru
          _
        // Predicated region
        $region29: #{swin_stage_forward.1} parent=11 // pred_check
          %p365 = pneg %p155
        $region30: #{swin_stage_forward.1} parent=11 // pred_check_branch
          %367 = sbr.rel (%p365) target = $region32
        $region31: #{swin_stage_forward.1} parent=11 // pred_region
          _
        $region32: #{swin_stage_forward.1} parent=11 // pred_fallthru
          _
        // Predicated region
        $region33: #{swin_stage_forward.1} parent=11 // pred_check
          %p368 = pneg %p176
        $region34: #{swin_stage_forward.1} parent=11 // pred_check_branch
          %370 = sbr.rel (%p368) target = $region36
        $region35: #{swin_stage_forward.1} parent=11 // pred_region
          _
        $region36: #{swin_stage_forward.1} parent=11 // pred_fallthru
          _
        // Predicated region
        $region37: #{swin_stage_forward.1} parent=11 // pred_check
          %p371 = pneg %p197
        $region38: #{swin_stage_forward.1} parent=11 // pred_check_branch
          %373 = sbr.rel (%p371) target = $region40
        $region39: #{swin_stage_forward.1} parent=11 // pred_region
          _
        $region40: #{swin_stage_forward.1} parent=11 // pred_fallthru
          _
        // Predicated region
        $region41: #{swin_stage_forward.1} parent=11 // pred_check
          %p374 = pneg %p218
        $region42: #{swin_stage_forward.1} parent=11 // pred_check_branch
          %376 = sbr.rel (%p374) target = $region44
        $region43: #{swin_stage_forward.1} parent=11 // pred_region
          %s378 = ssub.s32 32, 32
          %379 = vsyncadd [#allocation6], %s378
          %s380 = sshll.u32 [#allocation5], 4
          %s381 = int_to_ptr.vmem [resolvable:$true] %s380
          %386 = dma.hbm_to_vmem [thread:$0]  %s8, 32, %s381, [#allocation6], 16, 16, 1
        $region44: #{swin_stage_forward.1} parent=11 // pred_fallthru
          _
        // Predicated region
        $region45: #{swin_stage_forward.1} parent=11 // pred_check
          %p387 = pneg %p239
        $region46: #{swin_stage_forward.1} parent=11 // pred_check_branch
          %389 = sbr.rel (%p387) target = $region48
        $region47: #{swin_stage_forward.1} parent=11 // pred_region
          _
        $region48: #{swin_stage_forward.1} parent=11 // pred_fallthru
          _
        // Predicated region
        $region49: #{swin_stage_forward.1} parent=11 // pred_check
          %p390 = pneg %p260
        $region50: #{swin_stage_forward.1} parent=11 // pred_check_branch
          %392 = sbr.rel (%p390) target = $region52
        $region51: #{swin_stage_forward.1} parent=11 // pred_region
          _
        $region52: #{swin_stage_forward.1} parent=11 // pred_fallthru
          _
        // Predicated region
        $region53: #{swin_stage_forward.1} parent=11 // pred_check
          %p393 = pneg %p281
        $region54: #{swin_stage_forward.1} parent=11 // pred_check_branch
          %395 = sbr.rel (%p393) target = $region56
        $region55: #{swin_stage_forward.1} parent=11 // pred_region
          _
        $region56: #{swin_stage_forward.1} parent=11 // pred_fallthru
          _
        // Predicated region
        $region57: #{swin_stage_forward.1} parent=11 // pred_check
          %p396 = pneg %p302
        $region58: #{swin_stage_forward.1} parent=11 // pred_check_branch
          %398 = sbr.rel (%p396) target = $region60
        $region59: #{swin_stage_forward.1} parent=11 // pred_region
          _
        $region60: #{swin_stage_forward.1} parent=11 // pred_fallthru
          _
      $region12: #{swin_stage_forward.1} parent=5 // pred_fallthru
        _
      %p399 = scmp.lt.s32.totalorder %s24, 2
      // Predicated region
      $region61: #{swin_stage_forward.1} parent=5 // pred_check
        %p400 = pneg %p399
      $region62: #{swin_stage_forward.1} parent=5 // pred_check_branch
        %402 = sbr.rel (%p400) target = $region64
      $region63: #{swin_stage_forward.1} parent=5 // pred_region
        // Predicated region
        $region65: #{swin_stage_forward.1} parent=63 // pred_check
          %p403 = pneg %p44
        $region66: #{swin_stage_forward.1} parent=63 // pred_check_branch
          %405 = sbr.rel (%p403) target = $region68
        $region67: #{swin_stage_forward.1} parent=63 // pred_region
          %p406 = scmp.lt.s32.totalorder %s24, 1
          %s407 = scalar_select %p406, %s24, 1
          %s408 = smul.addr %s407, 8
          %s409 = smul.addr %s408, 8
          %s410 = scalar_lea.vmem %s0, %s409
        $region68: #{swin_stage_forward.1} parent=63 // pred_fallthru
          _
      $region64: #{swin_stage_forward.1} parent=5 // pred_fallthru
        _
      %p411 = scmp.le.s32.totalorder 1, %s24
      %p412 = scmp.lt.s32.totalorder %s24, 3
      %p413 = pnand %p411, %p412
      %p414 = pneg %p413
      // Predicated region
      $region69: #{swin_stage_forward.1} parent=5 // pred_check
        _
      $region70: #{swin_stage_forward.1} parent=5 // pred_check_branch
        %416 = sbr.rel (%p413) target = $region72
      $region71: #{swin_stage_forward.1} parent=5 // pred_region
        %s417 = ssub.s32 %s24, 1
        // Predicated region
        $region73: #{swin_stage_forward.1} parent=71 // pred_check
          %p418 = pneg %p92
        $region74: #{swin_stage_forward.1} parent=71 // pred_check_branch
          %420 = sbr.rel (%p418) target = $region76
        $region75: #{swin_stage_forward.1} parent=71 // pred_region
          %421 = dma.done [#allocation3], 32
        $region76: #{swin_stage_forward.1} parent=71 // pred_fallthru
          _
        // Predicated region
        $region77: #{swin_stage_forward.1} parent=71 // pred_check
          %p422 = pneg %p218
        $region78: #{swin_stage_forward.1} parent=71 // pred_check_branch
          %424 = sbr.rel (%p422) target = $region80
        $region79: #{swin_stage_forward.1} parent=71 // pred_region
          %425 = dma.done [#allocation6], 32
        $region80: #{swin_stage_forward.1} parent=71 // pred_fallthru
          _
        %p426 = scmp.lt.s32.totalorder %s29, 1
        %s427 = scalar_select %p426, %s29, 1
        %s428 = smul.addr %s427, 8
        %s429 = smul.addr %s428, 8
        %s430 = scalar_lea.vmem %s0, %s429
        %p431 = pneg %p50
        %p432 = pneg %p47
        %p433 = pneg %p71
        %p434 = pneg %p68
        %p435 = pneg %p92
        %p436 = pneg %p89
        %p437 = pneg %p113
        %p438 = pneg %p110
        %p439 = pneg %p134
        %p440 = pneg %p131
        %p441 = pneg %p155
        %p442 = pneg %p152
        %p443 = pneg %p176
        %p444 = pneg %p173
        %p445 = pneg %p197
        %p446 = pneg %p194
        %p447 = pneg %p218
        %p448 = pneg %p215
        %p449 = pneg %p239
        %p450 = pneg %p236
        %p451 = pneg %p260
        %p452 = pneg %p257
        %p453 = pneg %p281
        %p454 = pneg %p278
        %p455 = pneg %p302
        %p456 = pneg %p299
        %p457 = pneg %p328
        %p458 = pneg %p325
        %s459 = sand.u32 %s315, 1
        %s460 = scalar_lea.sflag [#allocation4], %s459
        %s461 = sand.u32 %s315, 1
        %s462 = smul.addr %s461, 64
        %s463 = scalar_lea.vmem [#allocation7], %s462
        %p464 = scmp.lt.s32.totalorder %s29, 1
        %s465 = scalar_select %p464, %s29, 1
        %s466 = smul.addr %s465, 8
        %s467 = smul.addr %s466, 8
        %s468 = scalar_lea.vmem %s0, %s467
        %v469 = vld [vmem:[%s468] sm:$0xff]
        %v470 = vld [vmem:[%s468 + $0x8] sm:$0xff]
        %v471 = vld [vmem:[%s468 + $0x10] sm:$0xff]
        %v472 = vld [vmem:[%s468 + $0x18] sm:$0xff]
        %v473 = vld [vmem:[%s468 + $0x20] sm:$0xff]
        %v474 = vld [vmem:[%s468 + $0x28] sm:$0xff]
        %v475 = vld [vmem:[%s468 + $0x30] sm:$0xff]
        %v476 = vld [vmem:[%s468 + $0x38] sm:$0xff]
        %v478 = vrot.slane %v470, 4
        %v481 = vrot.slane %v472, 4
        %v484 = vrot.slane %v469, 4
        %v487 = vrot.slane %v471, 4
        %v490 = vrot.slane %v474, 4
        %v493 = vrot.slane %v476, 4
        %v496 = vrot.slane %v473, 4
        %v499 = vrot.slane %v475, 4
        %vm501 = vcmask 1043456
        %v502 = vsel %vm501, %v469, %v478
        %v503 = vsel %vm501, %v471, %v481
        %v504 = vsel %vm501, %v484, %v470
        %v505 = vsel %vm501, %v487, %v472
        %v506 = vsel %vm501, %v473, %v490
        %v507 = vsel %vm501, %v475, %v493
        %v508 = vsel %vm501, %v496, %v474
        %v509 = vsel %vm501, %v499, %v476
        %v510 = vld [vmem:[%s1] sm:$0x1]
        %v511 = vld [vmem:[#allocation2] sm:$0x1]
        %vm512 = vcmask 261120
        %v513 = vsel %vm512, %v502, 0.0
        %514 = vadd.xlane.f32.xlu0 %v513
        %v515 = vpop.xlane.xlu0 %514
        %v516 = vsel %vm512, %v503, 0.0
        %517 = vadd.xlane.f32.xlu0 %v516
        %v518 = vpop.xlane.xlu0 %517
        %v519 = vsel %vm512, %v504, 0.0
        %520 = vadd.xlane.f32.xlu0 %v519
        %v521 = vpop.xlane.xlu0 %520
        %v522 = vsel %vm512, %v505, 0.0
        %523 = vadd.xlane.f32.xlu0 %v522
        %v524 = vpop.xlane.xlu0 %523
        %v525 = vsel %vm512, %v506, 0.0
        %526 = vadd.xlane.f32.xlu0 %v525
        %v527 = vpop.xlane.xlu0 %526
        %v528 = vsel %vm512, %v507, 0.0
        %529 = vadd.xlane.f32.xlu0 %v528
        %v530 = vpop.xlane.xlu0 %529
        %v531 = vsel %vm512, %v508, 0.0
        %532 = vadd.xlane.f32.xlu0 %v531
        %v533 = vpop.xlane.xlu0 %532
        %v534 = vsel %vm512, %v509, 0.0
        %535 = vadd.xlane.f32.xlu0 %v534
        %v536 = vpop.xlane.xlu0 %535
        %v537 = vrcp.pop 32.0
        %v538 = vmul.f32 %v515, %v537
        %v539 = vmul.f32 %v518, %v537
        %v540 = vmul.f32 %v521, %v537
        %v541 = vmul.f32 %v524, %v537
        %v542 = vmul.f32 %v527, %v537
        %v543 = vmul.f32 %v530, %v537
        %v544 = vmul.f32 %v533, %v537
        %v545 = vmul.f32 %v536, %v537
        %v546 = vsub.f32 %v502, %v538
        %v547 = vsub.f32 %v503, %v539
        %v548 = vsub.f32 %v504, %v540
        %v549 = vsub.f32 %v505, %v541
        %v550 = vsub.f32 %v506, %v542
        %v551 = vsub.f32 %v507, %v543
        %v552 = vsub.f32 %v508, %v544
        %v553 = vsub.f32 %v509, %v545
        %v554 = vmul.f32 %v546, %v546
        %v555 = vmul.f32 %v547, %v547
        %v556 = vmul.f32 %v548, %v548
        %v557 = vmul.f32 %v549, %v549
        %v558 = vmul.f32 %v550, %v550
        %v559 = vmul.f32 %v551, %v551
        %v560 = vmul.f32 %v552, %v552
        %v561 = vmul.f32 %v553, %v553
        %v562 = vsel %vm512, %v554, 0.0
        %563 = vadd.xlane.f32.xlu0 %v562
        %v564 = vpop.xlane.xlu0 %563
        %v565 = vsel %vm512, %v555, 0.0
        %566 = vadd.xlane.f32.xlu0 %v565
        %v567 = vpop.xlane.xlu0 %566
        %v568 = vsel %vm512, %v556, 0.0
        %569 = vadd.xlane.f32.xlu0 %v568
        %v570 = vpop.xlane.xlu0 %569
        %v571 = vsel %vm512, %v557, 0.0
        %572 = vadd.xlane.f32.xlu0 %v571
        %v573 = vpop.xlane.xlu0 %572
        %v574 = vsel %vm512, %v558, 0.0
        %575 = vadd.xlane.f32.xlu0 %v574
        %v576 = vpop.xlane.xlu0 %575
        %v577 = vsel %vm512, %v559, 0.0
        %578 = vadd.xlane.f32.xlu0 %v577
        %v579 = vpop.xlane.xlu0 %578
        %v580 = vsel %vm512, %v560, 0.0
        %581 = vadd.xlane.f32.xlu0 %v580
        %v582 = vpop.xlane.xlu0 %581
        %v583 = vsel %vm512, %v561, 0.0
        %584 = vadd.xlane.f32.xlu0 %v583
        %v585 = vpop.xlane.xlu0 %584
        %v586 = vmul.f32 %v564, %v537
        %v587 = vmul.f32 %v567, %v537
        %v588 = vmul.f32 %v570, %v537
        %v589 = vmul.f32 %v573, %v537
        %v590 = vmul.f32 %v576, %v537
        %v591 = vmul.f32 %v579, %v537
        %v592 = vmul.f32 %v582, %v537
        %v593 = vmul.f32 %v585, %v537
        %v594 = vadd.f32 %v586, 1e-05
        %v595 = vadd.f32 %v587, 1e-05
        %v596 = vadd.f32 %v588, 1e-05
        %v597 = vadd.f32 %v589, 1e-05
        %v598 = vadd.f32 %v590, 1e-05
        %v599 = vadd.f32 %v591, 1e-05
        %v600 = vadd.f32 %v592, 1e-05
        %v601 = vadd.f32 %v593, 1e-05
        %v602 = vrsqrt.pop %v594
        %v603 = vrsqrt.pop %v595
        %v604 = vrsqrt.pop %v596
        %v605 = vrsqrt.pop %v597
        %v606 = vrsqrt.pop %v598
        %v607 = vrsqrt.pop %v599
        %v608 = vrsqrt.pop %v600
        %v609 = vrsqrt.pop %v601
        %v610 = vmul.f32 %v546, %v602
        %v611 = vmul.f32 %v547, %v603
        %v612 = vmul.f32 %v548, %v604
        %v613 = vmul.f32 %v549, %v605
        %v614 = vmul.f32 %v550, %v606
        %v615 = vmul.f32 %v551, %v607
        %v616 = vmul.f32 %v552, %v608
        %v617 = vmul.f32 %v553, %v609
        %v619 = vlaneseq
        %v620 = vshrl.u32 %v619, 7
        %v621 = vsub.s32 0, %v620
        %v622 = vrot.slane %v510, %v621
        %v624 = vmul.f32 %v610, %v622
        %v625 = vmul.f32 %v611, %v622
        %v626 = vmul.f32 %v612, %v622
        %v627 = vmul.f32 %v613, %v622
        %v628 = vmul.f32 %v614, %v622
        %v629 = vmul.f32 %v615, %v622
        %v630 = vmul.f32 %v616, %v622
        %v631 = vmul.f32 %v617, %v622
        %v633 = vlaneseq
        %v634 = vshrl.u32 %v633, 7
        %v635 = vsub.s32 0, %v634
        %v636 = vrot.slane %v511, %v635
        %v638 = vadd.f32 %v624, %v636
        %v639 = vadd.f32 %v625, %v636
        %v640 = vadd.f32 %v626, %v636
        %v641 = vadd.f32 %v627, %v636
        %v642 = vadd.f32 %v628, %v636
        %v643 = vadd.f32 %v629, %v636
        %v644 = vadd.f32 %v630, %v636
        %v645 = vadd.f32 %v631, %v636
        %v646 = vld [vmem:[%s3] sm:$0xff]
        %v647 = vld [vmem:[%s3 + $0x8] sm:$0xff]
        %v648 = vld [vmem:[%s3 + $0x10] sm:$0xff]
        %v649 = vld [vmem:[%s3 + $0x18] sm:$0xff]
        %v650 = vld [vmem:[%s4] sm:$0x1]
        %v652 = vlaneseq
        %v653 = vshrl.u32 %v652, 7
        %v654 = vsub.s32 0, %v653
        %v655 = vrot.slane %v650, %v654
        %v658 = vsel %vm512, %v638, 0
        %v661 = vsel %vm512, %v639, 0
        %v664 = vsel %vm512, %v640, 0
        %v667 = vsel %vm512, %v641, 0
        %v670 = vsel %vm512, %v642, 0
        %v673 = vsel %vm512, %v643, 0
        %v676 = vsel %vm512, %v644, 0
        %v679 = vsel %vm512, %v645, 0
        %681 = vmatprep.subr.mxu0 0.0
        %682 = vmatpush1.msra.mxu0 %v646
        %683 = vmatprep.subr.mxu0 0.0
        %684 = vmatpush1.msra.mxu0 %v647
        %685 = vmatprep.subr.mxu0 0.0
        %686 = vmatpush1.msra.mxu0 %v648
        %687 = vmatprep.subr.mxu0 0.0
        %688 = vmatpush1.msra.mxu0 %v649
        %689 = vmatprep.subr.mxu0 0.0
        %690 = vmatpush1.msra.mxu0 0.0
        %691 = vmatprep.subr.mxu0 0.0
        %692 = vmatpush1.msra.mxu0 0.0
        %693 = vmatprep.subr.mxu0 0.0
        %694 = vmatpush1.msra.mxu0 0.0
        %695 = vmatprep.subr.mxu0 0.0
        %696 = vmatpush1.msra.mxu0 0.0
        %697 = vmatprep.subr.mxu0 0.0
        %698 = vmatpush1.msra.mxu0 0.0
        %699 = vmatprep.subr.mxu0 0.0
        %700 = vmatpush1.msra.mxu0 0.0
        %701 = vmatprep.subr.mxu0 0.0
        %702 = vmatpush1.msra.mxu0 0.0
        %703 = vmatprep.subr.mxu0 0.0
        %704 = vmatpush1.msra.mxu0 0.0
        %705 = vmatprep.subr.mxu0 0.0
        %706 = vmatpush1.msra.mxu0 0.0
        %707 = vmatprep.subr.mxu0 0.0
        %708 = vmatpush1.msra.mxu0 0.0
        %709 = vmatprep.subr.mxu0 0.0
        %710 = vmatpush1.msra.mxu0 0.0
        %711 = vmatprep.subr.mxu0 0.0
        %712 = vmatpush1.msra.mxu0 0.0
        %713 = vmatprep.subr.mxu0 0.0
        %714 = vmatpush1.msra.mxu0 0.0
        %715 = vmatprep.subr.mxu0 0.0
        %716 = vmatpush1.msra.mxu0 0.0
        %717 = vmatprep.subr.mxu0 0.0
        %718 = vmatpush1.msra.mxu0 0.0
        %719 = vmatprep.subr.mxu0 0.0
        %720 = vmatpush1.msra.mxu0 0.0
        %721 = vmatprep.subr.mxu0 0.0
        %722 = vmatpush1.msra.mxu0 0.0
        %723 = vmatprep.subr.mxu0 0.0
        %724 = vmatpush1.msra.mxu0 0.0
        %725 = vmatprep.subr.mxu0 0.0
        %726 = vmatpush1.msra.mxu0 0.0
        %727 = vmatprep.subr.mxu0 0.0
        %728 = vmatpush1.msra.mxu0 0.0
        %729 = vmatprep.subr.mxu0 0.0
        %730 = vmatpush1.msra.mxu0 0.0
        %731 = vmatprep.subr.mxu0 0.0
        %732 = vmatpush1.msra.mxu0 0.0
        %733 = vmatprep.subr.mxu0 0.0
        %734 = vmatpush1.msra.mxu0 0.0
        %735 = vmatprep.subr.mxu0 0.0
        %736 = vmatpush1.msra.mxu0 0.0
        %737 = vmatprep.subr.mxu0 0.0
        %738 = vmatpush1.msra.mxu0 0.0
        %739 = vmatprep.subr.mxu0 0.0
        %740 = vmatpush1.msra.mxu0 0.0
        %741 = vmatprep.subr.mxu0 0.0
        %742 = vmatpush1.msra.mxu0 0.0
        %743 = vmatprep.subr.mxu0 0.0
        %744 = vmatpush1.msra.mxu0 0.0
        %745 = vmatprep.mubr.f32.mxu0 0.0
        %746 = vmatmul.mubr.f32.gmra.mrb[0].mxu0 %v658
        %v747 = vpop.f32.mrb[0].mxu0
        %v748 = vadd.f32 %v655, %v747
        %v749 = vpop.f32.mrb[0].mxu0
        %750 = vmatprep.mubr.f32.mxu0 0.0
        %751 = vmatmul.mubr.f32.gmra.mrb[0].mxu0 %v661
        %v752 = vpop.f32.mrb[0].mxu0
        %v753 = vadd.f32 %v655, %v752
        %v754 = vpop.f32.mrb[0].mxu0
        %755 = vmatprep.mubr.f32.mxu0 0.0
        %756 = vmatmul.mubr.f32.gmra.mrb[0].mxu0 %v664
        %v757 = vpop.f32.mrb[0].mxu0
        %v758 = vadd.f32 %v655, %v757
        %v759 = vpop.f32.mrb[0].mxu0
        %760 = vmatprep.mubr.f32.mxu0 0.0
        %761 = vmatmul.mubr.f32.gmra.mrb[0].mxu0 %v667
        %v762 = vpop.f32.mrb[0].mxu0
        %v763 = vadd.f32 %v655, %v762
        %v764 = vpop.f32.mrb[0].mxu0
        %765 = vmatprep.mubr.f32.mxu0 0.0
        %766 = vmatmul.mubr.f32.gmra.mrb[0].mxu0 %v670
        %v767 = vpop.f32.mrb[0].mxu0
        %v768 = vadd.f32 %v655, %v767
        %v769 = vpop.f32.mrb[0].mxu0
        %770 = vmatprep.mubr.f32.mxu0 0.0
        %771 = vmatmul.mubr.f32.gmra.mrb[0].mxu0 %v673
        %v772 = vpop.f32.mrb[0].mxu0
        %v773 = vadd.f32 %v655, %v772
        %v774 = vpop.f32.mrb[0].mxu0
        %775 = vmatprep.mubr.f32.mxu0 0.0
        %776 = vmatmul.mubr.f32.gmra.mrb[0].mxu0 %v676
        %v777 = vpop.f32.mrb[0].mxu0
        %v778 = vadd.f32 %v655, %v777
        %v779 = vpop.f32.mrb[0].mxu0
        %780 = vmatprep.mubr.f32.mxu0 0.0
        %781 = vmatmul.mubr.f32.gmra.mrb[0].mxu0 %v679
        %v782 = vpop.f32.mrb[0].mxu0
        %v783 = vadd.f32 %v655, %v782
        %v784 = vpop.f32.mrb[0].mxu0
        %785 = vdwg.mxu0
        %v786 = vld [vmem:[%s5] sm:$0xff]
        %v787 = vld [vmem:[%s5 + $0x8] sm:$0xff]
        %v788 = vld [vmem:[%s5 + $0x10] sm:$0xff]
        %v789 = vld [vmem:[%s5 + $0x18] sm:$0xff]
        %792 = vrot.lane.b32.xlu0 %v748, 96
        %v793 = vpop.permute.xlu0 %792
        %794 = vrot.lane.b32.xlu0 %v753, 96
        %v795 = vpop.permute.xlu0 %794
        %vm796 = vcmask 64512
        %v797 = vsel %vm796, %v748, 0
        %v799 = vsel %vm796, %v753, 0
        %v801 = vsel %vm796, %v793, 0
        %v803 = vsel %vm796, %v795, 0
        %805 = vmatprep.subr.mxu0 0.0
        %806 = vmatpush1.xpose.msra.mxu0 %v801
        %807 = vmatprep.subr.mxu0 0.0
        %808 = vmatpush1.xpose.msra.mxu0 %v803
        %809 = vmatprep.subr.mxu0 0.0
        %810 = vmatpush1.xpose.msra.mxu0 0.0
        %811 = vmatprep.subr.mxu0 0.0
        %812 = vmatpush1.xpose.msra.mxu0 0.0
        %813 = vmatprep.subr.mxu0 0.0
        %814 = vmatpush1.xpose.msra.mxu0 0.0
        %815 = vmatprep.subr.mxu0 0.0
        %816 = vmatpush1.xpose.msra.mxu0 0.0
        %817 = vmatprep.subr.mxu0 0.0
        %818 = vmatpush1.xpose.msra.mxu0 0.0
        %819 = vmatprep.subr.mxu0 0.0
        %820 = vmatpush1.xpose.msra.mxu0 0.0
        %821 = vmatprep.subr.mxu0 0.0
        %822 = vmatpush1.xpose.msra.mxu0 0.0
        %823 = vmatprep.subr.mxu0 0.0
        %824 = vmatpush1.xpose.msra.mxu0 0.0
        %825 = vmatprep.subr.mxu0 0.0
        %826 = vmatpush1.xpose.msra.mxu0 0.0
        %827 = vmatprep.subr.mxu0 0.0
        %828 = vmatpush1.xpose.msra.mxu0 0.0
        %829 = vmatprep.subr.mxu0 0.0
        %830 = vmatpush1.xpose.msra.mxu0 0.0
        %831 = vmatprep.subr.mxu0 0.0
        %832 = vmatpush1.xpose.msra.mxu0 0.0
        %833 = vmatprep.subr.mxu0 0.0
        %834 = vmatpush1.xpose.msra.mxu0 0.0
        %835 = vmatprep.subr.mxu0 0.0
        %836 = vmatpush1.xpose.msra.mxu0 0.0
        %837 = vmatprep.subr.mxu0 0.0
        %838 = vmatpush1.xpose.msra.mxu0 0.0
        %839 = vmatprep.subr.mxu0 0.0
        %840 = vmatpush1.xpose.msra.mxu0 0.0
        %841 = vmatprep.subr.mxu0 0.0
        %842 = vmatpush1.xpose.msra.mxu0 0.0
        %843 = vmatprep.subr.mxu0 0.0
        %844 = vmatpush1.xpose.msra.mxu0 0.0
        %845 = vmatprep.subr.mxu0 0.0
        %846 = vmatpush1.xpose.msra.mxu0 0.0
        %847 = vmatprep.subr.mxu0 0.0
        %848 = vmatpush1.xpose.msra.mxu0 0.0
        %849 = vmatprep.subr.mxu0 0.0
        %850 = vmatpush1.xpose.msra.mxu0 0.0
        %851 = vmatprep.subr.mxu0 0.0
        %852 = vmatpush1.xpose.msra.mxu0 0.0
        %853 = vmatprep.subr.mxu0 0.0
        %854 = vmatpush1.xpose.msra.mxu0 0.0
        %855 = vmatprep.subr.mxu0 0.0
        %856 = vmatpush1.xpose.msra.mxu0 0.0
        %857 = vmatprep.subr.mxu0 0.0
        %858 = vmatpush1.xpose.msra.mxu0 0.0
        %859 = vmatprep.subr.mxu0 0.0
        %860 = vmatpush1.xpose.msra.mxu0 0.0
        %861 = vmatprep.subr.mxu0 0.0
        %862 = vmatpush1.xpose.msra.mxu0 0.0
        %863 = vmatprep.subr.mxu0 0.0
        %864 = vmatpush1.xpose.msra.mxu0 0.0
        %865 = vmatprep.subr.mxu0 0.0
        %866 = vmatpush1.xpose.msra.mxu0 0.0
        %867 = vmatprep.subr.mxu0 0.0
        %868 = vmatpush1.xpose.msra.mxu0 0.0
        %869 = vmatprep.mubr.f32.mxu0 0.0
        %870 = vmatmul.mubr.f32.gmra.mrb[0].mxu0 %v797
        %v871 = vpop.f32.mrb[0].mxu0
        %v872 = vadd.f32 0.0, %v871
        %v873 = vpop.f32.mrb[0].mxu0
        %874 = vmatprep.mubr.f32.mxu0 0.0
        %875 = vmatmul.mubr.f32.gmra.mrb[0].mxu0 %v799
        %v876 = vpop.f32.mrb[0].mxu0
        %v877 = vadd.f32 0.0, %v876
        %v878 = vpop.f32.mrb[0].mxu0
        %879 = vdwg.mxu0
        %882 = vrot.lane.b32.xlu0 %v758, 96
        %v883 = vpop.permute.xlu0 %882
        %884 = vrot.lane.b32.xlu0 %v763, 96
        %v885 = vpop.permute.xlu0 %884
        %v886 = vsel %vm796, %v758, 0
        %v888 = vsel %vm796, %v763, 0
        %v890 = vsel %vm796, %v883, 0
        %v892 = vsel %vm796, %v885, 0
        %894 = vmatprep.subr.mxu0 0.0
        %895 = vmatpush1.xpose.msra.mxu0 %v890
        %896 = vmatprep.subr.mxu0 0.0
        %897 = vmatpush1.xpose.msra.mxu0 %v892
        %898 = vmatprep.subr.mxu0 0.0
        %899 = vmatpush1.xpose.msra.mxu0 0.0
        %900 = vmatprep.subr.mxu0 0.0
        %901 = vmatpush1.xpose.msra.mxu0 0.0
        %902 = vmatprep.subr.mxu0 0.0
        %903 = vmatpush1.xpose.msra.mxu0 0.0
        %904 = vmatprep.subr.mxu0 0.0
        %905 = vmatpush1.xpose.msra.mxu0 0.0
        %906 = vmatprep.subr.mxu0 0.0
        %907 = vmatpush1.xpose.msra.mxu0 0.0
        %908 = vmatprep.subr.mxu0 0.0
        %909 = vmatpush1.xpose.msra.mxu0 0.0
        %910 = vmatprep.subr.mxu0 0.0
        %911 = vmatpush1.xpose.msra.mxu0 0.0
        %912 = vmatprep.subr.mxu0 0.0
        %913 = vmatpush1.xpose.msra.mxu0 0.0
        %914 = vmatprep.subr.mxu0 0.0
        %915 = vmatpush1.xpose.msra.mxu0 0.0
        %916 = vmatprep.subr.mxu0 0.0
        %917 = vmatpush1.xpose.msra.mxu0 0.0
        %918 = vmatprep.subr.mxu0 0.0
        %919 = vmatpush1.xpose.msra.mxu0 0.0
        %920 = vmatprep.subr.mxu0 0.0
        %921 = vmatpush1.xpose.msra.mxu0 0.0
        %922 = vmatprep.subr.mxu0 0.0
        %923 = vmatpush1.xpose.msra.mxu0 0.0
        %924 = vmatprep.subr.mxu0 0.0
        %925 = vmatpush1.xpose.msra.mxu0 0.0
        %926 = vmatprep.subr.mxu0 0.0
        %927 = vmatpush1.xpose.msra.mxu0 0.0
        %928 = vmatprep.subr.mxu0 0.0
        %929 = vmatpush1.xpose.msra.mxu0 0.0
        %930 = vmatprep.subr.mxu0 0.0
        %931 = vmatpush1.xpose.msra.mxu0 0.0
        %932 = vmatprep.subr.mxu0 0.0
        %933 = vmatpush1.xpose.msra.mxu0 0.0
        %934 = vmatprep.subr.mxu0 0.0
        %935 = vmatpush1.xpose.msra.mxu0 0.0
        %936 = vmatprep.subr.mxu0 0.0
        %937 = vmatpush1.xpose.msra.mxu0 0.0
        %938 = vmatprep.subr.mxu0 0.0
        %939 = vmatpush1.xpose.msra.mxu0 0.0
        %940 = vmatprep.subr.mxu0 0.0
        %941 = vmatpush1.xpose.msra.mxu0 0.0
        %942 = vmatprep.subr.mxu0 0.0
        %943 = vmatpush1.xpose.msra.mxu0 0.0
        %944 = vmatprep.subr.mxu0 0.0
        %945 = vmatpush1.xpose.msra.mxu0 0.0
        %946 = vmatprep.subr.mxu0 0.0
        %947 = vmatpush1.xpose.msra.mxu0 0.0
        %948 = vmatprep.subr.mxu0 0.0
        %949 = vmatpush1.xpose.msra.mxu0 0.0
        %950 = vmatprep.subr.mxu0 0.0
        %951 = vmatpush1.xpose.msra.mxu0 0.0
        %952 = vmatprep.subr.mxu0 0.0
        %953 = vmatpush1.xpose.msra.mxu0 0.0
        %954 = vmatprep.subr.mxu0 0.0
        %955 = vmatpush1.xpose.msra.mxu0 0.0
        %956 = vmatprep.subr.mxu0 0.0
        %957 = vmatpush1.xpose.msra.mxu0 0.0
        %958 = vmatprep.mubr.f32.mxu0 0.0
        %959 = vmatmul.mubr.f32.gmra.mrb[0].mxu0 %v886
        %v960 = vpop.f32.mrb[0].mxu0
        %v961 = vadd.f32 0.0, %v960
        %v962 = vpop.f32.mrb[0].mxu0
        %963 = vmatprep.mubr.f32.mxu0 0.0
        %964 = vmatmul.mubr.f32.gmra.mrb[0].mxu0 %v888
        %v965 = vpop.f32.mrb[0].mxu0
        %v966 = vadd.f32 0.0, %v965
        %v967 = vpop.f32.mrb[0].mxu0
        %968 = vdwg.mxu0
        %971 = vrot.lane.b32.xlu0 %v768, 96
        %v972 = vpop.permute.xlu0 %971
        %973 = vrot.lane.b32.xlu0 %v773, 96
        %v974 = vpop.permute.xlu0 %973
        %v975 = vsel %vm796, %v768, 0
        %v977 = vsel %vm796, %v773, 0
        %v979 = vsel %vm796, %v972, 0
        %v981 = vsel %vm796, %v974, 0
        %983 = vmatprep.subr.mxu0 0.0
        %984 = vmatpush1.xpose.msra.mxu0 %v979
        %985 = vmatprep.subr.mxu0 0.0
        %986 = vmatpush1.xpose.msra.mxu0 %v981
        %987 = vmatprep.subr.mxu0 0.0
        %988 = vmatpush1.xpose.msra.mxu0 0.0
        %989 = vmatprep.subr.mxu0 0.0
        %990 = vmatpush1.xpose.msra.mxu0 0.0
        %991 = vmatprep.subr.mxu0 0.0
        %992 = vmatpush1.xpose.msra.mxu0 0.0
        %993 = vmatprep.subr.mxu0 0.0
        %994 = vmatpush1.xpose.msra.mxu0 0.0
        %995 = vmatprep.subr.mxu0 0.0
        %996 = vmatpush1.xpose.msra.mxu0 0.0
        %997 = vmatprep.subr.mxu0 0.0
        %998 = vmatpush1.xpose.msra.mxu0 0.0
        %999 = vmatprep.subr.mxu0 0.0
        %1000 = vmatpush1.xpose.msra.mxu0 0.0
        %1001 = vmatprep.subr.mxu0 0.0
        %1002 = vmatpush1.xpose.msra.mxu0 0.0
        %1003 = vmatprep.subr.mxu0 0.0
        %1004 = vmatpush1.xpose.msra.mxu0 0.0
        %1005 = vmatprep.subr.mxu0 0.0
        %1006 = vmatpush1.xpose.msra.mxu0 0.0
        %1007 = vmatprep.subr.mxu0 0.0
        %1008 = vmatpush1.xpose.msra.mxu0 0.0
        %1009 = vmatprep.subr.mxu0 0.0
        %1010 = vmatpush1.xpose.msra.mxu0 0.0
        %1011 = vmatprep.subr.mxu0 0.0
        %1012 = vmatpush1.xpose.msra.mxu0 0.0
        %1013 = vmatprep.subr.mxu0 0.0
        %1014 = vmatpush1.xpose.msra.mxu0 0.0
        %1015 = vmatprep.subr.mxu0 0.0
        %1016 = vmatpush1.xpose.msra.mxu0 0.0
        %1017 = vmatprep.subr.mxu0 0.0
        %1018 = vmatpush1.xpose.msra.mxu0 0.0
        %1019 = vmatprep.subr.mxu0 0.0
        %1020 = vmatpush1.xpose.msra.mxu0 0.0
        %1021 = vmatprep.subr.mxu0 0.0
        %1022 = vmatpush1.xpose.msra.mxu0 0.0
        %1023 = vmatprep.subr.mxu0 0.0
        %1024 = vmatpush1.xpose.msra.mxu0 0.0
        %1025 = vmatprep.subr.mxu0 0.0
        %1026 = vmatpush1.xpose.msra.mxu0 0.0
        %1027 = vmatprep.subr.mxu0 0.0
        %1028 = vmatpush1.xpose.msra.mxu0 0.0
        %1029 = vmatprep.subr.mxu0 0.0
        %1030 = vmatpush1.xpose.msra.mxu0 0.0
        %1031 = vmatprep.subr.mxu0 0.0
        %1032 = vmatpush1.xpose.msra.mxu0 0.0
        %1033 = vmatprep.subr.mxu0 0.0
        %1034 = vmatpush1.xpose.msra.mxu0 0.0
        %1035 = vmatprep.subr.mxu0 0.0
        %1036 = vmatpush1.xpose.msra.mxu0 0.0
        %1037 = vmatprep.subr.mxu0 0.0
        %1038 = vmatpush1.xpose.msra.mxu0 0.0
        %1039 = vmatprep.subr.mxu0 0.0
        %1040 = vmatpush1.xpose.msra.mxu0 0.0
        %1041 = vmatprep.subr.mxu0 0.0
        %1042 = vmatpush1.xpose.msra.mxu0 0.0
        %1043 = vmatprep.subr.mxu0 0.0
        %1044 = vmatpush1.xpose.msra.mxu0 0.0
        %1045 = vmatprep.subr.mxu0 0.0
        %1046 = vmatpush1.xpose.msra.mxu0 0.0
        %1047 = vmatprep.mubr.f32.mxu0 0.0
        %1048 = vmatmul.mubr.f32.gmra.mrb[0].mxu0 %v975
        %v1049 = vpop.f32.mrb[0].mxu0
        %v1050 = vadd.f32 0.0, %v1049
        %v1051 = vpop.f32.mrb[0].mxu0
        %1052 = vmatprep.mubr.f32.mxu0 0.0
        %1053 = vmatmul.mubr.f32.gmra.mrb[0].mxu0 %v977
        %v1054 = vpop.f32.mrb[0].mxu0
        %v1055 = vadd.f32 0.0, %v1054
        %v1056 = vpop.f32.mrb[0].mxu0
        %1057 = vdwg.mxu0
        %1060 = vrot.lane.b32.xlu0 %v778, 96
        %v1061 = vpop.permute.xlu0 %1060
        %1062 = vrot.lane.b32.xlu0 %v783, 96
        %v1063 = vpop.permute.xlu0 %1062
        %v1064 = vsel %vm796, %v778, 0
        %v1066 = vsel %vm796, %v783, 0
        %v1068 = vsel %vm796, %v1061, 0
        %v1070 = vsel %vm796, %v1063, 0
        %1072 = vmatprep.subr.mxu0 0.0
        %1073 = vmatpush1.xpose.msra.mxu0 %v1068
        %1074 = vmatprep.subr.mxu0 0.0
        %1075 = vmatpush1.xpose.msra.mxu0 %v1070
        %1076 = vmatprep.subr.mxu0 0.0
        %1077 = vmatpush1.xpose.msra.mxu0 0.0
        %1078 = vmatprep.subr.mxu0 0.0
        %1079 = vmatpush1.xpose.msra.mxu0 0.0
        %1080 = vmatprep.subr.mxu0 0.0
        %1081 = vmatpush1.xpose.msra.mxu0 0.0
        %1082 = vmatprep.subr.mxu0 0.0
        %1083 = vmatpush1.xpose.msra.mxu0 0.0
        %1084 = vmatprep.subr.mxu0 0.0
        %1085 = vmatpush1.xpose.msra.mxu0 0.0
        %1086 = vmatprep.subr.mxu0 0.0
        %1087 = vmatpush1.xpose.msra.mxu0 0.0
        %1088 = vmatprep.subr.mxu0 0.0
        %1089 = vmatpush1.xpose.msra.mxu0 0.0
        %1090 = vmatprep.subr.mxu0 0.0
        %1091 = vmatpush1.xpose.msra.mxu0 0.0
        %1092 = vmatprep.subr.mxu0 0.0
        %1093 = vmatpush1.xpose.msra.mxu0 0.0
        %1094 = vmatprep.subr.mxu0 0.0
        %1095 = vmatpush1.xpose.msra.mxu0 0.0
        %1096 = vmatprep.subr.mxu0 0.0
        %1097 = vmatpush1.xpose.msra.mxu0 0.0
        %1098 = vmatprep.subr.mxu0 0.0
        %1099 = vmatpush1.xpose.msra.mxu0 0.0
        %1100 = vmatprep.subr.mxu0 0.0
        %1101 = vmatpush1.xpose.msra.mxu0 0.0
        %1102 = vmatprep.subr.mxu0 0.0
        %1103 = vmatpush1.xpose.msra.mxu0 0.0
        %1104 = vmatprep.subr.mxu0 0.0
        %1105 = vmatpush1.xpose.msra.mxu0 0.0
        %1106 = vmatprep.subr.mxu0 0.0
        %1107 = vmatpush1.xpose.msra.mxu0 0.0
        %1108 = vmatprep.subr.mxu0 0.0
        %1109 = vmatpush1.xpose.msra.mxu0 0.0
        %1110 = vmatprep.subr.mxu0 0.0
        %1111 = vmatpush1.xpose.msra.mxu0 0.0
        %1112 = vmatprep.subr.mxu0 0.0
        %1113 = vmatpush1.xpose.msra.mxu0 0.0
        %1114 = vmatprep.subr.mxu0 0.0
        %1115 = vmatpush1.xpose.msra.mxu0 0.0
        %1116 = vmatprep.subr.mxu0 0.0
        %1117 = vmatpush1.xpose.msra.mxu0 0.0
        %1118 = vmatprep.subr.mxu0 0.0
        %1119 = vmatpush1.xpose.msra.mxu0 0.0
        %1120 = vmatprep.subr.mxu0 0.0
        %1121 = vmatpush1.xpose.msra.mxu0 0.0
        %1122 = vmatprep.subr.mxu0 0.0
        %1123 = vmatpush1.xpose.msra.mxu0 0.0
        %1124 = vmatprep.subr.mxu0 0.0
        %1125 = vmatpush1.xpose.msra.mxu0 0.0
        %1126 = vmatprep.subr.mxu0 0.0
        %1127 = vmatpush1.xpose.msra.mxu0 0.0
        %1128 = vmatprep.subr.mxu0 0.0
        %1129 = vmatpush1.xpose.msra.mxu0 0.0
        %1130 = vmatprep.subr.mxu0 0.0
        %1131 = vmatpush1.xpose.msra.mxu0 0.0
        %1132 = vmatprep.subr.mxu0 0.0
        %1133 = vmatpush1.xpose.msra.mxu0 0.0
        %1134 = vmatprep.subr.mxu0 0.0
        %1135 = vmatpush1.xpose.msra.mxu0 0.0
        %1136 = vmatprep.mubr.f32.mxu0 0.0
        %1137 = vmatmul.mubr.f32.gmra.mrb[0].mxu0 %v1064
        %v1138 = vpop.f32.mrb[0].mxu0
        %v1139 = vadd.f32 0.0, %v1138
        %v1140 = vpop.f32.mrb[0].mxu0
        %1141 = vmatprep.mubr.f32.mxu0 0.0
        %1142 = vmatmul.mubr.f32.gmra.mrb[0].mxu0 %v1066
        %v1143 = vpop.f32.mrb[0].mxu0
        %v1144 = vadd.f32 0.0, %v1143
        %v1145 = vpop.f32.mrb[0].mxu0
        %1146 = vdwg.mxu0
        %v1147 = vmul.f32 %v872, 0.35355338
        %v1148 = vmul.f32 %v877, 0.35355338
        %v1149 = vmul.f32 %v961, 0.35355338
        %v1150 = vmul.f32 %v966, 0.35355338
        %v1151 = vmul.f32 %v1050, 0.35355338
        %v1152 = vmul.f32 %v1055, 0.35355338
        %v1153 = vmul.f32 %v1139, 0.35355338
        %v1154 = vmul.f32 %v1144, 0.35355338
        %vm1155 = vcmask 130048
        %v1156 = vsel %vm1155, %v1147, -inf
        %1157 = vmax.xlane.f32.xlu0 %v1156
        %v1158 = vpop.xlane.xlu0 %1157
        %v1159 = vsel %vm1155, %v1148, -inf
        %1160 = vmax.xlane.f32.xlu0 %v1159
        %v1161 = vpop.xlane.xlu0 %1160
        %v1162 = vsel %vm1155, %v1149, -inf
        %1163 = vmax.xlane.f32.xlu0 %v1162
        %v1164 = vpop.xlane.xlu0 %1163
        %v1165 = vsel %vm1155, %v1150, -inf
        %1166 = vmax.xlane.f32.xlu0 %v1165
        %v1167 = vpop.xlane.xlu0 %1166
        %v1168 = vsel %vm1155, %v1151, -inf
        %1169 = vmax.xlane.f32.xlu0 %v1168
        %v1170 = vpop.xlane.xlu0 %1169
        %v1171 = vsel %vm1155, %v1152, -inf
        %1172 = vmax.xlane.f32.xlu0 %v1171
        %v1173 = vpop.xlane.xlu0 %1172
        %v1174 = vsel %vm1155, %v1153, -inf
        %1175 = vmax.xlane.f32.xlu0 %v1174
        %v1176 = vpop.xlane.xlu0 %1175
        %v1177 = vsel %vm1155, %v1154, -inf
        %1178 = vmax.xlane.f32.xlu0 %v1177
        %v1179 = vpop.xlane.xlu0 %1178
        %v1180 = vsub.f32 %v1147, %v1158
        %v1181 = vsub.f32 %v1148, %v1161
        %v1182 = vsub.f32 %v1149, %v1164
        %v1183 = vsub.f32 %v1150, %v1167
        %v1184 = vsub.f32 %v1151, %v1170
        %v1185 = vsub.f32 %v1152, %v1173
        %v1186 = vsub.f32 %v1153, %v1176
        %v1187 = vsub.f32 %v1154, %v1179
        %v1188 = vmul.f32 %v1180, 1.442695
        %v1189 = vpow.pop %v1188
        %v1190 = vmul.f32 %v1181, 1.442695
        %v1191 = vpow.pop %v1190
        %v1192 = vmul.f32 %v1182, 1.442695
        %v1193 = vpow.pop %v1192
        %v1194 = vmul.f32 %v1183, 1.442695
        %v1195 = vpow.pop %v1194
        %v1196 = vmul.f32 %v1184, 1.442695
        %v1197 = vpow.pop %v1196
        %v1198 = vmul.f32 %v1185, 1.442695
        %v1199 = vpow.pop %v1198
        %v1200 = vmul.f32 %v1186, 1.442695
        %v1201 = vpow.pop %v1200
        %v1202 = vmul.f32 %v1187, 1.442695
        %v1203 = vpow.pop %v1202
        %v1204 = vsel %vm1155, %v1189, 0.0
        %1205 = vadd.xlane.f32.xlu0 %v1204
        %v1206 = vpop.xlane.xlu0 %1205
        %v1207 = vsel %vm1155, %v1191, 0.0
        %1208 = vadd.xlane.f32.xlu0 %v1207
        %v1209 = vpop.xlane.xlu0 %1208
        %v1210 = vsel %vm1155, %v1193, 0.0
        %1211 = vadd.xlane.f32.xlu0 %v1210
        %v1212 = vpop.xlane.xlu0 %1211
        %v1213 = vsel %vm1155, %v1195, 0.0
        %1214 = vadd.xlane.f32.xlu0 %v1213
        %v1215 = vpop.xlane.xlu0 %1214
        %v1216 = vsel %vm1155, %v1197, 0.0
        %1217 = vadd.xlane.f32.xlu0 %v1216
        %v1218 = vpop.xlane.xlu0 %1217
        %v1219 = vsel %vm1155, %v1199, 0.0
        %1220 = vadd.xlane.f32.xlu0 %v1219
        %v1221 = vpop.xlane.xlu0 %1220
        %v1222 = vsel %vm1155, %v1201, 0.0
        %1223 = vadd.xlane.f32.xlu0 %v1222
        %v1224 = vpop.xlane.xlu0 %1223
        %v1225 = vsel %vm1155, %v1203, 0.0
        %1226 = vadd.xlane.f32.xlu0 %v1225
        %v1227 = vpop.xlane.xlu0 %1226
        %v1228 = vrcp.pop %v1206
        %v1229 = vmul.f32 %v1189, %v1228
        %v1230 = vrcp.pop %v1209
        %v1231 = vmul.f32 %v1191, %v1230
        %v1232 = vrcp.pop %v1212
        %v1233 = vmul.f32 %v1193, %v1232
        %v1234 = vrcp.pop %v1215
        %v1235 = vmul.f32 %v1195, %v1234
        %v1236 = vrcp.pop %v1218
        %v1237 = vmul.f32 %v1197, %v1236
        %v1238 = vrcp.pop %v1221
        %v1239 = vmul.f32 %v1199, %v1238
        %v1240 = vrcp.pop %v1224
        %v1241 = vmul.f32 %v1201, %v1240
        %v1242 = vrcp.pop %v1227
        %v1243 = vmul.f32 %v1203, %v1242
        %1244 = vrot.lane.b32.xlu0 %v748, 64
        %v1245 = vpop.permute.xlu0 %1244
        %1246 = vrot.lane.b32.xlu0 %v753, 64
        %v1247 = vpop.permute.xlu0 %1246
        %v1251 = vsel %vm1155, %v1229, 0
        %v1254 = vsel %vm1155, %v1231, 0
        %1256 = vmatprep.subr.mxu0 0.0
        %1257 = vmatpush1.msra.mxu0 %v1245
        %1258 = vmatprep.subr.mxu0 0.0
        %1259 = vmatpush1.msra.mxu0 %v1247
        %1260 = vmatprep.subr.mxu0 0.0
        %1261 = vmatpush1.msra.mxu0 0.0
        %1262 = vmatprep.subr.mxu0 0.0
        %1263 = vmatpush1.msra.mxu0 0.0
        %1264 = vmatprep.subr.mxu0 0.0
        %1265 = vmatpush1.msra.mxu0 0.0
        %1266 = vmatprep.subr.mxu0 0.0
        %1267 = vmatpush1.msra.mxu0 0.0
        %1268 = vmatprep.subr.mxu0 0.0
        %1269 = vmatpush1.msra.mxu0 0.0
        %1270 = vmatprep.subr.mxu0 0.0
        %1271 = vmatpush1.msra.mxu0 0.0
        %1272 = vmatprep.subr.mxu0 0.0
        %1273 = vmatpush1.msra.mxu0 0.0
        %1274 = vmatprep.subr.mxu0 0.0
        %1275 = vmatpush1.msra.mxu0 0.0
        %1276 = vmatprep.subr.mxu0 0.0
        %1277 = vmatpush1.msra.mxu0 0.0
        %1278 = vmatprep.subr.mxu0 0.0
        %1279 = vmatpush1.msra.mxu0 0.0
        %1280 = vmatprep.subr.mxu0 0.0
        %1281 = vmatpush1.msra.mxu0 0.0
        %1282 = vmatprep.subr.mxu0 0.0
        %1283 = vmatpush1.msra.mxu0 0.0
        %1284 = vmatprep.subr.mxu0 0.0
        %1285 = vmatpush1.msra.mxu0 0.0
        %1286 = vmatprep.subr.mxu0 0.0
        %1287 = vmatpush1.msra.mxu0 0.0
        %1288 = vmatprep.subr.mxu0 0.0
        %1289 = vmatpush1.msra.mxu0 0.0
        %1290 = vmatprep.subr.mxu0 0.0
        %1291 = vmatpush1.msra.mxu0 0.0
        %1292 = vmatprep.subr.mxu0 0.0
        %1293 = vmatpush1.msra.mxu0 0.0
        %1294 = vmatprep.subr.mxu0 0.0
        %1295 = vmatpush1.msra.mxu0 0.0
        %1296 = vmatprep.subr.mxu0 0.0
        %1297 = vmatpush1.msra.mxu0 0.0
        %1298 = vmatprep.subr.mxu0 0.0
        %1299 = vmatpush1.msra.mxu0 0.0
        %1300 = vmatprep.subr.mxu0 0.0
        %1301 = vmatpush1.msra.mxu0 0.0
        %1302 = vmatprep.subr.mxu0 0.0
        %1303 = vmatpush1.msra.mxu0 0.0
        %1304 = vmatprep.subr.mxu0 0.0
        %1305 = vmatpush1.msra.mxu0 0.0
        %1306 = vmatprep.subr.mxu0 0.0
        %1307 = vmatpush1.msra.mxu0 0.0
        %1308 = vmatprep.subr.mxu0 0.0
        %1309 = vmatpush1.msra.mxu0 0.0
        %1310 = vmatprep.subr.mxu0 0.0
        %1311 = vmatpush1.msra.mxu0 0.0
        %1312 = vmatprep.subr.mxu0 0.0
        %1313 = vmatpush1.msra.mxu0 0.0
        %1314 = vmatprep.subr.mxu0 0.0
        %1315 = vmatpush1.msra.mxu0 0.0
        %1316 = vmatprep.subr.mxu0 0.0
        %1317 = vmatpush1.msra.mxu0 0.0
        %1318 = vmatprep.subr.mxu0 0.0
        %1319 = vmatpush1.msra.mxu0 0.0
        %1320 = vmatprep.mubr.f32.mxu0 0.0
        %1321 = vmatmul.mubr.f32.gmra.mrb[0].mxu0 %v1251
        %v1322 = vpop.f32.mrb[0].mxu0
        %v1323 = vadd.f32 0.0, %v1322
        %v1324 = vpop.f32.mrb[0].mxu0
        %1325 = vmatprep.mubr.f32.mxu0 0.0
        %1326 = vmatmul.mubr.f32.gmra.mrb[0].mxu0 %v1254
        %v1327 = vpop.f32.mrb[0].mxu0
        %v1328 = vadd.f32 0.0, %v1327
        %v1329 = vpop.f32.mrb[0].mxu0
        %1330 = vdwg.mxu0
        %1331 = vrot.lane.b32.xlu0 %v758, 64
        %v1332 = vpop.permute.xlu0 %1331
        %1333 = vrot.lane.b32.xlu0 %v763, 64
        %v1334 = vpop.permute.xlu0 %1333
        %v1338 = vsel %vm1155, %v1233, 0
        %v1341 = vsel %vm1155, %v1235, 0
        %1343 = vmatprep.subr.mxu0 0.0
        %1344 = vmatpush1.msra.mxu0 %v1332
        %1345 = vmatprep.subr.mxu0 0.0
        %1346 = vmatpush1.msra.mxu0 %v1334
        %1347 = vmatprep.subr.mxu0 0.0
        %1348 = vmatpush1.msra.mxu0 0.0
        %1349 = vmatprep.subr.mxu0 0.0
        %1350 = vmatpush1.msra.mxu0 0.0
        %1351 = vmatprep.subr.mxu0 0.0
        %1352 = vmatpush1.msra.mxu0 0.0
        %1353 = vmatprep.subr.mxu0 0.0
        %1354 = vmatpush1.msra.mxu0 0.0
        %1355 = vmatprep.subr.mxu0 0.0
        %1356 = vmatpush1.msra.mxu0 0.0
        %1357 = vmatprep.subr.mxu0 0.0
        %1358 = vmatpush1.msra.mxu0 0.0
        %1359 = vmatprep.subr.mxu0 0.0
        %1360 = vmatpush1.msra.mxu0 0.0
        %1361 = vmatprep.subr.mxu0 0.0
        %1362 = vmatpush1.msra.mxu0 0.0
        %1363 = vmatprep.subr.mxu0 0.0
        %1364 = vmatpush1.msra.mxu0 0.0
        %1365 = vmatprep.subr.mxu0 0.0
        %1366 = vmatpush1.msra.mxu0 0.0
        %1367 = vmatprep.subr.mxu0 0.0
        %1368 = vmatpush1.msra.mxu0 0.0
        %1369 = vmatprep.subr.mxu0 0.0
        %1370 = vmatpush1.msra.mxu0 0.0
        %1371 = vmatprep.subr.mxu0 0.0
        %1372 = vmatpush1.msra.mxu0 0.0
        %1373 = vmatprep.subr.mxu0 0.0
        %1374 = vmatpush1.msra.mxu0 0.0
        %1375 = vmatprep.subr.mxu0 0.0
        %1376 = vmatpush1.msra.mxu0 0.0
        %1377 = vmatprep.subr.mxu0 0.0
        %1378 = vmatpush1.msra.mxu0 0.0
        %1379 = vmatprep.subr.mxu0 0.0
        %1380 = vmatpush1.msra.mxu0 0.0
        %1381 = vmatprep.subr.mxu0 0.0
        %1382 = vmatpush1.msra.mxu0 0.0
        %1383 = vmatprep.subr.mxu0 0.0
        %1384 = vmatpush1.msra.mxu0 0.0
        %1385 = vmatprep.subr.mxu0 0.0
        %1386 = vmatpush1.msra.mxu0 0.0
        %1387 = vmatprep.subr.mxu0 0.0
        %1388 = vmatpush1.msra.mxu0 0.0
        %1389 = vmatprep.subr.mxu0 0.0
        %1390 = vmatpush1.msra.mxu0 0.0
        %1391 = vmatprep.subr.mxu0 0.0
        %1392 = vmatpush1.msra.mxu0 0.0
        %1393 = vmatprep.subr.mxu0 0.0
        %1394 = vmatpush1.msra.mxu0 0.0
        %1395 = vmatprep.subr.mxu0 0.0
        %1396 = vmatpush1.msra.mxu0 0.0
        %1397 = vmatprep.subr.mxu0 0.0
        %1398 = vmatpush1.msra.mxu0 0.0
        %1399 = vmatprep.subr.mxu0 0.0
        %1400 = vmatpush1.msra.mxu0 0.0
        %1401 = vmatprep.subr.mxu0 0.0
        %1402 = vmatpush1.msra.mxu0 0.0
        %1403 = vmatprep.subr.mxu0 0.0
        %1404 = vmatpush1.msra.mxu0 0.0
        %1405 = vmatprep.subr.mxu0 0.0
        %1406 = vmatpush1.msra.mxu0 0.0
        %1407 = vmatprep.mubr.f32.mxu0 0.0
        %1408 = vmatmul.mubr.f32.gmra.mrb[0].mxu0 %v1338
        %v1409 = vpop.f32.mrb[0].mxu0
        %v1410 = vadd.f32 0.0, %v1409
        %v1411 = vpop.f32.mrb[0].mxu0
        %1412 = vmatprep.mubr.f32.mxu0 0.0
        %1413 = vmatmul.mubr.f32.gmra.mrb[0].mxu0 %v1341
        %v1414 = vpop.f32.mrb[0].mxu0
        %v1415 = vadd.f32 0.0, %v1414
        %v1416 = vpop.f32.mrb[0].mxu0
        %1417 = vdwg.mxu0
        %1418 = vrot.lane.b32.xlu0 %v768, 64
        %v1419 = vpop.permute.xlu0 %1418
        %1420 = vrot.lane.b32.xlu0 %v773, 64
        %v1421 = vpop.permute.xlu0 %1420
        %v1425 = vsel %vm1155, %v1237, 0
        %v1428 = vsel %vm1155, %v1239, 0
        %1430 = vmatprep.subr.mxu0 0.0
        %1431 = vmatpush1.msra.mxu0 %v1419
        %1432 = vmatprep.subr.mxu0 0.0
        %1433 = vmatpush1.msra.mxu0 %v1421
        %1434 = vmatprep.subr.mxu0 0.0
        %1435 = vmatpush1.msra.mxu0 0.0
        %1436 = vmatprep.subr.mxu0 0.0
        %1437 = vmatpush1.msra.mxu0 0.0
        %1438 = vmatprep.subr.mxu0 0.0
        %1439 = vmatpush1.msra.mxu0 0.0
        %1440 = vmatprep.subr.mxu0 0.0
        %1441 = vmatpush1.msra.mxu0 0.0
        %1442 = vmatprep.subr.mxu0 0.0
        %1443 = vmatpush1.msra.mxu0 0.0
        %1444 = vmatprep.subr.mxu0 0.0
        %1445 = vmatpush1.msra.mxu0 0.0
        %1446 = vmatprep.subr.mxu0 0.0
        %1447 = vmatpush1.msra.mxu0 0.0
        %1448 = vmatprep.subr.mxu0 0.0
        %1449 = vmatpush1.msra.mxu0 0.0
        %1450 = vmatprep.subr.mxu0 0.0
        %1451 = vmatpush1.msra.mxu0 0.0
        %1452 = vmatprep.subr.mxu0 0.0
        %1453 = vmatpush1.msra.mxu0 0.0
        %1454 = vmatprep.subr.mxu0 0.0
        %1455 = vmatpush1.msra.mxu0 0.0
        %1456 = vmatprep.subr.mxu0 0.0
        %1457 = vmatpush1.msra.mxu0 0.0
        %1458 = vmatprep.subr.mxu0 0.0
        %1459 = vmatpush1.msra.mxu0 0.0
        %1460 = vmatprep.subr.mxu0 0.0
        %1461 = vmatpush1.msra.mxu0 0.0
        %1462 = vmatprep.subr.mxu0 0.0
        %1463 = vmatpush1.msra.mxu0 0.0
        %1464 = vmatprep.subr.mxu0 0.0
        %1465 = vmatpush1.msra.mxu0 0.0
        %1466 = vmatprep.subr.mxu0 0.0
        %1467 = vmatpush1.msra.mxu0 0.0
        %1468 = vmatprep.subr.mxu0 0.0
        %1469 = vmatpush1.msra.mxu0 0.0
        %1470 = vmatprep.subr.mxu0 0.0
        %1471 = vmatpush1.msra.mxu0 0.0
        %1472 = vmatprep.subr.mxu0 0.0
        %1473 = vmatpush1.msra.mxu0 0.0
        %1474 = vmatprep.subr.mxu0 0.0
        %1475 = vmatpush1.msra.mxu0 0.0
        %1476 = vmatprep.subr.mxu0 0.0
        %1477 = vmatpush1.msra.mxu0 0.0
        %1478 = vmatprep.subr.mxu0 0.0
        %1479 = vmatpush1.msra.mxu0 0.0
        %1480 = vmatprep.subr.mxu0 0.0
        %1481 = vmatpush1.msra.mxu0 0.0
        %1482 = vmatprep.subr.mxu0 0.0
        %1483 = vmatpush1.msra.mxu0 0.0
        %1484 = vmatprep.subr.mxu0 0.0
        %1485 = vmatpush1.msra.mxu0 0.0
        %1486 = vmatprep.subr.mxu0 0.0
        %1487 = vmatpush1.msra.mxu0 0.0
        %1488 = vmatprep.subr.mxu0 0.0
        %1489 = vmatpush1.msra.mxu0 0.0
        %1490 = vmatprep.subr.mxu0 0.0
        %1491 = vmatpush1.msra.mxu0 0.0
        %1492 = vmatprep.subr.mxu0 0.0
        %1493 = vmatpush1.msra.mxu0 0.0
        %1494 = vmatprep.mubr.f32.mxu0 0.0
        %1495 = vmatmul.mubr.f32.gmra.mrb[0].mxu0 %v1425
        %v1496 = vpop.f32.mrb[0].mxu0
        %v1497 = vadd.f32 0.0, %v1496
        %v1498 = vpop.f32.mrb[0].mxu0
        %1499 = vmatprep.mubr.f32.mxu0 0.0
        %1500 = vmatmul.mubr.f32.gmra.mrb[0].mxu0 %v1428
        %v1501 = vpop.f32.mrb[0].mxu0
        %v1502 = vadd.f32 0.0, %v1501
        %v1503 = vpop.f32.mrb[0].mxu0
        %1504 = vdwg.mxu0
        %1505 = vrot.lane.b32.xlu0 %v778, 64
        %v1506 = vpop.permute.xlu0 %1505
        %1507 = vrot.lane.b32.xlu0 %v783, 64
        %v1508 = vpop.permute.xlu0 %1507
        %v1512 = vsel %vm1155, %v1241, 0
        %v1515 = vsel %vm1155, %v1243, 0
        %1517 = vmatprep.subr.mxu0 0.0
        %1518 = vmatpush1.msra.mxu0 %v1506
        %1519 = vmatprep.subr.mxu0 0.0
        %1520 = vmatpush1.msra.mxu0 %v1508
        %1521 = vmatprep.subr.mxu0 0.0
        %1522 = vmatpush1.msra.mxu0 0.0
        %1523 = vmatprep.subr.mxu0 0.0
        %1524 = vmatpush1.msra.mxu0 0.0
        %1525 = vmatprep.subr.mxu0 0.0
        %1526 = vmatpush1.msra.mxu0 0.0
        %1527 = vmatprep.subr.mxu0 0.0
        %1528 = vmatpush1.msra.mxu0 0.0
        %1529 = vmatprep.subr.mxu0 0.0
        %1530 = vmatpush1.msra.mxu0 0.0
        %1531 = vmatprep.subr.mxu0 0.0
        %1532 = vmatpush1.msra.mxu0 0.0
        %1533 = vmatprep.subr.mxu0 0.0
        %1534 = vmatpush1.msra.mxu0 0.0
        %1535 = vmatprep.subr.mxu0 0.0
        %1536 = vmatpush1.msra.mxu0 0.0
        %1537 = vmatprep.subr.mxu0 0.0
        %1538 = vmatpush1.msra.mxu0 0.0
        %1539 = vmatprep.subr.mxu0 0.0
        %1540 = vmatpush1.msra.mxu0 0.0
        %1541 = vmatprep.subr.mxu0 0.0
        %1542 = vmatpush1.msra.mxu0 0.0
        %1543 = vmatprep.subr.mxu0 0.0
        %1544 = vmatpush1.msra.mxu0 0.0
        %1545 = vmatprep.subr.mxu0 0.0
        %1546 = vmatpush1.msra.mxu0 0.0
        %1547 = vmatprep.subr.mxu0 0.0
        %1548 = vmatpush1.msra.mxu0 0.0
        %1549 = vmatprep.subr.mxu0 0.0
        %1550 = vmatpush1.msra.mxu0 0.0
        %1551 = vmatprep.subr.mxu0 0.0
        %1552 = vmatpush1.msra.mxu0 0.0
        %1553 = vmatprep.subr.mxu0 0.0
        %1554 = vmatpush1.msra.mxu0 0.0
        %1555 = vmatprep.subr.mxu0 0.0
        %1556 = vmatpush1.msra.mxu0 0.0
        %1557 = vmatprep.subr.mxu0 0.0
        %1558 = vmatpush1.msra.mxu0 0.0
        %1559 = vmatprep.subr.mxu0 0.0
        %1560 = vmatpush1.msra.mxu0 0.0
        %1561 = vmatprep.subr.mxu0 0.0
        %1562 = vmatpush1.msra.mxu0 0.0
        %1563 = vmatprep.subr.mxu0 0.0
        %1564 = vmatpush1.msra.mxu0 0.0
        %1565 = vmatprep.subr.mxu0 0.0
        %1566 = vmatpush1.msra.mxu0 0.0
        %1567 = vmatprep.subr.mxu0 0.0
        %1568 = vmatpush1.msra.mxu0 0.0
        %1569 = vmatprep.subr.mxu0 0.0
        %1570 = vmatpush1.msra.mxu0 0.0
        %1571 = vmatprep.subr.mxu0 0.0
        %1572 = vmatpush1.msra.mxu0 0.0
        %1573 = vmatprep.subr.mxu0 0.0
        %1574 = vmatpush1.msra.mxu0 0.0
        %1575 = vmatprep.subr.mxu0 0.0
        %1576 = vmatpush1.msra.mxu0 0.0
        %1577 = vmatprep.subr.mxu0 0.0
        %1578 = vmatpush1.msra.mxu0 0.0
        %1579 = vmatprep.subr.mxu0 0.0
        %1580 = vmatpush1.msra.mxu0 0.0
        %1581 = vmatprep.mubr.f32.mxu0 0.0
        %1582 = vmatmul.mubr.f32.gmra.mrb[0].mxu0 %v1512
        %v1583 = vpop.f32.mrb[0].mxu0
        %v1584 = vadd.f32 0.0, %v1583
        %v1585 = vpop.f32.mrb[0].mxu0
        %1586 = vmatprep.mubr.f32.mxu0 0.0
        %1587 = vmatmul.mubr.f32.gmra.mrb[0].mxu0 %v1515
        %v1588 = vpop.f32.mrb[0].mxu0
        %v1589 = vadd.f32 0.0, %v1588
        %v1590 = vpop.f32.mrb[0].mxu0
        %1591 = vdwg.mxu0
        %1592 = vrot.lane.b32.xlu0 %v748, 120
        %v1593 = vpop.permute.xlu0 %1592
        %1594 = vrot.lane.b32.xlu0 %v753, 120
        %v1595 = vpop.permute.xlu0 %1594
        %1596 = vrot.lane.b32.xlu0 %v748, 88
        %v1597 = vpop.permute.xlu0 %1596
        %1598 = vrot.lane.b32.xlu0 %v753, 88
        %v1599 = vpop.permute.xlu0 %1598
        %v1600 = vsel %vm796, %v1593, 0
        %v1602 = vsel %vm796, %v1595, 0
        %v1604 = vsel %vm796, %v1597, 0
        %v1606 = vsel %vm796, %v1599, 0
        %1608 = vmatprep.subr.mxu0 0.0
        %1609 = vmatpush1.xpose.msra.mxu0 %v1604
        %1610 = vmatprep.subr.mxu0 0.0
        %1611 = vmatpush1.xpose.msra.mxu0 %v1606
        %1612 = vmatprep.subr.mxu0 0.0
        %1613 = vmatpush1.xpose.msra.mxu0 0.0
        %1614 = vmatprep.subr.mxu0 0.0
        %1615 = vmatpush1.xpose.msra.mxu0 0.0
        %1616 = vmatprep.subr.mxu0 0.0
        %1617 = vmatpush1.xpose.msra.mxu0 0.0
        %1618 = vmatprep.subr.mxu0 0.0
        %1619 = vmatpush1.xpose.msra.mxu0 0.0
        %1620 = vmatprep.subr.mxu0 0.0
        %1621 = vmatpush1.xpose.msra.mxu0 0.0
        %1622 = vmatprep.subr.mxu0 0.0
        %1623 = vmatpush1.xpose.msra.mxu0 0.0
        %1624 = vmatprep.subr.mxu0 0.0
        %1625 = vmatpush1.xpose.msra.mxu0 0.0
        %1626 = vmatprep.subr.mxu0 0.0
        %1627 = vmatpush1.xpose.msra.mxu0 0.0
        %1628 = vmatprep.subr.mxu0 0.0
        %1629 = vmatpush1.xpose.msra.mxu0 0.0
        %1630 = vmatprep.subr.mxu0 0.0
        %1631 = vmatpush1.xpose.msra.mxu0 0.0
        %1632 = vmatprep.subr.mxu0 0.0
        %1633 = vmatpush1.xpose.msra.mxu0 0.0
        %1634 = vmatprep.subr.mxu0 0.0
        %1635 = vmatpush1.xpose.msra.mxu0 0.0
        %1636 = vmatprep.subr.mxu0 0.0
        %1637 = vmatpush1.xpose.msra.mxu0 0.0
        %1638 = vmatprep.subr.mxu0 0.0
        %1639 = vmatpush1.xpose.msra.mxu0 0.0
        %1640 = vmatprep.subr.mxu0 0.0
        %1641 = vmatpush1.xpose.msra.mxu0 0.0
        %1642 = vmatprep.subr.mxu0 0.0
        %1643 = vmatpush1.xpose.msra.mxu0 0.0
        %1644 = vmatprep.subr.mxu0 0.0
        %1645 = vmatpush1.xpose.msra.mxu0 0.0
        %1646 = vmatprep.subr.mxu0 0.0
        %1647 = vmatpush1.xpose.msra.mxu0 0.0
        %1648 = vmatprep.subr.mxu0 0.0
        %1649 = vmatpush1.xpose.msra.mxu0 0.0
        %1650 = vmatprep.subr.mxu0 0.0
        %1651 = vmatpush1.xpose.msra.mxu0 0.0
        %1652 = vmatprep.subr.mxu0 0.0
        %1653 = vmatpush1.xpose.msra.mxu0 0.0
        %1654 = vmatprep.subr.mxu0 0.0
        %1655 = vmatpush1.xpose.msra.mxu0 0.0
        %1656 = vmatprep.subr.mxu0 0.0
        %1657 = vmatpush1.xpose.msra.mxu0 0.0
        %1658 = vmatprep.subr.mxu0 0.0
        %1659 = vmatpush1.xpose.msra.mxu0 0.0
        %1660 = vmatprep.subr.mxu0 0.0
        %1661 = vmatpush1.xpose.msra.mxu0 0.0
        %1662 = vmatprep.subr.mxu0 0.0
        %1663 = vmatpush1.xpose.msra.mxu0 0.0
        %1664 = vmatprep.subr.mxu0 0.0
        %1665 = vmatpush1.xpose.msra.mxu0 0.0
        %1666 = vmatprep.subr.mxu0 0.0
        %1667 = vmatpush1.xpose.msra.mxu0 0.0
        %1668 = vmatprep.subr.mxu0 0.0
        %1669 = vmatpush1.xpose.msra.mxu0 0.0
        %1670 = vmatprep.subr.mxu0 0.0
        %1671 = vmatpush1.xpose.msra.mxu0 0.0
        %1672 = vmatprep.mubr.f32.mxu0 0.0
        %1673 = vmatmul.mubr.f32.gmra.mrb[0].mxu0 %v1600
        %v1674 = vpop.f32.mrb[0].mxu0
        %v1675 = vadd.f32 0.0, %v1674
        %v1676 = vpop.f32.mrb[0].mxu0
        %1677 = vmatprep.mubr.f32.mxu0 0.0
        %1678 = vmatmul.mubr.f32.gmra.mrb[0].mxu0 %v1602
        %v1679 = vpop.f32.mrb[0].mxu0
        %v1680 = vadd.f32 0.0, %v1679
        %v1681 = vpop.f32.mrb[0].mxu0
        %1682 = vdwg.mxu0
        %1683 = vrot.lane.b32.xlu0 %v758, 120
        %v1684 = vpop.permute.xlu0 %1683
        %1685 = vrot.lane.b32.xlu0 %v763, 120
        %v1686 = vpop.permute.xlu0 %1685
        %1687 = vrot.lane.b32.xlu0 %v758, 88
        %v1688 = vpop.permute.xlu0 %1687
        %1689 = vrot.lane.b32.xlu0 %v763, 88
        %v1690 = vpop.permute.xlu0 %1689
        %v1691 = vsel %vm796, %v1684, 0
        %v1693 = vsel %vm796, %v1686, 0
        %v1695 = vsel %vm796, %v1688, 0
        %v1697 = vsel %vm796, %v1690, 0
        %1699 = vmatprep.subr.mxu0 0.0
        %1700 = vmatpush1.xpose.msra.mxu0 %v1695
        %1701 = vmatprep.subr.mxu0 0.0
        %1702 = vmatpush1.xpose.msra.mxu0 %v1697
        %1703 = vmatprep.subr.mxu0 0.0
        %1704 = vmatpush1.xpose.msra.mxu0 0.0
        %1705 = vmatprep.subr.mxu0 0.0
        %1706 = vmatpush1.xpose.msra.mxu0 0.0
        %1707 = vmatprep.subr.mxu0 0.0
        %1708 = vmatpush1.xpose.msra.mxu0 0.0
        %1709 = vmatprep.subr.mxu0 0.0
        %1710 = vmatpush1.xpose.msra.mxu0 0.0
        %1711 = vmatprep.subr.mxu0 0.0
        %1712 = vmatpush1.xpose.msra.mxu0 0.0
        %1713 = vmatprep.subr.mxu0 0.0
        %1714 = vmatpush1.xpose.msra.mxu0 0.0
        %1715 = vmatprep.subr.mxu0 0.0
        %1716 = vmatpush1.xpose.msra.mxu0 0.0
        %1717 = vmatprep.subr.mxu0 0.0
        %1718 = vmatpush1.xpose.msra.mxu0 0.0
        %1719 = vmatprep.subr.mxu0 0.0
        %1720 = vmatpush1.xpose.msra.mxu0 0.0
        %1721 = vmatprep.subr.mxu0 0.0
        %1722 = vmatpush1.xpose.msra.mxu0 0.0
        %1723 = vmatprep.subr.mxu0 0.0
        %1724 = vmatpush1.xpose.msra.mxu0 0.0
        %1725 = vmatprep.subr.mxu0 0.0
        %1726 = vmatpush1.xpose.msra.mxu0 0.0
        %1727 = vmatprep.subr.mxu0 0.0
        %1728 = vmatpush1.xpose.msra.mxu0 0.0
        %1729 = vmatprep.subr.mxu0 0.0
        %1730 = vmatpush1.xpose.msra.mxu0 0.0
        %1731 = vmatprep.subr.mxu0 0.0
        %1732 = vmatpush1.xpose.msra.mxu0 0.0
        %1733 = vmatprep.subr.mxu0 0.0
        %1734 = vmatpush1.xpose.msra.mxu0 0.0
        %1735 = vmatprep.subr.mxu0 0.0
        %1736 = vmatpush1.xpose.msra.mxu0 0.0
        %1737 = vmatprep.subr.mxu0 0.0
        %1738 = vmatpush1.xpose.msra.mxu0 0.0
        %1739 = vmatprep.subr.mxu0 0.0
        %1740 = vmatpush1.xpose.msra.mxu0 0.0
        %1741 = vmatprep.subr.mxu0 0.0
        %1742 = vmatpush1.xpose.msra.mxu0 0.0
        %1743 = vmatprep.subr.mxu0 0.0
        %1744 = vmatpush1.xpose.msra.mxu0 0.0
        %1745 = vmatprep.subr.mxu0 0.0
        %1746 = vmatpush1.xpose.msra.mxu0 0.0
        %1747 = vmatprep.subr.mxu0 0.0
        %1748 = vmatpush1.xpose.msra.mxu0 0.0
        %1749 = vmatprep.subr.mxu0 0.0
        %1750 = vmatpush1.xpose.msra.mxu0 0.0
        %1751 = vmatprep.subr.mxu0 0.0
        %1752 = vmatpush1.xpose.msra.mxu0 0.0
        %1753 = vmatprep.subr.mxu0 0.0
        %1754 = vmatpush1.xpose.msra.mxu0 0.0
        %1755 = vmatprep.subr.mxu0 0.0
        %1756 = vmatpush1.xpose.msra.mxu0 0.0
        %1757 = vmatprep.subr.mxu0 0.0
        %1758 = vmatpush1.xpose.msra.mxu0 0.0
        %1759 = vmatprep.subr.mxu0 0.0
        %1760 = vmatpush1.xpose.msra.mxu0 0.0
        %1761 = vmatprep.subr.mxu0 0.0
        %1762 = vmatpush1.xpose.msra.mxu0 0.0
        %1763 = vmatprep.mubr.f32.mxu0 0.0
        %1764 = vmatmul.mubr.f32.gmra.mrb[0].mxu0 %v1691
        %v1765 = vpop.f32.mrb[0].mxu0
        %v1766 = vadd.f32 0.0, %v1765
        %v1767 = vpop.f32.mrb[0].mxu0
        %1768 = vmatprep.mubr.f32.mxu0 0.0
        %1769 = vmatmul.mubr.f32.gmra.mrb[0].mxu0 %v1693
        %v1770 = vpop.f32.mrb[0].mxu0
        %v1771 = vadd.f32 0.0, %v1770
        %v1772 = vpop.f32.mrb[0].mxu0
        %1773 = vdwg.mxu0
        %1774 = vrot.lane.b32.xlu0 %v768, 120
        %v1775 = vpop.permute.xlu0 %1774
        %1776 = vrot.lane.b32.xlu0 %v773, 120
        %v1777 = vpop.permute.xlu0 %1776
        %1778 = vrot.lane.b32.xlu0 %v768, 88
        %v1779 = vpop.permute.xlu0 %1778
        %1780 = vrot.lane.b32.xlu0 %v773, 88
        %v1781 = vpop.permute.xlu0 %1780
        %v1782 = vsel %vm796, %v1775, 0
        %v1784 = vsel %vm796, %v1777, 0
        %v1786 = vsel %vm796, %v1779, 0
        %v1788 = vsel %vm796, %v1781, 0
        %1790 = vmatprep.subr.mxu0 0.0
        %1791 = vmatpush1.xpose.msra.mxu0 %v1786
        %1792 = vmatprep.subr.mxu0 0.0
        %1793 = vmatpush1.xpose.msra.mxu0 %v1788
        %1794 = vmatprep.subr.mxu0 0.0
        %1795 = vmatpush1.xpose.msra.mxu0 0.0
        %1796 = vmatprep.subr.mxu0 0.0
        %1797 = vmatpush1.xpose.msra.mxu0 0.0
        %1798 = vmatprep.subr.mxu0 0.0
        %1799 = vmatpush1.xpose.msra.mxu0 0.0
        %1800 = vmatprep.subr.mxu0 0.0
        %1801 = vmatpush1.xpose.msra.mxu0 0.0
        %1802 = vmatprep.subr.mxu0 0.0
        %1803 = vmatpush1.xpose.msra.mxu0 0.0
        %1804 = vmatprep.subr.mxu0 0.0
        %1805 = vmatpush1.xpose.msra.mxu0 0.0
        %1806 = vmatprep.subr.mxu0 0.0
        %1807 = vmatpush1.xpose.msra.mxu0 0.0
        %1808 = vmatprep.subr.mxu0 0.0
        %1809 = vmatpush1.xpose.msra.mxu0 0.0
        %1810 = vmatprep.subr.mxu0 0.0
        %1811 = vmatpush1.xpose.msra.mxu0 0.0
        %1812 = vmatprep.subr.mxu0 0.0
        %1813 = vmatpush1.xpose.msra.mxu0 0.0
        %1814 = vmatprep.subr.mxu0 0.0
        %1815 = vmatpush1.xpose.msra.mxu0 0.0
        %1816 = vmatprep.subr.mxu0 0.0
        %1817 = vmatpush1.xpose.msra.mxu0 0.0
        %1818 = vmatprep.subr.mxu0 0.0
        %1819 = vmatpush1.xpose.msra.mxu0 0.0
        %1820 = vmatprep.subr.mxu0 0.0
        %1821 = vmatpush1.xpose.msra.mxu0 0.0
        %1822 = vmatprep.subr.mxu0 0.0
        %1823 = vmatpush1.xpose.msra.mxu0 0.0
        %1824 = vmatprep.subr.mxu0 0.0
        %1825 = vmatpush1.xpose.msra.mxu0 0.0
        %1826 = vmatprep.subr.mxu0 0.0
        %1827 = vmatpush1.xpose.msra.mxu0 0.0
        %1828 = vmatprep.subr.mxu0 0.0
        %1829 = vmatpush1.xpose.msra.mxu0 0.0
        %1830 = vmatprep.subr.mxu0 0.0
        %1831 = vmatpush1.xpose.msra.mxu0 0.0
        %1832 = vmatprep.subr.mxu0 0.0
        %1833 = vmatpush1.xpose.msra.mxu0 0.0
        %1834 = vmatprep.subr.mxu0 0.0
        %1835 = vmatpush1.xpose.msra.mxu0 0.0
        %1836 = vmatprep.subr.mxu0 0.0
        %1837 = vmatpush1.xpose.msra.mxu0 0.0
        %1838 = vmatprep.subr.mxu0 0.0
        %1839 = vmatpush1.xpose.msra.mxu0 0.0
        %1840 = vmatprep.subr.mxu0 0.0
        %1841 = vmatpush1.xpose.msra.mxu0 0.0
        %1842 = vmatprep.subr.mxu0 0.0
        %1843 = vmatpush1.xpose.msra.mxu0 0.0
        %1844 = vmatprep.subr.mxu0 0.0
        %1845 = vmatpush1.xpose.msra.mxu0 0.0
        %1846 = vmatprep.subr.mxu0 0.0
        %1847 = vmatpush1.xpose.msra.mxu0 0.0
        %1848 = vmatprep.subr.mxu0 0.0
        %1849 = vmatpush1.xpose.msra.mxu0 0.0
        %1850 = vmatprep.subr.mxu0 0.0
        %1851 = vmatpush1.xpose.msra.mxu0 0.0
        %1852 = vmatprep.subr.mxu0 0.0
        %1853 = vmatpush1.xpose.msra.mxu0 0.0
        %1854 = vmatprep.mubr.f32.mxu0 0.0
        %1855 = vmatmul.mubr.f32.gmra.mrb[0].mxu0 %v1782
        %v1856 = vpop.f32.mrb[0].mxu0
        %v1857 = vadd.f32 0.0, %v1856
        %v1858 = vpop.f32.mrb[0].mxu0
        %1859 = vmatprep.mubr.f32.mxu0 0.0
        %1860 = vmatmul.mubr.f32.gmra.mrb[0].mxu0 %v1784
        %v1861 = vpop.f32.mrb[0].mxu0
        %v1862 = vadd.f32 0.0, %v1861
        %v1863 = vpop.f32.mrb[0].mxu0
        %1864 = vdwg.mxu0
        %1865 = vrot.lane.b32.xlu0 %v778, 120
        %v1866 = vpop.permute.xlu0 %1865
        %1867 = vrot.lane.b32.xlu0 %v783, 120
        %v1868 = vpop.permute.xlu0 %1867
        %1869 = vrot.lane.b32.xlu0 %v778, 88
        %v1870 = vpop.permute.xlu0 %1869
        %1871 = vrot.lane.b32.xlu0 %v783, 88
        %v1872 = vpop.permute.xlu0 %1871
        %v1873 = vsel %vm796, %v1866, 0
        %v1875 = vsel %vm796, %v1868, 0
        %v1877 = vsel %vm796, %v1870, 0
        %v1879 = vsel %vm796, %v1872, 0
        %1881 = vmatprep.subr.mxu0 0.0
        %1882 = vmatpush1.xpose.msra.mxu0 %v1877
        %1883 = vmatprep.subr.mxu0 0.0
        %1884 = vmatpush1.xpose.msra.mxu0 %v1879
        %1885 = vmatprep.subr.mxu0 0.0
        %1886 = vmatpush1.xpose.msra.mxu0 0.0
        %1887 = vmatprep.subr.mxu0 0.0
        %1888 = vmatpush1.xpose.msra.mxu0 0.0
        %1889 = vmatprep.subr.mxu0 0.0
        %1890 = vmatpush1.xpose.msra.mxu0 0.0
        %1891 = vmatprep.subr.mxu0 0.0
        %1892 = vmatpush1.xpose.msra.mxu0 0.0
        %1893 = vmatprep.subr.mxu0 0.0
        %1894 = vmatpush1.xpose.msra.mxu0 0.0
        %1895 = vmatprep.subr.mxu0 0.0
        %1896 = vmatpush1.xpose.msra.mxu0 0.0
        %1897 = vmatprep.subr.mxu0 0.0
        %1898 = vmatpush1.xpose.msra.mxu0 0.0
        %1899 = vmatprep.subr.mxu0 0.0
        %1900 = vmatpush1.xpose.msra.mxu0 0.0
        %1901 = vmatprep.subr.mxu0 0.0
        %1902 = vmatpush1.xpose.msra.mxu0 0.0
        %1903 = vmatprep.subr.mxu0 0.0
        %1904 = vmatpush1.xpose.msra.mxu0 0.0
        %1905 = vmatprep.subr.mxu0 0.0
        %1906 = vmatpush1.xpose.msra.mxu0 0.0
        %1907 = vmatprep.subr.mxu0 0.0
        %1908 = vmatpush1.xpose.msra.mxu0 0.0
        %1909 = vmatprep.subr.mxu0 0.0
        %1910 = vmatpush1.xpose.msra.mxu0 0.0
        %1911 = vmatprep.subr.mxu0 0.0
        %1912 = vmatpush1.xpose.msra.mxu0 0.0
        %1913 = vmatprep.subr.mxu0 0.0
        %1914 = vmatpush1.xpose.msra.mxu0 0.0
        %1915 = vmatprep.subr.mxu0 0.0
        %1916 = vmatpush1.xpose.msra.mxu0 0.0
        %1917 = vmatprep.subr.mxu0 0.0
        %1918 = vmatpush1.xpose.msra.mxu0 0.0
        %1919 = vmatprep.subr.mxu0 0.0
        %1920 = vmatpush1.xpose.msra.mxu0 0.0
        %1921 = vmatprep.subr.mxu0 0.0
        %1922 = vmatpush1.xpose.msra.mxu0 0.0
        %1923 = vmatprep.subr.mxu0 0.0
        %1924 = vmatpush1.xpose.msra.mxu0 0.0
        %1925 = vmatprep.subr.mxu0 0.0
        %1926 = vmatpush1.xpose.msra.mxu0 0.0
        %1927 = vmatprep.subr.mxu0 0.0
        %1928 = vmatpush1.xpose.msra.mxu0 0.0
        %1929 = vmatprep.subr.mxu0 0.0
        %1930 = vmatpush1.xpose.msra.mxu0 0.0
        %1931 = vmatprep.subr.mxu0 0.0
        %1932 = vmatpush1.xpose.msra.mxu0 0.0
        %1933 = vmatprep.subr.mxu0 0.0
        %1934 = vmatpush1.xpose.msra.mxu0 0.0
        %1935 = vmatprep.subr.mxu0 0.0
        %1936 = vmatpush1.xpose.msra.mxu0 0.0
        %1937 = vmatprep.subr.mxu0 0.0
        %1938 = vmatpush1.xpose.msra.mxu0 0.0
        %1939 = vmatprep.subr.mxu0 0.0
        %1940 = vmatpush1.xpose.msra.mxu0 0.0
        %1941 = vmatprep.subr.mxu0 0.0
        %1942 = vmatpush1.xpose.msra.mxu0 0.0
        %1943 = vmatprep.subr.mxu0 0.0
        %1944 = vmatpush1.xpose.msra.mxu0 0.0
        %1945 = vmatprep.mubr.f32.mxu0 0.0
        %1946 = vmatmul.mubr.f32.gmra.mrb[0].mxu0 %v1873
        %v1947 = vpop.f32.mrb[0].mxu0
        %v1948 = vadd.f32 0.0, %v1947
        %v1949 = vpop.f32.mrb[0].mxu0
        %1950 = vmatprep.mubr.f32.mxu0 0.0
        %1951 = vmatmul.mubr.f32.gmra.mrb[0].mxu0 %v1875
        %v1952 = vpop.f32.mrb[0].mxu0
        %v1953 = vadd.f32 0.0, %v1952
        %v1954 = vpop.f32.mrb[0].mxu0
        %1955 = vdwg.mxu0
        %v1956 = vmul.f32 %v1675, 0.35355338
        %v1957 = vmul.f32 %v1680, 0.35355338
        %v1958 = vmul.f32 %v1766, 0.35355338
        %v1959 = vmul.f32 %v1771, 0.35355338
        %v1960 = vmul.f32 %v1857, 0.35355338
        %v1961 = vmul.f32 %v1862, 0.35355338
        %v1962 = vmul.f32 %v1948, 0.35355338
        %v1963 = vmul.f32 %v1953, 0.35355338
        %v1964 = vsel %vm1155, %v1956, -inf
        %1965 = vmax.xlane.f32.xlu0 %v1964
        %v1966 = vpop.xlane.xlu0 %1965
        %v1967 = vsel %vm1155, %v1957, -inf
        %1968 = vmax.xlane.f32.xlu0 %v1967
        %v1969 = vpop.xlane.xlu0 %1968
        %v1970 = vsel %vm1155, %v1958, -inf
        %1971 = vmax.xlane.f32.xlu0 %v1970
        %v1972 = vpop.xlane.xlu0 %1971
        %v1973 = vsel %vm1155, %v1959, -inf
        %1974 = vmax.xlane.f32.xlu0 %v1973
        %v1975 = vpop.xlane.xlu0 %1974
        %v1976 = vsel %vm1155, %v1960, -inf
        %1977 = vmax.xlane.f32.xlu0 %v1976
        %v1978 = vpop.xlane.xlu0 %1977
        %v1979 = vsel %vm1155, %v1961, -inf
        %1980 = vmax.xlane.f32.xlu0 %v1979
        %v1981 = vpop.xlane.xlu0 %1980
        %v1982 = vsel %vm1155, %v1962, -inf
        %1983 = vmax.xlane.f32.xlu0 %v1982
        %v1984 = vpop.xlane.xlu0 %1983
        %v1985 = vsel %vm1155, %v1963, -inf
        %1986 = vmax.xlane.f32.xlu0 %v1985
        %v1987 = vpop.xlane.xlu0 %1986
        %v1988 = vsub.f32 %v1956, %v1966
        %v1989 = vsub.f32 %v1957, %v1969
        %v1990 = vsub.f32 %v1958, %v1972
        %v1991 = vsub.f32 %v1959, %v1975
        %v1992 = vsub.f32 %v1960, %v1978
        %v1993 = vsub.f32 %v1961, %v1981
        %v1994 = vsub.f32 %v1962, %v1984
        %v1995 = vsub.f32 %v1963, %v1987
        %v1996 = vmul.f32 %v1988, 1.442695
        %v1997 = vpow.pop %v1996
        %v1998 = vmul.f32 %v1989, 1.442695
        %v1999 = vpow.pop %v1998
        %v2000 = vmul.f32 %v1990, 1.442695
        %v2001 = vpow.pop %v2000
        %v2002 = vmul.f32 %v1991, 1.442695
        %v2003 = vpow.pop %v2002
        %v2004 = vmul.f32 %v1992, 1.442695
        %v2005 = vpow.pop %v2004
        %v2006 = vmul.f32 %v1993, 1.442695
        %v2007 = vpow.pop %v2006
        %v2008 = vmul.f32 %v1994, 1.442695
        %v2009 = vpow.pop %v2008
        %v2010 = vmul.f32 %v1995, 1.442695
        %v2011 = vpow.pop %v2010
        %v2012 = vsel %vm1155, %v1997, 0.0
        %2013 = vadd.xlane.f32.xlu0 %v2012
        %v2014 = vpop.xlane.xlu0 %2013
        %v2015 = vsel %vm1155, %v1999, 0.0
        %2016 = vadd.xlane.f32.xlu0 %v2015
        %v2017 = vpop.xlane.xlu0 %2016
        %v2018 = vsel %vm1155, %v2001, 0.0
        %2019 = vadd.xlane.f32.xlu0 %v2018
        %v2020 = vpop.xlane.xlu0 %2019
        %v2021 = vsel %vm1155, %v2003, 0.0
        %2022 = vadd.xlane.f32.xlu0 %v2021
        %v2023 = vpop.xlane.xlu0 %2022
        %v2024 = vsel %vm1155, %v2005, 0.0
        %2025 = vadd.xlane.f32.xlu0 %v2024
        %v2026 = vpop.xlane.xlu0 %2025
        %v2027 = vsel %vm1155, %v2007, 0.0
        %2028 = vadd.xlane.f32.xlu0 %v2027
        %v2029 = vpop.xlane.xlu0 %2028
        %v2030 = vsel %vm1155, %v2009, 0.0
        %2031 = vadd.xlane.f32.xlu0 %v2030
        %v2032 = vpop.xlane.xlu0 %2031
        %v2033 = vsel %vm1155, %v2011, 0.0
        %2034 = vadd.xlane.f32.xlu0 %v2033
        %v2035 = vpop.xlane.xlu0 %2034
        %v2036 = vrcp.pop %v2014
        %v2037 = vmul.f32 %v1997, %v2036
        %v2038 = vrcp.pop %v2017
        %v2039 = vmul.f32 %v1999, %v2038
        %v2040 = vrcp.pop %v2020
        %v2041 = vmul.f32 %v2001, %v2040
        %v2042 = vrcp.pop %v2023
        %v2043 = vmul.f32 %v2003, %v2042
        %v2044 = vrcp.pop %v2026
        %v2045 = vmul.f32 %v2005, %v2044
        %v2046 = vrcp.pop %v2029
        %v2047 = vmul.f32 %v2007, %v2046
        %v2048 = vrcp.pop %v2032
        %v2049 = vmul.f32 %v2009, %v2048
        %v2050 = vrcp.pop %v2035
        %v2051 = vmul.f32 %v2011, %v2050
        %2052 = vrot.lane.b32.xlu0 %v748, 56
        %v2053 = vpop.permute.xlu0 %2052
        %2054 = vrot.lane.b32.xlu0 %v753, 56
        %v2055 = vpop.permute.xlu0 %2054
        %v2059 = vsel %vm1155, %v2037, 0
        %v2062 = vsel %vm1155, %v2039, 0
        %2064 = vmatprep.subr.mxu0 0.0
        %2065 = vmatpush1.msra.mxu0 %v2053
        %2066 = vmatprep.subr.mxu0 0.0
        %2067 = vmatpush1.msra.mxu0 %v2055
        %2068 = vmatprep.subr.mxu0 0.0
        %2069 = vmatpush1.msra.mxu0 0.0
        %2070 = vmatprep.subr.mxu0 0.0
        %2071 = vmatpush1.msra.mxu0 0.0
        %2072 = vmatprep.subr.mxu0 0.0
        %2073 = vmatpush1.msra.mxu0 0.0
        %2074 = vmatprep.subr.mxu0 0.0
        %2075 = vmatpush1.msra.mxu0 0.0
        %2076 = vmatprep.subr.mxu0 0.0
        %2077 = vmatpush1.msra.mxu0 0.0
        %2078 = vmatprep.subr.mxu0 0.0
        %2079 = vmatpush1.msra.mxu0 0.0
        %2080 = vmatprep.subr.mxu0 0.0
        %2081 = vmatpush1.msra.mxu0 0.0
        %2082 = vmatprep.subr.mxu0 0.0
        %2083 = vmatpush1.msra.mxu0 0.0
        %2084 = vmatprep.subr.mxu0 0.0
        %2085 = vmatpush1.msra.mxu0 0.0
        %2086 = vmatprep.subr.mxu0 0.0
        %2087 = vmatpush1.msra.mxu0 0.0
        %2088 = vmatprep.subr.mxu0 0.0
        %2089 = vmatpush1.msra.mxu0 0.0
        %2090 = vmatprep.subr.mxu0 0.0
        %2091 = vmatpush1.msra.mxu0 0.0
        %2092 = vmatprep.subr.mxu0 0.0
        %2093 = vmatpush1.msra.mxu0 0.0
        %2094 = vmatprep.subr.mxu0 0.0
        %2095 = vmatpush1.msra.mxu0 0.0
        %2096 = vmatprep.subr.mxu0 0.0
        %2097 = vmatpush1.msra.mxu0 0.0
        %2098 = vmatprep.subr.mxu0 0.0
        %2099 = vmatpush1.msra.mxu0 0.0
        %2100 = vmatprep.subr.mxu0 0.0
        %2101 = vmatpush1.msra.mxu0 0.0
        %2102 = vmatprep.subr.mxu0 0.0
        %2103 = vmatpush1.msra.mxu0 0.0
        %2104 = vmatprep.subr.mxu0 0.0
        %2105 = vmatpush1.msra.mxu0 0.0
        %2106 = vmatprep.subr.mxu0 0.0
        %2107 = vmatpush1.msra.mxu0 0.0
        %2108 = vmatprep.subr.mxu0 0.0
        %2109 = vmatpush1.msra.mxu0 0.0
        %2110 = vmatprep.subr.mxu0 0.0
        %2111 = vmatpush1.msra.mxu0 0.0
        %2112 = vmatprep.subr.mxu0 0.0
        %2113 = vmatpush1.msra.mxu0 0.0
        %2114 = vmatprep.subr.mxu0 0.0
        %2115 = vmatpush1.msra.mxu0 0.0
        %2116 = vmatprep.subr.mxu0 0.0
        %2117 = vmatpush1.msra.mxu0 0.0
        %2118 = vmatprep.subr.mxu0 0.0
        %2119 = vmatpush1.msra.mxu0 0.0
        %2120 = vmatprep.subr.mxu0 0.0
        %2121 = vmatpush1.msra.mxu0 0.0
        %2122 = vmatprep.subr.mxu0 0.0
        %2123 = vmatpush1.msra.mxu0 0.0
        %2124 = vmatprep.subr.mxu0 0.0
        %2125 = vmatpush1.msra.mxu0 0.0
        %2126 = vmatprep.subr.mxu0 0.0
        %2127 = vmatpush1.msra.mxu0 0.0
        %2128 = vmatprep.mubr.f32.mxu0 0.0
        %2129 = vmatmul.mubr.f32.gmra.mrb[0].mxu0 %v2059
        %v2130 = vpop.f32.mrb[0].mxu0
        %v2131 = vadd.f32 0.0, %v2130
        %v2132 = vpop.f32.mrb[0].mxu0
        %2133 = vmatprep.mubr.f32.mxu0 0.0
        %2134 = vmatmul.mubr.f32.gmra.mrb[0].mxu0 %v2062
        %v2135 = vpop.f32.mrb[0].mxu0
        %v2136 = vadd.f32 0.0, %v2135
        %v2137 = vpop.f32.mrb[0].mxu0
        %2138 = vdwg.mxu0
        %2139 = vrot.lane.b32.xlu0 %v758, 56
        %v2140 = vpop.permute.xlu0 %2139
        %2141 = vrot.lane.b32.xlu0 %v763, 56
        %v2142 = vpop.permute.xlu0 %2141
        %v2146 = vsel %vm1155, %v2041, 0
        %v2149 = vsel %vm1155, %v2043, 0
        %2151 = vmatprep.subr.mxu0 0.0
        %2152 = vmatpush1.msra.mxu0 %v2140
        %2153 = vmatprep.subr.mxu0 0.0
        %2154 = vmatpush1.msra.mxu0 %v2142
        %2155 = vmatprep.subr.mxu0 0.0
        %2156 = vmatpush1.msra.mxu0 0.0
        %2157 = vmatprep.subr.mxu0 0.0
        %2158 = vmatpush1.msra.mxu0 0.0
        %2159 = vmatprep.subr.mxu0 0.0
        %2160 = vmatpush1.msra.mxu0 0.0
        %2161 = vmatprep.subr.mxu0 0.0
        %2162 = vmatpush1.msra.mxu0 0.0
        %2163 = vmatprep.subr.mxu0 0.0
        %2164 = vmatpush1.msra.mxu0 0.0
        %2165 = vmatprep.subr.mxu0 0.0
        %2166 = vmatpush1.msra.mxu0 0.0
        %2167 = vmatprep.subr.mxu0 0.0
        %2168 = vmatpush1.msra.mxu0 0.0
        %2169 = vmatprep.subr.mxu0 0.0
        %2170 = vmatpush1.msra.mxu0 0.0
        %2171 = vmatprep.subr.mxu0 0.0
        %2172 = vmatpush1.msra.mxu0 0.0
        %2173 = vmatprep.subr.mxu0 0.0
        %2174 = vmatpush1.msra.mxu0 0.0
        %2175 = vmatprep.subr.mxu0 0.0
        %2176 = vmatpush1.msra.mxu0 0.0
        %2177 = vmatprep.subr.mxu0 0.0
        %2178 = vmatpush1.msra.mxu0 0.0
        %2179 = vmatprep.subr.mxu0 0.0
        %2180 = vmatpush1.msra.mxu0 0.0
        %2181 = vmatprep.subr.mxu0 0.0
        %2182 = vmatpush1.msra.mxu0 0.0
        %2183 = vmatprep.subr.mxu0 0.0
        %2184 = vmatpush1.msra.mxu0 0.0
        %2185 = vmatprep.subr.mxu0 0.0
        %2186 = vmatpush1.msra.mxu0 0.0
        %2187 = vmatprep.subr.mxu0 0.0
        %2188 = vmatpush1.msra.mxu0 0.0
        %2189 = vmatprep.subr.mxu0 0.0
        %2190 = vmatpush1.msra.mxu0 0.0
        %2191 = vmatprep.subr.mxu0 0.0
        %2192 = vmatpush1.msra.mxu0 0.0
        %2193 = vmatprep.subr.mxu0 0.0
        %2194 = vmatpush1.msra.mxu0 0.0
        %2195 = vmatprep.subr.mxu0 0.0
        %2196 = vmatpush1.msra.mxu0 0.0
        %2197 = vmatprep.subr.mxu0 0.0
        %2198 = vmatpush1.msra.mxu0 0.0
        %2199 = vmatprep.subr.mxu0 0.0
        %2200 = vmatpush1.msra.mxu0 0.0
        %2201 = vmatprep.subr.mxu0 0.0
        %2202 = vmatpush1.msra.mxu0 0.0
        %2203 = vmatprep.subr.mxu0 0.0
        %2204 = vmatpush1.msra.mxu0 0.0
        %2205 = vmatprep.subr.mxu0 0.0
        %2206 = vmatpush1.msra.mxu0 0.0
        %2207 = vmatprep.subr.mxu0 0.0
        %2208 = vmatpush1.msra.mxu0 0.0
        %2209 = vmatprep.subr.mxu0 0.0
        %2210 = vmatpush1.msra.mxu0 0.0
        %2211 = vmatprep.subr.mxu0 0.0
        %2212 = vmatpush1.msra.mxu0 0.0
        %2213 = vmatprep.subr.mxu0 0.0
        %2214 = vmatpush1.msra.mxu0 0.0
        %2215 = vmatprep.mubr.f32.mxu0 0.0
        %2216 = vmatmul.mubr.f32.gmra.mrb[0].mxu0 %v2146
        %v2217 = vpop.f32.mrb[0].mxu0
        %v2218 = vadd.f32 0.0, %v2217
        %v2219 = vpop.f32.mrb[0].mxu0
        %2220 = vmatprep.mubr.f32.mxu0 0.0
        %2221 = vmatmul.mubr.f32.gmra.mrb[0].mxu0 %v2149
        %v2222 = vpop.f32.mrb[0].mxu0
        %v2223 = vadd.f32 0.0, %v2222
        %v2224 = vpop.f32.mrb[0].mxu0
        %2225 = vdwg.mxu0
        %2226 = vrot.lane.b32.xlu0 %v768, 56
        %v2227 = vpop.permute.xlu0 %2226
        %2228 = vrot.lane.b32.xlu0 %v773, 56
        %v2229 = vpop.permute.xlu0 %2228
        %v2233 = vsel %vm1155, %v2045, 0
        %v2236 = vsel %vm1155, %v2047, 0
        %2238 = vmatprep.subr.mxu0 0.0
        %2239 = vmatpush1.msra.mxu0 %v2227
        %2240 = vmatprep.subr.mxu0 0.0
        %2241 = vmatpush1.msra.mxu0 %v2229
        %2242 = vmatprep.subr.mxu0 0.0
        %2243 = vmatpush1.msra.mxu0 0.0
        %2244 = vmatprep.subr.mxu0 0.0
        %2245 = vmatpush1.msra.mxu0 0.0
        %2246 = vmatprep.subr.mxu0 0.0
        %2247 = vmatpush1.msra.mxu0 0.0
        %2248 = vmatprep.subr.mxu0 0.0
        %2249 = vmatpush1.msra.mxu0 0.0
        %2250 = vmatprep.subr.mxu0 0.0
        %2251 = vmatpush1.msra.mxu0 0.0
        %2252 = vmatprep.subr.mxu0 0.0
        %2253 = vmatpush1.msra.mxu0 0.0
        %2254 = vmatprep.subr.mxu0 0.0
        %2255 = vmatpush1.msra.mxu0 0.0
        %2256 = vmatprep.subr.mxu0 0.0
        %2257 = vmatpush1.msra.mxu0 0.0
        %2258 = vmatprep.subr.mxu0 0.0
        %2259 = vmatpush1.msra.mxu0 0.0
        %2260 = vmatprep.subr.mxu0 0.0
        %2261 = vmatpush1.msra.mxu0 0.0
        %2262 = vmatprep.subr.mxu0 0.0
        %2263 = vmatpush1.msra.mxu0 0.0
        %2264 = vmatprep.subr.mxu0 0.0
        %2265 = vmatpush1.msra.mxu0 0.0
        %2266 = vmatprep.subr.mxu0 0.0
        %2267 = vmatpush1.msra.mxu0 0.0
        %2268 = vmatprep.subr.mxu0 0.0
        %2269 = vmatpush1.msra.mxu0 0.0
        %2270 = vmatprep.subr.mxu0 0.0
        %2271 = vmatpush1.msra.mxu0 0.0
        %2272 = vmatprep.subr.mxu0 0.0
        %2273 = vmatpush1.msra.mxu0 0.0
        %2274 = vmatprep.subr.mxu0 0.0
        %2275 = vmatpush1.msra.mxu0 0.0
        %2276 = vmatprep.subr.mxu0 0.0
        %2277 = vmatpush1.msra.mxu0 0.0
        %2278 = vmatprep.subr.mxu0 0.0
        %2279 = vmatpush1.msra.mxu0 0.0
        %2280 = vmatprep.subr.mxu0 0.0
        %2281 = vmatpush1.msra.mxu0 0.0
        %2282 = vmatprep.subr.mxu0 0.0
        %2283 = vmatpush1.msra.mxu0 0.0
        %2284 = vmatprep.subr.mxu0 0.0
        %2285 = vmatpush1.msra.mxu0 0.0
        %2286 = vmatprep.subr.mxu0 0.0
        %2287 = vmatpush1.msra.mxu0 0.0
        %2288 = vmatprep.subr.mxu0 0.0
        %2289 = vmatpush1.msra.mxu0 0.0
        %2290 = vmatprep.subr.mxu0 0.0
        %2291 = vmatpush1.msra.mxu0 0.0
        %2292 = vmatprep.subr.mxu0 0.0
        %2293 = vmatpush1.msra.mxu0 0.0
        %2294 = vmatprep.subr.mxu0 0.0
        %2295 = vmatpush1.msra.mxu0 0.0
        %2296 = vmatprep.subr.mxu0 0.0
        %2297 = vmatpush1.msra.mxu0 0.0
        %2298 = vmatprep.subr.mxu0 0.0
        %2299 = vmatpush1.msra.mxu0 0.0
        %2300 = vmatprep.subr.mxu0 0.0
        %2301 = vmatpush1.msra.mxu0 0.0
        %2302 = vmatprep.mubr.f32.mxu0 0.0
        %2303 = vmatmul.mubr.f32.gmra.mrb[0].mxu0 %v2233
        %v2304 = vpop.f32.mrb[0].mxu0
        %v2305 = vadd.f32 0.0, %v2304
        %v2306 = vpop.f32.mrb[0].mxu0
        %2307 = vmatprep.mubr.f32.mxu0 0.0
        %2308 = vmatmul.mubr.f32.gmra.mrb[0].mxu0 %v2236
        %v2309 = vpop.f32.mrb[0].mxu0
        %v2310 = vadd.f32 0.0, %v2309
        %v2311 = vpop.f32.mrb[0].mxu0
        %2312 = vdwg.mxu0
        %2313 = vrot.lane.b32.xlu0 %v778, 56
        %v2314 = vpop.permute.xlu0 %2313
        %2315 = vrot.lane.b32.xlu0 %v783, 56
        %v2316 = vpop.permute.xlu0 %2315
        %v2320 = vsel %vm1155, %v2049, 0
        %v2323 = vsel %vm1155, %v2051, 0
        %2325 = vmatprep.subr.mxu0 0.0
        %2326 = vmatpush1.msra.mxu0 %v2314
        %2327 = vmatprep.subr.mxu0 0.0
        %2328 = vmatpush1.msra.mxu0 %v2316
        %2329 = vmatprep.subr.mxu0 0.0
        %2330 = vmatpush1.msra.mxu0 0.0
        %2331 = vmatprep.subr.mxu0 0.0
        %2332 = vmatpush1.msra.mxu0 0.0
        %2333 = vmatprep.subr.mxu0 0.0
        %2334 = vmatpush1.msra.mxu0 0.0
        %2335 = vmatprep.subr.mxu0 0.0
        %2336 = vmatpush1.msra.mxu0 0.0
        %2337 = vmatprep.subr.mxu0 0.0
        %2338 = vmatpush1.msra.mxu0 0.0
        %2339 = vmatprep.subr.mxu0 0.0
        %2340 = vmatpush1.msra.mxu0 0.0
        %2341 = vmatprep.subr.mxu0 0.0
        %2342 = vmatpush1.msra.mxu0 0.0
        %2343 = vmatprep.subr.mxu0 0.0
        %2344 = vmatpush1.msra.mxu0 0.0
        %2345 = vmatprep.subr.mxu0 0.0
        %2346 = vmatpush1.msra.mxu0 0.0
        %2347 = vmatprep.subr.mxu0 0.0
        %2348 = vmatpush1.msra.mxu0 0.0
        %2349 = vmatprep.subr.mxu0 0.0
        %2350 = vmatpush1.msra.mxu0 0.0
        %2351 = vmatprep.subr.mxu0 0.0
        %2352 = vmatpush1.msra.mxu0 0.0
        %2353 = vmatprep.subr.mxu0 0.0
        %2354 = vmatpush1.msra.mxu0 0.0
        %2355 = vmatprep.subr.mxu0 0.0
        %2356 = vmatpush1.msra.mxu0 0.0
        %2357 = vmatprep.subr.mxu0 0.0
        %2358 = vmatpush1.msra.mxu0 0.0
        %2359 = vmatprep.subr.mxu0 0.0
        %2360 = vmatpush1.msra.mxu0 0.0
        %2361 = vmatprep.subr.mxu0 0.0
        %2362 = vmatpush1.msra.mxu0 0.0
        %2363 = vmatprep.subr.mxu0 0.0
        %2364 = vmatpush1.msra.mxu0 0.0
        %2365 = vmatprep.subr.mxu0 0.0
        %2366 = vmatpush1.msra.mxu0 0.0
        %2367 = vmatprep.subr.mxu0 0.0
        %2368 = vmatpush1.msra.mxu0 0.0
        %2369 = vmatprep.subr.mxu0 0.0
        %2370 = vmatpush1.msra.mxu0 0.0
        %2371 = vmatprep.subr.mxu0 0.0
        %2372 = vmatpush1.msra.mxu0 0.0
        %2373 = vmatprep.subr.mxu0 0.0
        %2374 = vmatpush1.msra.mxu0 0.0
        %2375 = vmatprep.subr.mxu0 0.0
        %2376 = vmatpush1.msra.mxu0 0.0
        %2377 = vmatprep.subr.mxu0 0.0
        %2378 = vmatpush1.msra.mxu0 0.0
        %2379 = vmatprep.subr.mxu0 0.0
        %2380 = vmatpush1.msra.mxu0 0.0
        %2381 = vmatprep.subr.mxu0 0.0
        %2382 = vmatpush1.msra.mxu0 0.0
        %2383 = vmatprep.subr.mxu0 0.0
        %2384 = vmatpush1.msra.mxu0 0.0
        %2385 = vmatprep.subr.mxu0 0.0
        %2386 = vmatpush1.msra.mxu0 0.0
        %2387 = vmatprep.subr.mxu0 0.0
        %2388 = vmatpush1.msra.mxu0 0.0
        %2389 = vmatprep.mubr.f32.mxu0 0.0
        %2390 = vmatmul.mubr.f32.gmra.mrb[0].mxu0 %v2320
        %v2391 = vpop.f32.mrb[0].mxu0
        %v2392 = vadd.f32 0.0, %v2391
        %v2393 = vpop.f32.mrb[0].mxu0
        %2394 = vmatprep.mubr.f32.mxu0 0.0
        %2395 = vmatmul.mubr.f32.gmra.mrb[0].mxu0 %v2323
        %v2396 = vpop.f32.mrb[0].mxu0
        %v2397 = vadd.f32 0.0, %v2396
        %v2398 = vpop.f32.mrb[0].mxu0
        %2399 = vdwg.mxu0
        %v2401 = vsel %vm796, %v2131, 0
        %v2404 = vsel %vm796, %v2136, 0
        %v2407 = vsel %vm796, %v2218, 0
        %v2410 = vsel %vm796, %v2223, 0
        %v2413 = vsel %vm796, %v2305, 0
        %v2416 = vsel %vm796, %v2310, 0
        %v2419 = vsel %vm796, %v2392, 0
        %v2422 = vsel %vm796, %v2397, 0
        %2424 = vmatprep.subr.mxu0 0.0
        %2425 = vmatpush1.msra.mxu0 %v787
        %2426 = vmatprep.subr.mxu0 0.0
        %2427 = vmatpush1.msra.mxu0 0.0
        %2428 = vmatprep.subr.mxu0 0.0
        %2429 = vmatpush1.msra.mxu0 0.0
        %2430 = vmatprep.subr.mxu0 0.0
        %2431 = vmatpush1.msra.mxu0 0.0
        %2432 = vmatprep.subr.mxu0 0.0
        %2433 = vmatpush1.msra.mxu0 0.0
        %2434 = vmatprep.subr.mxu0 0.0
        %2435 = vmatpush1.msra.mxu0 0.0
        %2436 = vmatprep.subr.mxu0 0.0
        %2437 = vmatpush1.msra.mxu0 0.0
        %2438 = vmatprep.subr.mxu0 0.0
        %2439 = vmatpush1.msra.mxu0 0.0
        %2440 = vmatprep.subr.mxu0 0.0
        %2441 = vmatpush1.msra.mxu0 0.0
        %2442 = vmatprep.subr.mxu0 0.0
        %2443 = vmatpush1.msra.mxu0 0.0
        %2444 = vmatprep.subr.mxu0 0.0
        %2445 = vmatpush1.msra.mxu0 0.0
        %2446 = vmatprep.subr.mxu0 0.0
        %2447 = vmatpush1.msra.mxu0 0.0
        %2448 = vmatprep.subr.mxu0 0.0
        %2449 = vmatpush1.msra.mxu0 0.0
        %2450 = vmatprep.subr.mxu0 0.0
        %2451 = vmatpush1.msra.mxu0 0.0
        %2452 = vmatprep.subr.mxu0 0.0
        %2453 = vmatpush1.msra.mxu0 0.0
        %2454 = vmatprep.subr.mxu0 0.0
        %2455 = vmatpush1.msra.mxu0 0.0
        %2456 = vmatprep.subr.mxu0 0.0
        %2457 = vmatpush1.msra.mxu0 0.0
        %2458 = vmatprep.subr.mxu0 0.0
        %2459 = vmatpush1.msra.mxu0 0.0
        %2460 = vmatprep.subr.mxu0 0.0
        %2461 = vmatpush1.msra.mxu0 0.0
        %2462 = vmatprep.subr.mxu0 0.0
        %2463 = vmatpush1.msra.mxu0 0.0
        %2464 = vmatprep.subr.mxu0 0.0
        %2465 = vmatpush1.msra.mxu0 0.0
        %2466 = vmatprep.subr.mxu0 0.0
        %2467 = vmatpush1.msra.mxu0 0.0
        %2468 = vmatprep.subr.mxu0 0.0
        %2469 = vmatpush1.msra.mxu0 0.0
        %2470 = vmatprep.subr.mxu0 0.0
        %2471 = vmatpush1.msra.mxu0 0.0
        %2472 = vmatprep.subr.mxu0 0.0
        %2473 = vmatpush1.msra.mxu0 0.0
        %2474 = vmatprep.subr.mxu0 0.0
        %2475 = vmatpush1.msra.mxu0 0.0
        %2476 = vmatprep.subr.mxu0 0.0
        %2477 = vmatpush1.msra.mxu0 0.0
        %2478 = vmatprep.subr.mxu0 0.0
        %2479 = vmatpush1.msra.mxu0 0.0
        %2480 = vmatprep.subr.mxu0 0.0
        %2481 = vmatpush1.msra.mxu0 0.0
        %2482 = vmatprep.subr.mxu0 0.0
        %2483 = vmatpush1.msra.mxu0 0.0
        %2484 = vmatprep.subr.mxu0 0.0
        %2485 = vmatpush1.msra.mxu0 0.0
        %2486 = vmatprep.subr.mxu0 0.0
        %2487 = vmatpush1.msra.mxu0 0.0
        %2488 = vmatprep.mubr.f32.mxu0 0.0
        %2489 = vmatmul.mubr.f32.gmra.mrb[0].mxu0 %v2401
        %v2490 = vpop.f32.mrb[0].mxu0
        %v2491 = vadd.f32 0.0, %v2490
        %v2492 = vpop.f32.mrb[0].mxu0
        %2493 = vmatprep.mubr.f32.mxu0 0.0
        %2494 = vmatmul.mubr.f32.gmra.mrb[0].mxu0 %v2404
        %v2495 = vpop.f32.mrb[0].mxu0
        %v2496 = vadd.f32 0.0, %v2495
        %v2497 = vpop.f32.mrb[0].mxu0
        %2498 = vmatprep.mubr.f32.mxu0 0.0
        %2499 = vmatmul.mubr.f32.gmra.mrb[0].mxu0 %v2407
        %v2500 = vpop.f32.mrb[0].mxu0
        %v2501 = vadd.f32 0.0, %v2500
        %v2502 = vpop.f32.mrb[0].mxu0
        %2503 = vmatprep.mubr.f32.mxu0 0.0
        %2504 = vmatmul.mubr.f32.gmra.mrb[0].mxu0 %v2410
        %v2505 = vpop.f32.mrb[0].mxu0
        %v2506 = vadd.f32 0.0, %v2505
        %v2507 = vpop.f32.mrb[0].mxu0
        %2508 = vmatprep.mubr.f32.mxu0 0.0
        %2509 = vmatmul.mubr.f32.gmra.mrb[0].mxu0 %v2413
        %v2510 = vpop.f32.mrb[0].mxu0
        %v2511 = vadd.f32 0.0, %v2510
        %v2512 = vpop.f32.mrb[0].mxu0
        %2513 = vmatprep.mubr.f32.mxu0 0.0
        %2514 = vmatmul.mubr.f32.gmra.mrb[0].mxu0 %v2416
        %v2515 = vpop.f32.mrb[0].mxu0
        %v2516 = vadd.f32 0.0, %v2515
        %v2517 = vpop.f32.mrb[0].mxu0
        %2518 = vmatprep.mubr.f32.mxu0 0.0
        %2519 = vmatmul.mubr.f32.gmra.mrb[0].mxu0 %v2419
        %v2520 = vpop.f32.mrb[0].mxu0
        %v2521 = vadd.f32 0.0, %v2520
        %v2522 = vpop.f32.mrb[0].mxu0
        %2523 = vmatprep.mubr.f32.mxu0 0.0
        %2524 = vmatmul.mubr.f32.gmra.mrb[0].mxu0 %v2422
        %v2525 = vpop.f32.mrb[0].mxu0
        %v2526 = vadd.f32 0.0, %v2525
        %v2527 = vpop.f32.mrb[0].mxu0
        %2528 = vdwg.mxu0
        %v2530 = vsel %vm796, %v1323, 0
        %v2533 = vsel %vm796, %v1328, 0
        %v2536 = vsel %vm796, %v1410, 0
        %v2539 = vsel %vm796, %v1415, 0
        %v2542 = vsel %vm796, %v1497, 0
        %v2545 = vsel %vm796, %v1502, 0
        %v2548 = vsel %vm796, %v1584, 0
        %v2551 = vsel %vm796, %v1589, 0
        %2553 = vmatprep.subr.mxu0 0.0
        %2554 = vmatpush1.msra.mxu0 %v786
        %2555 = vmatprep.subr.mxu0 0.0
        %2556 = vmatpush1.msra.mxu0 0.0
        %2557 = vmatprep.subr.mxu0 0.0
        %2558 = vmatpush1.msra.mxu0 0.0
        %2559 = vmatprep.subr.mxu0 0.0
        %2560 = vmatpush1.msra.mxu0 0.0
        %2561 = vmatprep.subr.mxu0 0.0
        %2562 = vmatpush1.msra.mxu0 0.0
        %2563 = vmatprep.subr.mxu0 0.0
        %2564 = vmatpush1.msra.mxu0 0.0
        %2565 = vmatprep.subr.mxu0 0.0
        %2566 = vmatpush1.msra.mxu0 0.0
        %2567 = vmatprep.subr.mxu0 0.0
        %2568 = vmatpush1.msra.mxu0 0.0
        %2569 = vmatprep.subr.mxu0 0.0
        %2570 = vmatpush1.msra.mxu0 0.0
        %2571 = vmatprep.subr.mxu0 0.0
        %2572 = vmatpush1.msra.mxu0 0.0
        %2573 = vmatprep.subr.mxu0 0.0
        %2574 = vmatpush1.msra.mxu0 0.0
        %2575 = vmatprep.subr.mxu0 0.0
        %2576 = vmatpush1.msra.mxu0 0.0
        %2577 = vmatprep.subr.mxu0 0.0
        %2578 = vmatpush1.msra.mxu0 0.0
        %2579 = vmatprep.subr.mxu0 0.0
        %2580 = vmatpush1.msra.mxu0 0.0
        %2581 = vmatprep.subr.mxu0 0.0
        %2582 = vmatpush1.msra.mxu0 0.0
        %2583 = vmatprep.subr.mxu0 0.0
        %2584 = vmatpush1.msra.mxu0 0.0
        %2585 = vmatprep.subr.mxu0 0.0
        %2586 = vmatpush1.msra.mxu0 0.0
        %2587 = vmatprep.subr.mxu0 0.0
        %2588 = vmatpush1.msra.mxu0 0.0
        %2589 = vmatprep.subr.mxu0 0.0
        %2590 = vmatpush1.msra.mxu0 0.0
        %2591 = vmatprep.subr.mxu0 0.0
        %2592 = vmatpush1.msra.mxu0 0.0
        %2593 = vmatprep.subr.mxu0 0.0
        %2594 = vmatpush1.msra.mxu0 0.0
        %2595 = vmatprep.subr.mxu0 0.0
        %2596 = vmatpush1.msra.mxu0 0.0
        %2597 = vmatprep.subr.mxu0 0.0
        %2598 = vmatpush1.msra.mxu0 0.0
        %2599 = vmatprep.subr.mxu0 0.0
        %2600 = vmatpush1.msra.mxu0 0.0
        %2601 = vmatprep.subr.mxu0 0.0
        %2602 = vmatpush1.msra.mxu0 0.0
        %2603 = vmatprep.subr.mxu0 0.0
        %2604 = vmatpush1.msra.mxu0 0.0
        %2605 = vmatprep.subr.mxu0 0.0
        %2606 = vmatpush1.msra.mxu0 0.0
        %2607 = vmatprep.subr.mxu0 0.0
        %2608 = vmatpush1.msra.mxu0 0.0
        %2609 = vmatprep.subr.mxu0 0.0
        %2610 = vmatpush1.msra.mxu0 0.0
        %2611 = vmatprep.subr.mxu0 0.0
        %2612 = vmatpush1.msra.mxu0 0.0
        %2613 = vmatprep.subr.mxu0 0.0
        %2614 = vmatpush1.msra.mxu0 0.0
        %2615 = vmatprep.subr.mxu0 0.0
        %2616 = vmatpush1.msra.mxu0 0.0
        %2617 = vmatprep.mubr.f32.mxu0 0.0
        %2618 = vmatmul.mubr.f32.gmra.mrb[0].mxu0 %v2530
        %v2619 = vpop.f32.mrb[0].mxu0
        %v2620 = vadd.f32 %v2491, %v2619
        %v2621 = vpop.f32.mrb[0].mxu0
        %2622 = vmatprep.mubr.f32.mxu0 0.0
        %2623 = vmatmul.mubr.f32.gmra.mrb[0].mxu0 %v2533
        %v2624 = vpop.f32.mrb[0].mxu0
        %v2625 = vadd.f32 %v2496, %v2624
        %v2626 = vpop.f32.mrb[0].mxu0
        %2627 = vmatprep.mubr.f32.mxu0 0.0
        %2628 = vmatmul.mubr.f32.gmra.mrb[0].mxu0 %v2536
        %v2629 = vpop.f32.mrb[0].mxu0
        %v2630 = vadd.f32 %v2501, %v2629
        %v2631 = vpop.f32.mrb[0].mxu0
        %2632 = vmatprep.mubr.f32.mxu0 0.0
        %2633 = vmatmul.mubr.f32.gmra.mrb[0].mxu0 %v2539
        %v2634 = vpop.f32.mrb[0].mxu0
        %v2635 = vadd.f32 %v2506, %v2634
        %v2636 = vpop.f32.mrb[0].mxu0
        %2637 = vmatprep.mubr.f32.mxu0 0.0
        %2638 = vmatmul.mubr.f32.gmra.mrb[0].mxu0 %v2542
        %v2639 = vpop.f32.mrb[0].mxu0
        %v2640 = vadd.f32 %v2511, %v2639
        %v2641 = vpop.f32.mrb[0].mxu0
        %2642 = vmatprep.mubr.f32.mxu0 0.0
        %2643 = vmatmul.mubr.f32.gmra.mrb[0].mxu0 %v2545
        %v2644 = vpop.f32.mrb[0].mxu0
        %v2645 = vadd.f32 %v2516, %v2644
        %v2646 = vpop.f32.mrb[0].mxu0
        %2647 = vmatprep.mubr.f32.mxu0 0.0
        %2648 = vmatmul.mubr.f32.gmra.mrb[0].mxu0 %v2548
        %v2649 = vpop.f32.mrb[0].mxu0
        %v2650 = vadd.f32 %v2521, %v2649
        %v2651 = vpop.f32.mrb[0].mxu0
        %2652 = vmatprep.mubr.f32.mxu0 0.0
        %2653 = vmatmul.mubr.f32.gmra.mrb[0].mxu0 %v2551
        %v2654 = vpop.f32.mrb[0].mxu0
        %v2655 = vadd.f32 %v2526, %v2654
        %v2656 = vpop.f32.mrb[0].mxu0
        %2657 = vdwg.mxu0
        %2658 = vrot.lane.b32.xlu0 %v748, 112
        %v2659 = vpop.permute.xlu0 %2658
        %2660 = vrot.lane.b32.xlu0 %v753, 112
        %v2661 = vpop.permute.xlu0 %2660
        %2662 = vrot.lane.b32.xlu0 %v748, 80
        %v2663 = vpop.permute.xlu0 %2662
        %2664 = vrot.lane.b32.xlu0 %v753, 80
        %v2665 = vpop.permute.xlu0 %2664
        %v2666 = vsel %vm796, %v2659, 0
        %v2668 = vsel %vm796, %v2661, 0
        %v2670 = vsel %vm796, %v2663, 0
        %v2672 = vsel %vm796, %v2665, 0
        %2674 = vmatprep.subr.mxu0 0.0
        %2675 = vmatpush1.xpose.msra.mxu0 %v2670
        %2676 = vmatprep.subr.mxu0 0.0
        %2677 = vmatpush1.xpose.msra.mxu0 %v2672
        %2678 = vmatprep.subr.mxu0 0.0
        %2679 = vmatpush1.xpose.msra.mxu0 0.0
        %2680 = vmatprep.subr.mxu0 0.0
        %2681 = vmatpush1.xpose.msra.mxu0 0.0
        %2682 = vmatprep.subr.mxu0 0.0
        %2683 = vmatpush1.xpose.msra.mxu0 0.0
        %2684 = vmatprep.subr.mxu0 0.0
        %2685 = vmatpush1.xpose.msra.mxu0 0.0
        %2686 = vmatprep.subr.mxu0 0.0
        %2687 = vmatpush1.xpose.msra.mxu0 0.0
        %2688 = vmatprep.subr.mxu0 0.0
        %2689 = vmatpush1.xpose.msra.mxu0 0.0
        %2690 = vmatprep.subr.mxu0 0.0
        %2691 = vmatpush1.xpose.msra.mxu0 0.0
        %2692 = vmatprep.subr.mxu0 0.0
        %2693 = vmatpush1.xpose.msra.mxu0 0.0
        %2694 = vmatprep.subr.mxu0 0.0
        %2695 = vmatpush1.xpose.msra.mxu0 0.0
        %2696 = vmatprep.subr.mxu0 0.0
        %2697 = vmatpush1.xpose.msra.mxu0 0.0
        %2698 = vmatprep.subr.mxu0 0.0
        %2699 = vmatpush1.xpose.msra.mxu0 0.0
        %2700 = vmatprep.subr.mxu0 0.0
        %2701 = vmatpush1.xpose.msra.mxu0 0.0
        %2702 = vmatprep.subr.mxu0 0.0
        %2703 = vmatpush1.xpose.msra.mxu0 0.0
        %2704 = vmatprep.subr.mxu0 0.0
        %2705 = vmatpush1.xpose.msra.mxu0 0.0
        %2706 = vmatprep.subr.mxu0 0.0
        %2707 = vmatpush1.xpose.msra.mxu0 0.0
        %2708 = vmatprep.subr.mxu0 0.0
        %2709 = vmatpush1.xpose.msra.mxu0 0.0
        %2710 = vmatprep.subr.mxu0 0.0
        %2711 = vmatpush1.xpose.msra.mxu0 0.0
        %2712 = vmatprep.subr.mxu0 0.0
        %2713 = vmatpush1.xpose.msra.mxu0 0.0
        %2714 = vmatprep.subr.mxu0 0.0
        %2715 = vmatpush1.xpose.msra.mxu0 0.0
        %2716 = vmatprep.subr.mxu0 0.0
        %2717 = vmatpush1.xpose.msra.mxu0 0.0
        %2718 = vmatprep.subr.mxu0 0.0
        %2719 = vmatpush1.xpose.msra.mxu0 0.0
        %2720 = vmatprep.subr.mxu0 0.0
        %2721 = vmatpush1.xpose.msra.mxu0 0.0
        %2722 = vmatprep.subr.mxu0 0.0
        %2723 = vmatpush1.xpose.msra.mxu0 0.0
        %2724 = vmatprep.subr.mxu0 0.0
        %2725 = vmatpush1.xpose.msra.mxu0 0.0
        %2726 = vmatprep.subr.mxu0 0.0
        %2727 = vmatpush1.xpose.msra.mxu0 0.0
        %2728 = vmatprep.subr.mxu0 0.0
        %2729 = vmatpush1.xpose.msra.mxu0 0.0
        %2730 = vmatprep.subr.mxu0 0.0
        %2731 = vmatpush1.xpose.msra.mxu0 0.0
        %2732 = vmatprep.subr.mxu0 0.0
        %2733 = vmatpush1.xpose.msra.mxu0 0.0
        %2734 = vmatprep.subr.mxu0 0.0
        %2735 = vmatpush1.xpose.msra.mxu0 0.0
        %2736 = vmatprep.subr.mxu0 0.0
        %2737 = vmatpush1.xpose.msra.mxu0 0.0
        %2738 = vmatprep.mubr.f32.mxu0 0.0
        %2739 = vmatmul.mubr.f32.gmra.mrb[0].mxu0 %v2666
        %v2740 = vpop.f32.mrb[0].mxu0
        %v2741 = vadd.f32 0.0, %v2740
        %v2742 = vpop.f32.mrb[0].mxu0
        %2743 = vmatprep.mubr.f32.mxu0 0.0
        %2744 = vmatmul.mubr.f32.gmra.mrb[0].mxu0 %v2668
        %v2745 = vpop.f32.mrb[0].mxu0
        %v2746 = vadd.f32 0.0, %v2745
        %v2747 = vpop.f32.mrb[0].mxu0
        %2748 = vdwg.mxu0
        %2749 = vrot.lane.b32.xlu0 %v758, 112
        %v2750 = vpop.permute.xlu0 %2749
        %2751 = vrot.lane.b32.xlu0 %v763, 112
        %v2752 = vpop.permute.xlu0 %2751
        %2753 = vrot.lane.b32.xlu0 %v758, 80
        %v2754 = vpop.permute.xlu0 %2753
        %2755 = vrot.lane.b32.xlu0 %v763, 80
        %v2756 = vpop.permute.xlu0 %2755
        %v2757 = vsel %vm796, %v2750, 0
        %v2759 = vsel %vm796, %v2752, 0
        %v2761 = vsel %vm796, %v2754, 0
        %v2763 = vsel %vm796, %v2756, 0
        %2765 = vmatprep.subr.mxu0 0.0
        %2766 = vmatpush1.xpose.msra.mxu0 %v2761
        %2767 = vmatprep.subr.mxu0 0.0
        %2768 = vmatpush1.xpose.msra.mxu0 %v2763
        %2769 = vmatprep.subr.mxu0 0.0
        %2770 = vmatpush1.xpose.msra.mxu0 0.0
        %2771 = vmatprep.subr.mxu0 0.0
        %2772 = vmatpush1.xpose.msra.mxu0 0.0
        %2773 = vmatprep.subr.mxu0 0.0
        %2774 = vmatpush1.xpose.msra.mxu0 0.0
        %2775 = vmatprep.subr.mxu0 0.0
        %2776 = vmatpush1.xpose.msra.mxu0 0.0
        %2777 = vmatprep.subr.mxu0 0.0
        %2778 = vmatpush1.xpose.msra.mxu0 0.0
        %2779 = vmatprep.subr.mxu0 0.0
        %2780 = vmatpush1.xpose.msra.mxu0 0.0
        %2781 = vmatprep.subr.mxu0 0.0
        %2782 = vmatpush1.xpose.msra.mxu0 0.0
        %2783 = vmatprep.subr.mxu0 0.0
        %2784 = vmatpush1.xpose.msra.mxu0 0.0
        %2785 = vmatprep.subr.mxu0 0.0
        %2786 = vmatpush1.xpose.msra.mxu0 0.0
        %2787 = vmatprep.subr.mxu0 0.0
        %2788 = vmatpush1.xpose.msra.mxu0 0.0
        %2789 = vmatprep.subr.mxu0 0.0
        %2790 = vmatpush1.xpose.msra.mxu0 0.0
        %2791 = vmatprep.subr.mxu0 0.0
        %2792 = vmatpush1.xpose.msra.mxu0 0.0
        %2793 = vmatprep.subr.mxu0 0.0
        %2794 = vmatpush1.xpose.msra.mxu0 0.0
        %2795 = vmatprep.subr.mxu0 0.0
        %2796 = vmatpush1.xpose.msra.mxu0 0.0
        %2797 = vmatprep.subr.mxu0 0.0
        %2798 = vmatpush1.xpose.msra.mxu0 0.0
        %2799 = vmatprep.subr.mxu0 0.0
        %2800 = vmatpush1.xpose.msra.mxu0 0.0
        %2801 = vmatprep.subr.mxu0 0.0
        %2802 = vmatpush1.xpose.msra.mxu0 0.0
        %2803 = vmatprep.subr.mxu0 0.0
        %2804 = vmatpush1.xpose.msra.mxu0 0.0
        %2805 = vmatprep.subr.mxu0 0.0
        %2806 = vmatpush1.xpose.msra.mxu0 0.0
        %2807 = vmatprep.subr.mxu0 0.0
        %2808 = vmatpush1.xpose.msra.mxu0 0.0
        %2809 = vmatprep.subr.mxu0 0.0
        %2810 = vmatpush1.xpose.msra.mxu0 0.0
        %2811 = vmatprep.subr.mxu0 0.0
        %2812 = vmatpush1.xpose.msra.mxu0 0.0
        %2813 = vmatprep.subr.mxu0 0.0
        %2814 = vmatpush1.xpose.msra.mxu0 0.0
        %2815 = vmatprep.subr.mxu0 0.0
        %2816 = vmatpush1.xpose.msra.mxu0 0.0
        %2817 = vmatprep.subr.mxu0 0.0
        %2818 = vmatpush1.xpose.msra.mxu0 0.0
        %2819 = vmatprep.subr.mxu0 0.0
        %2820 = vmatpush1.xpose.msra.mxu0 0.0
        %2821 = vmatprep.subr.mxu0 0.0
        %2822 = vmatpush1.xpose.msra.mxu0 0.0
        %2823 = vmatprep.subr.mxu0 0.0
        %2824 = vmatpush1.xpose.msra.mxu0 0.0
        %2825 = vmatprep.subr.mxu0 0.0
        %2826 = vmatpush1.xpose.msra.mxu0 0.0
        %2827 = vmatprep.subr.mxu0 0.0
        %2828 = vmatpush1.xpose.msra.mxu0 0.0
        %2829 = vmatprep.mubr.f32.mxu0 0.0
        %2830 = vmatmul.mubr.f32.gmra.mrb[0].mxu0 %v2757
        %v2831 = vpop.f32.mrb[0].mxu0
        %v2832 = vadd.f32 0.0, %v2831
        %v2833 = vpop.f32.mrb[0].mxu0
        %2834 = vmatprep.mubr.f32.mxu0 0.0
        %2835 = vmatmul.mubr.f32.gmra.mrb[0].mxu0 %v2759
        %v2836 = vpop.f32.mrb[0].mxu0
        %v2837 = vadd.f32 0.0, %v2836
        %v2838 = vpop.f32.mrb[0].mxu0
        %2839 = vdwg.mxu0
        %2840 = vrot.lane.b32.xlu0 %v768, 112
        %v2841 = vpop.permute.xlu0 %2840
        %2842 = vrot.lane.b32.xlu0 %v773, 112
        %v2843 = vpop.permute.xlu0 %2842
        %2844 = vrot.lane.b32.xlu0 %v768, 80
        %v2845 = vpop.permute.xlu0 %2844
        %2846 = vrot.lane.b32.xlu0 %v773, 80
        %v2847 = vpop.permute.xlu0 %2846
        %v2848 = vsel %vm796, %v2841, 0
        %v2850 = vsel %vm796, %v2843, 0
        %v2852 = vsel %vm796, %v2845, 0
        %v2854 = vsel %vm796, %v2847, 0
        %2856 = vmatprep.subr.mxu0 0.0
        %2857 = vmatpush1.xpose.msra.mxu0 %v2852
        %2858 = vmatprep.subr.mxu0 0.0
        %2859 = vmatpush1.xpose.msra.mxu0 %v2854
        %2860 = vmatprep.subr.mxu0 0.0
        %2861 = vmatpush1.xpose.msra.mxu0 0.0
        %2862 = vmatprep.subr.mxu0 0.0
        %2863 = vmatpush1.xpose.msra.mxu0 0.0
        %2864 = vmatprep.subr.mxu0 0.0
        %2865 = vmatpush1.xpose.msra.mxu0 0.0
        %2866 = vmatprep.subr.mxu0 0.0
        %2867 = vmatpush1.xpose.msra.mxu0 0.0
        %2868 = vmatprep.subr.mxu0 0.0
        %2869 = vmatpush1.xpose.msra.mxu0 0.0
        %2870 = vmatprep.subr.mxu0 0.0
        %2871 = vmatpush1.xpose.msra.mxu0 0.0
        %2872 = vmatprep.subr.mxu0 0.0
        %2873 = vmatpush1.xpose.msra.mxu0 0.0
        %2874 = vmatprep.subr.mxu0 0.0
        %2875 = vmatpush1.xpose.msra.mxu0 0.0
        %2876 = vmatprep.subr.mxu0 0.0
        %2877 = vmatpush1.xpose.msra.mxu0 0.0
        %2878 = vmatprep.subr.mxu0 0.0
        %2879 = vmatpush1.xpose.msra.mxu0 0.0
        %2880 = vmatprep.subr.mxu0 0.0
        %2881 = vmatpush1.xpose.msra.mxu0 0.0
        %2882 = vmatprep.subr.mxu0 0.0
        %2883 = vmatpush1.xpose.msra.mxu0 0.0
        %2884 = vmatprep.subr.mxu0 0.0
        %2885 = vmatpush1.xpose.msra.mxu0 0.0
        %2886 = vmatprep.subr.mxu0 0.0
        %2887 = vmatpush1.xpose.msra.mxu0 0.0
        %2888 = vmatprep.subr.mxu0 0.0
        %2889 = vmatpush1.xpose.msra.mxu0 0.0
        %2890 = vmatprep.subr.mxu0 0.0
        %2891 = vmatpush1.xpose.msra.mxu0 0.0
        %2892 = vmatprep.subr.mxu0 0.0
        %2893 = vmatpush1.xpose.msra.mxu0 0.0
        %2894 = vmatprep.subr.mxu0 0.0
        %2895 = vmatpush1.xpose.msra.mxu0 0.0
        %2896 = vmatprep.subr.mxu0 0.0
        %2897 = vmatpush1.xpose.msra.mxu0 0.0
        %2898 = vmatprep.subr.mxu0 0.0
        %2899 = vmatpush1.xpose.msra.mxu0 0.0
        %2900 = vmatprep.subr.mxu0 0.0
        %2901 = vmatpush1.xpose.msra.mxu0 0.0
        %2902 = vmatprep.subr.mxu0 0.0
        %2903 = vmatpush1.xpose.msra.mxu0 0.0
        %2904 = vmatprep.subr.mxu0 0.0
        %2905 = vmatpush1.xpose.msra.mxu0 0.0
        %2906 = vmatprep.subr.mxu0 0.0
        %2907 = vmatpush1.xpose.msra.mxu0 0.0
        %2908 = vmatprep.subr.mxu0 0.0
        %2909 = vmatpush1.xpose.msra.mxu0 0.0
        %2910 = vmatprep.subr.mxu0 0.0
        %2911 = vmatpush1.xpose.msra.mxu0 0.0
        %2912 = vmatprep.subr.mxu0 0.0
        %2913 = vmatpush1.xpose.msra.mxu0 0.0
        %2914 = vmatprep.subr.mxu0 0.0
        %2915 = vmatpush1.xpose.msra.mxu0 0.0
        %2916 = vmatprep.subr.mxu0 0.0
        %2917 = vmatpush1.xpose.msra.mxu0 0.0
        %2918 = vmatprep.subr.mxu0 0.0
        %2919 = vmatpush1.xpose.msra.mxu0 0.0
        %2920 = vmatprep.mubr.f32.mxu0 0.0
        %2921 = vmatmul.mubr.f32.gmra.mrb[0].mxu0 %v2848
        %v2922 = vpop.f32.mrb[0].mxu0
        %v2923 = vadd.f32 0.0, %v2922
        %v2924 = vpop.f32.mrb[0].mxu0
        %2925 = vmatprep.mubr.f32.mxu0 0.0
        %2926 = vmatmul.mubr.f32.gmra.mrb[0].mxu0 %v2850
        %v2927 = vpop.f32.mrb[0].mxu0
        %v2928 = vadd.f32 0.0, %v2927
        %v2929 = vpop.f32.mrb[0].mxu0
        %2930 = vdwg.mxu0
        %2931 = vrot.lane.b32.xlu0 %v778, 112
        %v2932 = vpop.permute.xlu0 %2931
        %2933 = vrot.lane.b32.xlu0 %v783, 112
        %v2934 = vpop.permute.xlu0 %2933
        %2935 = vrot.lane.b32.xlu0 %v778, 80
        %v2936 = vpop.permute.xlu0 %2935
        %2937 = vrot.lane.b32.xlu0 %v783, 80
        %v2938 = vpop.permute.xlu0 %2937
        %v2939 = vsel %vm796, %v2932, 0
        %v2941 = vsel %vm796, %v2934, 0
        %v2943 = vsel %vm796, %v2936, 0
        %v2945 = vsel %vm796, %v2938, 0
        %2947 = vmatprep.subr.mxu0 0.0
        %2948 = vmatpush1.xpose.msra.mxu0 %v2943
        %2949 = vmatprep.subr.mxu0 0.0
        %2950 = vmatpush1.xpose.msra.mxu0 %v2945
        %2951 = vmatprep.subr.mxu0 0.0
        %2952 = vmatpush1.xpose.msra.mxu0 0.0
        %2953 = vmatprep.subr.mxu0 0.0
        %2954 = vmatpush1.xpose.msra.mxu0 0.0
        %2955 = vmatprep.subr.mxu0 0.0
        %2956 = vmatpush1.xpose.msra.mxu0 0.0
        %2957 = vmatprep.subr.mxu0 0.0
        %2958 = vmatpush1.xpose.msra.mxu0 0.0
        %2959 = vmatprep.subr.mxu0 0.0
        %2960 = vmatpush1.xpose.msra.mxu0 0.0
        %2961 = vmatprep.subr.mxu0 0.0
        %2962 = vmatpush1.xpose.msra.mxu0 0.0
        %2963 = vmatprep.subr.mxu0 0.0
        %2964 = vmatpush1.xpose.msra.mxu0 0.0
        %2965 = vmatprep.subr.mxu0 0.0
        %2966 = vmatpush1.xpose.msra.mxu0 0.0
        %2967 = vmatprep.subr.mxu0 0.0
        %2968 = vmatpush1.xpose.msra.mxu0 0.0
        %2969 = vmatprep.subr.mxu0 0.0
        %2970 = vmatpush1.xpose.msra.mxu0 0.0
        %2971 = vmatprep.subr.mxu0 0.0
        %2972 = vmatpush1.xpose.msra.mxu0 0.0
        %2973 = vmatprep.subr.mxu0 0.0
        %2974 = vmatpush1.xpose.msra.mxu0 0.0
        %2975 = vmatprep.subr.mxu0 0.0
        %2976 = vmatpush1.xpose.msra.mxu0 0.0
        %2977 = vmatprep.subr.mxu0 0.0
        %2978 = vmatpush1.xpose.msra.mxu0 0.0
        %2979 = vmatprep.subr.mxu0 0.0
        %2980 = vmatpush1.xpose.msra.mxu0 0.0
        %2981 = vmatprep.subr.mxu0 0.0
        %2982 = vmatpush1.xpose.msra.mxu0 0.0
        %2983 = vmatprep.subr.mxu0 0.0
        %2984 = vmatpush1.xpose.msra.mxu0 0.0
        %2985 = vmatprep.subr.mxu0 0.0
        %2986 = vmatpush1.xpose.msra.mxu0 0.0
        %2987 = vmatprep.subr.mxu0 0.0
        %2988 = vmatpush1.xpose.msra.mxu0 0.0
        %2989 = vmatprep.subr.mxu0 0.0
        %2990 = vmatpush1.xpose.msra.mxu0 0.0
        %2991 = vmatprep.subr.mxu0 0.0
        %2992 = vmatpush1.xpose.msra.mxu0 0.0
        %2993 = vmatprep.subr.mxu0 0.0
        %2994 = vmatpush1.xpose.msra.mxu0 0.0
        %2995 = vmatprep.subr.mxu0 0.0
        %2996 = vmatpush1.xpose.msra.mxu0 0.0
        %2997 = vmatprep.subr.mxu0 0.0
        %2998 = vmatpush1.xpose.msra.mxu0 0.0
        %2999 = vmatprep.subr.mxu0 0.0
        %3000 = vmatpush1.xpose.msra.mxu0 0.0
        %3001 = vmatprep.subr.mxu0 0.0
        %3002 = vmatpush1.xpose.msra.mxu0 0.0
        %3003 = vmatprep.subr.mxu0 0.0
        %3004 = vmatpush1.xpose.msra.mxu0 0.0
        %3005 = vmatprep.subr.mxu0 0.0
        %3006 = vmatpush1.xpose.msra.mxu0 0.0
        %3007 = vmatprep.subr.mxu0 0.0
        %3008 = vmatpush1.xpose.msra.mxu0 0.0
        %3009 = vmatprep.subr.mxu0 0.0
        %3010 = vmatpush1.xpose.msra.mxu0 0.0
        %3011 = vmatprep.mubr.f32.mxu0 0.0
        %3012 = vmatmul.mubr.f32.gmra.mrb[0].mxu0 %v2939
        %v3013 = vpop.f32.mrb[0].mxu0
        %v3014 = vadd.f32 0.0, %v3013
        %v3015 = vpop.f32.mrb[0].mxu0
        %3016 = vmatprep.mubr.f32.mxu0 0.0
        %3017 = vmatmul.mubr.f32.gmra.mrb[0].mxu0 %v2941
        %v3018 = vpop.f32.mrb[0].mxu0
        %v3019 = vadd.f32 0.0, %v3018
        %v3020 = vpop.f32.mrb[0].mxu0
        %3021 = vdwg.mxu0
        %v3022 = vmul.f32 %v2741, 0.35355338
        %v3023 = vmul.f32 %v2746, 0.35355338
        %v3024 = vmul.f32 %v2832, 0.35355338
        %v3025 = vmul.f32 %v2837, 0.35355338
        %v3026 = vmul.f32 %v2923, 0.35355338
        %v3027 = vmul.f32 %v2928, 0.35355338
        %v3028 = vmul.f32 %v3014, 0.35355338
        %v3029 = vmul.f32 %v3019, 0.35355338
        %v3030 = vsel %vm1155, %v3022, -inf
        %3031 = vmax.xlane.f32.xlu0 %v3030
        %v3032 = vpop.xlane.xlu0 %3031
        %v3033 = vsel %vm1155, %v3023, -inf
        %3034 = vmax.xlane.f32.xlu0 %v3033
        %v3035 = vpop.xlane.xlu0 %3034
        %v3036 = vsel %vm1155, %v3024, -inf
        %3037 = vmax.xlane.f32.xlu0 %v3036
        %v3038 = vpop.xlane.xlu0 %3037
        %v3039 = vsel %vm1155, %v3025, -inf
        %3040 = vmax.xlane.f32.xlu0 %v3039
        %v3041 = vpop.xlane.xlu0 %3040
        %v3042 = vsel %vm1155, %v3026, -inf
        %3043 = vmax.xlane.f32.xlu0 %v3042
        %v3044 = vpop.xlane.xlu0 %3043
        %v3045 = vsel %vm1155, %v3027, -inf
        %3046 = vmax.xlane.f32.xlu0 %v3045
        %v3047 = vpop.xlane.xlu0 %3046
        %v3048 = vsel %vm1155, %v3028, -inf
        %3049 = vmax.xlane.f32.xlu0 %v3048
        %v3050 = vpop.xlane.xlu0 %3049
        %v3051 = vsel %vm1155, %v3029, -inf
        %3052 = vmax.xlane.f32.xlu0 %v3051
        %v3053 = vpop.xlane.xlu0 %3052
        %v3054 = vsub.f32 %v3022, %v3032
        %v3055 = vsub.f32 %v3023, %v3035
        %v3056 = vsub.f32 %v3024, %v3038
        %v3057 = vsub.f32 %v3025, %v3041
        %v3058 = vsub.f32 %v3026, %v3044
        %v3059 = vsub.f32 %v3027, %v3047
        %v3060 = vsub.f32 %v3028, %v3050
        %v3061 = vsub.f32 %v3029, %v3053
        %v3062 = vmul.f32 %v3054, 1.442695
        %v3063 = vpow.pop %v3062
        %v3064 = vmul.f32 %v3055, 1.442695
        %v3065 = vpow.pop %v3064
        %v3066 = vmul.f32 %v3056, 1.442695
        %v3067 = vpow.pop %v3066
        %v3068 = vmul.f32 %v3057, 1.442695
        %v3069 = vpow.pop %v3068
        %v3070 = vmul.f32 %v3058, 1.442695
        %v3071 = vpow.pop %v3070
        %v3072 = vmul.f32 %v3059, 1.442695
        %v3073 = vpow.pop %v3072
        %v3074 = vmul.f32 %v3060, 1.442695
        %v3075 = vpow.pop %v3074
        %v3076 = vmul.f32 %v3061, 1.442695
        %v3077 = vpow.pop %v3076
        %v3078 = vsel %vm1155, %v3063, 0.0
        %3079 = vadd.xlane.f32.xlu0 %v3078
        %v3080 = vpop.xlane.xlu0 %3079
        %v3081 = vsel %vm1155, %v3065, 0.0
        %3082 = vadd.xlane.f32.xlu0 %v3081
        %v3083 = vpop.xlane.xlu0 %3082
        %v3084 = vsel %vm1155, %v3067, 0.0
        %3085 = vadd.xlane.f32.xlu0 %v3084
        %v3086 = vpop.xlane.xlu0 %3085
        %v3087 = vsel %vm1155, %v3069, 0.0
        %3088 = vadd.xlane.f32.xlu0 %v3087
        %v3089 = vpop.xlane.xlu0 %3088
        %v3090 = vsel %vm1155, %v3071, 0.0
        %3091 = vadd.xlane.f32.xlu0 %v3090
        %v3092 = vpop.xlane.xlu0 %3091
        %v3093 = vsel %vm1155, %v3073, 0.0
        %3094 = vadd.xlane.f32.xlu0 %v3093
        %v3095 = vpop.xlane.xlu0 %3094
        %v3096 = vsel %vm1155, %v3075, 0.0
        %3097 = vadd.xlane.f32.xlu0 %v3096
        %v3098 = vpop.xlane.xlu0 %3097
        %v3099 = vsel %vm1155, %v3077, 0.0
        %3100 = vadd.xlane.f32.xlu0 %v3099
        %v3101 = vpop.xlane.xlu0 %3100
        %v3102 = vrcp.pop %v3080
        %v3103 = vmul.f32 %v3063, %v3102
        %v3104 = vrcp.pop %v3083
        %v3105 = vmul.f32 %v3065, %v3104
        %v3106 = vrcp.pop %v3086
        %v3107 = vmul.f32 %v3067, %v3106
        %v3108 = vrcp.pop %v3089
        %v3109 = vmul.f32 %v3069, %v3108
        %v3110 = vrcp.pop %v3092
        %v3111 = vmul.f32 %v3071, %v3110
        %v3112 = vrcp.pop %v3095
        %v3113 = vmul.f32 %v3073, %v3112
        %v3114 = vrcp.pop %v3098
        %v3115 = vmul.f32 %v3075, %v3114
        %v3116 = vrcp.pop %v3101
        %v3117 = vmul.f32 %v3077, %v3116
        %3118 = vrot.lane.b32.xlu0 %v748, 48
        %v3119 = vpop.permute.xlu0 %3118
        %3120 = vrot.lane.b32.xlu0 %v753, 48
        %v3121 = vpop.permute.xlu0 %3120
        %v3125 = vsel %vm1155, %v3103, 0
        %v3128 = vsel %vm1155, %v3105, 0
        %3130 = vmatprep.subr.mxu0 0.0
        %3131 = vmatpush1.msra.mxu0 %v3119
        %3132 = vmatprep.subr.mxu0 0.0
        %3133 = vmatpush1.msra.mxu0 %v3121
        %3134 = vmatprep.subr.mxu0 0.0
        %3135 = vmatpush1.msra.mxu0 0.0
        %3136 = vmatprep.subr.mxu0 0.0
        %3137 = vmatpush1.msra.mxu0 0.0
        %3138 = vmatprep.subr.mxu0 0.0
        %3139 = vmatpush1.msra.mxu0 0.0
        %3140 = vmatprep.subr.mxu0 0.0
        %3141 = vmatpush1.msra.mxu0 0.0
        %3142 = vmatprep.subr.mxu0 0.0
        %3143 = vmatpush1.msra.mxu0 0.0
        %3144 = vmatprep.subr.mxu0 0.0
        %3145 = vmatpush1.msra.mxu0 0.0
        %3146 = vmatprep.subr.mxu0 0.0
        %3147 = vmatpush1.msra.mxu0 0.0
        %3148 = vmatprep.subr.mxu0 0.0
        %3149 = vmatpush1.msra.mxu0 0.0
        %3150 = vmatprep.subr.mxu0 0.0
        %3151 = vmatpush1.msra.mxu0 0.0
        %3152 = vmatprep.subr.mxu0 0.0
        %3153 = vmatpush1.msra.mxu0 0.0
        %3154 = vmatprep.subr.mxu0 0.0
        %3155 = vmatpush1.msra.mxu0 0.0
        %3156 = vmatprep.subr.mxu0 0.0
        %3157 = vmatpush1.msra.mxu0 0.0
        %3158 = vmatprep.subr.mxu0 0.0
        %3159 = vmatpush1.msra.mxu0 0.0
        %3160 = vmatprep.subr.mxu0 0.0
        %3161 = vmatpush1.msra.mxu0 0.0
        %3162 = vmatprep.subr.mxu0 0.0
        %3163 = vmatpush1.msra.mxu0 0.0
        %3164 = vmatprep.subr.mxu0 0.0
        %3165 = vmatpush1.msra.mxu0 0.0
        %3166 = vmatprep.subr.mxu0 0.0
        %3167 = vmatpush1.msra.mxu0 0.0
        %3168 = vmatprep.subr.mxu0 0.0
        %3169 = vmatpush1.msra.mxu0 0.0
        %3170 = vmatprep.subr.mxu0 0.0
        %3171 = vmatpush1.msra.mxu0 0.0
        %3172 = vmatprep.subr.mxu0 0.0
        %3173 = vmatpush1.msra.mxu0 0.0
        %3174 = vmatprep.subr.mxu0 0.0
        %3175 = vmatpush1.msra.mxu0 0.0
        %3176 = vmatprep.subr.mxu0 0.0
        %3177 = vmatpush1.msra.mxu0 0.0
        %3178 = vmatprep.subr.mxu0 0.0
        %3179 = vmatpush1.msra.mxu0 0.0
        %3180 = vmatprep.subr.mxu0 0.0
        %3181 = vmatpush1.msra.mxu0 0.0
        %3182 = vmatprep.subr.mxu0 0.0
        %3183 = vmatpush1.msra.mxu0 0.0
        %3184 = vmatprep.subr.mxu0 0.0
        %3185 = vmatpush1.msra.mxu0 0.0
        %3186 = vmatprep.subr.mxu0 0.0
        %3187 = vmatpush1.msra.mxu0 0.0
        %3188 = vmatprep.subr.mxu0 0.0
        %3189 = vmatpush1.msra.mxu0 0.0
        %3190 = vmatprep.subr.mxu0 0.0
        %3191 = vmatpush1.msra.mxu0 0.0
        %3192 = vmatprep.subr.mxu0 0.0
        %3193 = vmatpush1.msra.mxu0 0.0
        %3194 = vmatprep.mubr.f32.mxu0 0.0
        %3195 = vmatmul.mubr.f32.gmra.mrb[0].mxu0 %v3125
        %v3196 = vpop.f32.mrb[0].mxu0
        %v3197 = vadd.f32 0.0, %v3196
        %v3198 = vpop.f32.mrb[0].mxu0
        %3199 = vmatprep.mubr.f32.mxu0 0.0
        %3200 = vmatmul.mubr.f32.gmra.mrb[0].mxu0 %v3128
        %v3201 = vpop.f32.mrb[0].mxu0
        %v3202 = vadd.f32 0.0, %v3201
        %v3203 = vpop.f32.mrb[0].mxu0
        %3204 = vdwg.mxu0
        %3205 = vrot.lane.b32.xlu0 %v758, 48
        %v3206 = vpop.permute.xlu0 %3205
        %3207 = vrot.lane.b32.xlu0 %v763, 48
        %v3208 = vpop.permute.xlu0 %3207
        %v3212 = vsel %vm1155, %v3107, 0
        %v3215 = vsel %vm1155, %v3109, 0
        %3217 = vmatprep.subr.mxu0 0.0
        %3218 = vmatpush1.msra.mxu0 %v3206
        %3219 = vmatprep.subr.mxu0 0.0
        %3220 = vmatpush1.msra.mxu0 %v3208
        %3221 = vmatprep.subr.mxu0 0.0
        %3222 = vmatpush1.msra.mxu0 0.0
        %3223 = vmatprep.subr.mxu0 0.0
        %3224 = vmatpush1.msra.mxu0 0.0
        %3225 = vmatprep.subr.mxu0 0.0
        %3226 = vmatpush1.msra.mxu0 0.0
        %3227 = vmatprep.subr.mxu0 0.0
        %3228 = vmatpush1.msra.mxu0 0.0
        %3229 = vmatprep.subr.mxu0 0.0
        %3230 = vmatpush1.msra.mxu0 0.0
        %3231 = vmatprep.subr.mxu0 0.0
        %3232 = vmatpush1.msra.mxu0 0.0
        %3233 = vmatprep.subr.mxu0 0.0
        %3234 = vmatpush1.msra.mxu0 0.0
        %3235 = vmatprep.subr.mxu0 0.0
        %3236 = vmatpush1.msra.mxu0 0.0
        %3237 = vmatprep.subr.mxu0 0.0
        %3238 = vmatpush1.msra.mxu0 0.0
        %3239 = vmatprep.subr.mxu0 0.0
        %3240 = vmatpush1.msra.mxu0 0.0
        %3241 = vmatprep.subr.mxu0 0.0
        %3242 = vmatpush1.msra.mxu0 0.0
        %3243 = vmatprep.subr.mxu0 0.0
        %3244 = vmatpush1.msra.mxu0 0.0
        %3245 = vmatprep.subr.mxu0 0.0
        %3246 = vmatpush1.msra.mxu0 0.0
        %3247 = vmatprep.subr.mxu0 0.0
        %3248 = vmatpush1.msra.mxu0 0.0
        %3249 = vmatprep.subr.mxu0 0.0
        %3250 = vmatpush1.msra.mxu0 0.0
        %3251 = vmatprep.subr.mxu0 0.0
        %3252 = vmatpush1.msra.mxu0 0.0
        %3253 = vmatprep.subr.mxu0 0.0
        %3254 = vmatpush1.msra.mxu0 0.0
        %3255 = vmatprep.subr.mxu0 0.0
        %3256 = vmatpush1.msra.mxu0 0.0
        %3257 = vmatprep.subr.mxu0 0.0
        %3258 = vmatpush1.msra.mxu0 0.0
        %3259 = vmatprep.subr.mxu0 0.0
        %3260 = vmatpush1.msra.mxu0 0.0
        %3261 = vmatprep.subr.mxu0 0.0
        %3262 = vmatpush1.msra.mxu0 0.0
        %3263 = vmatprep.subr.mxu0 0.0
        %3264 = vmatpush1.msra.mxu0 0.0
        %3265 = vmatprep.subr.mxu0 0.0
        %3266 = vmatpush1.msra.mxu0 0.0
        %3267 = vmatprep.subr.mxu0 0.0
        %3268 = vmatpush1.msra.mxu0 0.0
        %3269 = vmatprep.subr.mxu0 0.0
        %3270 = vmatpush1.msra.mxu0 0.0
        %3271 = vmatprep.subr.mxu0 0.0
        %3272 = vmatpush1.msra.mxu0 0.0
        %3273 = vmatprep.subr.mxu0 0.0
        %3274 = vmatpush1.msra.mxu0 0.0
        %3275 = vmatprep.subr.mxu0 0.0
        %3276 = vmatpush1.msra.mxu0 0.0
        %3277 = vmatprep.subr.mxu0 0.0
        %3278 = vmatpush1.msra.mxu0 0.0
        %3279 = vmatprep.subr.mxu0 0.0
        %3280 = vmatpush1.msra.mxu0 0.0
        %3281 = vmatprep.mubr.f32.mxu0 0.0
        %3282 = vmatmul.mubr.f32.gmra.mrb[0].mxu0 %v3212
        %v3283 = vpop.f32.mrb[0].mxu0
        %v3284 = vadd.f32 0.0, %v3283
        %v3285 = vpop.f32.mrb[0].mxu0
        %3286 = vmatprep.mubr.f32.mxu0 0.0
        %3287 = vmatmul.mubr.f32.gmra.mrb[0].mxu0 %v3215
        %v3288 = vpop.f32.mrb[0].mxu0
        %v3289 = vadd.f32 0.0, %v3288
        %v3290 = vpop.f32.mrb[0].mxu0
        %3291 = vdwg.mxu0
        %3292 = vrot.lane.b32.xlu0 %v768, 48
        %v3293 = vpop.permute.xlu0 %3292
        %3294 = vrot.lane.b32.xlu0 %v773, 48
        %v3295 = vpop.permute.xlu0 %3294
        %v3299 = vsel %vm1155, %v3111, 0
        %v3302 = vsel %vm1155, %v3113, 0
        %3304 = vmatprep.subr.mxu0 0.0
        %3305 = vmatpush1.msra.mxu0 %v3293
        %3306 = vmatprep.subr.mxu0 0.0
        %3307 = vmatpush1.msra.mxu0 %v3295
        %3308 = vmatprep.subr.mxu0 0.0
        %3309 = vmatpush1.msra.mxu0 0.0
        %3310 = vmatprep.subr.mxu0 0.0
        %3311 = vmatpush1.msra.mxu0 0.0
        %3312 = vmatprep.subr.mxu0 0.0
        %3313 = vmatpush1.msra.mxu0 0.0
        %3314 = vmatprep.subr.mxu0 0.0
        %3315 = vmatpush1.msra.mxu0 0.0
        %3316 = vmatprep.subr.mxu0 0.0
        %3317 = vmatpush1.msra.mxu0 0.0
        %3318 = vmatprep.subr.mxu0 0.0
        %3319 = vmatpush1.msra.mxu0 0.0
        %3320 = vmatprep.subr.mxu0 0.0
        %3321 = vmatpush1.msra.mxu0 0.0
        %3322 = vmatprep.subr.mxu0 0.0
        %3323 = vmatpush1.msra.mxu0 0.0
        %3324 = vmatprep.subr.mxu0 0.0
        %3325 = vmatpush1.msra.mxu0 0.0
        %3326 = vmatprep.subr.mxu0 0.0
        %3327 = vmatpush1.msra.mxu0 0.0
        %3328 = vmatprep.subr.mxu0 0.0
        %3329 = vmatpush1.msra.mxu0 0.0
        %3330 = vmatprep.subr.mxu0 0.0
        %3331 = vmatpush1.msra.mxu0 0.0
        %3332 = vmatprep.subr.mxu0 0.0
        %3333 = vmatpush1.msra.mxu0 0.0
        %3334 = vmatprep.subr.mxu0 0.0
        %3335 = vmatpush1.msra.mxu0 0.0
        %3336 = vmatprep.subr.mxu0 0.0
        %3337 = vmatpush1.msra.mxu0 0.0
        %3338 = vmatprep.subr.mxu0 0.0
        %3339 = vmatpush1.msra.mxu0 0.0
        %3340 = vmatprep.subr.mxu0 0.0
        %3341 = vmatpush1.msra.mxu0 0.0
        %3342 = vmatprep.subr.mxu0 0.0
        %3343 = vmatpush1.msra.mxu0 0.0
        %3344 = vmatprep.subr.mxu0 0.0
        %3345 = vmatpush1.msra.mxu0 0.0
        %3346 = vmatprep.subr.mxu0 0.0
        %3347 = vmatpush1.msra.mxu0 0.0
        %3348 = vmatprep.subr.mxu0 0.0
        %3349 = vmatpush1.msra.mxu0 0.0
        %3350 = vmatprep.subr.mxu0 0.0
        %3351 = vmatpush1.msra.mxu0 0.0
        %3352 = vmatprep.subr.mxu0 0.0
        %3353 = vmatpush1.msra.mxu0 0.0
        %3354 = vmatprep.subr.mxu0 0.0
        %3355 = vmatpush1.msra.mxu0 0.0
        %3356 = vmatprep.subr.mxu0 0.0
        %3357 = vmatpush1.msra.mxu0 0.0
        %3358 = vmatprep.subr.mxu0 0.0
        %3359 = vmatpush1.msra.mxu0 0.0
        %3360 = vmatprep.subr.mxu0 0.0
        %3361 = vmatpush1.msra.mxu0 0.0
        %3362 = vmatprep.subr.mxu0 0.0
        %3363 = vmatpush1.msra.mxu0 0.0
        %3364 = vmatprep.subr.mxu0 0.0
        %3365 = vmatpush1.msra.mxu0 0.0
        %3366 = vmatprep.subr.mxu0 0.0
        %3367 = vmatpush1.msra.mxu0 0.0
        %3368 = vmatprep.mubr.f32.mxu0 0.0
        %3369 = vmatmul.mubr.f32.gmra.mrb[0].mxu0 %v3299
        %v3370 = vpop.f32.mrb[0].mxu0
        %v3371 = vadd.f32 0.0, %v3370
        %v3372 = vpop.f32.mrb[0].mxu0
        %3373 = vmatprep.mubr.f32.mxu0 0.0
        %3374 = vmatmul.mubr.f32.gmra.mrb[0].mxu0 %v3302
        %v3375 = vpop.f32.mrb[0].mxu0
        %v3376 = vadd.f32 0.0, %v3375
        %v3377 = vpop.f32.mrb[0].mxu0
        %3378 = vdwg.mxu0
        %3379 = vrot.lane.b32.xlu0 %v778, 48
        %v3380 = vpop.permute.xlu0 %3379
        %3381 = vrot.lane.b32.xlu0 %v783, 48
        %v3382 = vpop.permute.xlu0 %3381
        %v3386 = vsel %vm1155, %v3115, 0
        %v3389 = vsel %vm1155, %v3117, 0
        %3391 = vmatprep.subr.mxu0 0.0
        %3392 = vmatpush1.msra.mxu0 %v3380
        %3393 = vmatprep.subr.mxu0 0.0
        %3394 = vmatpush1.msra.mxu0 %v3382
        %3395 = vmatprep.subr.mxu0 0.0
        %3396 = vmatpush1.msra.mxu0 0.0
        %3397 = vmatprep.subr.mxu0 0.0
        %3398 = vmatpush1.msra.mxu0 0.0
        %3399 = vmatprep.subr.mxu0 0.0
        %3400 = vmatpush1.msra.mxu0 0.0
        %3401 = vmatprep.subr.mxu0 0.0
        %3402 = vmatpush1.msra.mxu0 0.0
        %3403 = vmatprep.subr.mxu0 0.0
        %3404 = vmatpush1.msra.mxu0 0.0
        %3405 = vmatprep.subr.mxu0 0.0
        %3406 = vmatpush1.msra.mxu0 0.0
        %3407 = vmatprep.subr.mxu0 0.0
        %3408 = vmatpush1.msra.mxu0 0.0
        %3409 = vmatprep.subr.mxu0 0.0
        %3410 = vmatpush1.msra.mxu0 0.0
        %3411 = vmatprep.subr.mxu0 0.0
        %3412 = vmatpush1.msra.mxu0 0.0
        %3413 = vmatprep.subr.mxu0 0.0
        %3414 = vmatpush1.msra.mxu0 0.0
        %3415 = vmatprep.subr.mxu0 0.0
        %3416 = vmatpush1.msra.mxu0 0.0
        %3417 = vmatprep.subr.mxu0 0.0
        %3418 = vmatpush1.msra.mxu0 0.0
        %3419 = vmatprep.subr.mxu0 0.0
        %3420 = vmatpush1.msra.mxu0 0.0
        %3421 = vmatprep.subr.mxu0 0.0
        %3422 = vmatpush1.msra.mxu0 0.0
        %3423 = vmatprep.subr.mxu0 0.0
        %3424 = vmatpush1.msra.mxu0 0.0
        %3425 = vmatprep.subr.mxu0 0.0
        %3426 = vmatpush1.msra.mxu0 0.0
        %3427 = vmatprep.subr.mxu0 0.0
        %3428 = vmatpush1.msra.mxu0 0.0
        %3429 = vmatprep.subr.mxu0 0.0
        %3430 = vmatpush1.msra.mxu0 0.0
        %3431 = vmatprep.subr.mxu0 0.0
        %3432 = vmatpush1.msra.mxu0 0.0
        %3433 = vmatprep.subr.mxu0 0.0
        %3434 = vmatpush1.msra.mxu0 0.0
        %3435 = vmatprep.subr.mxu0 0.0
        %3436 = vmatpush1.msra.mxu0 0.0
        %3437 = vmatprep.subr.mxu0 0.0
        %3438 = vmatpush1.msra.mxu0 0.0
        %3439 = vmatprep.subr.mxu0 0.0
        %3440 = vmatpush1.msra.mxu0 0.0
        %3441 = vmatprep.subr.mxu0 0.0
        %3442 = vmatpush1.msra.mxu0 0.0
        %3443 = vmatprep.subr.mxu0 0.0
        %3444 = vmatpush1.msra.mxu0 0.0
        %3445 = vmatprep.subr.mxu0 0.0
        %3446 = vmatpush1.msra.mxu0 0.0
        %3447 = vmatprep.subr.mxu0 0.0
        %3448 = vmatpush1.msra.mxu0 0.0
        %3449 = vmatprep.subr.mxu0 0.0
        %3450 = vmatpush1.msra.mxu0 0.0
        %3451 = vmatprep.subr.mxu0 0.0
        %3452 = vmatpush1.msra.mxu0 0.0
        %3453 = vmatprep.subr.mxu0 0.0
        %3454 = vmatpush1.msra.mxu0 0.0
        %3455 = vmatprep.mubr.f32.mxu0 0.0
        %3456 = vmatmul.mubr.f32.gmra.mrb[0].mxu0 %v3386
        %v3457 = vpop.f32.mrb[0].mxu0
        %v3458 = vadd.f32 0.0, %v3457
        %v3459 = vpop.f32.mrb[0].mxu0
        %3460 = vmatprep.mubr.f32.mxu0 0.0
        %3461 = vmatmul.mubr.f32.gmra.mrb[0].mxu0 %v3389
        %v3462 = vpop.f32.mrb[0].mxu0
        %v3463 = vadd.f32 0.0, %v3462
        %v3464 = vpop.f32.mrb[0].mxu0
        %3465 = vdwg.mxu0
        %v3467 = vsel %vm796, %v3197, 0
        %v3470 = vsel %vm796, %v3202, 0
        %v3473 = vsel %vm796, %v3284, 0
        %v3476 = vsel %vm796, %v3289, 0
        %v3479 = vsel %vm796, %v3371, 0
        %v3482 = vsel %vm796, %v3376, 0
        %v3485 = vsel %vm796, %v3458, 0
        %v3488 = vsel %vm796, %v3463, 0
        %3490 = vmatprep.subr.mxu0 0.0
        %3491 = vmatpush1.msra.mxu0 %v788
        %3492 = vmatprep.subr.mxu0 0.0
        %3493 = vmatpush1.msra.mxu0 0.0
        %3494 = vmatprep.subr.mxu0 0.0
        %3495 = vmatpush1.msra.mxu0 0.0
        %3496 = vmatprep.subr.mxu0 0.0
        %3497 = vmatpush1.msra.mxu0 0.0
        %3498 = vmatprep.subr.mxu0 0.0
        %3499 = vmatpush1.msra.mxu0 0.0
        %3500 = vmatprep.subr.mxu0 0.0
        %3501 = vmatpush1.msra.mxu0 0.0
        %3502 = vmatprep.subr.mxu0 0.0
        %3503 = vmatpush1.msra.mxu0 0.0
        %3504 = vmatprep.subr.mxu0 0.0
        %3505 = vmatpush1.msra.mxu0 0.0
        %3506 = vmatprep.subr.mxu0 0.0
        %3507 = vmatpush1.msra.mxu0 0.0
        %3508 = vmatprep.subr.mxu0 0.0
        %3509 = vmatpush1.msra.mxu0 0.0
        %3510 = vmatprep.subr.mxu0 0.0
        %3511 = vmatpush1.msra.mxu0 0.0
        %3512 = vmatprep.subr.mxu0 0.0
        %3513 = vmatpush1.msra.mxu0 0.0
        %3514 = vmatprep.subr.mxu0 0.0
        %3515 = vmatpush1.msra.mxu0 0.0
        %3516 = vmatprep.subr.mxu0 0.0
        %3517 = vmatpush1.msra.mxu0 0.0
        %3518 = vmatprep.subr.mxu0 0.0
        %3519 = vmatpush1.msra.mxu0 0.0
        %3520 = vmatprep.subr.mxu0 0.0
        %3521 = vmatpush1.msra.mxu0 0.0
        %3522 = vmatprep.subr.mxu0 0.0
        %3523 = vmatpush1.msra.mxu0 0.0
        %3524 = vmatprep.subr.mxu0 0.0
        %3525 = vmatpush1.msra.mxu0 0.0
        %3526 = vmatprep.subr.mxu0 0.0
        %3527 = vmatpush1.msra.mxu0 0.0
        %3528 = vmatprep.subr.mxu0 0.0
        %3529 = vmatpush1.msra.mxu0 0.0
        %3530 = vmatprep.subr.mxu0 0.0
        %3531 = vmatpush1.msra.mxu0 0.0
        %3532 = vmatprep.subr.mxu0 0.0
        %3533 = vmatpush1.msra.mxu0 0.0
        %3534 = vmatprep.subr.mxu0 0.0
        %3535 = vmatpush1.msra.mxu0 0.0
        %3536 = vmatprep.subr.mxu0 0.0
        %3537 = vmatpush1.msra.mxu0 0.0
        %3538 = vmatprep.subr.mxu0 0.0
        %3539 = vmatpush1.msra.mxu0 0.0
        %3540 = vmatprep.subr.mxu0 0.0
        %3541 = vmatpush1.msra.mxu0 0.0
        %3542 = vmatprep.subr.mxu0 0.0
        %3543 = vmatpush1.msra.mxu0 0.0
        %3544 = vmatprep.subr.mxu0 0.0
        %3545 = vmatpush1.msra.mxu0 0.0
        %3546 = vmatprep.subr.mxu0 0.0
        %3547 = vmatpush1.msra.mxu0 0.0
        %3548 = vmatprep.subr.mxu0 0.0
        %3549 = vmatpush1.msra.mxu0 0.0
        %3550 = vmatprep.subr.mxu0 0.0
        %3551 = vmatpush1.msra.mxu0 0.0
        %3552 = vmatprep.subr.mxu0 0.0
        %3553 = vmatpush1.msra.mxu0 0.0
        %3554 = vmatprep.mubr.f32.mxu0 0.0
        %3555 = vmatmul.mubr.f32.gmra.mrb[0].mxu0 %v3467
        %v3556 = vpop.f32.mrb[0].mxu0
        %v3557 = vadd.f32 0.0, %v3556
        %v3558 = vpop.f32.mrb[0].mxu0
        %3559 = vmatprep.mubr.f32.mxu0 0.0
        %3560 = vmatmul.mubr.f32.gmra.mrb[0].mxu0 %v3470
        %v3561 = vpop.f32.mrb[0].mxu0
        %v3562 = vadd.f32 0.0, %v3561
        %v3563 = vpop.f32.mrb[0].mxu0
        %3564 = vmatprep.mubr.f32.mxu0 0.0
        %3565 = vmatmul.mubr.f32.gmra.mrb[0].mxu0 %v3473
        %v3566 = vpop.f32.mrb[0].mxu0
        %v3567 = vadd.f32 0.0, %v3566
        %v3568 = vpop.f32.mrb[0].mxu0
        %3569 = vmatprep.mubr.f32.mxu0 0.0
        %3570 = vmatmul.mubr.f32.gmra.mrb[0].mxu0 %v3476
        %v3571 = vpop.f32.mrb[0].mxu0
        %v3572 = vadd.f32 0.0, %v3571
        %v3573 = vpop.f32.mrb[0].mxu0
        %3574 = vmatprep.mubr.f32.mxu0 0.0
        %3575 = vmatmul.mubr.f32.gmra.mrb[0].mxu0 %v3479
        %v3576 = vpop.f32.mrb[0].mxu0
        %v3577 = vadd.f32 0.0, %v3576
        %v3578 = vpop.f32.mrb[0].mxu0
        %3579 = vmatprep.mubr.f32.mxu0 0.0
        %3580 = vmatmul.mubr.f32.gmra.mrb[0].mxu0 %v3482
        %v3581 = vpop.f32.mrb[0].mxu0
        %v3582 = vadd.f32 0.0, %v3581
        %v3583 = vpop.f32.mrb[0].mxu0
        %3584 = vmatprep.mubr.f32.mxu0 0.0
        %3585 = vmatmul.mubr.f32.gmra.mrb[0].mxu0 %v3485
        %v3586 = vpop.f32.mrb[0].mxu0
        %v3587 = vadd.f32 0.0, %v3586
        %v3588 = vpop.f32.mrb[0].mxu0
        %3589 = vmatprep.mubr.f32.mxu0 0.0
        %3590 = vmatmul.mubr.f32.gmra.mrb[0].mxu0 %v3488
        %v3591 = vpop.f32.mrb[0].mxu0
        %v3592 = vadd.f32 0.0, %v3591
        %v3593 = vpop.f32.mrb[0].mxu0
        %3594 = vdwg.mxu0
        %v3595 = vadd.f32 %v2620, %v3557
        %v3596 = vadd.f32 %v2625, %v3562
        %v3597 = vadd.f32 %v2630, %v3567
        %v3598 = vadd.f32 %v2635, %v3572
        %v3599 = vadd.f32 %v2640, %v3577
        %v3600 = vadd.f32 %v2645, %v3582
        %v3601 = vadd.f32 %v2650, %v3587
        %v3602 = vadd.f32 %v2655, %v3592
        %3603 = vrot.lane.b32.xlu0 %v748, 104
        %v3604 = vpop.permute.xlu0 %3603
        %3605 = vrot.lane.b32.xlu0 %v753, 104
        %v3606 = vpop.permute.xlu0 %3605
        %3607 = vrot.lane.b32.xlu0 %v748, 72
        %v3608 = vpop.permute.xlu0 %3607
        %3609 = vrot.lane.b32.xlu0 %v753, 72
        %v3610 = vpop.permute.xlu0 %3609
        %v3611 = vsel %vm796, %v3604, 0
        %v3613 = vsel %vm796, %v3606, 0
        %v3615 = vsel %vm796, %v3608, 0
        %v3617 = vsel %vm796, %v3610, 0
        %3619 = vmatprep.subr.mxu0 0.0
        %3620 = vmatpush1.xpose.msra.mxu0 %v3615
        %3621 = vmatprep.subr.mxu0 0.0
        %3622 = vmatpush1.xpose.msra.mxu0 %v3617
        %3623 = vmatprep.subr.mxu0 0.0
        %3624 = vmatpush1.xpose.msra.mxu0 0.0
        %3625 = vmatprep.subr.mxu0 0.0
        %3626 = vmatpush1.xpose.msra.mxu0 0.0
        %3627 = vmatprep.subr.mxu0 0.0
        %3628 = vmatpush1.xpose.msra.mxu0 0.0
        %3629 = vmatprep.subr.mxu0 0.0
        %3630 = vmatpush1.xpose.msra.mxu0 0.0
        %3631 = vmatprep.subr.mxu0 0.0
        %3632 = vmatpush1.xpose.msra.mxu0 0.0
        %3633 = vmatprep.subr.mxu0 0.0
        %3634 = vmatpush1.xpose.msra.mxu0 0.0
        %3635 = vmatprep.subr.mxu0 0.0
        %3636 = vmatpush1.xpose.msra.mxu0 0.0
        %3637 = vmatprep.subr.mxu0 0.0
        %3638 = vmatpush1.xpose.msra.mxu0 0.0
        %3639 = vmatprep.subr.mxu0 0.0
        %3640 = vmatpush1.xpose.msra.mxu0 0.0
        %3641 = vmatprep.subr.mxu0 0.0
        %3642 = vmatpush1.xpose.msra.mxu0 0.0
        %3643 = vmatprep.subr.mxu0 0.0
        %3644 = vmatpush1.xpose.msra.mxu0 0.0
        %3645 = vmatprep.subr.mxu0 0.0
        %3646 = vmatpush1.xpose.msra.mxu0 0.0
        %3647 = vmatprep.subr.mxu0 0.0
        %3648 = vmatpush1.xpose.msra.mxu0 0.0
        %3649 = vmatprep.subr.mxu0 0.0
        %3650 = vmatpush1.xpose.msra.mxu0 0.0
        %3651 = vmatprep.subr.mxu0 0.0
        %3652 = vmatpush1.xpose.msra.mxu0 0.0
        %3653 = vmatprep.subr.mxu0 0.0
        %3654 = vmatpush1.xpose.msra.mxu0 0.0
        %3655 = vmatprep.subr.mxu0 0.0
        %3656 = vmatpush1.xpose.msra.mxu0 0.0
        %3657 = vmatprep.subr.mxu0 0.0
        %3658 = vmatpush1.xpose.msra.mxu0 0.0
        %3659 = vmatprep.subr.mxu0 0.0
        %3660 = vmatpush1.xpose.msra.mxu0 0.0
        %3661 = vmatprep.subr.mxu0 0.0
        %3662 = vmatpush1.xpose.msra.mxu0 0.0
        %3663 = vmatprep.subr.mxu0 0.0
        %3664 = vmatpush1.xpose.msra.mxu0 0.0
        %3665 = vmatprep.subr.mxu0 0.0
        %3666 = vmatpush1.xpose.msra.mxu0 0.0
        %3667 = vmatprep.subr.mxu0 0.0
        %3668 = vmatpush1.xpose.msra.mxu0 0.0
        %3669 = vmatprep.subr.mxu0 0.0
        %3670 = vmatpush1.xpose.msra.mxu0 0.0
        %3671 = vmatprep.subr.mxu0 0.0
        %3672 = vmatpush1.xpose.msra.mxu0 0.0
        %3673 = vmatprep.subr.mxu0 0.0
        %3674 = vmatpush1.xpose.msra.mxu0 0.0
        %3675 = vmatprep.subr.mxu0 0.0
        %3676 = vmatpush1.xpose.msra.mxu0 0.0
        %3677 = vmatprep.subr.mxu0 0.0
        %3678 = vmatpush1.xpose.msra.mxu0 0.0
        %3679 = vmatprep.subr.mxu0 0.0
        %3680 = vmatpush1.xpose.msra.mxu0 0.0
        %3681 = vmatprep.subr.mxu0 0.0
        %3682 = vmatpush1.xpose.msra.mxu0 0.0
        %3683 = vmatprep.mubr.f32.mxu0 0.0
        %3684 = vmatmul.mubr.f32.gmra.mrb[0].mxu0 %v3611
        %v3685 = vpop.f32.mrb[0].mxu0
        %v3686 = vadd.f32 0.0, %v3685
        %v3687 = vpop.f32.mrb[0].mxu0
        %3688 = vmatprep.mubr.f32.mxu0 0.0
        %3689 = vmatmul.mubr.f32.gmra.mrb[0].mxu0 %v3613
        %v3690 = vpop.f32.mrb[0].mxu0
        %v3691 = vadd.f32 0.0, %v3690
        %v3692 = vpop.f32.mrb[0].mxu0
        %3693 = vdwg.mxu0
        %3694 = vrot.lane.b32.xlu0 %v758, 104
        %v3695 = vpop.permute.xlu0 %3694
        %3696 = vrot.lane.b32.xlu0 %v763, 104
        %v3697 = vpop.permute.xlu0 %3696
        %3698 = vrot.lane.b32.xlu0 %v758, 72
        %v3699 = vpop.permute.xlu0 %3698
        %3700 = vrot.lane.b32.xlu0 %v763, 72
        %v3701 = vpop.permute.xlu0 %3700
        %v3702 = vsel %vm796, %v3695, 0
        %v3704 = vsel %vm796, %v3697, 0
        %v3706 = vsel %vm796, %v3699, 0
        %v3708 = vsel %vm796, %v3701, 0
        %3710 = vmatprep.subr.mxu0 0.0
        %3711 = vmatpush1.xpose.msra.mxu0 %v3706
        %3712 = vmatprep.subr.mxu0 0.0
        %3713 = vmatpush1.xpose.msra.mxu0 %v3708
        %3714 = vmatprep.subr.mxu0 0.0
        %3715 = vmatpush1.xpose.msra.mxu0 0.0
        %3716 = vmatprep.subr.mxu0 0.0
        %3717 = vmatpush1.xpose.msra.mxu0 0.0
        %3718 = vmatprep.subr.mxu0 0.0
        %3719 = vmatpush1.xpose.msra.mxu0 0.0
        %3720 = vmatprep.subr.mxu0 0.0
        %3721 = vmatpush1.xpose.msra.mxu0 0.0
        %3722 = vmatprep.subr.mxu0 0.0
        %3723 = vmatpush1.xpose.msra.mxu0 0.0
        %3724 = vmatprep.subr.mxu0 0.0
        %3725 = vmatpush1.xpose.msra.mxu0 0.0
        %3726 = vmatprep.subr.mxu0 0.0
        %3727 = vmatpush1.xpose.msra.mxu0 0.0
        %3728 = vmatprep.subr.mxu0 0.0
        %3729 = vmatpush1.xpose.msra.mxu0 0.0
        %3730 = vmatprep.subr.mxu0 0.0
        %3731 = vmatpush1.xpose.msra.mxu0 0.0
        %3732 = vmatprep.subr.mxu0 0.0
        %3733 = vmatpush1.xpose.msra.mxu0 0.0
        %3734 = vmatprep.subr.mxu0 0.0
        %3735 = vmatpush1.xpose.msra.mxu0 0.0
        %3736 = vmatprep.subr.mxu0 0.0
        %3737 = vmatpush1.xpose.msra.mxu0 0.0
        %3738 = vmatprep.subr.mxu0 0.0
        %3739 = vmatpush1.xpose.msra.mxu0 0.0
        %3740 = vmatprep.subr.mxu0 0.0
        %3741 = vmatpush1.xpose.msra.mxu0 0.0
        %3742 = vmatprep.subr.mxu0 0.0
        %3743 = vmatpush1.xpose.msra.mxu0 0.0
        %3744 = vmatprep.subr.mxu0 0.0
        %3745 = vmatpush1.xpose.msra.mxu0 0.0
        %3746 = vmatprep.subr.mxu0 0.0
        %3747 = vmatpush1.xpose.msra.mxu0 0.0
        %3748 = vmatprep.subr.mxu0 0.0
        %3749 = vmatpush1.xpose.msra.mxu0 0.0
        %3750 = vmatprep.subr.mxu0 0.0
        %3751 = vmatpush1.xpose.msra.mxu0 0.0
        %3752 = vmatprep.subr.mxu0 0.0
        %3753 = vmatpush1.xpose.msra.mxu0 0.0
        %3754 = vmatprep.subr.mxu0 0.0
        %3755 = vmatpush1.xpose.msra.mxu0 0.0
        %3756 = vmatprep.subr.mxu0 0.0
        %3757 = vmatpush1.xpose.msra.mxu0 0.0
        %3758 = vmatprep.subr.mxu0 0.0
        %3759 = vmatpush1.xpose.msra.mxu0 0.0
        %3760 = vmatprep.subr.mxu0 0.0
        %3761 = vmatpush1.xpose.msra.mxu0 0.0
        %3762 = vmatprep.subr.mxu0 0.0
        %3763 = vmatpush1.xpose.msra.mxu0 0.0
        %3764 = vmatprep.subr.mxu0 0.0
        %3765 = vmatpush1.xpose.msra.mxu0 0.0
        %3766 = vmatprep.subr.mxu0 0.0
        %3767 = vmatpush1.xpose.msra.mxu0 0.0
        %3768 = vmatprep.subr.mxu0 0.0
        %3769 = vmatpush1.xpose.msra.mxu0 0.0
        %3770 = vmatprep.subr.mxu0 0.0
        %3771 = vmatpush1.xpose.msra.mxu0 0.0
        %3772 = vmatprep.subr.mxu0 0.0
        %3773 = vmatpush1.xpose.msra.mxu0 0.0
        %3774 = vmatprep.mubr.f32.mxu0 0.0
        %3775 = vmatmul.mubr.f32.gmra.mrb[0].mxu0 %v3702
        %v3776 = vpop.f32.mrb[0].mxu0
        %v3777 = vadd.f32 0.0, %v3776
        %v3778 = vpop.f32.mrb[0].mxu0
        %3779 = vmatprep.mubr.f32.mxu0 0.0
        %3780 = vmatmul.mubr.f32.gmra.mrb[0].mxu0 %v3704
        %v3781 = vpop.f32.mrb[0].mxu0
        %v3782 = vadd.f32 0.0, %v3781
        %v3783 = vpop.f32.mrb[0].mxu0
        %3784 = vdwg.mxu0
        %3785 = vrot.lane.b32.xlu0 %v768, 104
        %v3786 = vpop.permute.xlu0 %3785
        %3787 = vrot.lane.b32.xlu0 %v773, 104
        %v3788 = vpop.permute.xlu0 %3787
        %3789 = vrot.lane.b32.xlu0 %v768, 72
        %v3790 = vpop.permute.xlu0 %3789
        %3791 = vrot.lane.b32.xlu0 %v773, 72
        %v3792 = vpop.permute.xlu0 %3791
        %v3793 = vsel %vm796, %v3786, 0
        %v3795 = vsel %vm796, %v3788, 0
        %v3797 = vsel %vm796, %v3790, 0
        %v3799 = vsel %vm796, %v3792, 0
        %3801 = vmatprep.subr.mxu0 0.0
        %3802 = vmatpush1.xpose.msra.mxu0 %v3797
        %3803 = vmatprep.subr.mxu0 0.0
        %3804 = vmatpush1.xpose.msra.mxu0 %v3799
        %3805 = vmatprep.subr.mxu0 0.0
        %3806 = vmatpush1.xpose.msra.mxu0 0.0
        %3807 = vmatprep.subr.mxu0 0.0
        %3808 = vmatpush1.xpose.msra.mxu0 0.0
        %3809 = vmatprep.subr.mxu0 0.0
        %3810 = vmatpush1.xpose.msra.mxu0 0.0
        %3811 = vmatprep.subr.mxu0 0.0
        %3812 = vmatpush1.xpose.msra.mxu0 0.0
        %3813 = vmatprep.subr.mxu0 0.0
        %3814 = vmatpush1.xpose.msra.mxu0 0.0
        %3815 = vmatprep.subr.mxu0 0.0
        %3816 = vmatpush1.xpose.msra.mxu0 0.0
        %3817 = vmatprep.subr.mxu0 0.0
        %3818 = vmatpush1.xpose.msra.mxu0 0.0
        %3819 = vmatprep.subr.mxu0 0.0
        %3820 = vmatpush1.xpose.msra.mxu0 0.0
        %3821 = vmatprep.subr.mxu0 0.0
        %3822 = vmatpush1.xpose.msra.mxu0 0.0
        %3823 = vmatprep.subr.mxu0 0.0
        %3824 = vmatpush1.xpose.msra.mxu0 0.0
        %3825 = vmatprep.subr.mxu0 0.0
        %3826 = vmatpush1.xpose.msra.mxu0 0.0
        %3827 = vmatprep.subr.mxu0 0.0
        %3828 = vmatpush1.xpose.msra.mxu0 0.0
        %3829 = vmatprep.subr.mxu0 0.0
        %3830 = vmatpush1.xpose.msra.mxu0 0.0
        %3831 = vmatprep.subr.mxu0 0.0
        %3832 = vmatpush1.xpose.msra.mxu0 0.0
        %3833 = vmatprep.subr.mxu0 0.0
        %3834 = vmatpush1.xpose.msra.mxu0 0.0
        %3835 = vmatprep.subr.mxu0 0.0
        %3836 = vmatpush1.xpose.msra.mxu0 0.0
        %3837 = vmatprep.subr.mxu0 0.0
        %3838 = vmatpush1.xpose.msra.mxu0 0.0
        %3839 = vmatprep.subr.mxu0 0.0
        %3840 = vmatpush1.xpose.msra.mxu0 0.0
        %3841 = vmatprep.subr.mxu0 0.0
        %3842 = vmatpush1.xpose.msra.mxu0 0.0
        %3843 = vmatprep.subr.mxu0 0.0
        %3844 = vmatpush1.xpose.msra.mxu0 0.0
        %3845 = vmatprep.subr.mxu0 0.0
        %3846 = vmatpush1.xpose.msra.mxu0 0.0
        %3847 = vmatprep.subr.mxu0 0.0
        %3848 = vmatpush1.xpose.msra.mxu0 0.0
        %3849 = vmatprep.subr.mxu0 0.0
        %3850 = vmatpush1.xpose.msra.mxu0 0.0
        %3851 = vmatprep.subr.mxu0 0.0
        %3852 = vmatpush1.xpose.msra.mxu0 0.0
        %3853 = vmatprep.subr.mxu0 0.0
        %3854 = vmatpush1.xpose.msra.mxu0 0.0
        %3855 = vmatprep.subr.mxu0 0.0
        %3856 = vmatpush1.xpose.msra.mxu0 0.0
        %3857 = vmatprep.subr.mxu0 0.0
        %3858 = vmatpush1.xpose.msra.mxu0 0.0
        %3859 = vmatprep.subr.mxu0 0.0
        %3860 = vmatpush1.xpose.msra.mxu0 0.0
        %3861 = vmatprep.subr.mxu0 0.0
        %3862 = vmatpush1.xpose.msra.mxu0 0.0
        %3863 = vmatprep.subr.mxu0 0.0
        %3864 = vmatpush1.xpose.msra.mxu0 0.0
        %3865 = vmatprep.mubr.f32.mxu0 0.0
        %3866 = vmatmul.mubr.f32.gmra.mrb[0].mxu0 %v3793
        %v3867 = vpop.f32.mrb[0].mxu0
        %v3868 = vadd.f32 0.0, %v3867
        %v3869 = vpop.f32.mrb[0].mxu0
        %3870 = vmatprep.mubr.f32.mxu0 0.0
        %3871 = vmatmul.mubr.f32.gmra.mrb[0].mxu0 %v3795
        %v3872 = vpop.f32.mrb[0].mxu0
        %v3873 = vadd.f32 0.0, %v3872
        %v3874 = vpop.f32.mrb[0].mxu0
        %3875 = vdwg.mxu0
        %3876 = vrot.lane.b32.xlu0 %v778, 104
        %v3877 = vpop.permute.xlu0 %3876
        %3878 = vrot.lane.b32.xlu0 %v783, 104
        %v3879 = vpop.permute.xlu0 %3878
        %3880 = vrot.lane.b32.xlu0 %v778, 72
        %v3881 = vpop.permute.xlu0 %3880
        %3882 = vrot.lane.b32.xlu0 %v783, 72
        %v3883 = vpop.permute.xlu0 %3882
        %v3884 = vsel %vm796, %v3877, 0
        %v3886 = vsel %vm796, %v3879, 0
        %v3888 = vsel %vm796, %v3881, 0
        %v3890 = vsel %vm796, %v3883, 0
        %3892 = vmatprep.subr.mxu0 0.0
        %3893 = vmatpush1.xpose.msra.mxu0 %v3888
        %3894 = vmatprep.subr.mxu0 0.0
        %3895 = vmatpush1.xpose.msra.mxu0 %v3890
        %3896 = vmatprep.subr.mxu0 0.0
        %3897 = vmatpush1.xpose.msra.mxu0 0.0
        %3898 = vmatprep.subr.mxu0 0.0
        %3899 = vmatpush1.xpose.msra.mxu0 0.0
        %3900 = vmatprep.subr.mxu0 0.0
        %3901 = vmatpush1.xpose.msra.mxu0 0.0
        %3902 = vmatprep.subr.mxu0 0.0
        %3903 = vmatpush1.xpose.msra.mxu0 0.0
        %3904 = vmatprep.subr.mxu0 0.0
        %3905 = vmatpush1.xpose.msra.mxu0 0.0
        %3906 = vmatprep.subr.mxu0 0.0
        %3907 = vmatpush1.xpose.msra.mxu0 0.0
        %3908 = vmatprep.subr.mxu0 0.0
        %3909 = vmatpush1.xpose.msra.mxu0 0.0
        %3910 = vmatprep.subr.mxu0 0.0
        %3911 = vmatpush1.xpose.msra.mxu0 0.0
        %3912 = vmatprep.subr.mxu0 0.0
        %3913 = vmatpush1.xpose.msra.mxu0 0.0
        %3914 = vmatprep.subr.mxu0 0.0
        %3915 = vmatpush1.xpose.msra.mxu0 0.0
        %3916 = vmatprep.subr.mxu0 0.0
        %3917 = vmatpush1.xpose.msra.mxu0 0.0
        %3918 = vmatprep.subr.mxu0 0.0
        %3919 = vmatpush1.xpose.msra.mxu0 0.0
        %3920 = vmatprep.subr.mxu0 0.0
        %3921 = vmatpush1.xpose.msra.mxu0 0.0
        %3922 = vmatprep.subr.mxu0 0.0
        %3923 = vmatpush1.xpose.msra.mxu0 0.0
        %3924 = vmatprep.subr.mxu0 0.0
        %3925 = vmatpush1.xpose.msra.mxu0 0.0
        %3926 = vmatprep.subr.mxu0 0.0
        %3927 = vmatpush1.xpose.msra.mxu0 0.0
        %3928 = vmatprep.subr.mxu0 0.0
        %3929 = vmatpush1.xpose.msra.mxu0 0.0
        %3930 = vmatprep.subr.mxu0 0.0
        %3931 = vmatpush1.xpose.msra.mxu0 0.0
        %3932 = vmatprep.subr.mxu0 0.0
        %3933 = vmatpush1.xpose.msra.mxu0 0.0
        %3934 = vmatprep.subr.mxu0 0.0
        %3935 = vmatpush1.xpose.msra.mxu0 0.0
        %3936 = vmatprep.subr.mxu0 0.0
        %3937 = vmatpush1.xpose.msra.mxu0 0.0
        %3938 = vmatprep.subr.mxu0 0.0
        %3939 = vmatpush1.xpose.msra.mxu0 0.0
        %3940 = vmatprep.subr.mxu0 0.0
        %3941 = vmatpush1.xpose.msra.mxu0 0.0
        %3942 = vmatprep.subr.mxu0 0.0
        %3943 = vmatpush1.xpose.msra.mxu0 0.0
        %3944 = vmatprep.subr.mxu0 0.0
        %3945 = vmatpush1.xpose.msra.mxu0 0.0
        %3946 = vmatprep.subr.mxu0 0.0
        %3947 = vmatpush1.xpose.msra.mxu0 0.0
        %3948 = vmatprep.subr.mxu0 0.0
        %3949 = vmatpush1.xpose.msra.mxu0 0.0
        %3950 = vmatprep.subr.mxu0 0.0
        %3951 = vmatpush1.xpose.msra.mxu0 0.0
        %3952 = vmatprep.subr.mxu0 0.0
        %3953 = vmatpush1.xpose.msra.mxu0 0.0
        %3954 = vmatprep.subr.mxu0 0.0
        %3955 = vmatpush1.xpose.msra.mxu0 0.0
        %3956 = vmatprep.mubr.f32.mxu0 0.0
        %3957 = vmatmul.mubr.f32.gmra.mrb[0].mxu0 %v3884
        %v3958 = vpop.f32.mrb[0].mxu0
        %v3959 = vadd.f32 0.0, %v3958
        %v3960 = vpop.f32.mrb[0].mxu0
        %3961 = vmatprep.mubr.f32.mxu0 0.0
        %3962 = vmatmul.mubr.f32.gmra.mrb[0].mxu0 %v3886
        %v3963 = vpop.f32.mrb[0].mxu0
        %v3964 = vadd.f32 0.0, %v3963
        %v3965 = vpop.f32.mrb[0].mxu0
        %3966 = vdwg.mxu0
        %v3967 = vmul.f32 %v3686, 0.35355338
        %v3968 = vmul.f32 %v3691, 0.35355338
        %v3969 = vmul.f32 %v3777, 0.35355338
        %v3970 = vmul.f32 %v3782, 0.35355338
        %v3971 = vmul.f32 %v3868, 0.35355338
        %v3972 = vmul.f32 %v3873, 0.35355338
        %v3973 = vmul.f32 %v3959, 0.35355338
        %v3974 = vmul.f32 %v3964, 0.35355338
        %v3975 = vsel %vm1155, %v3967, -inf
        %3976 = vmax.xlane.f32.xlu0 %v3975
        %v3977 = vpop.xlane.xlu0 %3976
        %v3978 = vsel %vm1155, %v3968, -inf
        %3979 = vmax.xlane.f32.xlu0 %v3978
        %v3980 = vpop.xlane.xlu0 %3979
        %v3981 = vsel %vm1155, %v3969, -inf
        %3982 = vmax.xlane.f32.xlu0 %v3981
        %v3983 = vpop.xlane.xlu0 %3982
        %v3984 = vsel %vm1155, %v3970, -inf
        %3985 = vmax.xlane.f32.xlu0 %v3984
        %v3986 = vpop.xlane.xlu0 %3985
        %v3987 = vsel %vm1155, %v3971, -inf
        %3988 = vmax.xlane.f32.xlu0 %v3987
        %v3989 = vpop.xlane.xlu0 %3988
        %v3990 = vsel %vm1155, %v3972, -inf
        %3991 = vmax.xlane.f32.xlu0 %v3990
        %v3992 = vpop.xlane.xlu0 %3991
        %v3993 = vsel %vm1155, %v3973, -inf
        %3994 = vmax.xlane.f32.xlu0 %v3993
        %v3995 = vpop.xlane.xlu0 %3994
        %v3996 = vsel %vm1155, %v3974, -inf
        %3997 = vmax.xlane.f32.xlu0 %v3996
        %v3998 = vpop.xlane.xlu0 %3997
        %v3999 = vsub.f32 %v3967, %v3977
        %v4000 = vsub.f32 %v3968, %v3980
        %v4001 = vsub.f32 %v3969, %v3983
        %v4002 = vsub.f32 %v3970, %v3986
        %v4003 = vsub.f32 %v3971, %v3989
        %v4004 = vsub.f32 %v3972, %v3992
        %v4005 = vsub.f32 %v3973, %v3995
        %v4006 = vsub.f32 %v3974, %v3998
        %v4007 = vmul.f32 %v3999, 1.442695
        %v4008 = vpow.pop %v4007
        %v4009 = vmul.f32 %v4000, 1.442695
        %v4010 = vpow.pop %v4009
        %v4011 = vmul.f32 %v4001, 1.442695
        %v4012 = vpow.pop %v4011
        %v4013 = vmul.f32 %v4002, 1.442695
        %v4014 = vpow.pop %v4013
        %v4015 = vmul.f32 %v4003, 1.442695
        %v4016 = vpow.pop %v4015
        %v4017 = vmul.f32 %v4004, 1.442695
        %v4018 = vpow.pop %v4017
        %v4019 = vmul.f32 %v4005, 1.442695
        %v4020 = vpow.pop %v4019
        %v4021 = vmul.f32 %v4006, 1.442695
        %v4022 = vpow.pop %v4021
        %v4023 = vsel %vm1155, %v4008, 0.0
        %4024 = vadd.xlane.f32.xlu0 %v4023
        %v4025 = vpop.xlane.xlu0 %4024
        %v4026 = vsel %vm1155, %v4010, 0.0
        %4027 = vadd.xlane.f32.xlu0 %v4026
        %v4028 = vpop.xlane.xlu0 %4027
        %v4029 = vsel %vm1155, %v4012, 0.0
        %4030 = vadd.xlane.f32.xlu0 %v4029
        %v4031 = vpop.xlane.xlu0 %4030
        %v4032 = vsel %vm1155, %v4014, 0.0
        %4033 = vadd.xlane.f32.xlu0 %v4032
        %v4034 = vpop.xlane.xlu0 %4033
        %v4035 = vsel %vm1155, %v4016, 0.0
        %4036 = vadd.xlane.f32.xlu0 %v4035
        %v4037 = vpop.xlane.xlu0 %4036
        %v4038 = vsel %vm1155, %v4018, 0.0
        %4039 = vadd.xlane.f32.xlu0 %v4038
        %v4040 = vpop.xlane.xlu0 %4039
        %v4041 = vsel %vm1155, %v4020, 0.0
        %4042 = vadd.xlane.f32.xlu0 %v4041
        %v4043 = vpop.xlane.xlu0 %4042
        %v4044 = vsel %vm1155, %v4022, 0.0
        %4045 = vadd.xlane.f32.xlu0 %v4044
        %v4046 = vpop.xlane.xlu0 %4045
        %v4047 = vrcp.pop %v4025
        %v4048 = vmul.f32 %v4008, %v4047
        %v4049 = vrcp.pop %v4028
        %v4050 = vmul.f32 %v4010, %v4049
        %v4051 = vrcp.pop %v4031
        %v4052 = vmul.f32 %v4012, %v4051
        %v4053 = vrcp.pop %v4034
        %v4054 = vmul.f32 %v4014, %v4053
        %v4055 = vrcp.pop %v4037
        %v4056 = vmul.f32 %v4016, %v4055
        %v4057 = vrcp.pop %v4040
        %v4058 = vmul.f32 %v4018, %v4057
        %v4059 = vrcp.pop %v4043
        %v4060 = vmul.f32 %v4020, %v4059
        %v4061 = vrcp.pop %v4046
        %v4062 = vmul.f32 %v4022, %v4061
        %4063 = vrot.lane.b32.xlu0 %v748, 40
        %v4064 = vpop.permute.xlu0 %4063
        %4065 = vrot.lane.b32.xlu0 %v753, 40
        %v4066 = vpop.permute.xlu0 %4065
        %v4070 = vsel %vm1155, %v4048, 0
        %v4073 = vsel %vm1155, %v4050, 0
        %4075 = vmatprep.subr.mxu0 0.0
        %4076 = vmatpush1.msra.mxu0 %v4064
        %4077 = vmatprep.subr.mxu0 0.0
        %4078 = vmatpush1.msra.mxu0 %v4066
        %4079 = vmatprep.subr.mxu0 0.0
        %4080 = vmatpush1.msra.mxu0 0.0
        %4081 = vmatprep.subr.mxu0 0.0
        %4082 = vmatpush1.msra.mxu0 0.0
        %4083 = vmatprep.subr.mxu0 0.0
        %4084 = vmatpush1.msra.mxu0 0.0
        %4085 = vmatprep.subr.mxu0 0.0
        %4086 = vmatpush1.msra.mxu0 0.0
        %4087 = vmatprep.subr.mxu0 0.0
        %4088 = vmatpush1.msra.mxu0 0.0
        %4089 = vmatprep.subr.mxu0 0.0
        %4090 = vmatpush1.msra.mxu0 0.0
        %4091 = vmatprep.subr.mxu0 0.0
        %4092 = vmatpush1.msra.mxu0 0.0
        %4093 = vmatprep.subr.mxu0 0.0
        %4094 = vmatpush1.msra.mxu0 0.0
        %4095 = vmatprep.subr.mxu0 0.0
        %4096 = vmatpush1.msra.mxu0 0.0
        %4097 = vmatprep.subr.mxu0 0.0
        %4098 = vmatpush1.msra.mxu0 0.0
        %4099 = vmatprep.subr.mxu0 0.0
        %4100 = vmatpush1.msra.mxu0 0.0
        %4101 = vmatprep.subr.mxu0 0.0
        %4102 = vmatpush1.msra.mxu0 0.0
        %4103 = vmatprep.subr.mxu0 0.0
        %4104 = vmatpush1.msra.mxu0 0.0
        %4105 = vmatprep.subr.mxu0 0.0
        %4106 = vmatpush1.msra.mxu0 0.0
        %4107 = vmatprep.subr.mxu0 0.0
        %4108 = vmatpush1.msra.mxu0 0.0
        %4109 = vmatprep.subr.mxu0 0.0
        %4110 = vmatpush1.msra.mxu0 0.0
        %4111 = vmatprep.subr.mxu0 0.0
        %4112 = vmatpush1.msra.mxu0 0.0
        %4113 = vmatprep.subr.mxu0 0.0
        %4114 = vmatpush1.msra.mxu0 0.0
        %4115 = vmatprep.subr.mxu0 0.0
        %4116 = vmatpush1.msra.mxu0 0.0
        %4117 = vmatprep.subr.mxu0 0.0
        %4118 = vmatpush1.msra.mxu0 0.0
        %4119 = vmatprep.subr.mxu0 0.0
        %4120 = vmatpush1.msra.mxu0 0.0
        %4121 = vmatprep.subr.mxu0 0.0
        %4122 = vmatpush1.msra.mxu0 0.0
        %4123 = vmatprep.subr.mxu0 0.0
        %4124 = vmatpush1.msra.mxu0 0.0
        %4125 = vmatprep.subr.mxu0 0.0
        %4126 = vmatpush1.msra.mxu0 0.0
        %4127 = vmatprep.subr.mxu0 0.0
        %4128 = vmatpush1.msra.mxu0 0.0
        %4129 = vmatprep.subr.mxu0 0.0
        %4130 = vmatpush1.msra.mxu0 0.0
        %4131 = vmatprep.subr.mxu0 0.0
        %4132 = vmatpush1.msra.mxu0 0.0
        %4133 = vmatprep.subr.mxu0 0.0
        %4134 = vmatpush1.msra.mxu0 0.0
        %4135 = vmatprep.subr.mxu0 0.0
        %4136 = vmatpush1.msra.mxu0 0.0
        %4137 = vmatprep.subr.mxu0 0.0
        %4138 = vmatpush1.msra.mxu0 0.0
        %4139 = vmatprep.mubr.f32.mxu0 0.0
        %4140 = vmatmul.mubr.f32.gmra.mrb[0].mxu0 %v4070
        %v4141 = vpop.f32.mrb[0].mxu0
        %v4142 = vadd.f32 0.0, %v4141
        %v4143 = vpop.f32.mrb[0].mxu0
        %4144 = vmatprep.mubr.f32.mxu0 0.0
        %4145 = vmatmul.mubr.f32.gmra.mrb[0].mxu0 %v4073
        %v4146 = vpop.f32.mrb[0].mxu0
        %v4147 = vadd.f32 0.0, %v4146
        %v4148 = vpop.f32.mrb[0].mxu0
        %4149 = vdwg.mxu0
        %4150 = vrot.lane.b32.xlu0 %v758, 40
        %v4151 = vpop.permute.xlu0 %4150
        %4152 = vrot.lane.b32.xlu0 %v763, 40
        %v4153 = vpop.permute.xlu0 %4152
        %v4157 = vsel %vm1155, %v4052, 0
        %v4160 = vsel %vm1155, %v4054, 0
        %4162 = vmatprep.subr.mxu0 0.0
        %4163 = vmatpush1.msra.mxu0 %v4151
        %4164 = vmatprep.subr.mxu0 0.0
        %4165 = vmatpush1.msra.mxu0 %v4153
        %4166 = vmatprep.subr.mxu0 0.0
        %4167 = vmatpush1.msra.mxu0 0.0
        %4168 = vmatprep.subr.mxu0 0.0
        %4169 = vmatpush1.msra.mxu0 0.0
        %4170 = vmatprep.subr.mxu0 0.0
        %4171 = vmatpush1.msra.mxu0 0.0
        %4172 = vmatprep.subr.mxu0 0.0
        %4173 = vmatpush1.msra.mxu0 0.0
        %4174 = vmatprep.subr.mxu0 0.0
        %4175 = vmatpush1.msra.mxu0 0.0
        %4176 = vmatprep.subr.mxu0 0.0
        %4177 = vmatpush1.msra.mxu0 0.0
        %4178 = vmatprep.subr.mxu0 0.0
        %4179 = vmatpush1.msra.mxu0 0.0
        %4180 = vmatprep.subr.mxu0 0.0
        %4181 = vmatpush1.msra.mxu0 0.0
        %4182 = vmatprep.subr.mxu0 0.0
        %4183 = vmatpush1.msra.mxu0 0.0
        %4184 = vmatprep.subr.mxu0 0.0
        %4185 = vmatpush1.msra.mxu0 0.0
        %4186 = vmatprep.subr.mxu0 0.0
        %4187 = vmatpush1.msra.mxu0 0.0
        %4188 = vmatprep.subr.mxu0 0.0
        %4189 = vmatpush1.msra.mxu0 0.0
        %4190 = vmatprep.subr.mxu0 0.0
        %4191 = vmatpush1.msra.mxu0 0.0
        %4192 = vmatprep.subr.mxu0 0.0
        %4193 = vmatpush1.msra.mxu0 0.0
        %4194 = vmatprep.subr.mxu0 0.0
        %4195 = vmatpush1.msra.mxu0 0.0
        %4196 = vmatprep.subr.mxu0 0.0
        %4197 = vmatpush1.msra.mxu0 0.0
        %4198 = vmatprep.subr.mxu0 0.0
        %4199 = vmatpush1.msra.mxu0 0.0
        %4200 = vmatprep.subr.mxu0 0.0
        %4201 = vmatpush1.msra.mxu0 0.0
        %4202 = vmatprep.subr.mxu0 0.0
        %4203 = vmatpush1.msra.mxu0 0.0
        %4204 = vmatprep.subr.mxu0 0.0
        %4205 = vmatpush1.msra.mxu0 0.0
        %4206 = vmatprep.subr.mxu0 0.0
        %4207 = vmatpush1.msra.mxu0 0.0
        %4208 = vmatprep.subr.mxu0 0.0
        %4209 = vmatpush1.msra.mxu0 0.0
        %4210 = vmatprep.subr.mxu0 0.0
        %4211 = vmatpush1.msra.mxu0 0.0
        %4212 = vmatprep.subr.mxu0 0.0
        %4213 = vmatpush1.msra.mxu0 0.0
        %4214 = vmatprep.subr.mxu0 0.0
        %4215 = vmatpush1.msra.mxu0 0.0
        %4216 = vmatprep.subr.mxu0 0.0
        %4217 = vmatpush1.msra.mxu0 0.0
        %4218 = vmatprep.subr.mxu0 0.0
        %4219 = vmatpush1.msra.mxu0 0.0
        %4220 = vmatprep.subr.mxu0 0.0
        %4221 = vmatpush1.msra.mxu0 0.0
        %4222 = vmatprep.subr.mxu0 0.0
        %4223 = vmatpush1.msra.mxu0 0.0
        %4224 = vmatprep.subr.mxu0 0.0
        %4225 = vmatpush1.msra.mxu0 0.0
        %4226 = vmatprep.mubr.f32.mxu0 0.0
        %4227 = vmatmul.mubr.f32.gmra.mrb[0].mxu0 %v4157
        %v4228 = vpop.f32.mrb[0].mxu0
        %v4229 = vadd.f32 0.0, %v4228
        %v4230 = vpop.f32.mrb[0].mxu0
        %4231 = vmatprep.mubr.f32.mxu0 0.0
        %4232 = vmatmul.mubr.f32.gmra.mrb[0].mxu0 %v4160
        %v4233 = vpop.f32.mrb[0].mxu0
        %v4234 = vadd.f32 0.0, %v4233
        %v4235 = vpop.f32.mrb[0].mxu0
        %4236 = vdwg.mxu0
        %4237 = vrot.lane.b32.xlu0 %v768, 40
        %v4238 = vpop.permute.xlu0 %4237
        %4239 = vrot.lane.b32.xlu0 %v773, 40
        %v4240 = vpop.permute.xlu0 %4239
        %v4244 = vsel %vm1155, %v4056, 0
        %v4247 = vsel %vm1155, %v4058, 0
        %4249 = vmatprep.subr.mxu0 0.0
        %4250 = vmatpush1.msra.mxu0 %v4238
        %4251 = vmatprep.subr.mxu0 0.0
        %4252 = vmatpush1.msra.mxu0 %v4240
        %4253 = vmatprep.subr.mxu0 0.0
        %4254 = vmatpush1.msra.mxu0 0.0
        %4255 = vmatprep.subr.mxu0 0.0
        %4256 = vmatpush1.msra.mxu0 0.0
        %4257 = vmatprep.subr.mxu0 0.0
        %4258 = vmatpush1.msra.mxu0 0.0
        %4259 = vmatprep.subr.mxu0 0.0
        %4260 = vmatpush1.msra.mxu0 0.0
        %4261 = vmatprep.subr.mxu0 0.0
        %4262 = vmatpush1.msra.mxu0 0.0
        %4263 = vmatprep.subr.mxu0 0.0
        %4264 = vmatpush1.msra.mxu0 0.0
        %4265 = vmatprep.subr.mxu0 0.0
        %4266 = vmatpush1.msra.mxu0 0.0
        %4267 = vmatprep.subr.mxu0 0.0
        %4268 = vmatpush1.msra.mxu0 0.0
        %4269 = vmatprep.subr.mxu0 0.0
        %4270 = vmatpush1.msra.mxu0 0.0
        %4271 = vmatprep.subr.mxu0 0.0
        %4272 = vmatpush1.msra.mxu0 0.0
        %4273 = vmatprep.subr.mxu0 0.0
        %4274 = vmatpush1.msra.mxu0 0.0
        %4275 = vmatprep.subr.mxu0 0.0
        %4276 = vmatpush1.msra.mxu0 0.0
        %4277 = vmatprep.subr.mxu0 0.0
        %4278 = vmatpush1.msra.mxu0 0.0
        %4279 = vmatprep.subr.mxu0 0.0
        %4280 = vmatpush1.msra.mxu0 0.0
        %4281 = vmatprep.subr.mxu0 0.0
        %4282 = vmatpush1.msra.mxu0 0.0
        %4283 = vmatprep.subr.mxu0 0.0
        %4284 = vmatpush1.msra.mxu0 0.0
        %4285 = vmatprep.subr.mxu0 0.0
        %4286 = vmatpush1.msra.mxu0 0.0
        %4287 = vmatprep.subr.mxu0 0.0
        %4288 = vmatpush1.msra.mxu0 0.0
        %4289 = vmatprep.subr.mxu0 0.0
        %4290 = vmatpush1.msra.mxu0 0.0
        %4291 = vmatprep.subr.mxu0 0.0
        %4292 = vmatpush1.msra.mxu0 0.0
        %4293 = vmatprep.subr.mxu0 0.0
        %4294 = vmatpush1.msra.mxu0 0.0
        %4295 = vmatprep.subr.mxu0 0.0
        %4296 = vmatpush1.msra.mxu0 0.0
        %4297 = vmatprep.subr.mxu0 0.0
        %4298 = vmatpush1.msra.mxu0 0.0
        %4299 = vmatprep.subr.mxu0 0.0
        %4300 = vmatpush1.msra.mxu0 0.0
        %4301 = vmatprep.subr.mxu0 0.0
        %4302 = vmatpush1.msra.mxu0 0.0
        %4303 = vmatprep.subr.mxu0 0.0
        %4304 = vmatpush1.msra.mxu0 0.0
        %4305 = vmatprep.subr.mxu0 0.0
        %4306 = vmatpush1.msra.mxu0 0.0
        %4307 = vmatprep.subr.mxu0 0.0
        %4308 = vmatpush1.msra.mxu0 0.0
        %4309 = vmatprep.subr.mxu0 0.0
        %4310 = vmatpush1.msra.mxu0 0.0
        %4311 = vmatprep.subr.mxu0 0.0
        %4312 = vmatpush1.msra.mxu0 0.0
        %4313 = vmatprep.mubr.f32.mxu0 0.0
        %4314 = vmatmul.mubr.f32.gmra.mrb[0].mxu0 %v4244
        %v4315 = vpop.f32.mrb[0].mxu0
        %v4316 = vadd.f32 0.0, %v4315
        %v4317 = vpop.f32.mrb[0].mxu0
        %4318 = vmatprep.mubr.f32.mxu0 0.0
        %4319 = vmatmul.mubr.f32.gmra.mrb[0].mxu0 %v4247
        %v4320 = vpop.f32.mrb[0].mxu0
        %v4321 = vadd.f32 0.0, %v4320
        %v4322 = vpop.f32.mrb[0].mxu0
        %4323 = vdwg.mxu0
        %4324 = vrot.lane.b32.xlu0 %v778, 40
        %v4325 = vpop.permute.xlu0 %4324
        %4326 = vrot.lane.b32.xlu0 %v783, 40
        %v4327 = vpop.permute.xlu0 %4326
        %v4331 = vsel %vm1155, %v4060, 0
        %v4334 = vsel %vm1155, %v4062, 0
        %4336 = vmatprep.subr.mxu0 0.0
        %4337 = vmatpush1.msra.mxu0 %v4325
        %4338 = vmatprep.subr.mxu0 0.0
        %4339 = vmatpush1.msra.mxu0 %v4327
        %4340 = vmatprep.subr.mxu0 0.0
        %4341 = vmatpush1.msra.mxu0 0.0
        %4342 = vmatprep.subr.mxu0 0.0
        %4343 = vmatpush1.msra.mxu0 0.0
        %4344 = vmatprep.subr.mxu0 0.0
        %4345 = vmatpush1.msra.mxu0 0.0
        %4346 = vmatprep.subr.mxu0 0.0
        %4347 = vmatpush1.msra.mxu0 0.0
        %4348 = vmatprep.subr.mxu0 0.0
        %4349 = vmatpush1.msra.mxu0 0.0
        %4350 = vmatprep.subr.mxu0 0.0
        %4351 = vmatpush1.msra.mxu0 0.0
        %4352 = vmatprep.subr.mxu0 0.0
        %4353 = vmatpush1.msra.mxu0 0.0
        %4354 = vmatprep.subr.mxu0 0.0
        %4355 = vmatpush1.msra.mxu0 0.0
        %4356 = vmatprep.subr.mxu0 0.0
        %4357 = vmatpush1.msra.mxu0 0.0
        %4358 = vmatprep.subr.mxu0 0.0
        %4359 = vmatpush1.msra.mxu0 0.0
        %4360 = vmatprep.subr.mxu0 0.0
        %4361 = vmatpush1.msra.mxu0 0.0
        %4362 = vmatprep.subr.mxu0 0.0
        %4363 = vmatpush1.msra.mxu0 0.0
        %4364 = vmatprep.subr.mxu0 0.0
        %4365 = vmatpush1.msra.mxu0 0.0
        %4366 = vmatprep.subr.mxu0 0.0
        %4367 = vmatpush1.msra.mxu0 0.0
        %4368 = vmatprep.subr.mxu0 0.0
        %4369 = vmatpush1.msra.mxu0 0.0
        %4370 = vmatprep.subr.mxu0 0.0
        %4371 = vmatpush1.msra.mxu0 0.0
        %4372 = vmatprep.subr.mxu0 0.0
        %4373 = vmatpush1.msra.mxu0 0.0
        %4374 = vmatprep.subr.mxu0 0.0
        %4375 = vmatpush1.msra.mxu0 0.0
        %4376 = vmatprep.subr.mxu0 0.0
        %4377 = vmatpush1.msra.mxu0 0.0
        %4378 = vmatprep.subr.mxu0 0.0
        %4379 = vmatpush1.msra.mxu0 0.0
        %4380 = vmatprep.subr.mxu0 0.0
        %4381 = vmatpush1.msra.mxu0 0.0
        %4382 = vmatprep.subr.mxu0 0.0
        %4383 = vmatpush1.msra.mxu0 0.0
        %4384 = vmatprep.subr.mxu0 0.0
        %4385 = vmatpush1.msra.mxu0 0.0
        %4386 = vmatprep.subr.mxu0 0.0
        %4387 = vmatpush1.msra.mxu0 0.0
        %4388 = vmatprep.subr.mxu0 0.0
        %4389 = vmatpush1.msra.mxu0 0.0
        %4390 = vmatprep.subr.mxu0 0.0
        %4391 = vmatpush1.msra.mxu0 0.0
        %4392 = vmatprep.subr.mxu0 0.0
        %4393 = vmatpush1.msra.mxu0 0.0
        %4394 = vmatprep.subr.mxu0 0.0
        %4395 = vmatpush1.msra.mxu0 0.0
        %4396 = vmatprep.subr.mxu0 0.0
        %4397 = vmatpush1.msra.mxu0 0.0
        %4398 = vmatprep.subr.mxu0 0.0
        %4399 = vmatpush1.msra.mxu0 0.0
        %4400 = vmatprep.mubr.f32.mxu0 0.0
        %4401 = vmatmul.mubr.f32.gmra.mrb[0].mxu0 %v4331
        %v4402 = vpop.f32.mrb[0].mxu0
        %v4403 = vadd.f32 0.0, %v4402
        %v4404 = vpop.f32.mrb[0].mxu0
        %4405 = vmatprep.mubr.f32.mxu0 0.0
        %4406 = vmatmul.mubr.f32.gmra.mrb[0].mxu0 %v4334
        %v4407 = vpop.f32.mrb[0].mxu0
        %v4408 = vadd.f32 0.0, %v4407
        %v4409 = vpop.f32.mrb[0].mxu0
        %4410 = vdwg.mxu0
        %v4412 = vsel %vm796, %v4142, 0
        %v4415 = vsel %vm796, %v4147, 0
        %v4418 = vsel %vm796, %v4229, 0
        %v4421 = vsel %vm796, %v4234, 0
        %v4424 = vsel %vm796, %v4316, 0
        %v4427 = vsel %vm796, %v4321, 0
        %v4430 = vsel %vm796, %v4403, 0
        %v4433 = vsel %vm796, %v4408, 0
        %4435 = vmatprep.subr.mxu0 0.0
        %4436 = vmatpush1.msra.mxu0 %v789
        %4437 = vmatprep.subr.mxu0 0.0
        %4438 = vmatpush1.msra.mxu0 0.0
        %4439 = vmatprep.subr.mxu0 0.0
        %4440 = vmatpush1.msra.mxu0 0.0
        %4441 = vmatprep.subr.mxu0 0.0
        %4442 = vmatpush1.msra.mxu0 0.0
        %4443 = vmatprep.subr.mxu0 0.0
        %4444 = vmatpush1.msra.mxu0 0.0
        %4445 = vmatprep.subr.mxu0 0.0
        %4446 = vmatpush1.msra.mxu0 0.0
        %4447 = vmatprep.subr.mxu0 0.0
        %4448 = vmatpush1.msra.mxu0 0.0
        %4449 = vmatprep.subr.mxu0 0.0
        %4450 = vmatpush1.msra.mxu0 0.0
        %4451 = vmatprep.subr.mxu0 0.0
        %4452 = vmatpush1.msra.mxu0 0.0
        %4453 = vmatprep.subr.mxu0 0.0
        %4454 = vmatpush1.msra.mxu0 0.0
        %4455 = vmatprep.subr.mxu0 0.0
        %4456 = vmatpush1.msra.mxu0 0.0
        %4457 = vmatprep.subr.mxu0 0.0
        %4458 = vmatpush1.msra.mxu0 0.0
        %4459 = vmatprep.subr.mxu0 0.0
        %4460 = vmatpush1.msra.mxu0 0.0
        %4461 = vmatprep.subr.mxu0 0.0
        %4462 = vmatpush1.msra.mxu0 0.0
        %4463 = vmatprep.subr.mxu0 0.0
        %4464 = vmatpush1.msra.mxu0 0.0
        %4465 = vmatprep.subr.mxu0 0.0
        %4466 = vmatpush1.msra.mxu0 0.0
        %4467 = vmatprep.subr.mxu0 0.0
        %4468 = vmatpush1.msra.mxu0 0.0
        %4469 = vmatprep.subr.mxu0 0.0
        %4470 = vmatpush1.msra.mxu0 0.0
        %4471 = vmatprep.subr.mxu0 0.0
        %4472 = vmatpush1.msra.mxu0 0.0
        %4473 = vmatprep.subr.mxu0 0.0
        %4474 = vmatpush1.msra.mxu0 0.0
        %4475 = vmatprep.subr.mxu0 0.0
        %4476 = vmatpush1.msra.mxu0 0.0
        %4477 = vmatprep.subr.mxu0 0.0
        %4478 = vmatpush1.msra.mxu0 0.0
        %4479 = vmatprep.subr.mxu0 0.0
        %4480 = vmatpush1.msra.mxu0 0.0
        %4481 = vmatprep.subr.mxu0 0.0
        %4482 = vmatpush1.msra.mxu0 0.0
        %4483 = vmatprep.subr.mxu0 0.0
        %4484 = vmatpush1.msra.mxu0 0.0
        %4485 = vmatprep.subr.mxu0 0.0
        %4486 = vmatpush1.msra.mxu0 0.0
        %4487 = vmatprep.subr.mxu0 0.0
        %4488 = vmatpush1.msra.mxu0 0.0
        %4489 = vmatprep.subr.mxu0 0.0
        %4490 = vmatpush1.msra.mxu0 0.0
        %4491 = vmatprep.subr.mxu0 0.0
        %4492 = vmatpush1.msra.mxu0 0.0
        %4493 = vmatprep.subr.mxu0 0.0
        %4494 = vmatpush1.msra.mxu0 0.0
        %4495 = vmatprep.subr.mxu0 0.0
        %4496 = vmatpush1.msra.mxu0 0.0
        %4497 = vmatprep.subr.mxu0 0.0
        %4498 = vmatpush1.msra.mxu0 0.0
        %4499 = vmatprep.mubr.f32.mxu0 0.0
        %4500 = vmatmul.mubr.f32.gmra.mrb[0].mxu0 %v4412
        %v4501 = vpop.f32.mrb[0].mxu0
        %v4502 = vadd.f32 0.0, %v4501
        %v4503 = vpop.f32.mrb[0].mxu0
        %4504 = vmatprep.mubr.f32.mxu0 0.0
        %4505 = vmatmul.mubr.f32.gmra.mrb[0].mxu0 %v4415
        %v4506 = vpop.f32.mrb[0].mxu0
        %v4507 = vadd.f32 0.0, %v4506
        %v4508 = vpop.f32.mrb[0].mxu0
        %4509 = vmatprep.mubr.f32.mxu0 0.0
        %4510 = vmatmul.mubr.f32.gmra.mrb[0].mxu0 %v4418
        %v4511 = vpop.f32.mrb[0].mxu0
        %v4512 = vadd.f32 0.0, %v4511
        %v4513 = vpop.f32.mrb[0].mxu0
        %4514 = vmatprep.mubr.f32.mxu0 0.0
        %4515 = vmatmul.mubr.f32.gmra.mrb[0].mxu0 %v4421
        %v4516 = vpop.f32.mrb[0].mxu0
        %v4517 = vadd.f32 0.0, %v4516
        %v4518 = vpop.f32.mrb[0].mxu0
        %4519 = vmatprep.mubr.f32.mxu0 0.0
        %4520 = vmatmul.mubr.f32.gmra.mrb[0].mxu0 %v4424
        %v4521 = vpop.f32.mrb[0].mxu0
        %v4522 = vadd.f32 0.0, %v4521
        %v4523 = vpop.f32.mrb[0].mxu0
        %4524 = vmatprep.mubr.f32.mxu0 0.0
        %4525 = vmatmul.mubr.f32.gmra.mrb[0].mxu0 %v4427
        %v4526 = vpop.f32.mrb[0].mxu0
        %v4527 = vadd.f32 0.0, %v4526
        %v4528 = vpop.f32.mrb[0].mxu0
        %4529 = vmatprep.mubr.f32.mxu0 0.0
        %4530 = vmatmul.mubr.f32.gmra.mrb[0].mxu0 %v4430
        %v4531 = vpop.f32.mrb[0].mxu0
        %v4532 = vadd.f32 0.0, %v4531
        %v4533 = vpop.f32.mrb[0].mxu0
        %4534 = vmatprep.mubr.f32.mxu0 0.0
        %4535 = vmatmul.mubr.f32.gmra.mrb[0].mxu0 %v4433
        %v4536 = vpop.f32.mrb[0].mxu0
        %v4537 = vadd.f32 0.0, %v4536
        %v4538 = vpop.f32.mrb[0].mxu0
        %4539 = vdwg.mxu0
        %v4540 = vadd.f32 %v3595, %v4502
        %v4541 = vadd.f32 %v3596, %v4507
        %v4542 = vadd.f32 %v3597, %v4512
        %v4543 = vadd.f32 %v3598, %v4517
        %v4544 = vadd.f32 %v3599, %v4522
        %v4545 = vadd.f32 %v3600, %v4527
        %v4546 = vadd.f32 %v3601, %v4532
        %v4547 = vadd.f32 %v3602, %v4537
        %v4548 = vadd.f32 %v502, %v4540
        %v4549 = vadd.f32 %v503, %v4541
        %v4550 = vadd.f32 %v504, %v4542
        %v4551 = vadd.f32 %v505, %v4543
        %v4552 = vadd.f32 %v506, %v4544
        %v4553 = vadd.f32 %v507, %v4545
        %v4554 = vadd.f32 %v508, %v4546
        %v4555 = vadd.f32 %v509, %v4547
        %v4556 = vld [vmem:[%s6] sm:$0x1]
        %v4558 = vlaneseq
        %v4559 = vshrl.u32 %v4558, 7
        %v4560 = vsub.s32 0, %v4559
        %v4561 = vrot.slane %v4556, %v4560
        %v4563 = vadd.f32 %v4548, %v4561
        %v4564 = vadd.f32 %v4549, %v4561
        %v4565 = vadd.f32 %v4550, %v4561
        %v4566 = vadd.f32 %v4551, %v4561
        %v4567 = vadd.f32 %v4552, %v4561
        %v4568 = vadd.f32 %v4553, %v4561
        %v4569 = vadd.f32 %v4554, %v4561
        %v4570 = vadd.f32 %v4555, %v4561
        %v4571 = vld [vmem:[%s7] sm:$0x1]
        %v4572 = vld [vmem:[#allocation5] sm:$0x1]
        %v4573 = vsel %vm512, %v4563, 0.0
        %4574 = vadd.xlane.f32.xlu0 %v4573
        %v4575 = vpop.xlane.xlu0 %4574
        %v4576 = vsel %vm512, %v4564, 0.0
        %4577 = vadd.xlane.f32.xlu0 %v4576
        %v4578 = vpop.xlane.xlu0 %4577
        %v4579 = vsel %vm512, %v4565, 0.0
        %4580 = vadd.xlane.f32.xlu0 %v4579
        %v4581 = vpop.xlane.xlu0 %4580
        %v4582 = vsel %vm512, %v4566, 0.0
        %4583 = vadd.xlane.f32.xlu0 %v4582
        %v4584 = vpop.xlane.xlu0 %4583
        %v4585 = vsel %vm512, %v4567, 0.0
        %4586 = vadd.xlane.f32.xlu0 %v4585
        %v4587 = vpop.xlane.xlu0 %4586
        %v4588 = vsel %vm512, %v4568, 0.0
        %4589 = vadd.xlane.f32.xlu0 %v4588
        %v4590 = vpop.xlane.xlu0 %4589
        %v4591 = vsel %vm512, %v4569, 0.0
        %4592 = vadd.xlane.f32.xlu0 %v4591
        %v4593 = vpop.xlane.xlu0 %4592
        %v4594 = vsel %vm512, %v4570, 0.0
        %4595 = vadd.xlane.f32.xlu0 %v4594
        %v4596 = vpop.xlane.xlu0 %4595
        %v4597 = vmul.f32 %v4575, %v537
        %v4598 = vmul.f32 %v4578, %v537
        %v4599 = vmul.f32 %v4581, %v537
        %v4600 = vmul.f32 %v4584, %v537
        %v4601 = vmul.f32 %v4587, %v537
        %v4602 = vmul.f32 %v4590, %v537
        %v4603 = vmul.f32 %v4593, %v537
        %v4604 = vmul.f32 %v4596, %v537
        %v4605 = vsub.f32 %v4563, %v4597
        %v4606 = vsub.f32 %v4564, %v4598
        %v4607 = vsub.f32 %v4565, %v4599
        %v4608 = vsub.f32 %v4566, %v4600
        %v4609 = vsub.f32 %v4567, %v4601
        %v4610 = vsub.f32 %v4568, %v4602
        %v4611 = vsub.f32 %v4569, %v4603
        %v4612 = vsub.f32 %v4570, %v4604
        %v4613 = vmul.f32 %v4605, %v4605
        %v4614 = vmul.f32 %v4606, %v4606
        %v4615 = vmul.f32 %v4607, %v4607
        %v4616 = vmul.f32 %v4608, %v4608
        %v4617 = vmul.f32 %v4609, %v4609
        %v4618 = vmul.f32 %v4610, %v4610
        %v4619 = vmul.f32 %v4611, %v4611
        %v4620 = vmul.f32 %v4612, %v4612
        %v4621 = vsel %vm512, %v4613, 0.0
        %4622 = vadd.xlane.f32.xlu0 %v4621
        %v4623 = vpop.xlane.xlu0 %4622
        %v4624 = vsel %vm512, %v4614, 0.0
        %4625 = vadd.xlane.f32.xlu0 %v4624
        %v4626 = vpop.xlane.xlu0 %4625
        %v4627 = vsel %vm512, %v4615, 0.0
        %4628 = vadd.xlane.f32.xlu0 %v4627
        %v4629 = vpop.xlane.xlu0 %4628
        %v4630 = vsel %vm512, %v4616, 0.0
        %4631 = vadd.xlane.f32.xlu0 %v4630
        %v4632 = vpop.xlane.xlu0 %4631
        %v4633 = vsel %vm512, %v4617, 0.0
        %4634 = vadd.xlane.f32.xlu0 %v4633
        %v4635 = vpop.xlane.xlu0 %4634
        %v4636 = vsel %vm512, %v4618, 0.0
        %4637 = vadd.xlane.f32.xlu0 %v4636
        %v4638 = vpop.xlane.xlu0 %4637
        %v4639 = vsel %vm512, %v4619, 0.0
        %4640 = vadd.xlane.f32.xlu0 %v4639
        %v4641 = vpop.xlane.xlu0 %4640
        %v4642 = vsel %vm512, %v4620, 0.0
        %4643 = vadd.xlane.f32.xlu0 %v4642
        %v4644 = vpop.xlane.xlu0 %4643
        %v4645 = vmul.f32 %v4623, %v537
        %v4646 = vmul.f32 %v4626, %v537
        %v4647 = vmul.f32 %v4629, %v537
        %v4648 = vmul.f32 %v4632, %v537
        %v4649 = vmul.f32 %v4635, %v537
        %v4650 = vmul.f32 %v4638, %v537
        %v4651 = vmul.f32 %v4641, %v537
        %v4652 = vmul.f32 %v4644, %v537
        %v4653 = vadd.f32 %v4645, 1e-05
        %v4654 = vadd.f32 %v4646, 1e-05
        %v4655 = vadd.f32 %v4647, 1e-05
        %v4656 = vadd.f32 %v4648, 1e-05
        %v4657 = vadd.f32 %v4649, 1e-05
        %v4658 = vadd.f32 %v4650, 1e-05
        %v4659 = vadd.f32 %v4651, 1e-05
        %v4660 = vadd.f32 %v4652, 1e-05
        %v4661 = vrsqrt.pop %v4653
        %v4662 = vrsqrt.pop %v4654
        %v4663 = vrsqrt.pop %v4655
        %v4664 = vrsqrt.pop %v4656
        %v4665 = vrsqrt.pop %v4657
        %v4666 = vrsqrt.pop %v4658
        %v4667 = vrsqrt.pop %v4659
        %v4668 = vrsqrt.pop %v4660
        %v4669 = vmul.f32 %v4605, %v4661
        %v4670 = vmul.f32 %v4606, %v4662
        %v4671 = vmul.f32 %v4607, %v4663
        %v4672 = vmul.f32 %v4608, %v4664
        %v4673 = vmul.f32 %v4609, %v4665
        %v4674 = vmul.f32 %v4610, %v4666
        %v4675 = vmul.f32 %v4611, %v4667
        %v4676 = vmul.f32 %v4612, %v4668
        %v4678 = vlaneseq
        %v4679 = vshrl.u32 %v4678, 7
        %v4680 = vsub.s32 0, %v4679
        %v4681 = vrot.slane %v4571, %v4680
        %v4683 = vmul.f32 %v4669, %v4681
        %v4684 = vmul.f32 %v4670, %v4681
        %v4685 = vmul.f32 %v4671, %v4681
        %v4686 = vmul.f32 %v4672, %v4681
        %v4687 = vmul.f32 %v4673, %v4681
        %v4688 = vmul.f32 %v4674, %v4681
        %v4689 = vmul.f32 %v4675, %v4681
        %v4690 = vmul.f32 %v4676, %v4681
        %v4692 = vlaneseq
        %v4693 = vshrl.u32 %v4692, 7
        %v4694 = vsub.s32 0, %v4693
        %v4695 = vrot.slane %v4572, %v4694
        %v4697 = vadd.f32 %v4683, %v4695
        %v4698 = vadd.f32 %v4684, %v4695
        %v4699 = vadd.f32 %v4685, %v4695
        %v4700 = vadd.f32 %v4686, %v4695
        %v4701 = vadd.f32 %v4687, %v4695
        %v4702 = vadd.f32 %v4688, %v4695
        %v4703 = vadd.f32 %v4689, %v4695
        %v4704 = vadd.f32 %v4690, %v4695
        %v4705 = vld [vmem:[%s9] sm:$0xff]
        %v4706 = vld [vmem:[%s9 + $0x8] sm:$0xff]
        %v4707 = vld [vmem:[%s9 + $0x10] sm:$0xff]
        %v4708 = vld [vmem:[%s9 + $0x18] sm:$0xff]
        %v4709 = vld [vmem:[%s10] sm:$0x1]
        %v4711 = vlaneseq
        %v4712 = vshrl.u32 %v4711, 7
        %v4713 = vsub.s32 0, %v4712
        %v4714 = vrot.slane %v4709, %v4713
        %v4717 = vsel %vm512, %v4697, 0
        %v4720 = vsel %vm512, %v4698, 0
        %v4723 = vsel %vm512, %v4699, 0
        %v4726 = vsel %vm512, %v4700, 0
        %v4729 = vsel %vm512, %v4701, 0
        %v4732 = vsel %vm512, %v4702, 0
        %v4735 = vsel %vm512, %v4703, 0
        %v4738 = vsel %vm512, %v4704, 0
        %4740 = vmatprep.subr.mxu0 0.0
        %4741 = vmatpush1.msra.mxu0 %v4705
        %4742 = vmatprep.subr.mxu0 0.0
        %4743 = vmatpush1.msra.mxu0 %v4706
        %4744 = vmatprep.subr.mxu0 0.0
        %4745 = vmatpush1.msra.mxu0 %v4707
        %4746 = vmatprep.subr.mxu0 0.0
        %4747 = vmatpush1.msra.mxu0 %v4708
        %4748 = vmatprep.subr.mxu0 0.0
        %4749 = vmatpush1.msra.mxu0 0.0
        %4750 = vmatprep.subr.mxu0 0.0
        %4751 = vmatpush1.msra.mxu0 0.0
        %4752 = vmatprep.subr.mxu0 0.0
        %4753 = vmatpush1.msra.mxu0 0.0
        %4754 = vmatprep.subr.mxu0 0.0
        %4755 = vmatpush1.msra.mxu0 0.0
        %4756 = vmatprep.subr.mxu0 0.0
        %4757 = vmatpush1.msra.mxu0 0.0
        %4758 = vmatprep.subr.mxu0 0.0
        %4759 = vmatpush1.msra.mxu0 0.0
        %4760 = vmatprep.subr.mxu0 0.0
        %4761 = vmatpush1.msra.mxu0 0.0
        %4762 = vmatprep.subr.mxu0 0.0
        %4763 = vmatpush1.msra.mxu0 0.0
        %4764 = vmatprep.subr.mxu0 0.0
        %4765 = vmatpush1.msra.mxu0 0.0
        %4766 = vmatprep.subr.mxu0 0.0
        %4767 = vmatpush1.msra.mxu0 0.0
        %4768 = vmatprep.subr.mxu0 0.0
        %4769 = vmatpush1.msra.mxu0 0.0
        %4770 = vmatprep.subr.mxu0 0.0
        %4771 = vmatpush1.msra.mxu0 0.0
        %4772 = vmatprep.subr.mxu0 0.0
        %4773 = vmatpush1.msra.mxu0 0.0
        %4774 = vmatprep.subr.mxu0 0.0
        %4775 = vmatpush1.msra.mxu0 0.0
        %4776 = vmatprep.subr.mxu0 0.0
        %4777 = vmatpush1.msra.mxu0 0.0
        %4778 = vmatprep.subr.mxu0 0.0
        %4779 = vmatpush1.msra.mxu0 0.0
        %4780 = vmatprep.subr.mxu0 0.0
        %4781 = vmatpush1.msra.mxu0 0.0
        %4782 = vmatprep.subr.mxu0 0.0
        %4783 = vmatpush1.msra.mxu0 0.0
        %4784 = vmatprep.subr.mxu0 0.0
        %4785 = vmatpush1.msra.mxu0 0.0
        %4786 = vmatprep.subr.mxu0 0.0
        %4787 = vmatpush1.msra.mxu0 0.0
        %4788 = vmatprep.subr.mxu0 0.0
        %4789 = vmatpush1.msra.mxu0 0.0
        %4790 = vmatprep.subr.mxu0 0.0
        %4791 = vmatpush1.msra.mxu0 0.0
        %4792 = vmatprep.subr.mxu0 0.0
        %4793 = vmatpush1.msra.mxu0 0.0
        %4794 = vmatprep.subr.mxu0 0.0
        %4795 = vmatpush1.msra.mxu0 0.0
        %4796 = vmatprep.subr.mxu0 0.0
        %4797 = vmatpush1.msra.mxu0 0.0
        %4798 = vmatprep.subr.mxu0 0.0
        %4799 = vmatpush1.msra.mxu0 0.0
        %4800 = vmatprep.subr.mxu0 0.0
        %4801 = vmatpush1.msra.mxu0 0.0
        %4802 = vmatprep.subr.mxu0 0.0
        %4803 = vmatpush1.msra.mxu0 0.0
        %4804 = vmatprep.mubr.f32.mxu0 0.0
        %4805 = vmatmul.mubr.f32.gmra.mrb[0].mxu0 %v4717
        %v4806 = vpop.f32.mrb[0].mxu0
        %v4807 = vadd.f32 %v4714, %v4806
        %v4808 = vpop.f32.mrb[0].mxu0
        %4809 = vmatprep.mubr.f32.mxu0 0.0
        %4810 = vmatmul.mubr.f32.gmra.mrb[0].mxu0 %v4720
        %v4811 = vpop.f32.mrb[0].mxu0
        %v4812 = vadd.f32 %v4714, %v4811
        %v4813 = vpop.f32.mrb[0].mxu0
        %4814 = vmatprep.mubr.f32.mxu0 0.0
        %4815 = vmatmul.mubr.f32.gmra.mrb[0].mxu0 %v4723
        %v4816 = vpop.f32.mrb[0].mxu0
        %v4817 = vadd.f32 %v4714, %v4816
        %v4818 = vpop.f32.mrb[0].mxu0
        %4819 = vmatprep.mubr.f32.mxu0 0.0
        %4820 = vmatmul.mubr.f32.gmra.mrb[0].mxu0 %v4726
        %v4821 = vpop.f32.mrb[0].mxu0
        %v4822 = vadd.f32 %v4714, %v4821
        %v4823 = vpop.f32.mrb[0].mxu0
        %4824 = vmatprep.mubr.f32.mxu0 0.0
        %4825 = vmatmul.mubr.f32.gmra.mrb[0].mxu0 %v4729
        %v4826 = vpop.f32.mrb[0].mxu0
        %v4827 = vadd.f32 %v4714, %v4826
        %v4828 = vpop.f32.mrb[0].mxu0
        %4829 = vmatprep.mubr.f32.mxu0 0.0
        %4830 = vmatmul.mubr.f32.gmra.mrb[0].mxu0 %v4732
        %v4831 = vpop.f32.mrb[0].mxu0
        %v4832 = vadd.f32 %v4714, %v4831
        %v4833 = vpop.f32.mrb[0].mxu0
        %4834 = vmatprep.mubr.f32.mxu0 0.0
        %4835 = vmatmul.mubr.f32.gmra.mrb[0].mxu0 %v4735
        %v4836 = vpop.f32.mrb[0].mxu0
        %v4837 = vadd.f32 %v4714, %v4836
        %v4838 = vpop.f32.mrb[0].mxu0
        %4839 = vmatprep.mubr.f32.mxu0 0.0
        %4840 = vmatmul.mubr.f32.gmra.mrb[0].mxu0 %v4738
        %v4841 = vpop.f32.mrb[0].mxu0
        %v4842 = vadd.f32 %v4714, %v4841
        %v4843 = vpop.f32.mrb[0].mxu0
        %4844 = vdwg.mxu0
        %v4845 = vmul.f32 %v4807, %v4807
        %v4846 = vmul.f32 %v4812, %v4812
        %v4847 = vmul.f32 %v4817, %v4817
        %v4848 = vmul.f32 %v4822, %v4822
        %v4849 = vmul.f32 %v4827, %v4827
        %v4850 = vmul.f32 %v4832, %v4832
        %v4851 = vmul.f32 %v4837, %v4837
        %v4852 = vmul.f32 %v4842, %v4842
        %v4853 = vmul.f32 %v4807, %v4845
        %v4854 = vmul.f32 %v4812, %v4846
        %v4855 = vmul.f32 %v4817, %v4847
        %v4856 = vmul.f32 %v4822, %v4848
        %v4857 = vmul.f32 %v4827, %v4849
        %v4858 = vmul.f32 %v4832, %v4850
        %v4859 = vmul.f32 %v4837, %v4851
        %v4860 = vmul.f32 %v4842, %v4852
        %v4861 = vmul.f32 %v4853, 0.044715
        %v4862 = vmul.f32 %v4854, 0.044715
        %v4863 = vmul.f32 %v4855, 0.044715
        %v4864 = vmul.f32 %v4856, 0.044715
        %v4865 = vmul.f32 %v4857, 0.044715
        %v4866 = vmul.f32 %v4858, 0.044715
        %v4867 = vmul.f32 %v4859, 0.044715
        %v4868 = vmul.f32 %v4860, 0.044715
        %v4869 = vadd.f32 %v4807, %v4861
        %v4870 = vadd.f32 %v4812, %v4862
        %v4871 = vadd.f32 %v4817, %v4863
        %v4872 = vadd.f32 %v4822, %v4864
        %v4873 = vadd.f32 %v4827, %v4865
        %v4874 = vadd.f32 %v4832, %v4866
        %v4875 = vadd.f32 %v4837, %v4867
        %v4876 = vadd.f32 %v4842, %v4868
        %v4877 = vmul.f32 %v4869, 0.7978846
        %v4878 = vmul.f32 %v4870, 0.7978846
        %v4879 = vmul.f32 %v4871, 0.7978846
        %v4880 = vmul.f32 %v4872, 0.7978846
        %v4881 = vmul.f32 %v4873, 0.7978846
        %v4882 = vmul.f32 %v4874, 0.7978846
        %v4883 = vmul.f32 %v4875, 0.7978846
        %v4884 = vmul.f32 %v4876, 0.7978846
        %v4885 = vtanh.pop %v4877
        %v4886 = vtanh.pop %v4878
        %v4887 = vtanh.pop %v4879
        %v4888 = vtanh.pop %v4880
        %v4889 = vtanh.pop %v4881
        %v4890 = vtanh.pop %v4882
        %v4891 = vtanh.pop %v4883
        %v4892 = vtanh.pop %v4884
        %v4893 = vadd.f32 %v4885, 1.0
        %v4894 = vadd.f32 %v4886, 1.0
        %v4895 = vadd.f32 %v4887, 1.0
        %v4896 = vadd.f32 %v4888, 1.0
        %v4897 = vadd.f32 %v4889, 1.0
        %v4898 = vadd.f32 %v4890, 1.0
        %v4899 = vadd.f32 %v4891, 1.0
        %v4900 = vadd.f32 %v4892, 1.0
        %v4901 = vmul.f32 %v4893, 0.5
        %v4902 = vmul.f32 %v4894, 0.5
        %v4903 = vmul.f32 %v4895, 0.5
        %v4904 = vmul.f32 %v4896, 0.5
        %v4905 = vmul.f32 %v4897, 0.5
        %v4906 = vmul.f32 %v4898, 0.5
        %v4907 = vmul.f32 %v4899, 0.5
        %v4908 = vmul.f32 %v4900, 0.5
        %v4909 = vmul.f32 %v4807, %v4901
        %v4910 = vmul.f32 %v4812, %v4902
        %v4911 = vmul.f32 %v4817, %v4903
        %v4912 = vmul.f32 %v4822, %v4904
        %v4913 = vmul.f32 %v4827, %v4905
        %v4914 = vmul.f32 %v4832, %v4906
        %v4915 = vmul.f32 %v4837, %v4907
        %v4916 = vmul.f32 %v4842, %v4908
        %v4917 = vld [vmem:[%s11] sm:$0xff]
        %v4918 = vld [vmem:[%s11 + $0x8] sm:$0xff]
        %v4919 = vld [vmem:[%s11 + $0x10] sm:$0xff]
        %v4920 = vld [vmem:[%s11 + $0x18] sm:$0xff]
        %v4921 = vld [vmem:[%s11 + $0x20] sm:$0xff]
        %v4922 = vld [vmem:[%s11 + $0x28] sm:$0xff]
        %v4923 = vld [vmem:[%s11 + $0x30] sm:$0xff]
        %v4924 = vld [vmem:[%s11 + $0x38] sm:$0xff]
        %v4925 = vld [vmem:[%s11 + $0x40] sm:$0xff]
        %v4926 = vld [vmem:[%s11 + $0x48] sm:$0xff]
        %v4927 = vld [vmem:[%s11 + $0x50] sm:$0xff]
        %v4928 = vld [vmem:[%s11 + $0x58] sm:$0xff]
        %v4929 = vld [vmem:[%s11 + $0x60] sm:$0xff]
        %v4930 = vld [vmem:[%s11 + $0x68] sm:$0xff]
        %v4931 = vld [vmem:[%s11 + $0x70] sm:$0xff]
        %v4932 = vld [vmem:[%s11 + $0x78] sm:$0xff]
        %4933 = vmatprep.subr.mxu0 0.0
        %4934 = vmatpush1.msra.mxu0 %v4917
        %4935 = vmatprep.subr.mxu0 0.0
        %4936 = vmatpush1.msra.mxu0 %v4918
        %4937 = vmatprep.subr.mxu0 0.0
        %4938 = vmatpush1.msra.mxu0 %v4919
        %4939 = vmatprep.subr.mxu0 0.0
        %4940 = vmatpush1.msra.mxu0 %v4920
        %4941 = vmatprep.subr.mxu0 0.0
        %4942 = vmatpush1.msra.mxu0 %v4921
        %4943 = vmatprep.subr.mxu0 0.0
        %4944 = vmatpush1.msra.mxu0 %v4922
        %4945 = vmatprep.subr.mxu0 0.0
        %4946 = vmatpush1.msra.mxu0 %v4923
        %4947 = vmatprep.subr.mxu0 0.0
        %4948 = vmatpush1.msra.mxu0 %v4924
        %4949 = vmatprep.subr.mxu0 0.0
        %4950 = vmatpush1.msra.mxu0 %v4925
        %4951 = vmatprep.subr.mxu0 0.0
        %4952 = vmatpush1.msra.mxu0 %v4926
        %4953 = vmatprep.subr.mxu0 0.0
        %4954 = vmatpush1.msra.mxu0 %v4927
        %4955 = vmatprep.subr.mxu0 0.0
        %4956 = vmatpush1.msra.mxu0 %v4928
        %4957 = vmatprep.subr.mxu0 0.0
        %4958 = vmatpush1.msra.mxu0 %v4929
        %4959 = vmatprep.subr.mxu0 0.0
        %4960 = vmatpush1.msra.mxu0 %v4930
        %4961 = vmatprep.subr.mxu0 0.0
        %4962 = vmatpush1.msra.mxu0 %v4931
        %4963 = vmatprep.subr.mxu0 0.0
        %4964 = vmatpush1.msra.mxu0 %v4932
        %4965 = vmatprep.subr.mxu0 0.0
        %4966 = vmatpush1.msra.mxu0 0.0
        %4967 = vmatprep.subr.mxu0 0.0
        %4968 = vmatpush1.msra.mxu0 0.0
        %4969 = vmatprep.subr.mxu0 0.0
        %4970 = vmatpush1.msra.mxu0 0.0
        %4971 = vmatprep.subr.mxu0 0.0
        %4972 = vmatpush1.msra.mxu0 0.0
        %4973 = vmatprep.subr.mxu0 0.0
        %4974 = vmatpush1.msra.mxu0 0.0
        %4975 = vmatprep.subr.mxu0 0.0
        %4976 = vmatpush1.msra.mxu0 0.0
        %4977 = vmatprep.subr.mxu0 0.0
        %4978 = vmatpush1.msra.mxu0 0.0
        %4979 = vmatprep.subr.mxu0 0.0
        %4980 = vmatpush1.msra.mxu0 0.0
        %4981 = vmatprep.subr.mxu0 0.0
        %4982 = vmatpush1.msra.mxu0 0.0
        %4983 = vmatprep.subr.mxu0 0.0
        %4984 = vmatpush1.msra.mxu0 0.0
        %4985 = vmatprep.subr.mxu0 0.0
        %4986 = vmatpush1.msra.mxu0 0.0
        %4987 = vmatprep.subr.mxu0 0.0
        %4988 = vmatpush1.msra.mxu0 0.0
        %4989 = vmatprep.subr.mxu0 0.0
        %4990 = vmatpush1.msra.mxu0 0.0
        %4991 = vmatprep.subr.mxu0 0.0
        %4992 = vmatpush1.msra.mxu0 0.0
        %4993 = vmatprep.subr.mxu0 0.0
        %4994 = vmatpush1.msra.mxu0 0.0
        %4995 = vmatprep.subr.mxu0 0.0
        %4996 = vmatpush1.msra.mxu0 0.0
        %4997 = vmatprep.mubr.f32.mxu0 0.0
        %4998 = vmatmul.mubr.f32.gmra.mrb[0].mxu0 %v4909
        %v4999 = vpop.f32.mrb[0].mxu0
        %v5000 = vadd.f32 0.0, %v4999
        %v5001 = vpop.f32.mrb[0].mxu0
        %5002 = vmatprep.mubr.f32.mxu0 0.0
        %5003 = vmatmul.mubr.f32.gmra.mrb[0].mxu0 %v4910
        %v5004 = vpop.f32.mrb[0].mxu0
        %v5005 = vadd.f32 0.0, %v5004
        %v5006 = vpop.f32.mrb[0].mxu0
        %5007 = vmatprep.mubr.f32.mxu0 0.0
        %5008 = vmatmul.mubr.f32.gmra.mrb[0].mxu0 %v4911
        %v5009 = vpop.f32.mrb[0].mxu0
        %v5010 = vadd.f32 0.0, %v5009
        %v5011 = vpop.f32.mrb[0].mxu0
        %5012 = vmatprep.mubr.f32.mxu0 0.0
        %5013 = vmatmul.mubr.f32.gmra.mrb[0].mxu0 %v4912
        %v5014 = vpop.f32.mrb[0].mxu0
        %v5015 = vadd.f32 0.0, %v5014
        %v5016 = vpop.f32.mrb[0].mxu0
        %5017 = vmatprep.mubr.f32.mxu0 0.0
        %5018 = vmatmul.mubr.f32.gmra.mrb[0].mxu0 %v4913
        %v5019 = vpop.f32.mrb[0].mxu0
        %v5020 = vadd.f32 0.0, %v5019
        %v5021 = vpop.f32.mrb[0].mxu0
        %5022 = vmatprep.mubr.f32.mxu0 0.0
        %5023 = vmatmul.mubr.f32.gmra.mrb[0].mxu0 %v4914
        %v5024 = vpop.f32.mrb[0].mxu0
        %v5025 = vadd.f32 0.0, %v5024
        %v5026 = vpop.f32.mrb[0].mxu0
        %5027 = vmatprep.mubr.f32.mxu0 0.0
        %5028 = vmatmul.mubr.f32.gmra.mrb[0].mxu0 %v4915
        %v5029 = vpop.f32.mrb[0].mxu0
        %v5030 = vadd.f32 0.0, %v5029
        %v5031 = vpop.f32.mrb[0].mxu0
        %5032 = vmatprep.mubr.f32.mxu0 0.0
        %5033 = vmatmul.mubr.f32.gmra.mrb[0].mxu0 %v4916
        %v5034 = vpop.f32.mrb[0].mxu0
        %v5035 = vadd.f32 0.0, %v5034
        %v5036 = vpop.f32.mrb[0].mxu0
        %5037 = vdwg.mxu0
        %v5038 = vadd.f32 %v4563, %v5000
        %v5039 = vadd.f32 %v4564, %v5005
        %v5040 = vadd.f32 %v4565, %v5010
        %v5041 = vadd.f32 %v4566, %v5015
        %v5042 = vadd.f32 %v4567, %v5020
        %v5043 = vadd.f32 %v4568, %v5025
        %v5044 = vadd.f32 %v4569, %v5030
        %v5045 = vadd.f32 %v4570, %v5035
        %v5046 = vld [vmem:[%s12] sm:$0x1]
        %v5048 = vlaneseq
        %v5049 = vshrl.u32 %v5048, 7
        %v5050 = vsub.s32 0, %v5049
        %v5051 = vrot.slane %v5046, %v5050
        %v5053 = vadd.f32 %v5038, %v5051
        %v5054 = vadd.f32 %v5039, %v5051
        %v5055 = vadd.f32 %v5040, %v5051
        %v5056 = vadd.f32 %v5041, %v5051
        %v5057 = vadd.f32 %v5042, %v5051
        %v5058 = vadd.f32 %v5043, %v5051
        %v5059 = vadd.f32 %v5044, %v5051
        %v5060 = vadd.f32 %v5045, %v5051
        %v5062 = vrot.slane %v5055, 4
        %v5065 = vrot.slane %v5053, 4
        %v5068 = vrot.slane %v5056, 4
        %v5071 = vrot.slane %v5054, 4
        %v5074 = vrot.slane %v5059, 4
        %v5077 = vrot.slane %v5057, 4
        %v5080 = vrot.slane %v5060, 4
        %v5083 = vrot.slane %v5058, 4
        %v5085 = vsel %vm501, %v5053, %v5062
        %v5086 = vsel %vm501, %v5065, %v5055
        %v5087 = vsel %vm501, %v5054, %v5068
        %v5088 = vsel %vm501, %v5071, %v5056
        %v5089 = vsel %vm501, %v5057, %v5074
        %v5090 = vsel %vm501, %v5077, %v5059
        %v5091 = vsel %vm501, %v5058, %v5080
        %v5092 = vsel %vm501, %v5083, %v5060
        %v5101 = vrot.slane %v5087, 2
        %v5102 = vrot.slane %v5088, 2
        %v5103 = vrot.slane %v5089, 2
        %v5104 = vrot.slane %v5090, 2
        %v5105 = vrot.slane %v5091, 2
        %v5106 = vrot.slane %v5092, 2
        %v5107 = vrot.slane %v5085, 2
        %v5108 = vrot.slane %v5086, 2
        %vm5117 = vcmask 1045504
        %v5118 = vsel %vm5117, %v5101, %v5101
        %v5119 = vsel %vm5117, %v5102, %v5102
        %v5120 = vsel %vm5117, %v5103, %v5103
        %v5121 = vsel %vm5117, %v5104, %v5104
        %v5122 = vsel %vm5117, %v5105, %v5105
        %v5123 = vsel %vm5117, %v5106, %v5106
        %v5124 = vsel %vm5117, %v5107, %v5107
        %v5125 = vsel %vm5117, %v5108, %v5108
        %v5127 = vrot.slane %v5119, 4
        %v5130 = vrot.slane %v5121, 4
        %v5133 = vrot.slane %v5118, 4
        %v5136 = vrot.slane %v5120, 4
        %v5139 = vrot.slane %v5123, 4
        %v5142 = vrot.slane %v5125, 4
        %v5145 = vrot.slane %v5122, 4
        %v5148 = vrot.slane %v5124, 4
        %v5150 = vsel %vm501, %v5118, %v5127
        %v5151 = vsel %vm501, %v5120, %v5130
        %v5152 = vsel %vm501, %v5133, %v5119
        %v5153 = vsel %vm501, %v5136, %v5121
        %v5154 = vsel %vm501, %v5122, %v5139
        %v5155 = vsel %vm501, %v5124, %v5142
        %v5156 = vsel %vm501, %v5145, %v5123
        %v5157 = vsel %vm501, %v5148, %v5125
        %s5158 = scalar_lea.vmem %s1, 1
        %v5159 = vld [vmem:[%s5158] sm:$0x1]
        %s5160 = scalar_lea.vmem [#allocation2], 1
        %v5161 = vld [vmem:[%s5160] sm:$0x1]
        %v5162 = vsel %vm512, %v5150, 0.0
        %5163 = vadd.xlane.f32.xlu0 %v5162
        %v5164 = vpop.xlane.xlu0 %5163
        %v5165 = vsel %vm512, %v5151, 0.0
        %5166 = vadd.xlane.f32.xlu0 %v5165
        %v5167 = vpop.xlane.xlu0 %5166
        %v5168 = vsel %vm512, %v5152, 0.0
        %5169 = vadd.xlane.f32.xlu0 %v5168
        %v5170 = vpop.xlane.xlu0 %5169
        %v5171 = vsel %vm512, %v5153, 0.0
        %5172 = vadd.xlane.f32.xlu0 %v5171
        %v5173 = vpop.xlane.xlu0 %5172
        %v5174 = vsel %vm512, %v5154, 0.0
        %5175 = vadd.xlane.f32.xlu0 %v5174
        %v5176 = vpop.xlane.xlu0 %5175
        %v5177 = vsel %vm512, %v5155, 0.0
        %5178 = vadd.xlane.f32.xlu0 %v5177
        %v5179 = vpop.xlane.xlu0 %5178
        %v5180 = vsel %vm512, %v5156, 0.0
        %5181 = vadd.xlane.f32.xlu0 %v5180
        %v5182 = vpop.xlane.xlu0 %5181
        %v5183 = vsel %vm512, %v5157, 0.0
        %5184 = vadd.xlane.f32.xlu0 %v5183
        %v5185 = vpop.xlane.xlu0 %5184
        %v5186 = vmul.f32 %v5164, %v537
        %v5187 = vmul.f32 %v5167, %v537
        %v5188 = vmul.f32 %v5170, %v537
        %v5189 = vmul.f32 %v5173, %v537
        %v5190 = vmul.f32 %v5176, %v537
        %v5191 = vmul.f32 %v5179, %v537
        %v5192 = vmul.f32 %v5182, %v537
        %v5193 = vmul.f32 %v5185, %v537
        %v5194 = vsub.f32 %v5150, %v5186
        %v5195 = vsub.f32 %v5151, %v5187
        %v5196 = vsub.f32 %v5152, %v5188
        %v5197 = vsub.f32 %v5153, %v5189
        %v5198 = vsub.f32 %v5154, %v5190
        %v5199 = vsub.f32 %v5155, %v5191
        %v5200 = vsub.f32 %v5156, %v5192
        %v5201 = vsub.f32 %v5157, %v5193
        %v5202 = vmul.f32 %v5194, %v5194
        %v5203 = vmul.f32 %v5195, %v5195
        %v5204 = vmul.f32 %v5196, %v5196
        %v5205 = vmul.f32 %v5197, %v5197
        %v5206 = vmul.f32 %v5198, %v5198
        %v5207 = vmul.f32 %v5199, %v5199
        %v5208 = vmul.f32 %v5200, %v5200
        %v5209 = vmul.f32 %v5201, %v5201
        %v5210 = vsel %vm512, %v5202, 0.0
        %5211 = vadd.xlane.f32.xlu0 %v5210
        %v5212 = vpop.xlane.xlu0 %5211
        %v5213 = vsel %vm512, %v5203, 0.0
        %5214 = vadd.xlane.f32.xlu0 %v5213
        %v5215 = vpop.xlane.xlu0 %5214
        %v5216 = vsel %vm512, %v5204, 0.0
        %5217 = vadd.xlane.f32.xlu0 %v5216
        %v5218 = vpop.xlane.xlu0 %5217
        %v5219 = vsel %vm512, %v5205, 0.0
        %5220 = vadd.xlane.f32.xlu0 %v5219
        %v5221 = vpop.xlane.xlu0 %5220
        %v5222 = vsel %vm512, %v5206, 0.0
        %5223 = vadd.xlane.f32.xlu0 %v5222
        %v5224 = vpop.xlane.xlu0 %5223
        %v5225 = vsel %vm512, %v5207, 0.0
        %5226 = vadd.xlane.f32.xlu0 %v5225
        %v5227 = vpop.xlane.xlu0 %5226
        %v5228 = vsel %vm512, %v5208, 0.0
        %5229 = vadd.xlane.f32.xlu0 %v5228
        %v5230 = vpop.xlane.xlu0 %5229
        %v5231 = vsel %vm512, %v5209, 0.0
        %5232 = vadd.xlane.f32.xlu0 %v5231
        %v5233 = vpop.xlane.xlu0 %5232
        %v5234 = vmul.f32 %v5212, %v537
        %v5235 = vmul.f32 %v5215, %v537
        %v5236 = vmul.f32 %v5218, %v537
        %v5237 = vmul.f32 %v5221, %v537
        %v5238 = vmul.f32 %v5224, %v537
        %v5239 = vmul.f32 %v5227, %v537
        %v5240 = vmul.f32 %v5230, %v537
        %v5241 = vmul.f32 %v5233, %v537
        %v5242 = vadd.f32 %v5234, 1e-05
        %v5243 = vadd.f32 %v5235, 1e-05
        %v5244 = vadd.f32 %v5236, 1e-05
        %v5245 = vadd.f32 %v5237, 1e-05
        %v5246 = vadd.f32 %v5238, 1e-05
        %v5247 = vadd.f32 %v5239, 1e-05
        %v5248 = vadd.f32 %v5240, 1e-05
        %v5249 = vadd.f32 %v5241, 1e-05
        %v5250 = vrsqrt.pop %v5242
        %v5251 = vrsqrt.pop %v5243
        %v5252 = vrsqrt.pop %v5244
        %v5253 = vrsqrt.pop %v5245
        %v5254 = vrsqrt.pop %v5246
        %v5255 = vrsqrt.pop %v5247
        %v5256 = vrsqrt.pop %v5248
        %v5257 = vrsqrt.pop %v5249
        %v5258 = vmul.f32 %v5194, %v5250
        %v5259 = vmul.f32 %v5195, %v5251
        %v5260 = vmul.f32 %v5196, %v5252
        %v5261 = vmul.f32 %v5197, %v5253
        %v5262 = vmul.f32 %v5198, %v5254
        %v5263 = vmul.f32 %v5199, %v5255
        %v5264 = vmul.f32 %v5200, %v5256
        %v5265 = vmul.f32 %v5201, %v5257
        %v5267 = vlaneseq
        %v5268 = vshrl.u32 %v5267, 7
        %v5269 = vsub.s32 0, %v5268
        %v5270 = vrot.slane %v5159, %v5269
        %v5272 = vmul.f32 %v5258, %v5270
        %v5273 = vmul.f32 %v5259, %v5270
        %v5274 = vmul.f32 %v5260, %v5270
        %v5275 = vmul.f32 %v5261, %v5270
        %v5276 = vmul.f32 %v5262, %v5270
        %v5277 = vmul.f32 %v5263, %v5270
        %v5278 = vmul.f32 %v5264, %v5270
        %v5279 = vmul.f32 %v5265, %v5270
        %v5281 = vlaneseq
        %v5282 = vshrl.u32 %v5281, 7
        %v5283 = vsub.s32 0, %v5282
        %v5284 = vrot.slane %v5161, %v5283
        %v5286 = vadd.f32 %v5272, %v5284
        %v5287 = vadd.f32 %v5273, %v5284
        %v5288 = vadd.f32 %v5274, %v5284
        %v5289 = vadd.f32 %v5275, %v5284
        %v5290 = vadd.f32 %v5276, %v5284
        %v5291 = vadd.f32 %v5277, %v5284
        %v5292 = vadd.f32 %v5278, %v5284
        %v5293 = vadd.f32 %v5279, %v5284
        %s5294 = scalar_lea.vmem %s3, 32
        %v5295 = vld [vmem:[%s5294] sm:$0xff]
        %v5296 = vld [vmem:[%s5294 + $0x8] sm:$0xff]
        %v5297 = vld [vmem:[%s5294 + $0x10] sm:$0xff]
        %v5298 = vld [vmem:[%s5294 + $0x18] sm:$0xff]
        %s5299 = scalar_lea.vmem %s4, 1
        %v5300 = vld [vmem:[%s5299] sm:$0x1]
        %v5302 = vlaneseq
        %v5303 = vshrl.u32 %v5302, 7
        %v5304 = vsub.s32 0, %v5303
        %v5305 = vrot.slane %v5300, %v5304
        %v5308 = vsel %vm512, %v5286, 0
        %v5311 = vsel %vm512, %v5287, 0
        %v5314 = vsel %vm512, %v5288, 0
        %v5317 = vsel %vm512, %v5289, 0
        %v5320 = vsel %vm512, %v5290, 0
        %v5323 = vsel %vm512, %v5291, 0
        %v5326 = vsel %vm512, %v5292, 0
        %v5329 = vsel %vm512, %v5293, 0
        %5331 = vmatprep.subr.mxu0 0.0
        %5332 = vmatpush1.msra.mxu0 %v5295
        %5333 = vmatprep.subr.mxu0 0.0
        %5334 = vmatpush1.msra.mxu0 %v5296
        %5335 = vmatprep.subr.mxu0 0.0
        %5336 = vmatpush1.msra.mxu0 %v5297
        %5337 = vmatprep.subr.mxu0 0.0
        %5338 = vmatpush1.msra.mxu0 %v5298
        %5339 = vmatprep.subr.mxu0 0.0
        %5340 = vmatpush1.msra.mxu0 0.0
        %5341 = vmatprep.subr.mxu0 0.0
        %5342 = vmatpush1.msra.mxu0 0.0
        %5343 = vmatprep.subr.mxu0 0.0
        %5344 = vmatpush1.msra.mxu0 0.0
        %5345 = vmatprep.subr.mxu0 0.0
        %5346 = vmatpush1.msra.mxu0 0.0
        %5347 = vmatprep.subr.mxu0 0.0
        %5348 = vmatpush1.msra.mxu0 0.0
        %5349 = vmatprep.subr.mxu0 0.0
        %5350 = vmatpush1.msra.mxu0 0.0
        %5351 = vmatprep.subr.mxu0 0.0
        %5352 = vmatpush1.msra.mxu0 0.0
        %5353 = vmatprep.subr.mxu0 0.0
        %5354 = vmatpush1.msra.mxu0 0.0
        %5355 = vmatprep.subr.mxu0 0.0
        %5356 = vmatpush1.msra.mxu0 0.0
        %5357 = vmatprep.subr.mxu0 0.0
        %5358 = vmatpush1.msra.mxu0 0.0
        %5359 = vmatprep.subr.mxu0 0.0
        %5360 = vmatpush1.msra.mxu0 0.0
        %5361 = vmatprep.subr.mxu0 0.0
        %5362 = vmatpush1.msra.mxu0 0.0
        %5363 = vmatprep.subr.mxu0 0.0
        %5364 = vmatpush1.msra.mxu0 0.0
        %5365 = vmatprep.subr.mxu0 0.0
        %5366 = vmatpush1.msra.mxu0 0.0
        %5367 = vmatprep.subr.mxu0 0.0
        %5368 = vmatpush1.msra.mxu0 0.0
        %5369 = vmatprep.subr.mxu0 0.0
        %5370 = vmatpush1.msra.mxu0 0.0
        %5371 = vmatprep.subr.mxu0 0.0
        %5372 = vmatpush1.msra.mxu0 0.0
        %5373 = vmatprep.subr.mxu0 0.0
        %5374 = vmatpush1.msra.mxu0 0.0
        %5375 = vmatprep.subr.mxu0 0.0
        %5376 = vmatpush1.msra.mxu0 0.0
        %5377 = vmatprep.subr.mxu0 0.0
        %5378 = vmatpush1.msra.mxu0 0.0
        %5379 = vmatprep.subr.mxu0 0.0
        %5380 = vmatpush1.msra.mxu0 0.0
        %5381 = vmatprep.subr.mxu0 0.0
        %5382 = vmatpush1.msra.mxu0 0.0
        %5383 = vmatprep.subr.mxu0 0.0
        %5384 = vmatpush1.msra.mxu0 0.0
        %5385 = vmatprep.subr.mxu0 0.0
        %5386 = vmatpush1.msra.mxu0 0.0
        %5387 = vmatprep.subr.mxu0 0.0
        %5388 = vmatpush1.msra.mxu0 0.0
        %5389 = vmatprep.subr.mxu0 0.0
        %5390 = vmatpush1.msra.mxu0 0.0
        %5391 = vmatprep.subr.mxu0 0.0
        %5392 = vmatpush1.msra.mxu0 0.0
        %5393 = vmatprep.subr.mxu0 0.0
        %5394 = vmatpush1.msra.mxu0 0.0
        %5395 = vmatprep.mubr.f32.mxu0 0.0
        %5396 = vmatmul.mubr.f32.gmra.mrb[0].mxu0 %v5308
        %v5397 = vpop.f32.mrb[0].mxu0
        %v5398 = vadd.f32 %v5305, %v5397
        %v5399 = vpop.f32.mrb[0].mxu0
        %5400 = vmatprep.mubr.f32.mxu0 0.0
        %5401 = vmatmul.mubr.f32.gmra.mrb[0].mxu0 %v5311
        %v5402 = vpop.f32.mrb[0].mxu0
        %v5403 = vadd.f32 %v5305, %v5402
        %v5404 = vpop.f32.mrb[0].mxu0
        %5405 = vmatprep.mubr.f32.mxu0 0.0
        %5406 = vmatmul.mubr.f32.gmra.mrb[0].mxu0 %v5314
        %v5407 = vpop.f32.mrb[0].mxu0
        %v5408 = vadd.f32 %v5305, %v5407
        %v5409 = vpop.f32.mrb[0].mxu0
        %5410 = vmatprep.mubr.f32.mxu0 0.0
        %5411 = vmatmul.mubr.f32.gmra.mrb[0].mxu0 %v5317
        %v5412 = vpop.f32.mrb[0].mxu0
        %v5413 = vadd.f32 %v5305, %v5412
        %v5414 = vpop.f32.mrb[0].mxu0
        %5415 = vmatprep.mubr.f32.mxu0 0.0
        %5416 = vmatmul.mubr.f32.gmra.mrb[0].mxu0 %v5320
        %v5417 = vpop.f32.mrb[0].mxu0
        %v5418 = vadd.f32 %v5305, %v5417
        %v5419 = vpop.f32.mrb[0].mxu0
        %5420 = vmatprep.mubr.f32.mxu0 0.0
        %5421 = vmatmul.mubr.f32.gmra.mrb[0].mxu0 %v5323
        %v5422 = vpop.f32.mrb[0].mxu0
        %v5423 = vadd.f32 %v5305, %v5422
        %v5424 = vpop.f32.mrb[0].mxu0
        %5425 = vmatprep.mubr.f32.mxu0 0.0
        %5426 = vmatmul.mubr.f32.gmra.mrb[0].mxu0 %v5326
        %v5427 = vpop.f32.mrb[0].mxu0
        %v5428 = vadd.f32 %v5305, %v5427
        %v5429 = vpop.f32.mrb[0].mxu0
        %5430 = vmatprep.mubr.f32.mxu0 0.0
        %5431 = vmatmul.mubr.f32.gmra.mrb[0].mxu0 %v5329
        %v5432 = vpop.f32.mrb[0].mxu0
        %v5433 = vadd.f32 %v5305, %v5432
        %v5434 = vpop.f32.mrb[0].mxu0
        %5435 = vdwg.mxu0
        %s5436 = scalar_lea.vmem %s5, 32
        %v5437 = vld [vmem:[%s5436] sm:$0xff]
        %v5438 = vld [vmem:[%s5436 + $0x8] sm:$0xff]
        %v5439 = vld [vmem:[%s5436 + $0x10] sm:$0xff]
        %v5440 = vld [vmem:[%s5436 + $0x18] sm:$0xff]
        %5443 = vrot.lane.b32.xlu0 %v5398, 96
        %v5444 = vpop.permute.xlu0 %5443
        %5445 = vrot.lane.b32.xlu0 %v5403, 96
        %v5446 = vpop.permute.xlu0 %5445
        %v5447 = vsel %vm796, %v5398, 0
        %v5449 = vsel %vm796, %v5403, 0
        %v5451 = vsel %vm796, %v5444, 0
        %v5453 = vsel %vm796, %v5446, 0
        %5455 = vmatprep.subr.mxu0 0.0
        %5456 = vmatpush1.xpose.msra.mxu0 %v5451
        %5457 = vmatprep.subr.mxu0 0.0
        %5458 = vmatpush1.xpose.msra.mxu0 %v5453
        %5459 = vmatprep.subr.mxu0 0.0
        %5460 = vmatpush1.xpose.msra.mxu0 0.0
        %5461 = vmatprep.subr.mxu0 0.0
        %5462 = vmatpush1.xpose.msra.mxu0 0.0
        %5463 = vmatprep.subr.mxu0 0.0
        %5464 = vmatpush1.xpose.msra.mxu0 0.0
        %5465 = vmatprep.subr.mxu0 0.0
        %5466 = vmatpush1.xpose.msra.mxu0 0.0
        %5467 = vmatprep.subr.mxu0 0.0
        %5468 = vmatpush1.xpose.msra.mxu0 0.0
        %5469 = vmatprep.subr.mxu0 0.0
        %5470 = vmatpush1.xpose.msra.mxu0 0.0
        %5471 = vmatprep.subr.mxu0 0.0
        %5472 = vmatpush1.xpose.msra.mxu0 0.0
        %5473 = vmatprep.subr.mxu0 0.0
        %5474 = vmatpush1.xpose.msra.mxu0 0.0
        %5475 = vmatprep.subr.mxu0 0.0
        %5476 = vmatpush1.xpose.msra.mxu0 0.0
        %5477 = vmatprep.subr.mxu0 0.0
        %5478 = vmatpush1.xpose.msra.mxu0 0.0
        %5479 = vmatprep.subr.mxu0 0.0
        %5480 = vmatpush1.xpose.msra.mxu0 0.0
        %5481 = vmatprep.subr.mxu0 0.0
        %5482 = vmatpush1.xpose.msra.mxu0 0.0
        %5483 = vmatprep.subr.mxu0 0.0
        %5484 = vmatpush1.xpose.msra.mxu0 0.0
        %5485 = vmatprep.subr.mxu0 0.0
        %5486 = vmatpush1.xpose.msra.mxu0 0.0
        %5487 = vmatprep.subr.mxu0 0.0
        %5488 = vmatpush1.xpose.msra.mxu0 0.0
        %5489 = vmatprep.subr.mxu0 0.0
        %5490 = vmatpush1.xpose.msra.mxu0 0.0
        %5491 = vmatprep.subr.mxu0 0.0
        %5492 = vmatpush1.xpose.msra.mxu0 0.0
        %5493 = vmatprep.subr.mxu0 0.0
        %5494 = vmatpush1.xpose.msra.mxu0 0.0
        %5495 = vmatprep.subr.mxu0 0.0
        %5496 = vmatpush1.xpose.msra.mxu0 0.0
        %5497 = vmatprep.subr.mxu0 0.0
        %5498 = vmatpush1.xpose.msra.mxu0 0.0
        %5499 = vmatprep.subr.mxu0 0.0
        %5500 = vmatpush1.xpose.msra.mxu0 0.0
        %5501 = vmatprep.subr.mxu0 0.0
        %5502 = vmatpush1.xpose.msra.mxu0 0.0
        %5503 = vmatprep.subr.mxu0 0.0
        %5504 = vmatpush1.xpose.msra.mxu0 0.0
        %5505 = vmatprep.subr.mxu0 0.0
        %5506 = vmatpush1.xpose.msra.mxu0 0.0
        %5507 = vmatprep.subr.mxu0 0.0
        %5508 = vmatpush1.xpose.msra.mxu0 0.0
        %5509 = vmatprep.subr.mxu0 0.0
        %5510 = vmatpush1.xpose.msra.mxu0 0.0
        %5511 = vmatprep.subr.mxu0 0.0
        %5512 = vmatpush1.xpose.msra.mxu0 0.0
        %5513 = vmatprep.subr.mxu0 0.0
        %5514 = vmatpush1.xpose.msra.mxu0 0.0
        %5515 = vmatprep.subr.mxu0 0.0
        %5516 = vmatpush1.xpose.msra.mxu0 0.0
        %5517 = vmatprep.subr.mxu0 0.0
        %5518 = vmatpush1.xpose.msra.mxu0 0.0
        %5519 = vmatprep.mubr.f32.mxu0 0.0
        %5520 = vmatmul.mubr.f32.gmra.mrb[0].mxu0 %v5447
        %v5521 = vpop.f32.mrb[0].mxu0
        %v5522 = vadd.f32 0.0, %v5521
        %v5523 = vpop.f32.mrb[0].mxu0
        %5524 = vmatprep.mubr.f32.mxu0 0.0
        %5525 = vmatmul.mubr.f32.gmra.mrb[0].mxu0 %v5449
        %v5526 = vpop.f32.mrb[0].mxu0
        %v5527 = vadd.f32 0.0, %v5526
        %v5528 = vpop.f32.mrb[0].mxu0
        %5529 = vdwg.mxu0
        %5532 = vrot.lane.b32.xlu0 %v5408, 96
        %v5533 = vpop.permute.xlu0 %5532
        %5534 = vrot.lane.b32.xlu0 %v5413, 96
        %v5535 = vpop.permute.xlu0 %5534
        %v5536 = vsel %vm796, %v5408, 0
        %v5538 = vsel %vm796, %v5413, 0
        %v5540 = vsel %vm796, %v5533, 0
        %v5542 = vsel %vm796, %v5535, 0
        %5544 = vmatprep.subr.mxu0 0.0
        %5545 = vmatpush1.xpose.msra.mxu0 %v5540
        %5546 = vmatprep.subr.mxu0 0.0
        %5547 = vmatpush1.xpose.msra.mxu0 %v5542
        %5548 = vmatprep.subr.mxu0 0.0
        %5549 = vmatpush1.xpose.msra.mxu0 0.0
        %5550 = vmatprep.subr.mxu0 0.0
        %5551 = vmatpush1.xpose.msra.mxu0 0.0
        %5552 = vmatprep.subr.mxu0 0.0
        %5553 = vmatpush1.xpose.msra.mxu0 0.0
        %5554 = vmatprep.subr.mxu0 0.0
        %5555 = vmatpush1.xpose.msra.mxu0 0.0
        %5556 = vmatprep.subr.mxu0 0.0
        %5557 = vmatpush1.xpose.msra.mxu0 0.0
        %5558 = vmatprep.subr.mxu0 0.0
        %5559 = vmatpush1.xpose.msra.mxu0 0.0
        %5560 = vmatprep.subr.mxu0 0.0
        %5561 = vmatpush1.xpose.msra.mxu0 0.0
        %5562 = vmatprep.subr.mxu0 0.0
        %5563 = vmatpush1.xpose.msra.mxu0 0.0
        %5564 = vmatprep.subr.mxu0 0.0
        %5565 = vmatpush1.xpose.msra.mxu0 0.0
        %5566 = vmatprep.subr.mxu0 0.0
        %5567 = vmatpush1.xpose.msra.mxu0 0.0
        %5568 = vmatprep.subr.mxu0 0.0
        %5569 = vmatpush1.xpose.msra.mxu0 0.0
        %5570 = vmatprep.subr.mxu0 0.0
        %5571 = vmatpush1.xpose.msra.mxu0 0.0
        %5572 = vmatprep.subr.mxu0 0.0
        %5573 = vmatpush1.xpose.msra.mxu0 0.0
        %5574 = vmatprep.subr.mxu0 0.0
        %5575 = vmatpush1.xpose.msra.mxu0 0.0
        %5576 = vmatprep.subr.mxu0 0.0
        %5577 = vmatpush1.xpose.msra.mxu0 0.0
        %5578 = vmatprep.subr.mxu0 0.0
        %5579 = vmatpush1.xpose.msra.mxu0 0.0
        %5580 = vmatprep.subr.mxu0 0.0
        %5581 = vmatpush1.xpose.msra.mxu0 0.0
        %5582 = vmatprep.subr.mxu0 0.0
        %5583 = vmatpush1.xpose.msra.mxu0 0.0
        %5584 = vmatprep.subr.mxu0 0.0
        %5585 = vmatpush1.xpose.msra.mxu0 0.0
        %5586 = vmatprep.subr.mxu0 0.0
        %5587 = vmatpush1.xpose.msra.mxu0 0.0
        %5588 = vmatprep.subr.mxu0 0.0
        %5589 = vmatpush1.xpose.msra.mxu0 0.0
        %5590 = vmatprep.subr.mxu0 0.0
        %5591 = vmatpush1.xpose.msra.mxu0 0.0
        %5592 = vmatprep.subr.mxu0 0.0
        %5593 = vmatpush1.xpose.msra.mxu0 0.0
        %5594 = vmatprep.subr.mxu0 0.0
        %5595 = vmatpush1.xpose.msra.mxu0 0.0
        %5596 = vmatprep.subr.mxu0 0.0
        %5597 = vmatpush1.xpose.msra.mxu0 0.0
        %5598 = vmatprep.subr.mxu0 0.0
        %5599 = vmatpush1.xpose.msra.mxu0 0.0
        %5600 = vmatprep.subr.mxu0 0.0
        %5601 = vmatpush1.xpose.msra.mxu0 0.0
        %5602 = vmatprep.subr.mxu0 0.0
        %5603 = vmatpush1.xpose.msra.mxu0 0.0
        %5604 = vmatprep.subr.mxu0 0.0
        %5605 = vmatpush1.xpose.msra.mxu0 0.0
        %5606 = vmatprep.subr.mxu0 0.0
        %5607 = vmatpush1.xpose.msra.mxu0 0.0
        %5608 = vmatprep.mubr.f32.mxu0 0.0
        %5609 = vmatmul.mubr.f32.gmra.mrb[0].mxu0 %v5536
        %v5610 = vpop.f32.mrb[0].mxu0
        %v5611 = vadd.f32 0.0, %v5610
        %v5612 = vpop.f32.mrb[0].mxu0
        %5613 = vmatprep.mubr.f32.mxu0 0.0
        %5614 = vmatmul.mubr.f32.gmra.mrb[0].mxu0 %v5538
        %v5615 = vpop.f32.mrb[0].mxu0
        %v5616 = vadd.f32 0.0, %v5615
        %v5617 = vpop.f32.mrb[0].mxu0
        %5618 = vdwg.mxu0
        %5621 = vrot.lane.b32.xlu0 %v5418, 96
        %v5622 = vpop.permute.xlu0 %5621
        %5623 = vrot.lane.b32.xlu0 %v5423, 96
        %v5624 = vpop.permute.xlu0 %5623
        %v5625 = vsel %vm796, %v5418, 0
        %v5627 = vsel %vm796, %v5423, 0
        %v5629 = vsel %vm796, %v5622, 0
        %v5631 = vsel %vm796, %v5624, 0
        %5633 = vmatprep.subr.mxu0 0.0
        %5634 = vmatpush1.xpose.msra.mxu0 %v5629
        %5635 = vmatprep.subr.mxu0 0.0
        %5636 = vmatpush1.xpose.msra.mxu0 %v5631
        %5637 = vmatprep.subr.mxu0 0.0
        %5638 = vmatpush1.xpose.msra.mxu0 0.0
        %5639 = vmatprep.subr.mxu0 0.0
        %5640 = vmatpush1.xpose.msra.mxu0 0.0
        %5641 = vmatprep.subr.mxu0 0.0
        %5642 = vmatpush1.xpose.msra.mxu0 0.0
        %5643 = vmatprep.subr.mxu0 0.0
        %5644 = vmatpush1.xpose.msra.mxu0 0.0
        %5645 = vmatprep.subr.mxu0 0.0
        %5646 = vmatpush1.xpose.msra.mxu0 0.0
        %5647 = vmatprep.subr.mxu0 0.0
        %5648 = vmatpush1.xpose.msra.mxu0 0.0
        %5649 = vmatprep.subr.mxu0 0.0
        %5650 = vmatpush1.xpose.msra.mxu0 0.0
        %5651 = vmatprep.subr.mxu0 0.0
        %5652 = vmatpush1.xpose.msra.mxu0 0.0
        %5653 = vmatprep.subr.mxu0 0.0
        %5654 = vmatpush1.xpose.msra.mxu0 0.0
        %5655 = vmatprep.subr.mxu0 0.0
        %5656 = vmatpush1.xpose.msra.mxu0 0.0
        %5657 = vmatprep.subr.mxu0 0.0
        %5658 = vmatpush1.xpose.msra.mxu0 0.0
        %5659 = vmatprep.subr.mxu0 0.0
        %5660 = vmatpush1.xpose.msra.mxu0 0.0
        %5661 = vmatprep.subr.mxu0 0.0
        %5662 = vmatpush1.xpose.msra.mxu0 0.0
        %5663 = vmatprep.subr.mxu0 0.0
        %5664 = vmatpush1.xpose.msra.mxu0 0.0
        %5665 = vmatprep.subr.mxu0 0.0
        %5666 = vmatpush1.xpose.msra.mxu0 0.0
        %5667 = vmatprep.subr.mxu0 0.0
        %5668 = vmatpush1.xpose.msra.mxu0 0.0
        %5669 = vmatprep.subr.mxu0 0.0
        %5670 = vmatpush1.xpose.msra.mxu0 0.0
        %5671 = vmatprep.subr.mxu0 0.0
        %5672 = vmatpush1.xpose.msra.mxu0 0.0
        %5673 = vmatprep.subr.mxu0 0.0
        %5674 = vmatpush1.xpose.msra.mxu0 0.0
        %5675 = vmatprep.subr.mxu0 0.0
        %5676 = vmatpush1.xpose.msra.mxu0 0.0
        %5677 = vmatprep.subr.mxu0 0.0
        %5678 = vmatpush1.xpose.msra.mxu0 0.0
        %5679 = vmatprep.subr.mxu0 0.0
        %5680 = vmatpush1.xpose.msra.mxu0 0.0
        %5681 = vmatprep.subr.mxu0 0.0
        %5682 = vmatpush1.xpose.msra.mxu0 0.0
        %5683 = vmatprep.subr.mxu0 0.0
        %5684 = vmatpush1.xpose.msra.mxu0 0.0
        %5685 = vmatprep.subr.mxu0 0.0
        %5686 = vmatpush1.xpose.msra.mxu0 0.0
        %5687 = vmatprep.subr.mxu0 0.0
        %5688 = vmatpush1.xpose.msra.mxu0 0.0
        %5689 = vmatprep.subr.mxu0 0.0
        %5690 = vmatpush1.xpose.msra.mxu0 0.0
        %5691 = vmatprep.subr.mxu0 0.0
        %5692 = vmatpush1.xpose.msra.mxu0 0.0
        %5693 = vmatprep.subr.mxu0 0.0
        %5694 = vmatpush1.xpose.msra.mxu0 0.0
        %5695 = vmatprep.subr.mxu0 0.0
        %5696 = vmatpush1.xpose.msra.mxu0 0.0
        %5697 = vmatprep.mubr.f32.mxu0 0.0
        %5698 = vmatmul.mubr.f32.gmra.mrb[0].mxu0 %v5625
        %v5699 = vpop.f32.mrb[0].mxu0
        %v5700 = vadd.f32 0.0, %v5699
        %v5701 = vpop.f32.mrb[0].mxu0
        %5702 = vmatprep.mubr.f32.mxu0 0.0
        %5703 = vmatmul.mubr.f32.gmra.mrb[0].mxu0 %v5627
        %v5704 = vpop.f32.mrb[0].mxu0
        %v5705 = vadd.f32 0.0, %v5704
        %v5706 = vpop.f32.mrb[0].mxu0
        %5707 = vdwg.mxu0
        %5710 = vrot.lane.b32.xlu0 %v5428, 96
        %v5711 = vpop.permute.xlu0 %5710
        %5712 = vrot.lane.b32.xlu0 %v5433, 96
        %v5713 = vpop.permute.xlu0 %5712
        %v5714 = vsel %vm796, %v5428, 0
        %v5716 = vsel %vm796, %v5433, 0
        %v5718 = vsel %vm796, %v5711, 0
        %v5720 = vsel %vm796, %v5713, 0
        %5722 = vmatprep.subr.mxu0 0.0
        %5723 = vmatpush1.xpose.msra.mxu0 %v5718
        %5724 = vmatprep.subr.mxu0 0.0
        %5725 = vmatpush1.xpose.msra.mxu0 %v5720
        %5726 = vmatprep.subr.mxu0 0.0
        %5727 = vmatpush1.xpose.msra.mxu0 0.0
        %5728 = vmatprep.subr.mxu0 0.0
        %5729 = vmatpush1.xpose.msra.mxu0 0.0
        %5730 = vmatprep.subr.mxu0 0.0
        %5731 = vmatpush1.xpose.msra.mxu0 0.0
        %5732 = vmatprep.subr.mxu0 0.0
        %5733 = vmatpush1.xpose.msra.mxu0 0.0
        %5734 = vmatprep.subr.mxu0 0.0
        %5735 = vmatpush1.xpose.msra.mxu0 0.0
        %5736 = vmatprep.subr.mxu0 0.0
        %5737 = vmatpush1.xpose.msra.mxu0 0.0
        %5738 = vmatprep.subr.mxu0 0.0
        %5739 = vmatpush1.xpose.msra.mxu0 0.0
        %5740 = vmatprep.subr.mxu0 0.0
        %5741 = vmatpush1.xpose.msra.mxu0 0.0
        %5742 = vmatprep.subr.mxu0 0.0
        %5743 = vmatpush1.xpose.msra.mxu0 0.0
        %5744 = vmatprep.subr.mxu0 0.0
        %5745 = vmatpush1.xpose.msra.mxu0 0.0
        %5746 = vmatprep.subr.mxu0 0.0
        %5747 = vmatpush1.xpose.msra.mxu0 0.0
        %5748 = vmatprep.subr.mxu0 0.0
        %5749 = vmatpush1.xpose.msra.mxu0 0.0
        %5750 = vmatprep.subr.mxu0 0.0
        %5751 = vmatpush1.xpose.msra.mxu0 0.0
        %5752 = vmatprep.subr.mxu0 0.0
        %5753 = vmatpush1.xpose.msra.mxu0 0.0
        %5754 = vmatprep.subr.mxu0 0.0
        %5755 = vmatpush1.xpose.msra.mxu0 0.0
        %5756 = vmatprep.subr.mxu0 0.0
        %5757 = vmatpush1.xpose.msra.mxu0 0.0
        %5758 = vmatprep.subr.mxu0 0.0
        %5759 = vmatpush1.xpose.msra.mxu0 0.0
        %5760 = vmatprep.subr.mxu0 0.0
        %5761 = vmatpush1.xpose.msra.mxu0 0.0
        %5762 = vmatprep.subr.mxu0 0.0
        %5763 = vmatpush1.xpose.msra.mxu0 0.0
        %5764 = vmatprep.subr.mxu0 0.0
        %5765 = vmatpush1.xpose.msra.mxu0 0.0
        %5766 = vmatprep.subr.mxu0 0.0
        %5767 = vmatpush1.xpose.msra.mxu0 0.0
        %5768 = vmatprep.subr.mxu0 0.0
        %5769 = vmatpush1.xpose.msra.mxu0 0.0
        %5770 = vmatprep.subr.mxu0 0.0
        %5771 = vmatpush1.xpose.msra.mxu0 0.0
        %5772 = vmatprep.subr.mxu0 0.0
        %5773 = vmatpush1.xpose.msra.mxu0 0.0
        %5774 = vmatprep.subr.mxu0 0.0
        %5775 = vmatpush1.xpose.msra.mxu0 0.0
        %5776 = vmatprep.subr.mxu0 0.0
        %5777 = vmatpush1.xpose.msra.mxu0 0.0
        %5778 = vmatprep.subr.mxu0 0.0
        %5779 = vmatpush1.xpose.msra.mxu0 0.0
        %5780 = vmatprep.subr.mxu0 0.0
        %5781 = vmatpush1.xpose.msra.mxu0 0.0
        %5782 = vmatprep.subr.mxu0 0.0
        %5783 = vmatpush1.xpose.msra.mxu0 0.0
        %5784 = vmatprep.subr.mxu0 0.0
        %5785 = vmatpush1.xpose.msra.mxu0 0.0
        %5786 = vmatprep.mubr.f32.mxu0 0.0
        %5787 = vmatmul.mubr.f32.gmra.mrb[0].mxu0 %v5714
        %v5788 = vpop.f32.mrb[0].mxu0
        %v5789 = vadd.f32 0.0, %v5788
        %v5790 = vpop.f32.mrb[0].mxu0
        %5791 = vmatprep.mubr.f32.mxu0 0.0
        %5792 = vmatmul.mubr.f32.gmra.mrb[0].mxu0 %v5716
        %v5793 = vpop.f32.mrb[0].mxu0
        %v5794 = vadd.f32 0.0, %v5793
        %v5795 = vpop.f32.mrb[0].mxu0
        %5796 = vdwg.mxu0
        %v5797 = vmul.f32 %v5522, 0.35355338
        %v5798 = vmul.f32 %v5527, 0.35355338
        %v5799 = vmul.f32 %v5611, 0.35355338
        %v5800 = vmul.f32 %v5616, 0.35355338
        %v5801 = vmul.f32 %v5700, 0.35355338
        %v5802 = vmul.f32 %v5705, 0.35355338
        %v5803 = vmul.f32 %v5789, 0.35355338
        %v5804 = vmul.f32 %v5794, 0.35355338
        %v5805 = vsel %vm1155, %v5797, -inf
        %5806 = vmax.xlane.f32.xlu0 %v5805
        %v5807 = vpop.xlane.xlu0 %5806
        %v5808 = vsel %vm1155, %v5798, -inf
        %5809 = vmax.xlane.f32.xlu0 %v5808
        %v5810 = vpop.xlane.xlu0 %5809
        %v5811 = vsel %vm1155, %v5799, -inf
        %5812 = vmax.xlane.f32.xlu0 %v5811
        %v5813 = vpop.xlane.xlu0 %5812
        %v5814 = vsel %vm1155, %v5800, -inf
        %5815 = vmax.xlane.f32.xlu0 %v5814
        %v5816 = vpop.xlane.xlu0 %5815
        %v5817 = vsel %vm1155, %v5801, -inf
        %5818 = vmax.xlane.f32.xlu0 %v5817
        %v5819 = vpop.xlane.xlu0 %5818
        %v5820 = vsel %vm1155, %v5802, -inf
        %5821 = vmax.xlane.f32.xlu0 %v5820
        %v5822 = vpop.xlane.xlu0 %5821
        %v5823 = vsel %vm1155, %v5803, -inf
        %5824 = vmax.xlane.f32.xlu0 %v5823
        %v5825 = vpop.xlane.xlu0 %5824
        %v5826 = vsel %vm1155, %v5804, -inf
        %5827 = vmax.xlane.f32.xlu0 %v5826
        %v5828 = vpop.xlane.xlu0 %5827
        %v5829 = vsub.f32 %v5797, %v5807
        %v5830 = vsub.f32 %v5798, %v5810
        %v5831 = vsub.f32 %v5799, %v5813
        %v5832 = vsub.f32 %v5800, %v5816
        %v5833 = vsub.f32 %v5801, %v5819
        %v5834 = vsub.f32 %v5802, %v5822
        %v5835 = vsub.f32 %v5803, %v5825
        %v5836 = vsub.f32 %v5804, %v5828
        %v5837 = vmul.f32 %v5829, 1.442695
        %v5838 = vpow.pop %v5837
        %v5839 = vmul.f32 %v5830, 1.442695
        %v5840 = vpow.pop %v5839
        %v5841 = vmul.f32 %v5831, 1.442695
        %v5842 = vpow.pop %v5841
        %v5843 = vmul.f32 %v5832, 1.442695
        %v5844 = vpow.pop %v5843
        %v5845 = vmul.f32 %v5833, 1.442695
        %v5846 = vpow.pop %v5845
        %v5847 = vmul.f32 %v5834, 1.442695
        %v5848 = vpow.pop %v5847
        %v5849 = vmul.f32 %v5835, 1.442695
        %v5850 = vpow.pop %v5849
        %v5851 = vmul.f32 %v5836, 1.442695
        %v5852 = vpow.pop %v5851
        %v5853 = vsel %vm1155, %v5838, 0.0
        %5854 = vadd.xlane.f32.xlu0 %v5853
        %v5855 = vpop.xlane.xlu0 %5854
        %v5856 = vsel %vm1155, %v5840, 0.0
        %5857 = vadd.xlane.f32.xlu0 %v5856
        %v5858 = vpop.xlane.xlu0 %5857
        %v5859 = vsel %vm1155, %v5842, 0.0
        %5860 = vadd.xlane.f32.xlu0 %v5859
        %v5861 = vpop.xlane.xlu0 %5860
        %v5862 = vsel %vm1155, %v5844, 0.0
        %5863 = vadd.xlane.f32.xlu0 %v5862
        %v5864 = vpop.xlane.xlu0 %5863
        %v5865 = vsel %vm1155, %v5846, 0.0
        %5866 = vadd.xlane.f32.xlu0 %v5865
        %v5867 = vpop.xlane.xlu0 %5866
        %v5868 = vsel %vm1155, %v5848, 0.0
        %5869 = vadd.xlane.f32.xlu0 %v5868
        %v5870 = vpop.xlane.xlu0 %5869
        %v5871 = vsel %vm1155, %v5850, 0.0
        %5872 = vadd.xlane.f32.xlu0 %v5871
        %v5873 = vpop.xlane.xlu0 %5872
        %v5874 = vsel %vm1155, %v5852, 0.0
        %5875 = vadd.xlane.f32.xlu0 %v5874
        %v5876 = vpop.xlane.xlu0 %5875
        %v5877 = vrcp.pop %v5855
        %v5878 = vmul.f32 %v5838, %v5877
        %v5879 = vrcp.pop %v5858
        %v5880 = vmul.f32 %v5840, %v5879
        %v5881 = vrcp.pop %v5861
        %v5882 = vmul.f32 %v5842, %v5881
        %v5883 = vrcp.pop %v5864
        %v5884 = vmul.f32 %v5844, %v5883
        %v5885 = vrcp.pop %v5867
        %v5886 = vmul.f32 %v5846, %v5885
        %v5887 = vrcp.pop %v5870
        %v5888 = vmul.f32 %v5848, %v5887
        %v5889 = vrcp.pop %v5873
        %v5890 = vmul.f32 %v5850, %v5889
        %v5891 = vrcp.pop %v5876
        %v5892 = vmul.f32 %v5852, %v5891
        %5893 = vrot.lane.b32.xlu0 %v5398, 64
        %v5894 = vpop.permute.xlu0 %5893
        %5895 = vrot.lane.b32.xlu0 %v5403, 64
        %v5896 = vpop.permute.xlu0 %5895
        %v5900 = vsel %vm1155, %v5878, 0
        %v5903 = vsel %vm1155, %v5880, 0
        %5905 = vmatprep.subr.mxu0 0.0
        %5906 = vmatpush1.msra.mxu0 %v5894
        %5907 = vmatprep.subr.mxu0 0.0
        %5908 = vmatpush1.msra.mxu0 %v5896
        %5909 = vmatprep.subr.mxu0 0.0
        %5910 = vmatpush1.msra.mxu0 0.0
        %5911 = vmatprep.subr.mxu0 0.0
        %5912 = vmatpush1.msra.mxu0 0.0
        %5913 = vmatprep.subr.mxu0 0.0
        %5914 = vmatpush1.msra.mxu0 0.0
        %5915 = vmatprep.subr.mxu0 0.0
        %5916 = vmatpush1.msra.mxu0 0.0
        %5917 = vmatprep.subr.mxu0 0.0
        %5918 = vmatpush1.msra.mxu0 0.0
        %5919 = vmatprep.subr.mxu0 0.0
        %5920 = vmatpush1.msra.mxu0 0.0
        %5921 = vmatprep.subr.mxu0 0.0
        %5922 = vmatpush1.msra.mxu0 0.0
        %5923 = vmatprep.subr.mxu0 0.0
        %5924 = vmatpush1.msra.mxu0 0.0
        %5925 = vmatprep.subr.mxu0 0.0
        %5926 = vmatpush1.msra.mxu0 0.0
        %5927 = vmatprep.subr.mxu0 0.0
        %5928 = vmatpush1.msra.mxu0 0.0
        %5929 = vmatprep.subr.mxu0 0.0
        %5930 = vmatpush1.msra.mxu0 0.0
        %5931 = vmatprep.subr.mxu0 0.0
        %5932 = vmatpush1.msra.mxu0 0.0
        %5933 = vmatprep.subr.mxu0 0.0
        %5934 = vmatpush1.msra.mxu0 0.0
        %5935 = vmatprep.subr.mxu0 0.0
        %5936 = vmatpush1.msra.mxu0 0.0
        %5937 = vmatprep.subr.mxu0 0.0
        %5938 = vmatpush1.msra.mxu0 0.0
        %5939 = vmatprep.subr.mxu0 0.0
        %5940 = vmatpush1.msra.mxu0 0.0
        %5941 = vmatprep.subr.mxu0 0.0
        %5942 = vmatpush1.msra.mxu0 0.0
        %5943 = vmatprep.subr.mxu0 0.0
        %5944 = vmatpush1.msra.mxu0 0.0
        %5945 = vmatprep.subr.mxu0 0.0
        %5946 = vmatpush1.msra.mxu0 0.0
        %5947 = vmatprep.subr.mxu0 0.0
        %5948 = vmatpush1.msra.mxu0 0.0
        %5949 = vmatprep.subr.mxu0 0.0
        %5950 = vmatpush1.msra.mxu0 0.0
        %5951 = vmatprep.subr.mxu0 0.0
        %5952 = vmatpush1.msra.mxu0 0.0
        %5953 = vmatprep.subr.mxu0 0.0
        %5954 = vmatpush1.msra.mxu0 0.0
        %5955 = vmatprep.subr.mxu0 0.0
        %5956 = vmatpush1.msra.mxu0 0.0
        %5957 = vmatprep.subr.mxu0 0.0
        %5958 = vmatpush1.msra.mxu0 0.0
        %5959 = vmatprep.subr.mxu0 0.0
        %5960 = vmatpush1.msra.mxu0 0.0
        %5961 = vmatprep.subr.mxu0 0.0
        %5962 = vmatpush1.msra.mxu0 0.0
        %5963 = vmatprep.subr.mxu0 0.0
        %5964 = vmatpush1.msra.mxu0 0.0
        %5965 = vmatprep.subr.mxu0 0.0
        %5966 = vmatpush1.msra.mxu0 0.0
        %5967 = vmatprep.subr.mxu0 0.0
        %5968 = vmatpush1.msra.mxu0 0.0
        %5969 = vmatprep.mubr.f32.mxu0 0.0
        %5970 = vmatmul.mubr.f32.gmra.mrb[0].mxu0 %v5900
        %v5971 = vpop.f32.mrb[0].mxu0
        %v5972 = vadd.f32 0.0, %v5971
        %v5973 = vpop.f32.mrb[0].mxu0
        %5974 = vmatprep.mubr.f32.mxu0 0.0
        %5975 = vmatmul.mubr.f32.gmra.mrb[0].mxu0 %v5903
        %v5976 = vpop.f32.mrb[0].mxu0
        %v5977 = vadd.f32 0.0, %v5976
        %v5978 = vpop.f32.mrb[0].mxu0
        %5979 = vdwg.mxu0
        %5980 = vrot.lane.b32.xlu0 %v5408, 64
        %v5981 = vpop.permute.xlu0 %5980
        %5982 = vrot.lane.b32.xlu0 %v5413, 64
        %v5983 = vpop.permute.xlu0 %5982
        %v5987 = vsel %vm1155, %v5882, 0
        %v5990 = vsel %vm1155, %v5884, 0
        %5992 = vmatprep.subr.mxu0 0.0
        %5993 = vmatpush1.msra.mxu0 %v5981
        %5994 = vmatprep.subr.mxu0 0.0
        %5995 = vmatpush1.msra.mxu0 %v5983
        %5996 = vmatprep.subr.mxu0 0.0
        %5997 = vmatpush1.msra.mxu0 0.0
        %5998 = vmatprep.subr.mxu0 0.0
        %5999 = vmatpush1.msra.mxu0 0.0
        %6000 = vmatprep.subr.mxu0 0.0
        %6001 = vmatpush1.msra.mxu0 0.0
        %6002 = vmatprep.subr.mxu0 0.0
        %6003 = vmatpush1.msra.mxu0 0.0
        %6004 = vmatprep.subr.mxu0 0.0
        %6005 = vmatpush1.msra.mxu0 0.0
        %6006 = vmatprep.subr.mxu0 0.0
        %6007 = vmatpush1.msra.mxu0 0.0
        %6008 = vmatprep.subr.mxu0 0.0
        %6009 = vmatpush1.msra.mxu0 0.0
        %6010 = vmatprep.subr.mxu0 0.0
        %6011 = vmatpush1.msra.mxu0 0.0
        %6012 = vmatprep.subr.mxu0 0.0
        %6013 = vmatpush1.msra.mxu0 0.0
        %6014 = vmatprep.subr.mxu0 0.0
        %6015 = vmatpush1.msra.mxu0 0.0
        %6016 = vmatprep.subr.mxu0 0.0
        %6017 = vmatpush1.msra.mxu0 0.0
        %6018 = vmatprep.subr.mxu0 0.0
        %6019 = vmatpush1.msra.mxu0 0.0
        %6020 = vmatprep.subr.mxu0 0.0
        %6021 = vmatpush1.msra.mxu0 0.0
        %6022 = vmatprep.subr.mxu0 0.0
        %6023 = vmatpush1.msra.mxu0 0.0
        %6024 = vmatprep.subr.mxu0 0.0
        %6025 = vmatpush1.msra.mxu0 0.0
        %6026 = vmatprep.subr.mxu0 0.0
        %6027 = vmatpush1.msra.mxu0 0.0
        %6028 = vmatprep.subr.mxu0 0.0
        %6029 = vmatpush1.msra.mxu0 0.0
        %6030 = vmatprep.subr.mxu0 0.0
        %6031 = vmatpush1.msra.mxu0 0.0
        %6032 = vmatprep.subr.mxu0 0.0
        %6033 = vmatpush1.msra.mxu0 0.0
        %6034 = vmatprep.subr.mxu0 0.0
        %6035 = vmatpush1.msra.mxu0 0.0
        %6036 = vmatprep.subr.mxu0 0.0
        %6037 = vmatpush1.msra.mxu0 0.0
        %6038 = vmatprep.subr.mxu0 0.0
        %6039 = vmatpush1.msra.mxu0 0.0
        %6040 = vmatprep.subr.mxu0 0.0
        %6041 = vmatpush1.msra.mxu0 0.0
        %6042 = vmatprep.subr.mxu0 0.0
        %6043 = vmatpush1.msra.mxu0 0.0
        %6044 = vmatprep.subr.mxu0 0.0
        %6045 = vmatpush1.msra.mxu0 0.0
        %6046 = vmatprep.subr.mxu0 0.0
        %6047 = vmatpush1.msra.mxu0 0.0
        %6048 = vmatprep.subr.mxu0 0.0
        %6049 = vmatpush1.msra.mxu0 0.0
        %6050 = vmatprep.subr.mxu0 0.0
        %6051 = vmatpush1.msra.mxu0 0.0
        %6052 = vmatprep.subr.mxu0 0.0
        %6053 = vmatpush1.msra.mxu0 0.0
        %6054 = vmatprep.subr.mxu0 0.0
        %6055 = vmatpush1.msra.mxu0 0.0
        %6056 = vmatprep.mubr.f32.mxu0 0.0
        %6057 = vmatmul.mubr.f32.gmra.mrb[0].mxu0 %v5987
        %v6058 = vpop.f32.mrb[0].mxu0
        %v6059 = vadd.f32 0.0, %v6058
        %v6060 = vpop.f32.mrb[0].mxu0
        %6061 = vmatprep.mubr.f32.mxu0 0.0
        %6062 = vmatmul.mubr.f32.gmra.mrb[0].mxu0 %v5990
        %v6063 = vpop.f32.mrb[0].mxu0
        %v6064 = vadd.f32 0.0, %v6063
        %v6065 = vpop.f32.mrb[0].mxu0
        %6066 = vdwg.mxu0
        %6067 = vrot.lane.b32.xlu0 %v5418, 64
        %v6068 = vpop.permute.xlu0 %6067
        %6069 = vrot.lane.b32.xlu0 %v5423, 64
        %v6070 = vpop.permute.xlu0 %6069
        %v6074 = vsel %vm1155, %v5886, 0
        %v6077 = vsel %vm1155, %v5888, 0
        %6079 = vmatprep.subr.mxu0 0.0
        %6080 = vmatpush1.msra.mxu0 %v6068
        %6081 = vmatprep.subr.mxu0 0.0
        %6082 = vmatpush1.msra.mxu0 %v6070
        %6083 = vmatprep.subr.mxu0 0.0
        %6084 = vmatpush1.msra.mxu0 0.0
        %6085 = vmatprep.subr.mxu0 0.0
        %6086 = vmatpush1.msra.mxu0 0.0
        %6087 = vmatprep.subr.mxu0 0.0
        %6088 = vmatpush1.msra.mxu0 0.0
        %6089 = vmatprep.subr.mxu0 0.0
        %6090 = vmatpush1.msra.mxu0 0.0
        %6091 = vmatprep.subr.mxu0 0.0
        %6092 = vmatpush1.msra.mxu0 0.0
        %6093 = vmatprep.subr.mxu0 0.0
        %6094 = vmatpush1.msra.mxu0 0.0
        %6095 = vmatprep.subr.mxu0 0.0
        %6096 = vmatpush1.msra.mxu0 0.0
        %6097 = vmatprep.subr.mxu0 0.0
        %6098 = vmatpush1.msra.mxu0 0.0
        %6099 = vmatprep.subr.mxu0 0.0
        %6100 = vmatpush1.msra.mxu0 0.0
        %6101 = vmatprep.subr.mxu0 0.0
        %6102 = vmatpush1.msra.mxu0 0.0
        %6103 = vmatprep.subr.mxu0 0.0
        %6104 = vmatpush1.msra.mxu0 0.0
        %6105 = vmatprep.subr.mxu0 0.0
        %6106 = vmatpush1.msra.mxu0 0.0
        %6107 = vmatprep.subr.mxu0 0.0
        %6108 = vmatpush1.msra.mxu0 0.0
        %6109 = vmatprep.subr.mxu0 0.0
        %6110 = vmatpush1.msra.mxu0 0.0
        %6111 = vmatprep.subr.mxu0 0.0
        %6112 = vmatpush1.msra.mxu0 0.0
        %6113 = vmatprep.subr.mxu0 0.0
        %6114 = vmatpush1.msra.mxu0 0.0
        %6115 = vmatprep.subr.mxu0 0.0
        %6116 = vmatpush1.msra.mxu0 0.0
        %6117 = vmatprep.subr.mxu0 0.0
        %6118 = vmatpush1.msra.mxu0 0.0
        %6119 = vmatprep.subr.mxu0 0.0
        %6120 = vmatpush1.msra.mxu0 0.0
        %6121 = vmatprep.subr.mxu0 0.0
        %6122 = vmatpush1.msra.mxu0 0.0
        %6123 = vmatprep.subr.mxu0 0.0
        %6124 = vmatpush1.msra.mxu0 0.0
        %6125 = vmatprep.subr.mxu0 0.0
        %6126 = vmatpush1.msra.mxu0 0.0
        %6127 = vmatprep.subr.mxu0 0.0
        %6128 = vmatpush1.msra.mxu0 0.0
        %6129 = vmatprep.subr.mxu0 0.0
        %6130 = vmatpush1.msra.mxu0 0.0
        %6131 = vmatprep.subr.mxu0 0.0
        %6132 = vmatpush1.msra.mxu0 0.0
        %6133 = vmatprep.subr.mxu0 0.0
        %6134 = vmatpush1.msra.mxu0 0.0
        %6135 = vmatprep.subr.mxu0 0.0
        %6136 = vmatpush1.msra.mxu0 0.0
        %6137 = vmatprep.subr.mxu0 0.0
        %6138 = vmatpush1.msra.mxu0 0.0
        %6139 = vmatprep.subr.mxu0 0.0
        %6140 = vmatpush1.msra.mxu0 0.0
        %6141 = vmatprep.subr.mxu0 0.0
        %6142 = vmatpush1.msra.mxu0 0.0
        %6143 = vmatprep.mubr.f32.mxu0 0.0
        %6144 = vmatmul.mubr.f32.gmra.mrb[0].mxu0 %v6074
        %v6145 = vpop.f32.mrb[0].mxu0
        %v6146 = vadd.f32 0.0, %v6145
        %v6147 = vpop.f32.mrb[0].mxu0
        %6148 = vmatprep.mubr.f32.mxu0 0.0
        %6149 = vmatmul.mubr.f32.gmra.mrb[0].mxu0 %v6077
        %v6150 = vpop.f32.mrb[0].mxu0
        %v6151 = vadd.f32 0.0, %v6150
        %v6152 = vpop.f32.mrb[0].mxu0
        %6153 = vdwg.mxu0
        %6154 = vrot.lane.b32.xlu0 %v5428, 64
        %v6155 = vpop.permute.xlu0 %6154
        %6156 = vrot.lane.b32.xlu0 %v5433, 64
        %v6157 = vpop.permute.xlu0 %6156
        %v6161 = vsel %vm1155, %v5890, 0
        %v6164 = vsel %vm1155, %v5892, 0
        %6166 = vmatprep.subr.mxu0 0.0
        %6167 = vmatpush1.msra.mxu0 %v6155
        %6168 = vmatprep.subr.mxu0 0.0
        %6169 = vmatpush1.msra.mxu0 %v6157
        %6170 = vmatprep.subr.mxu0 0.0
        %6171 = vmatpush1.msra.mxu0 0.0
        %6172 = vmatprep.subr.mxu0 0.0
        %6173 = vmatpush1.msra.mxu0 0.0
        %6174 = vmatprep.subr.mxu0 0.0
        %6175 = vmatpush1.msra.mxu0 0.0
        %6176 = vmatprep.subr.mxu0 0.0
        %6177 = vmatpush1.msra.mxu0 0.0
        %6178 = vmatprep.subr.mxu0 0.0
        %6179 = vmatpush1.msra.mxu0 0.0
        %6180 = vmatprep.subr.mxu0 0.0
        %6181 = vmatpush1.msra.mxu0 0.0
        %6182 = vmatprep.subr.mxu0 0.0
        %6183 = vmatpush1.msra.mxu0 0.0
        %6184 = vmatprep.subr.mxu0 0.0
        %6185 = vmatpush1.msra.mxu0 0.0
        %6186 = vmatprep.subr.mxu0 0.0
        %6187 = vmatpush1.msra.mxu0 0.0
        %6188 = vmatprep.subr.mxu0 0.0
        %6189 = vmatpush1.msra.mxu0 0.0
        %6190 = vmatprep.subr.mxu0 0.0
        %6191 = vmatpush1.msra.mxu0 0.0
        %6192 = vmatprep.subr.mxu0 0.0
        %6193 = vmatpush1.msra.mxu0 0.0
        %6194 = vmatprep.subr.mxu0 0.0
        %6195 = vmatpush1.msra.mxu0 0.0
        %6196 = vmatprep.subr.mxu0 0.0
        %6197 = vmatpush1.msra.mxu0 0.0
        %6198 = vmatprep.subr.mxu0 0.0
        %6199 = vmatpush1.msra.mxu0 0.0
        %6200 = vmatprep.subr.mxu0 0.0
        %6201 = vmatpush1.msra.mxu0 0.0
        %6202 = vmatprep.subr.mxu0 0.0
        %6203 = vmatpush1.msra.mxu0 0.0
        %6204 = vmatprep.subr.mxu0 0.0
        %6205 = vmatpush1.msra.mxu0 0.0
        %6206 = vmatprep.subr.mxu0 0.0
        %6207 = vmatpush1.msra.mxu0 0.0
        %6208 = vmatprep.subr.mxu0 0.0
        %6209 = vmatpush1.msra.mxu0 0.0
        %6210 = vmatprep.subr.mxu0 0.0
        %6211 = vmatpush1.msra.mxu0 0.0
        %6212 = vmatprep.subr.mxu0 0.0
        %6213 = vmatpush1.msra.mxu0 0.0
        %6214 = vmatprep.subr.mxu0 0.0
        %6215 = vmatpush1.msra.mxu0 0.0
        %6216 = vmatprep.subr.mxu0 0.0
        %6217 = vmatpush1.msra.mxu0 0.0
        %6218 = vmatprep.subr.mxu0 0.0
        %6219 = vmatpush1.msra.mxu0 0.0
        %6220 = vmatprep.subr.mxu0 0.0
        %6221 = vmatpush1.msra.mxu0 0.0
        %6222 = vmatprep.subr.mxu0 0.0
        %6223 = vmatpush1.msra.mxu0 0.0
        %6224 = vmatprep.subr.mxu0 0.0
        %6225 = vmatpush1.msra.mxu0 0.0
        %6226 = vmatprep.subr.mxu0 0.0
        %6227 = vmatpush1.msra.mxu0 0.0
        %6228 = vmatprep.subr.mxu0 0.0
        %6229 = vmatpush1.msra.mxu0 0.0
        %6230 = vmatprep.mubr.f32.mxu0 0.0
        %6231 = vmatmul.mubr.f32.gmra.mrb[0].mxu0 %v6161
        %v6232 = vpop.f32.mrb[0].mxu0
        %v6233 = vadd.f32 0.0, %v6232
        %v6234 = vpop.f32.mrb[0].mxu0
        %6235 = vmatprep.mubr.f32.mxu0 0.0
        %6236 = vmatmul.mubr.f32.gmra.mrb[0].mxu0 %v6164
        %v6237 = vpop.f32.mrb[0].mxu0
        %v6238 = vadd.f32 0.0, %v6237
        %v6239 = vpop.f32.mrb[0].mxu0
        %6240 = vdwg.mxu0
        %6241 = vrot.lane.b32.xlu0 %v5398, 120
        %v6242 = vpop.permute.xlu0 %6241
        %6243 = vrot.lane.b32.xlu0 %v5403, 120
        %v6244 = vpop.permute.xlu0 %6243
        %6245 = vrot.lane.b32.xlu0 %v5398, 88
        %v6246 = vpop.permute.xlu0 %6245
        %6247 = vrot.lane.b32.xlu0 %v5403, 88
        %v6248 = vpop.permute.xlu0 %6247
        %v6249 = vsel %vm796, %v6242, 0
        %v6251 = vsel %vm796, %v6244, 0
        %v6253 = vsel %vm796, %v6246, 0
        %v6255 = vsel %vm796, %v6248, 0
        %6257 = vmatprep.subr.mxu0 0.0
        %6258 = vmatpush1.xpose.msra.mxu0 %v6253
        %6259 = vmatprep.subr.mxu0 0.0
        %6260 = vmatpush1.xpose.msra.mxu0 %v6255
        %6261 = vmatprep.subr.mxu0 0.0
        %6262 = vmatpush1.xpose.msra.mxu0 0.0
        %6263 = vmatprep.subr.mxu0 0.0
        %6264 = vmatpush1.xpose.msra.mxu0 0.0
        %6265 = vmatprep.subr.mxu0 0.0
        %6266 = vmatpush1.xpose.msra.mxu0 0.0
        %6267 = vmatprep.subr.mxu0 0.0
        %6268 = vmatpush1.xpose.msra.mxu0 0.0
        %6269 = vmatprep.subr.mxu0 0.0
        %6270 = vmatpush1.xpose.msra.mxu0 0.0
        %6271 = vmatprep.subr.mxu0 0.0
        %6272 = vmatpush1.xpose.msra.mxu0 0.0
        %6273 = vmatprep.subr.mxu0 0.0
        %6274 = vmatpush1.xpose.msra.mxu0 0.0
        %6275 = vmatprep.subr.mxu0 0.0
        %6276 = vmatpush1.xpose.msra.mxu0 0.0
        %6277 = vmatprep.subr.mxu0 0.0
        %6278 = vmatpush1.xpose.msra.mxu0 0.0
        %6279 = vmatprep.subr.mxu0 0.0
        %6280 = vmatpush1.xpose.msra.mxu0 0.0
        %6281 = vmatprep.subr.mxu0 0.0
        %6282 = vmatpush1.xpose.msra.mxu0 0.0
        %6283 = vmatprep.subr.mxu0 0.0
        %6284 = vmatpush1.xpose.msra.mxu0 0.0
        %6285 = vmatprep.subr.mxu0 0.0
        %6286 = vmatpush1.xpose.msra.mxu0 0.0
        %6287 = vmatprep.subr.mxu0 0.0
        %6288 = vmatpush1.xpose.msra.mxu0 0.0
        %6289 = vmatprep.subr.mxu0 0.0
        %6290 = vmatpush1.xpose.msra.mxu0 0.0
        %6291 = vmatprep.subr.mxu0 0.0
        %6292 = vmatpush1.xpose.msra.mxu0 0.0
        %6293 = vmatprep.subr.mxu0 0.0
        %6294 = vmatpush1.xpose.msra.mxu0 0.0
        %6295 = vmatprep.subr.mxu0 0.0
        %6296 = vmatpush1.xpose.msra.mxu0 0.0
        %6297 = vmatprep.subr.mxu0 0.0
        %6298 = vmatpush1.xpose.msra.mxu0 0.0
        %6299 = vmatprep.subr.mxu0 0.0
        %6300 = vmatpush1.xpose.msra.mxu0 0.0
        %6301 = vmatprep.subr.mxu0 0.0
        %6302 = vmatpush1.xpose.msra.mxu0 0.0
        %6303 = vmatprep.subr.mxu0 0.0
        %6304 = vmatpush1.xpose.msra.mxu0 0.0
        %6305 = vmatprep.subr.mxu0 0.0
        %6306 = vmatpush1.xpose.msra.mxu0 0.0
        %6307 = vmatprep.subr.mxu0 0.0
        %6308 = vmatpush1.xpose.msra.mxu0 0.0
        %6309 = vmatprep.subr.mxu0 0.0
        %6310 = vmatpush1.xpose.msra.mxu0 0.0
        %6311 = vmatprep.subr.mxu0 0.0
        %6312 = vmatpush1.xpose.msra.mxu0 0.0
        %6313 = vmatprep.subr.mxu0 0.0
        %6314 = vmatpush1.xpose.msra.mxu0 0.0
        %6315 = vmatprep.subr.mxu0 0.0
        %6316 = vmatpush1.xpose.msra.mxu0 0.0
        %6317 = vmatprep.subr.mxu0 0.0
        %6318 = vmatpush1.xpose.msra.mxu0 0.0
        %6319 = vmatprep.subr.mxu0 0.0
        %6320 = vmatpush1.xpose.msra.mxu0 0.0
        %6321 = vmatprep.mubr.f32.mxu0 0.0
        %6322 = vmatmul.mubr.f32.gmra.mrb[0].mxu0 %v6249
        %v6323 = vpop.f32.mrb[0].mxu0
        %v6324 = vadd.f32 0.0, %v6323
        %v6325 = vpop.f32.mrb[0].mxu0
        %6326 = vmatprep.mubr.f32.mxu0 0.0
        %6327 = vmatmul.mubr.f32.gmra.mrb[0].mxu0 %v6251
        %v6328 = vpop.f32.mrb[0].mxu0
        %v6329 = vadd.f32 0.0, %v6328
        %v6330 = vpop.f32.mrb[0].mxu0
        %6331 = vdwg.mxu0
        %6332 = vrot.lane.b32.xlu0 %v5408, 120
        %v6333 = vpop.permute.xlu0 %6332
        %6334 = vrot.lane.b32.xlu0 %v5413, 120
        %v6335 = vpop.permute.xlu0 %6334
        %6336 = vrot.lane.b32.xlu0 %v5408, 88
        %v6337 = vpop.permute.xlu0 %6336
        %6338 = vrot.lane.b32.xlu0 %v5413, 88
        %v6339 = vpop.permute.xlu0 %6338
        %v6340 = vsel %vm796, %v6333, 0
        %v6342 = vsel %vm796, %v6335, 0
        %v6344 = vsel %vm796, %v6337, 0
        %v6346 = vsel %vm796, %v6339, 0
        %6348 = vmatprep.subr.mxu0 0.0
        %6349 = vmatpush1.xpose.msra.mxu0 %v6344
        %6350 = vmatprep.subr.mxu0 0.0
        %6351 = vmatpush1.xpose.msra.mxu0 %v6346
        %6352 = vmatprep.subr.mxu0 0.0
        %6353 = vmatpush1.xpose.msra.mxu0 0.0
        %6354 = vmatprep.subr.mxu0 0.0
        %6355 = vmatpush1.xpose.msra.mxu0 0.0
        %6356 = vmatprep.subr.mxu0 0.0
        %6357 = vmatpush1.xpose.msra.mxu0 0.0
        %6358 = vmatprep.subr.mxu0 0.0
        %6359 = vmatpush1.xpose.msra.mxu0 0.0
        %6360 = vmatprep.subr.mxu0 0.0
        %6361 = vmatpush1.xpose.msra.mxu0 0.0
        %6362 = vmatprep.subr.mxu0 0.0
        %6363 = vmatpush1.xpose.msra.mxu0 0.0
        %6364 = vmatprep.subr.mxu0 0.0
        %6365 = vmatpush1.xpose.msra.mxu0 0.0
        %6366 = vmatprep.subr.mxu0 0.0
        %6367 = vmatpush1.xpose.msra.mxu0 0.0
        %6368 = vmatprep.subr.mxu0 0.0
        %6369 = vmatpush1.xpose.msra.mxu0 0.0
        %6370 = vmatprep.subr.mxu0 0.0
        %6371 = vmatpush1.xpose.msra.mxu0 0.0
        %6372 = vmatprep.subr.mxu0 0.0
        %6373 = vmatpush1.xpose.msra.mxu0 0.0
        %6374 = vmatprep.subr.mxu0 0.0
        %6375 = vmatpush1.xpose.msra.mxu0 0.0
        %6376 = vmatprep.subr.mxu0 0.0
        %6377 = vmatpush1.xpose.msra.mxu0 0.0
        %6378 = vmatprep.subr.mxu0 0.0
        %6379 = vmatpush1.xpose.msra.mxu0 0.0
        %6380 = vmatprep.subr.mxu0 0.0
        %6381 = vmatpush1.xpose.msra.mxu0 0.0
        %6382 = vmatprep.subr.mxu0 0.0
        %6383 = vmatpush1.xpose.msra.mxu0 0.0
        %6384 = vmatprep.subr.mxu0 0.0
        %6385 = vmatpush1.xpose.msra.mxu0 0.0
        %6386 = vmatprep.subr.mxu0 0.0
        %6387 = vmatpush1.xpose.msra.mxu0 0.0
        %6388 = vmatprep.subr.mxu0 0.0
        %6389 = vmatpush1.xpose.msra.mxu0 0.0
        %6390 = vmatprep.subr.mxu0 0.0
        %6391 = vmatpush1.xpose.msra.mxu0 0.0
        %6392 = vmatprep.subr.mxu0 0.0
        %6393 = vmatpush1.xpose.msra.mxu0 0.0
        %6394 = vmatprep.subr.mxu0 0.0
        %6395 = vmatpush1.xpose.msra.mxu0 0.0
        %6396 = vmatprep.subr.mxu0 0.0
        %6397 = vmatpush1.xpose.msra.mxu0 0.0
        %6398 = vmatprep.subr.mxu0 0.0
        %6399 = vmatpush1.xpose.msra.mxu0 0.0
        %6400 = vmatprep.subr.mxu0 0.0
        %6401 = vmatpush1.xpose.msra.mxu0 0.0
        %6402 = vmatprep.subr.mxu0 0.0
        %6403 = vmatpush1.xpose.msra.mxu0 0.0
        %6404 = vmatprep.subr.mxu0 0.0
        %6405 = vmatpush1.xpose.msra.mxu0 0.0
        %6406 = vmatprep.subr.mxu0 0.0
        %6407 = vmatpush1.xpose.msra.mxu0 0.0
        %6408 = vmatprep.subr.mxu0 0.0
        %6409 = vmatpush1.xpose.msra.mxu0 0.0
        %6410 = vmatprep.subr.mxu0 0.0
        %6411 = vmatpush1.xpose.msra.mxu0 0.0
        %6412 = vmatprep.mubr.f32.mxu0 0.0
        %6413 = vmatmul.mubr.f32.gmra.mrb[0].mxu0 %v6340
        %v6414 = vpop.f32.mrb[0].mxu0
        %v6415 = vadd.f32 0.0, %v6414
        %v6416 = vpop.f32.mrb[0].mxu0
        %6417 = vmatprep.mubr.f32.mxu0 0.0
        %6418 = vmatmul.mubr.f32.gmra.mrb[0].mxu0 %v6342
        %v6419 = vpop.f32.mrb[0].mxu0
        %v6420 = vadd.f32 0.0, %v6419
        %v6421 = vpop.f32.mrb[0].mxu0
        %6422 = vdwg.mxu0
        %6423 = vrot.lane.b32.xlu0 %v5418, 120
        %v6424 = vpop.permute.xlu0 %6423
        %6425 = vrot.lane.b32.xlu0 %v5423, 120
        %v6426 = vpop.permute.xlu0 %6425
        %6427 = vrot.lane.b32.xlu0 %v5418, 88
        %v6428 = vpop.permute.xlu0 %6427
        %6429 = vrot.lane.b32.xlu0 %v5423, 88
        %v6430 = vpop.permute.xlu0 %6429
        %v6431 = vsel %vm796, %v6424, 0
        %v6433 = vsel %vm796, %v6426, 0
        %v6435 = vsel %vm796, %v6428, 0
        %v6437 = vsel %vm796, %v6430, 0
        %6439 = vmatprep.subr.mxu0 0.0
        %6440 = vmatpush1.xpose.msra.mxu0 %v6435
        %6441 = vmatprep.subr.mxu0 0.0
        %6442 = vmatpush1.xpose.msra.mxu0 %v6437
        %6443 = vmatprep.subr.mxu0 0.0
        %6444 = vmatpush1.xpose.msra.mxu0 0.0
        %6445 = vmatprep.subr.mxu0 0.0
        %6446 = vmatpush1.xpose.msra.mxu0 0.0
        %6447 = vmatprep.subr.mxu0 0.0
        %6448 = vmatpush1.xpose.msra.mxu0 0.0
        %6449 = vmatprep.subr.mxu0 0.0
        %6450 = vmatpush1.xpose.msra.mxu0 0.0
        %6451 = vmatprep.subr.mxu0 0.0
        %6452 = vmatpush1.xpose.msra.mxu0 0.0
        %6453 = vmatprep.subr.mxu0 0.0
        %6454 = vmatpush1.xpose.msra.mxu0 0.0
        %6455 = vmatprep.subr.mxu0 0.0
        %6456 = vmatpush1.xpose.msra.mxu0 0.0
        %6457 = vmatprep.subr.mxu0 0.0
        %6458 = vmatpush1.xpose.msra.mxu0 0.0
        %6459 = vmatprep.subr.mxu0 0.0
        %6460 = vmatpush1.xpose.msra.mxu0 0.0
        %6461 = vmatprep.subr.mxu0 0.0
        %6462 = vmatpush1.xpose.msra.mxu0 0.0
        %6463 = vmatprep.subr.mxu0 0.0
        %6464 = vmatpush1.xpose.msra.mxu0 0.0
        %6465 = vmatprep.subr.mxu0 0.0
        %6466 = vmatpush1.xpose.msra.mxu0 0.0
        %6467 = vmatprep.subr.mxu0 0.0
        %6468 = vmatpush1.xpose.msra.mxu0 0.0
        %6469 = vmatprep.subr.mxu0 0.0
        %6470 = vmatpush1.xpose.msra.mxu0 0.0
        %6471 = vmatprep.subr.mxu0 0.0
        %6472 = vmatpush1.xpose.msra.mxu0 0.0
        %6473 = vmatprep.subr.mxu0 0.0
        %6474 = vmatpush1.xpose.msra.mxu0 0.0
        %6475 = vmatprep.subr.mxu0 0.0
        %6476 = vmatpush1.xpose.msra.mxu0 0.0
        %6477 = vmatprep.subr.mxu0 0.0
        %6478 = vmatpush1.xpose.msra.mxu0 0.0
        %6479 = vmatprep.subr.mxu0 0.0
        %6480 = vmatpush1.xpose.msra.mxu0 0.0
        %6481 = vmatprep.subr.mxu0 0.0
        %6482 = vmatpush1.xpose.msra.mxu0 0.0
        %6483 = vmatprep.subr.mxu0 0.0
        %6484 = vmatpush1.xpose.msra.mxu0 0.0
        %6485 = vmatprep.subr.mxu0 0.0
        %6486 = vmatpush1.xpose.msra.mxu0 0.0
        %6487 = vmatprep.subr.mxu0 0.0
        %6488 = vmatpush1.xpose.msra.mxu0 0.0
        %6489 = vmatprep.subr.mxu0 0.0
        %6490 = vmatpush1.xpose.msra.mxu0 0.0
        %6491 = vmatprep.subr.mxu0 0.0
        %6492 = vmatpush1.xpose.msra.mxu0 0.0
        %6493 = vmatprep.subr.mxu0 0.0
        %6494 = vmatpush1.xpose.msra.mxu0 0.0
        %6495 = vmatprep.subr.mxu0 0.0
        %6496 = vmatpush1.xpose.msra.mxu0 0.0
        %6497 = vmatprep.subr.mxu0 0.0
        %6498 = vmatpush1.xpose.msra.mxu0 0.0
        %6499 = vmatprep.subr.mxu0 0.0
        %6500 = vmatpush1.xpose.msra.mxu0 0.0
        %6501 = vmatprep.subr.mxu0 0.0
        %6502 = vmatpush1.xpose.msra.mxu0 0.0
        %6503 = vmatprep.mubr.f32.mxu0 0.0
        %6504 = vmatmul.mubr.f32.gmra.mrb[0].mxu0 %v6431
        %v6505 = vpop.f32.mrb[0].mxu0
        %v6506 = vadd.f32 0.0, %v6505
        %v6507 = vpop.f32.mrb[0].mxu0
        %6508 = vmatprep.mubr.f32.mxu0 0.0
        %6509 = vmatmul.mubr.f32.gmra.mrb[0].mxu0 %v6433
        %v6510 = vpop.f32.mrb[0].mxu0
        %v6511 = vadd.f32 0.0, %v6510
        %v6512 = vpop.f32.mrb[0].mxu0
        %6513 = vdwg.mxu0
        %6514 = vrot.lane.b32.xlu0 %v5428, 120
        %v6515 = vpop.permute.xlu0 %6514
        %6516 = vrot.lane.b32.xlu0 %v5433, 120
        %v6517 = vpop.permute.xlu0 %6516
        %6518 = vrot.lane.b32.xlu0 %v5428, 88
        %v6519 = vpop.permute.xlu0 %6518
        %6520 = vrot.lane.b32.xlu0 %v5433, 88
        %v6521 = vpop.permute.xlu0 %6520
        %v6522 = vsel %vm796, %v6515, 0
        %v6524 = vsel %vm796, %v6517, 0
        %v6526 = vsel %vm796, %v6519, 0
        %v6528 = vsel %vm796, %v6521, 0
        %6530 = vmatprep.subr.mxu0 0.0
        %6531 = vmatpush1.xpose.msra.mxu0 %v6526
        %6532 = vmatprep.subr.mxu0 0.0
        %6533 = vmatpush1.xpose.msra.mxu0 %v6528
        %6534 = vmatprep.subr.mxu0 0.0
        %6535 = vmatpush1.xpose.msra.mxu0 0.0
        %6536 = vmatprep.subr.mxu0 0.0
        %6537 = vmatpush1.xpose.msra.mxu0 0.0
        %6538 = vmatprep.subr.mxu0 0.0
        %6539 = vmatpush1.xpose.msra.mxu0 0.0
        %6540 = vmatprep.subr.mxu0 0.0
        %6541 = vmatpush1.xpose.msra.mxu0 0.0
        %6542 = vmatprep.subr.mxu0 0.0
        %6543 = vmatpush1.xpose.msra.mxu0 0.0
        %6544 = vmatprep.subr.mxu0 0.0
        %6545 = vmatpush1.xpose.msra.mxu0 0.0
        %6546 = vmatprep.subr.mxu0 0.0
        %6547 = vmatpush1.xpose.msra.mxu0 0.0
        %6548 = vmatprep.subr.mxu0 0.0
        %6549 = vmatpush1.xpose.msra.mxu0 0.0
        %6550 = vmatprep.subr.mxu0 0.0
        %6551 = vmatpush1.xpose.msra.mxu0 0.0
        %6552 = vmatprep.subr.mxu0 0.0
        %6553 = vmatpush1.xpose.msra.mxu0 0.0
        %6554 = vmatprep.subr.mxu0 0.0
        %6555 = vmatpush1.xpose.msra.mxu0 0.0
        %6556 = vmatprep.subr.mxu0 0.0
        %6557 = vmatpush1.xpose.msra.mxu0 0.0
        %6558 = vmatprep.subr.mxu0 0.0
        %6559 = vmatpush1.xpose.msra.mxu0 0.0
        %6560 = vmatprep.subr.mxu0 0.0
        %6561 = vmatpush1.xpose.msra.mxu0 0.0
        %6562 = vmatprep.subr.mxu0 0.0
        %6563 = vmatpush1.xpose.msra.mxu0 0.0
        %6564 = vmatprep.subr.mxu0 0.0
        %6565 = vmatpush1.xpose.msra.mxu0 0.0
        %6566 = vmatprep.subr.mxu0 0.0
        %6567 = vmatpush1.xpose.msra.mxu0 0.0
        %6568 = vmatprep.subr.mxu0 0.0
        %6569 = vmatpush1.xpose.msra.mxu0 0.0
        %6570 = vmatprep.subr.mxu0 0.0
        %6571 = vmatpush1.xpose.msra.mxu0 0.0
        %6572 = vmatprep.subr.mxu0 0.0
        %6573 = vmatpush1.xpose.msra.mxu0 0.0
        %6574 = vmatprep.subr.mxu0 0.0
        %6575 = vmatpush1.xpose.msra.mxu0 0.0
        %6576 = vmatprep.subr.mxu0 0.0
        %6577 = vmatpush1.xpose.msra.mxu0 0.0
        %6578 = vmatprep.subr.mxu0 0.0
        %6579 = vmatpush1.xpose.msra.mxu0 0.0
        %6580 = vmatprep.subr.mxu0 0.0
        %6581 = vmatpush1.xpose.msra.mxu0 0.0
        %6582 = vmatprep.subr.mxu0 0.0
        %6583 = vmatpush1.xpose.msra.mxu0 0.0
        %6584 = vmatprep.subr.mxu0 0.0
        %6585 = vmatpush1.xpose.msra.mxu0 0.0
        %6586 = vmatprep.subr.mxu0 0.0
        %6587 = vmatpush1.xpose.msra.mxu0 0.0
        %6588 = vmatprep.subr.mxu0 0.0
        %6589 = vmatpush1.xpose.msra.mxu0 0.0
        %6590 = vmatprep.subr.mxu0 0.0
        %6591 = vmatpush1.xpose.msra.mxu0 0.0
        %6592 = vmatprep.subr.mxu0 0.0
        %6593 = vmatpush1.xpose.msra.mxu0 0.0
        %6594 = vmatprep.mubr.f32.mxu0 0.0
        %6595 = vmatmul.mubr.f32.gmra.mrb[0].mxu0 %v6522
        %v6596 = vpop.f32.mrb[0].mxu0
        %v6597 = vadd.f32 0.0, %v6596
        %v6598 = vpop.f32.mrb[0].mxu0
        %6599 = vmatprep.mubr.f32.mxu0 0.0
        %6600 = vmatmul.mubr.f32.gmra.mrb[0].mxu0 %v6524
        %v6601 = vpop.f32.mrb[0].mxu0
        %v6602 = vadd.f32 0.0, %v6601
        %v6603 = vpop.f32.mrb[0].mxu0
        %6604 = vdwg.mxu0
        %v6605 = vmul.f32 %v6324, 0.35355338
        %v6606 = vmul.f32 %v6329, 0.35355338
        %v6607 = vmul.f32 %v6415, 0.35355338
        %v6608 = vmul.f32 %v6420, 0.35355338
        %v6609 = vmul.f32 %v6506, 0.35355338
        %v6610 = vmul.f32 %v6511, 0.35355338
        %v6611 = vmul.f32 %v6597, 0.35355338
        %v6612 = vmul.f32 %v6602, 0.35355338
        %v6613 = vsel %vm1155, %v6605, -inf
        %6614 = vmax.xlane.f32.xlu0 %v6613
        %v6615 = vpop.xlane.xlu0 %6614
        %v6616 = vsel %vm1155, %v6606, -inf
        %6617 = vmax.xlane.f32.xlu0 %v6616
        %v6618 = vpop.xlane.xlu0 %6617
        %v6619 = vsel %vm1155, %v6607, -inf
        %6620 = vmax.xlane.f32.xlu0 %v6619
        %v6621 = vpop.xlane.xlu0 %6620
        %v6622 = vsel %vm1155, %v6608, -inf
        %6623 = vmax.xlane.f32.xlu0 %v6622
        %v6624 = vpop.xlane.xlu0 %6623
        %v6625 = vsel %vm1155, %v6609, -inf
        %6626 = vmax.xlane.f32.xlu0 %v6625
        %v6627 = vpop.xlane.xlu0 %6626
        %v6628 = vsel %vm1155, %v6610, -inf
        %6629 = vmax.xlane.f32.xlu0 %v6628
        %v6630 = vpop.xlane.xlu0 %6629
        %v6631 = vsel %vm1155, %v6611, -inf
        %6632 = vmax.xlane.f32.xlu0 %v6631
        %v6633 = vpop.xlane.xlu0 %6632
        %v6634 = vsel %vm1155, %v6612, -inf
        %6635 = vmax.xlane.f32.xlu0 %v6634
        %v6636 = vpop.xlane.xlu0 %6635
        %v6637 = vsub.f32 %v6605, %v6615
        %v6638 = vsub.f32 %v6606, %v6618
        %v6639 = vsub.f32 %v6607, %v6621
        %v6640 = vsub.f32 %v6608, %v6624
        %v6641 = vsub.f32 %v6609, %v6627
        %v6642 = vsub.f32 %v6610, %v6630
        %v6643 = vsub.f32 %v6611, %v6633
        %v6644 = vsub.f32 %v6612, %v6636
        %v6645 = vmul.f32 %v6637, 1.442695
        %v6646 = vpow.pop %v6645
        %v6647 = vmul.f32 %v6638, 1.442695
        %v6648 = vpow.pop %v6647
        %v6649 = vmul.f32 %v6639, 1.442695
        %v6650 = vpow.pop %v6649
        %v6651 = vmul.f32 %v6640, 1.442695
        %v6652 = vpow.pop %v6651
        %v6653 = vmul.f32 %v6641, 1.442695
        %v6654 = vpow.pop %v6653
        %v6655 = vmul.f32 %v6642, 1.442695
        %v6656 = vpow.pop %v6655
        %v6657 = vmul.f32 %v6643, 1.442695
        %v6658 = vpow.pop %v6657
        %v6659 = vmul.f32 %v6644, 1.442695
        %v6660 = vpow.pop %v6659
        %v6661 = vsel %vm1155, %v6646, 0.0
        %6662 = vadd.xlane.f32.xlu0 %v6661
        %v6663 = vpop.xlane.xlu0 %6662
        %v6664 = vsel %vm1155, %v6648, 0.0
        %6665 = vadd.xlane.f32.xlu0 %v6664
        %v6666 = vpop.xlane.xlu0 %6665
        %v6667 = vsel %vm1155, %v6650, 0.0
        %6668 = vadd.xlane.f32.xlu0 %v6667
        %v6669 = vpop.xlane.xlu0 %6668
        %v6670 = vsel %vm1155, %v6652, 0.0
        %6671 = vadd.xlane.f32.xlu0 %v6670
        %v6672 = vpop.xlane.xlu0 %6671
        %v6673 = vsel %vm1155, %v6654, 0.0
        %6674 = vadd.xlane.f32.xlu0 %v6673
        %v6675 = vpop.xlane.xlu0 %6674
        %v6676 = vsel %vm1155, %v6656, 0.0
        %6677 = vadd.xlane.f32.xlu0 %v6676
        %v6678 = vpop.xlane.xlu0 %6677
        %v6679 = vsel %vm1155, %v6658, 0.0
        %6680 = vadd.xlane.f32.xlu0 %v6679
        %v6681 = vpop.xlane.xlu0 %6680
        %v6682 = vsel %vm1155, %v6660, 0.0
        %6683 = vadd.xlane.f32.xlu0 %v6682
        %v6684 = vpop.xlane.xlu0 %6683
        %v6685 = vrcp.pop %v6663
        %v6686 = vmul.f32 %v6646, %v6685
        %v6687 = vrcp.pop %v6666
        %v6688 = vmul.f32 %v6648, %v6687
        %v6689 = vrcp.pop %v6669
        %v6690 = vmul.f32 %v6650, %v6689
        %v6691 = vrcp.pop %v6672
        %v6692 = vmul.f32 %v6652, %v6691
        %v6693 = vrcp.pop %v6675
        %v6694 = vmul.f32 %v6654, %v6693
        %v6695 = vrcp.pop %v6678
        %v6696 = vmul.f32 %v6656, %v6695
        %v6697 = vrcp.pop %v6681
        %v6698 = vmul.f32 %v6658, %v6697
        %v6699 = vrcp.pop %v6684
        %v6700 = vmul.f32 %v6660, %v6699
        %6701 = vrot.lane.b32.xlu0 %v5398, 56
        %v6702 = vpop.permute.xlu0 %6701
        %6703 = vrot.lane.b32.xlu0 %v5403, 56
        %v6704 = vpop.permute.xlu0 %6703
        %v6708 = vsel %vm1155, %v6686, 0
        %v6711 = vsel %vm1155, %v6688, 0
        %6713 = vmatprep.subr.mxu0 0.0
        %6714 = vmatpush1.msra.mxu0 %v6702
        %6715 = vmatprep.subr.mxu0 0.0
        %6716 = vmatpush1.msra.mxu0 %v6704
        %6717 = vmatprep.subr.mxu0 0.0
        %6718 = vmatpush1.msra.mxu0 0.0
        %6719 = vmatprep.subr.mxu0 0.0
        %6720 = vmatpush1.msra.mxu0 0.0
        %6721 = vmatprep.subr.mxu0 0.0
        %6722 = vmatpush1.msra.mxu0 0.0
        %6723 = vmatprep.subr.mxu0 0.0
        %6724 = vmatpush1.msra.mxu0 0.0
        %6725 = vmatprep.subr.mxu0 0.0
        %6726 = vmatpush1.msra.mxu0 0.0
        %6727 = vmatprep.subr.mxu0 0.0
        %6728 = vmatpush1.msra.mxu0 0.0
        %6729 = vmatprep.subr.mxu0 0.0
        %6730 = vmatpush1.msra.mxu0 0.0
        %6731 = vmatprep.subr.mxu0 0.0
        %6732 = vmatpush1.msra.mxu0 0.0
        %6733 = vmatprep.subr.mxu0 0.0
        %6734 = vmatpush1.msra.mxu0 0.0
        %6735 = vmatprep.subr.mxu0 0.0
        %6736 = vmatpush1.msra.mxu0 0.0
        %6737 = vmatprep.subr.mxu0 0.0
        %6738 = vmatpush1.msra.mxu0 0.0
        %6739 = vmatprep.subr.mxu0 0.0
        %6740 = vmatpush1.msra.mxu0 0.0
        %6741 = vmatprep.subr.mxu0 0.0
        %6742 = vmatpush1.msra.mxu0 0.0
        %6743 = vmatprep.subr.mxu0 0.0
        %6744 = vmatpush1.msra.mxu0 0.0
        %6745 = vmatprep.subr.mxu0 0.0
        %6746 = vmatpush1.msra.mxu0 0.0
        %6747 = vmatprep.subr.mxu0 0.0
        %6748 = vmatpush1.msra.mxu0 0.0
        %6749 = vmatprep.subr.mxu0 0.0
        %6750 = vmatpush1.msra.mxu0 0.0
        %6751 = vmatprep.subr.mxu0 0.0
        %6752 = vmatpush1.msra.mxu0 0.0
        %6753 = vmatprep.subr.mxu0 0.0
        %6754 = vmatpush1.msra.mxu0 0.0
        %6755 = vmatprep.subr.mxu0 0.0
        %6756 = vmatpush1.msra.mxu0 0.0
        %6757 = vmatprep.subr.mxu0 0.0
        %6758 = vmatpush1.msra.mxu0 0.0
        %6759 = vmatprep.subr.mxu0 0.0
        %6760 = vmatpush1.msra.mxu0 0.0
        %6761 = vmatprep.subr.mxu0 0.0
        %6762 = vmatpush1.msra.mxu0 0.0
        %6763 = vmatprep.subr.mxu0 0.0
        %6764 = vmatpush1.msra.mxu0 0.0
        %6765 = vmatprep.subr.mxu0 0.0
        %6766 = vmatpush1.msra.mxu0 0.0
        %6767 = vmatprep.subr.mxu0 0.0
        %6768 = vmatpush1.msra.mxu0 0.0
        %6769 = vmatprep.subr.mxu0 0.0
        %6770 = vmatpush1.msra.mxu0 0.0
        %6771 = vmatprep.subr.mxu0 0.0
        %6772 = vmatpush1.msra.mxu0 0.0
        %6773 = vmatprep.subr.mxu0 0.0
        %6774 = vmatpush1.msra.mxu0 0.0
        %6775 = vmatprep.subr.mxu0 0.0
        %6776 = vmatpush1.msra.mxu0 0.0
        %6777 = vmatprep.mubr.f32.mxu0 0.0
        %6778 = vmatmul.mubr.f32.gmra.mrb[0].mxu0 %v6708
        %v6779 = vpop.f32.mrb[0].mxu0
        %v6780 = vadd.f32 0.0, %v6779
        %v6781 = vpop.f32.mrb[0].mxu0
        %6782 = vmatprep.mubr.f32.mxu0 0.0
        %6783 = vmatmul.mubr.f32.gmra.mrb[0].mxu0 %v6711
        %v6784 = vpop.f32.mrb[0].mxu0
        %v6785 = vadd.f32 0.0, %v6784
        %v6786 = vpop.f32.mrb[0].mxu0
        %6787 = vdwg.mxu0
        %6788 = vrot.lane.b32.xlu0 %v5408, 56
        %v6789 = vpop.permute.xlu0 %6788
        %6790 = vrot.lane.b32.xlu0 %v5413, 56
        %v6791 = vpop.permute.xlu0 %6790
        %v6795 = vsel %vm1155, %v6690, 0
        %v6798 = vsel %vm1155, %v6692, 0
        %6800 = vmatprep.subr.mxu0 0.0
        %6801 = vmatpush1.msra.mxu0 %v6789
        %6802 = vmatprep.subr.mxu0 0.0
        %6803 = vmatpush1.msra.mxu0 %v6791
        %6804 = vmatprep.subr.mxu0 0.0
        %6805 = vmatpush1.msra.mxu0 0.0
        %6806 = vmatprep.subr.mxu0 0.0
        %6807 = vmatpush1.msra.mxu0 0.0
        %6808 = vmatprep.subr.mxu0 0.0
        %6809 = vmatpush1.msra.mxu0 0.0
        %6810 = vmatprep.subr.mxu0 0.0
        %6811 = vmatpush1.msra.mxu0 0.0
        %6812 = vmatprep.subr.mxu0 0.0
        %6813 = vmatpush1.msra.mxu0 0.0
        %6814 = vmatprep.subr.mxu0 0.0
        %6815 = vmatpush1.msra.mxu0 0.0
        %6816 = vmatprep.subr.mxu0 0.0
        %6817 = vmatpush1.msra.mxu0 0.0
        %6818 = vmatprep.subr.mxu0 0.0
        %6819 = vmatpush1.msra.mxu0 0.0
        %6820 = vmatprep.subr.mxu0 0.0
        %6821 = vmatpush1.msra.mxu0 0.0
        %6822 = vmatprep.subr.mxu0 0.0
        %6823 = vmatpush1.msra.mxu0 0.0
        %6824 = vmatprep.subr.mxu0 0.0
        %6825 = vmatpush1.msra.mxu0 0.0
        %6826 = vmatprep.subr.mxu0 0.0
        %6827 = vmatpush1.msra.mxu0 0.0
        %6828 = vmatprep.subr.mxu0 0.0
        %6829 = vmatpush1.msra.mxu0 0.0
        %6830 = vmatprep.subr.mxu0 0.0
        %6831 = vmatpush1.msra.mxu0 0.0
        %6832 = vmatprep.subr.mxu0 0.0
        %6833 = vmatpush1.msra.mxu0 0.0
        %6834 = vmatprep.subr.mxu0 0.0
        %6835 = vmatpush1.msra.mxu0 0.0
        %6836 = vmatprep.subr.mxu0 0.0
        %6837 = vmatpush1.msra.mxu0 0.0
        %6838 = vmatprep.subr.mxu0 0.0
        %6839 = vmatpush1.msra.mxu0 0.0
        %6840 = vmatprep.subr.mxu0 0.0
        %6841 = vmatpush1.msra.mxu0 0.0
        %6842 = vmatprep.subr.mxu0 0.0
        %6843 = vmatpush1.msra.mxu0 0.0
        %6844 = vmatprep.subr.mxu0 0.0
        %6845 = vmatpush1.msra.mxu0 0.0
        %6846 = vmatprep.subr.mxu0 0.0
        %6847 = vmatpush1.msra.mxu0 0.0
        %6848 = vmatprep.subr.mxu0 0.0
        %6849 = vmatpush1.msra.mxu0 0.0
        %6850 = vmatprep.subr.mxu0 0.0
        %6851 = vmatpush1.msra.mxu0 0.0
        %6852 = vmatprep.subr.mxu0 0.0
        %6853 = vmatpush1.msra.mxu0 0.0
        %6854 = vmatprep.subr.mxu0 0.0
        %6855 = vmatpush1.msra.mxu0 0.0
        %6856 = vmatprep.subr.mxu0 0.0
        %6857 = vmatpush1.msra.mxu0 0.0
        %6858 = vmatprep.subr.mxu0 0.0
        %6859 = vmatpush1.msra.mxu0 0.0
        %6860 = vmatprep.subr.mxu0 0.0
        %6861 = vmatpush1.msra.mxu0 0.0
        %6862 = vmatprep.subr.mxu0 0.0
        %6863 = vmatpush1.msra.mxu0 0.0
        %6864 = vmatprep.mubr.f32.mxu0 0.0
        %6865 = vmatmul.mubr.f32.gmra.mrb[0].mxu0 %v6795
        %v6866 = vpop.f32.mrb[0].mxu0
        %v6867 = vadd.f32 0.0, %v6866
        %v6868 = vpop.f32.mrb[0].mxu0
        %6869 = vmatprep.mubr.f32.mxu0 0.0
        %6870 = vmatmul.mubr.f32.gmra.mrb[0].mxu0 %v6798
        %v6871 = vpop.f32.mrb[0].mxu0
        %v6872 = vadd.f32 0.0, %v6871
        %v6873 = vpop.f32.mrb[0].mxu0
        %6874 = vdwg.mxu0
        %6875 = vrot.lane.b32.xlu0 %v5418, 56
        %v6876 = vpop.permute.xlu0 %6875
        %6877 = vrot.lane.b32.xlu0 %v5423, 56
        %v6878 = vpop.permute.xlu0 %6877
        %v6882 = vsel %vm1155, %v6694, 0
        %v6885 = vsel %vm1155, %v6696, 0
        %6887 = vmatprep.subr.mxu0 0.0
        %6888 = vmatpush1.msra.mxu0 %v6876
        %6889 = vmatprep.subr.mxu0 0.0
        %6890 = vmatpush1.msra.mxu0 %v6878
        %6891 = vmatprep.subr.mxu0 0.0
        %6892 = vmatpush1.msra.mxu0 0.0
        %6893 = vmatprep.subr.mxu0 0.0
        %6894 = vmatpush1.msra.mxu0 0.0
        %6895 = vmatprep.subr.mxu0 0.0
        %6896 = vmatpush1.msra.mxu0 0.0
        %6897 = vmatprep.subr.mxu0 0.0
        %6898 = vmatpush1.msra.mxu0 0.0
        %6899 = vmatprep.subr.mxu0 0.0
        %6900 = vmatpush1.msra.mxu0 0.0
        %6901 = vmatprep.subr.mxu0 0.0
        %6902 = vmatpush1.msra.mxu0 0.0
        %6903 = vmatprep.subr.mxu0 0.0
        %6904 = vmatpush1.msra.mxu0 0.0
        %6905 = vmatprep.subr.mxu0 0.0
        %6906 = vmatpush1.msra.mxu0 0.0
        %6907 = vmatprep.subr.mxu0 0.0
        %6908 = vmatpush1.msra.mxu0 0.0
        %6909 = vmatprep.subr.mxu0 0.0
        %6910 = vmatpush1.msra.mxu0 0.0
        %6911 = vmatprep.subr.mxu0 0.0
        %6912 = vmatpush1.msra.mxu0 0.0
        %6913 = vmatprep.subr.mxu0 0.0
        %6914 = vmatpush1.msra.mxu0 0.0
        %6915 = vmatprep.subr.mxu0 0.0
        %6916 = vmatpush1.msra.mxu0 0.0
        %6917 = vmatprep.subr.mxu0 0.0
        %6918 = vmatpush1.msra.mxu0 0.0
        %6919 = vmatprep.subr.mxu0 0.0
        %6920 = vmatpush1.msra.mxu0 0.0
        %6921 = vmatprep.subr.mxu0 0.0
        %6922 = vmatpush1.msra.mxu0 0.0
        %6923 = vmatprep.subr.mxu0 0.0
        %6924 = vmatpush1.msra.mxu0 0.0
        %6925 = vmatprep.subr.mxu0 0.0
        %6926 = vmatpush1.msra.mxu0 0.0
        %6927 = vmatprep.subr.mxu0 0.0
        %6928 = vmatpush1.msra.mxu0 0.0
        %6929 = vmatprep.subr.mxu0 0.0
        %6930 = vmatpush1.msra.mxu0 0.0
        %6931 = vmatprep.subr.mxu0 0.0
        %6932 = vmatpush1.msra.mxu0 0.0
        %6933 = vmatprep.subr.mxu0 0.0
        %6934 = vmatpush1.msra.mxu0 0.0
        %6935 = vmatprep.subr.mxu0 0.0
        %6936 = vmatpush1.msra.mxu0 0.0
        %6937 = vmatprep.subr.mxu0 0.0
        %6938 = vmatpush1.msra.mxu0 0.0
        %6939 = vmatprep.subr.mxu0 0.0
        %6940 = vmatpush1.msra.mxu0 0.0
        %6941 = vmatprep.subr.mxu0 0.0
        %6942 = vmatpush1.msra.mxu0 0.0
        %6943 = vmatprep.subr.mxu0 0.0
        %6944 = vmatpush1.msra.mxu0 0.0
        %6945 = vmatprep.subr.mxu0 0.0
        %6946 = vmatpush1.msra.mxu0 0.0
        %6947 = vmatprep.subr.mxu0 0.0
        %6948 = vmatpush1.msra.mxu0 0.0
        %6949 = vmatprep.subr.mxu0 0.0
        %6950 = vmatpush1.msra.mxu0 0.0
        %6951 = vmatprep.mubr.f32.mxu0 0.0
        %6952 = vmatmul.mubr.f32.gmra.mrb[0].mxu0 %v6882
        %v6953 = vpop.f32.mrb[0].mxu0
        %v6954 = vadd.f32 0.0, %v6953
        %v6955 = vpop.f32.mrb[0].mxu0
        %6956 = vmatprep.mubr.f32.mxu0 0.0
        %6957 = vmatmul.mubr.f32.gmra.mrb[0].mxu0 %v6885
        %v6958 = vpop.f32.mrb[0].mxu0
        %v6959 = vadd.f32 0.0, %v6958
        %v6960 = vpop.f32.mrb[0].mxu0
        %6961 = vdwg.mxu0
        %6962 = vrot.lane.b32.xlu0 %v5428, 56
        %v6963 = vpop.permute.xlu0 %6962
        %6964 = vrot.lane.b32.xlu0 %v5433, 56
        %v6965 = vpop.permute.xlu0 %6964
        %v6969 = vsel %vm1155, %v6698, 0
        %v6972 = vsel %vm1155, %v6700, 0
        %6974 = vmatprep.subr.mxu0 0.0
        %6975 = vmatpush1.msra.mxu0 %v6963
        %6976 = vmatprep.subr.mxu0 0.0
        %6977 = vmatpush1.msra.mxu0 %v6965
        %6978 = vmatprep.subr.mxu0 0.0
        %6979 = vmatpush1.msra.mxu0 0.0
        %6980 = vmatprep.subr.mxu0 0.0
        %6981 = vmatpush1.msra.mxu0 0.0
        %6982 = vmatprep.subr.mxu0 0.0
        %6983 = vmatpush1.msra.mxu0 0.0
        %6984 = vmatprep.subr.mxu0 0.0
        %6985 = vmatpush1.msra.mxu0 0.0
        %6986 = vmatprep.subr.mxu0 0.0
        %6987 = vmatpush1.msra.mxu0 0.0
        %6988 = vmatprep.subr.mxu0 0.0
        %6989 = vmatpush1.msra.mxu0 0.0
        %6990 = vmatprep.subr.mxu0 0.0
        %6991 = vmatpush1.msra.mxu0 0.0
        %6992 = vmatprep.subr.mxu0 0.0
        %6993 = vmatpush1.msra.mxu0 0.0
        %6994 = vmatprep.subr.mxu0 0.0
        %6995 = vmatpush1.msra.mxu0 0.0
        %6996 = vmatprep.subr.mxu0 0.0
        %6997 = vmatpush1.msra.mxu0 0.0
        %6998 = vmatprep.subr.mxu0 0.0
        %6999 = vmatpush1.msra.mxu0 0.0
        %7000 = vmatprep.subr.mxu0 0.0
        %7001 = vmatpush1.msra.mxu0 0.0
        %7002 = vmatprep.subr.mxu0 0.0
        %7003 = vmatpush1.msra.mxu0 0.0
        %7004 = vmatprep.subr.mxu0 0.0
        %7005 = vmatpush1.msra.mxu0 0.0
        %7006 = vmatprep.subr.mxu0 0.0
        %7007 = vmatpush1.msra.mxu0 0.0
        %7008 = vmatprep.subr.mxu0 0.0
        %7009 = vmatpush1.msra.mxu0 0.0
        %7010 = vmatprep.subr.mxu0 0.0
        %7011 = vmatpush1.msra.mxu0 0.0
        %7012 = vmatprep.subr.mxu0 0.0
        %7013 = vmatpush1.msra.mxu0 0.0
        %7014 = vmatprep.subr.mxu0 0.0
        %7015 = vmatpush1.msra.mxu0 0.0
        %7016 = vmatprep.subr.mxu0 0.0
        %7017 = vmatpush1.msra.mxu0 0.0
        %7018 = vmatprep.subr.mxu0 0.0
        %7019 = vmatpush1.msra.mxu0 0.0
        %7020 = vmatprep.subr.mxu0 0.0
        %7021 = vmatpush1.msra.mxu0 0.0
        %7022 = vmatprep.subr.mxu0 0.0
        %7023 = vmatpush1.msra.mxu0 0.0
        %7024 = vmatprep.subr.mxu0 0.0
        %7025 = vmatpush1.msra.mxu0 0.0
        %7026 = vmatprep.subr.mxu0 0.0
        %7027 = vmatpush1.msra.mxu0 0.0
        %7028 = vmatprep.subr.mxu0 0.0
        %7029 = vmatpush1.msra.mxu0 0.0
        %7030 = vmatprep.subr.mxu0 0.0
        %7031 = vmatpush1.msra.mxu0 0.0
        %7032 = vmatprep.subr.mxu0 0.0
        %7033 = vmatpush1.msra.mxu0 0.0
        %7034 = vmatprep.subr.mxu0 0.0
        %7035 = vmatpush1.msra.mxu0 0.0
        %7036 = vmatprep.subr.mxu0 0.0
        %7037 = vmatpush1.msra.mxu0 0.0
        %7038 = vmatprep.mubr.f32.mxu0 0.0
        %7039 = vmatmul.mubr.f32.gmra.mrb[0].mxu0 %v6969
        %v7040 = vpop.f32.mrb[0].mxu0
        %v7041 = vadd.f32 0.0, %v7040
        %v7042 = vpop.f32.mrb[0].mxu0
        %7043 = vmatprep.mubr.f32.mxu0 0.0
        %7044 = vmatmul.mubr.f32.gmra.mrb[0].mxu0 %v6972
        %v7045 = vpop.f32.mrb[0].mxu0
        %v7046 = vadd.f32 0.0, %v7045
        %v7047 = vpop.f32.mrb[0].mxu0
        %7048 = vdwg.mxu0
        %v7050 = vsel %vm796, %v6780, 0
        %v7053 = vsel %vm796, %v6785, 0
        %v7056 = vsel %vm796, %v6867, 0
        %v7059 = vsel %vm796, %v6872, 0
        %v7062 = vsel %vm796, %v6954, 0
        %v7065 = vsel %vm796, %v6959, 0
        %v7068 = vsel %vm796, %v7041, 0
        %v7071 = vsel %vm796, %v7046, 0
        %7073 = vmatprep.subr.mxu0 0.0
        %7074 = vmatpush1.msra.mxu0 %v5438
        %7075 = vmatprep.subr.mxu0 0.0
        %7076 = vmatpush1.msra.mxu0 0.0
        %7077 = vmatprep.subr.mxu0 0.0
        %7078 = vmatpush1.msra.mxu0 0.0
        %7079 = vmatprep.subr.mxu0 0.0
        %7080 = vmatpush1.msra.mxu0 0.0
        %7081 = vmatprep.subr.mxu0 0.0
        %7082 = vmatpush1.msra.mxu0 0.0
        %7083 = vmatprep.subr.mxu0 0.0
        %7084 = vmatpush1.msra.mxu0 0.0
        %7085 = vmatprep.subr.mxu0 0.0
        %7086 = vmatpush1.msra.mxu0 0.0
        %7087 = vmatprep.subr.mxu0 0.0
        %7088 = vmatpush1.msra.mxu0 0.0
        %7089 = vmatprep.subr.mxu0 0.0
        %7090 = vmatpush1.msra.mxu0 0.0
        %7091 = vmatprep.subr.mxu0 0.0
        %7092 = vmatpush1.msra.mxu0 0.0
        %7093 = vmatprep.subr.mxu0 0.0
        %7094 = vmatpush1.msra.mxu0 0.0
        %7095 = vmatprep.subr.mxu0 0.0
        %7096 = vmatpush1.msra.mxu0 0.0
        %7097 = vmatprep.subr.mxu0 0.0
        %7098 = vmatpush1.msra.mxu0 0.0
        %7099 = vmatprep.subr.mxu0 0.0
        %7100 = vmatpush1.msra.mxu0 0.0
        %7101 = vmatprep.subr.mxu0 0.0
        %7102 = vmatpush1.msra.mxu0 0.0
        %7103 = vmatprep.subr.mxu0 0.0
        %7104 = vmatpush1.msra.mxu0 0.0
        %7105 = vmatprep.subr.mxu0 0.0
        %7106 = vmatpush1.msra.mxu0 0.0
        %7107 = vmatprep.subr.mxu0 0.0
        %7108 = vmatpush1.msra.mxu0 0.0
        %7109 = vmatprep.subr.mxu0 0.0
        %7110 = vmatpush1.msra.mxu0 0.0
        %7111 = vmatprep.subr.mxu0 0.0
        %7112 = vmatpush1.msra.mxu0 0.0
        %7113 = vmatprep.subr.mxu0 0.0
        %7114 = vmatpush1.msra.mxu0 0.0
        %7115 = vmatprep.subr.mxu0 0.0
        %7116 = vmatpush1.msra.mxu0 0.0
        %7117 = vmatprep.subr.mxu0 0.0
        %7118 = vmatpush1.msra.mxu0 0.0
        %7119 = vmatprep.subr.mxu0 0.0
        %7120 = vmatpush1.msra.mxu0 0.0
        %7121 = vmatprep.subr.mxu0 0.0
        %7122 = vmatpush1.msra.mxu0 0.0
        %7123 = vmatprep.subr.mxu0 0.0
        %7124 = vmatpush1.msra.mxu0 0.0
        %7125 = vmatprep.subr.mxu0 0.0
        %7126 = vmatpush1.msra.mxu0 0.0
        %7127 = vmatprep.subr.mxu0 0.0
        %7128 = vmatpush1.msra.mxu0 0.0
        %7129 = vmatprep.subr.mxu0 0.0
        %7130 = vmatpush1.msra.mxu0 0.0
        %7131 = vmatprep.subr.mxu0 0.0
        %7132 = vmatpush1.msra.mxu0 0.0
        %7133 = vmatprep.subr.mxu0 0.0
        %7134 = vmatpush1.msra.mxu0 0.0
        %7135 = vmatprep.subr.mxu0 0.0
        %7136 = vmatpush1.msra.mxu0 0.0
        %7137 = vmatprep.mubr.f32.mxu0 0.0
        %7138 = vmatmul.mubr.f32.gmra.mrb[0].mxu0 %v7050
        %v7139 = vpop.f32.mrb[0].mxu0
        %v7140 = vadd.f32 0.0, %v7139
        %v7141 = vpop.f32.mrb[0].mxu0
        %7142 = vmatprep.mubr.f32.mxu0 0.0
        %7143 = vmatmul.mubr.f32.gmra.mrb[0].mxu0 %v7053
        %v7144 = vpop.f32.mrb[0].mxu0
        %v7145 = vadd.f32 0.0, %v7144
        %v7146 = vpop.f32.mrb[0].mxu0
        %7147 = vmatprep.mubr.f32.mxu0 0.0
        %7148 = vmatmul.mubr.f32.gmra.mrb[0].mxu0 %v7056
        %v7149 = vpop.f32.mrb[0].mxu0
        %v7150 = vadd.f32 0.0, %v7149
        %v7151 = vpop.f32.mrb[0].mxu0
        %7152 = vmatprep.mubr.f32.mxu0 0.0
        %7153 = vmatmul.mubr.f32.gmra.mrb[0].mxu0 %v7059
        %v7154 = vpop.f32.mrb[0].mxu0
        %v7155 = vadd.f32 0.0, %v7154
        %v7156 = vpop.f32.mrb[0].mxu0
        %7157 = vmatprep.mubr.f32.mxu0 0.0
        %7158 = vmatmul.mubr.f32.gmra.mrb[0].mxu0 %v7062
        %v7159 = vpop.f32.mrb[0].mxu0
        %v7160 = vadd.f32 0.0, %v7159
        %v7161 = vpop.f32.mrb[0].mxu0
        %7162 = vmatprep.mubr.f32.mxu0 0.0
        %7163 = vmatmul.mubr.f32.gmra.mrb[0].mxu0 %v7065
        %v7164 = vpop.f32.mrb[0].mxu0
        %v7165 = vadd.f32 0.0, %v7164
        %v7166 = vpop.f32.mrb[0].mxu0
        %7167 = vmatprep.mubr.f32.mxu0 0.0
        %7168 = vmatmul.mubr.f32.gmra.mrb[0].mxu0 %v7068
        %v7169 = vpop.f32.mrb[0].mxu0
        %v7170 = vadd.f32 0.0, %v7169
        %v7171 = vpop.f32.mrb[0].mxu0
        %7172 = vmatprep.mubr.f32.mxu0 0.0
        %7173 = vmatmul.mubr.f32.gmra.mrb[0].mxu0 %v7071
        %v7174 = vpop.f32.mrb[0].mxu0
        %v7175 = vadd.f32 0.0, %v7174
        %v7176 = vpop.f32.mrb[0].mxu0
        %7177 = vdwg.mxu0
        %v7179 = vsel %vm796, %v5972, 0
        %v7182 = vsel %vm796, %v5977, 0
        %v7185 = vsel %vm796, %v6059, 0
        %v7188 = vsel %vm796, %v6064, 0
        %v7191 = vsel %vm796, %v6146, 0
        %v7194 = vsel %vm796, %v6151, 0
        %v7197 = vsel %vm796, %v6233, 0
        %v7200 = vsel %vm796, %v6238, 0
        %7202 = vmatprep.subr.mxu0 0.0
        %7203 = vmatpush1.msra.mxu0 %v5437
        %7204 = vmatprep.subr.mxu0 0.0
        %7205 = vmatpush1.msra.mxu0 0.0
        %7206 = vmatprep.subr.mxu0 0.0
        %7207 = vmatpush1.msra.mxu0 0.0
        %7208 = vmatprep.subr.mxu0 0.0
        %7209 = vmatpush1.msra.mxu0 0.0
        %7210 = vmatprep.subr.mxu0 0.0
        %7211 = vmatpush1.msra.mxu0 0.0
        %7212 = vmatprep.subr.mxu0 0.0
        %7213 = vmatpush1.msra.mxu0 0.0
        %7214 = vmatprep.subr.mxu0 0.0
        %7215 = vmatpush1.msra.mxu0 0.0
        %7216 = vmatprep.subr.mxu0 0.0
        %7217 = vmatpush1.msra.mxu0 0.0
        %7218 = vmatprep.subr.mxu0 0.0
        %7219 = vmatpush1.msra.mxu0 0.0
        %7220 = vmatprep.subr.mxu0 0.0
        %7221 = vmatpush1.msra.mxu0 0.0
        %7222 = vmatprep.subr.mxu0 0.0
        %7223 = vmatpush1.msra.mxu0 0.0
        %7224 = vmatprep.subr.mxu0 0.0
        %7225 = vmatpush1.msra.mxu0 0.0
        %7226 = vmatprep.subr.mxu0 0.0
        %7227 = vmatpush1.msra.mxu0 0.0
        %7228 = vmatprep.subr.mxu0 0.0
        %7229 = vmatpush1.msra.mxu0 0.0
        %7230 = vmatprep.subr.mxu0 0.0
        %7231 = vmatpush1.msra.mxu0 0.0
        %7232 = vmatprep.subr.mxu0 0.0
        %7233 = vmatpush1.msra.mxu0 0.0
        %7234 = vmatprep.subr.mxu0 0.0
        %7235 = vmatpush1.msra.mxu0 0.0
        %7236 = vmatprep.subr.mxu0 0.0
        %7237 = vmatpush1.msra.mxu0 0.0
        %7238 = vmatprep.subr.mxu0 0.0
        %7239 = vmatpush1.msra.mxu0 0.0
        %7240 = vmatprep.subr.mxu0 0.0
        %7241 = vmatpush1.msra.mxu0 0.0
        %7242 = vmatprep.subr.mxu0 0.0
        %7243 = vmatpush1.msra.mxu0 0.0
        %7244 = vmatprep.subr.mxu0 0.0
        %7245 = vmatpush1.msra.mxu0 0.0
        %7246 = vmatprep.subr.mxu0 0.0
        %7247 = vmatpush1.msra.mxu0 0.0
        %7248 = vmatprep.subr.mxu0 0.0
        %7249 = vmatpush1.msra.mxu0 0.0
        %7250 = vmatprep.subr.mxu0 0.0
        %7251 = vmatpush1.msra.mxu0 0.0
        %7252 = vmatprep.subr.mxu0 0.0
        %7253 = vmatpush1.msra.mxu0 0.0
        %7254 = vmatprep.subr.mxu0 0.0
        %7255 = vmatpush1.msra.mxu0 0.0
        %7256 = vmatprep.subr.mxu0 0.0
        %7257 = vmatpush1.msra.mxu0 0.0
        %7258 = vmatprep.subr.mxu0 0.0
        %7259 = vmatpush1.msra.mxu0 0.0
        %7260 = vmatprep.subr.mxu0 0.0
        %7261 = vmatpush1.msra.mxu0 0.0
        %7262 = vmatprep.subr.mxu0 0.0
        %7263 = vmatpush1.msra.mxu0 0.0
        %7264 = vmatprep.subr.mxu0 0.0
        %7265 = vmatpush1.msra.mxu0 0.0
        %7266 = vmatprep.mubr.f32.mxu0 0.0
        %7267 = vmatmul.mubr.f32.gmra.mrb[0].mxu0 %v7179
        %v7268 = vpop.f32.mrb[0].mxu0
        %v7269 = vadd.f32 %v7140, %v7268
        %v7270 = vpop.f32.mrb[0].mxu0
        %7271 = vmatprep.mubr.f32.mxu0 0.0
        %7272 = vmatmul.mubr.f32.gmra.mrb[0].mxu0 %v7182
        %v7273 = vpop.f32.mrb[0].mxu0
        %v7274 = vadd.f32 %v7145, %v7273
        %v7275 = vpop.f32.mrb[0].mxu0
        %7276 = vmatprep.mubr.f32.mxu0 0.0
        %7277 = vmatmul.mubr.f32.gmra.mrb[0].mxu0 %v7185
        %v7278 = vpop.f32.mrb[0].mxu0
        %v7279 = vadd.f32 %v7150, %v7278
        %v7280 = vpop.f32.mrb[0].mxu0
        %7281 = vmatprep.mubr.f32.mxu0 0.0
        %7282 = vmatmul.mubr.f32.gmra.mrb[0].mxu0 %v7188
        %v7283 = vpop.f32.mrb[0].mxu0
        %v7284 = vadd.f32 %v7155, %v7283
        %v7285 = vpop.f32.mrb[0].mxu0
        %7286 = vmatprep.mubr.f32.mxu0 0.0
        %7287 = vmatmul.mubr.f32.gmra.mrb[0].mxu0 %v7191
        %v7288 = vpop.f32.mrb[0].mxu0
        %v7289 = vadd.f32 %v7160, %v7288
        %v7290 = vpop.f32.mrb[0].mxu0
        %7291 = vmatprep.mubr.f32.mxu0 0.0
        %7292 = vmatmul.mubr.f32.gmra.mrb[0].mxu0 %v7194
        %v7293 = vpop.f32.mrb[0].mxu0
        %v7294 = vadd.f32 %v7165, %v7293
        %v7295 = vpop.f32.mrb[0].mxu0
        %7296 = vmatprep.mubr.f32.mxu0 0.0
        %7297 = vmatmul.mubr.f32.gmra.mrb[0].mxu0 %v7197
        %v7298 = vpop.f32.mrb[0].mxu0
        %v7299 = vadd.f32 %v7170, %v7298
        %v7300 = vpop.f32.mrb[0].mxu0
        %7301 = vmatprep.mubr.f32.mxu0 0.0
        %7302 = vmatmul.mubr.f32.gmra.mrb[0].mxu0 %v7200
        %v7303 = vpop.f32.mrb[0].mxu0
        %v7304 = vadd.f32 %v7175, %v7303
        %v7305 = vpop.f32.mrb[0].mxu0
        %7306 = vdwg.mxu0
        %7307 = vrot.lane.b32.xlu0 %v5398, 112
        %v7308 = vpop.permute.xlu0 %7307
        %7309 = vrot.lane.b32.xlu0 %v5403, 112
        %v7310 = vpop.permute.xlu0 %7309
        %7311 = vrot.lane.b32.xlu0 %v5398, 80
        %v7312 = vpop.permute.xlu0 %7311
        %7313 = vrot.lane.b32.xlu0 %v5403, 80
        %v7314 = vpop.permute.xlu0 %7313
        %v7315 = vsel %vm796, %v7308, 0
        %v7317 = vsel %vm796, %v7310, 0
        %v7319 = vsel %vm796, %v7312, 0
        %v7321 = vsel %vm796, %v7314, 0
        %7323 = vmatprep.subr.mxu0 0.0
        %7324 = vmatpush1.xpose.msra.mxu0 %v7319
        %7325 = vmatprep.subr.mxu0 0.0
        %7326 = vmatpush1.xpose.msra.mxu0 %v7321
        %7327 = vmatprep.subr.mxu0 0.0
        %7328 = vmatpush1.xpose.msra.mxu0 0.0
        %7329 = vmatprep.subr.mxu0 0.0
        %7330 = vmatpush1.xpose.msra.mxu0 0.0
        %7331 = vmatprep.subr.mxu0 0.0
        %7332 = vmatpush1.xpose.msra.mxu0 0.0
        %7333 = vmatprep.subr.mxu0 0.0
        %7334 = vmatpush1.xpose.msra.mxu0 0.0
        %7335 = vmatprep.subr.mxu0 0.0
        %7336 = vmatpush1.xpose.msra.mxu0 0.0
        %7337 = vmatprep.subr.mxu0 0.0
        %7338 = vmatpush1.xpose.msra.mxu0 0.0
        %7339 = vmatprep.subr.mxu0 0.0
        %7340 = vmatpush1.xpose.msra.mxu0 0.0
        %7341 = vmatprep.subr.mxu0 0.0
        %7342 = vmatpush1.xpose.msra.mxu0 0.0
        %7343 = vmatprep.subr.mxu0 0.0
        %7344 = vmatpush1.xpose.msra.mxu0 0.0
        %7345 = vmatprep.subr.mxu0 0.0
        %7346 = vmatpush1.xpose.msra.mxu0 0.0
        %7347 = vmatprep.subr.mxu0 0.0
        %7348 = vmatpush1.xpose.msra.mxu0 0.0
        %7349 = vmatprep.subr.mxu0 0.0
        %7350 = vmatpush1.xpose.msra.mxu0 0.0
        %7351 = vmatprep.subr.mxu0 0.0
        %7352 = vmatpush1.xpose.msra.mxu0 0.0
        %7353 = vmatprep.subr.mxu0 0.0
        %7354 = vmatpush1.xpose.msra.mxu0 0.0
        %7355 = vmatprep.subr.mxu0 0.0
        %7356 = vmatpush1.xpose.msra.mxu0 0.0
        %7357 = vmatprep.subr.mxu0 0.0
        %7358 = vmatpush1.xpose.msra.mxu0 0.0
        %7359 = vmatprep.subr.mxu0 0.0
        %7360 = vmatpush1.xpose.msra.mxu0 0.0
        %7361 = vmatprep.subr.mxu0 0.0
        %7362 = vmatpush1.xpose.msra.mxu0 0.0
        %7363 = vmatprep.subr.mxu0 0.0
        %7364 = vmatpush1.xpose.msra.mxu0 0.0
        %7365 = vmatprep.subr.mxu0 0.0
        %7366 = vmatpush1.xpose.msra.mxu0 0.0
        %7367 = vmatprep.subr.mxu0 0.0
        %7368 = vmatpush1.xpose.msra.mxu0 0.0
        %7369 = vmatprep.subr.mxu0 0.0
        %7370 = vmatpush1.xpose.msra.mxu0 0.0
        %7371 = vmatprep.subr.mxu0 0.0
        %7372 = vmatpush1.xpose.msra.mxu0 0.0
        %7373 = vmatprep.subr.mxu0 0.0
        %7374 = vmatpush1.xpose.msra.mxu0 0.0
        %7375 = vmatprep.subr.mxu0 0.0
        %7376 = vmatpush1.xpose.msra.mxu0 0.0
        %7377 = vmatprep.subr.mxu0 0.0
        %7378 = vmatpush1.xpose.msra.mxu0 0.0
        %7379 = vmatprep.subr.mxu0 0.0
        %7380 = vmatpush1.xpose.msra.mxu0 0.0
        %7381 = vmatprep.subr.mxu0 0.0
        %7382 = vmatpush1.xpose.msra.mxu0 0.0
        %7383 = vmatprep.subr.mxu0 0.0
        %7384 = vmatpush1.xpose.msra.mxu0 0.0
        %7385 = vmatprep.subr.mxu0 0.0
        %7386 = vmatpush1.xpose.msra.mxu0 0.0
        %7387 = vmatprep.mubr.f32.mxu0 0.0
        %7388 = vmatmul.mubr.f32.gmra.mrb[0].mxu0 %v7315
        %v7389 = vpop.f32.mrb[0].mxu0
        %v7390 = vadd.f32 0.0, %v7389
        %v7391 = vpop.f32.mrb[0].mxu0
        %7392 = vmatprep.mubr.f32.mxu0 0.0
        %7393 = vmatmul.mubr.f32.gmra.mrb[0].mxu0 %v7317
        %v7394 = vpop.f32.mrb[0].mxu0
        %v7395 = vadd.f32 0.0, %v7394
        %v7396 = vpop.f32.mrb[0].mxu0
        %7397 = vdwg.mxu0
        %7398 = vrot.lane.b32.xlu0 %v5408, 112
        %v7399 = vpop.permute.xlu0 %7398
        %7400 = vrot.lane.b32.xlu0 %v5413, 112
        %v7401 = vpop.permute.xlu0 %7400
        %7402 = vrot.lane.b32.xlu0 %v5408, 80
        %v7403 = vpop.permute.xlu0 %7402
        %7404 = vrot.lane.b32.xlu0 %v5413, 80
        %v7405 = vpop.permute.xlu0 %7404
        %v7406 = vsel %vm796, %v7399, 0
        %v7408 = vsel %vm796, %v7401, 0
        %v7410 = vsel %vm796, %v7403, 0
        %v7412 = vsel %vm796, %v7405, 0
        %7414 = vmatprep.subr.mxu0 0.0
        %7415 = vmatpush1.xpose.msra.mxu0 %v7410
        %7416 = vmatprep.subr.mxu0 0.0
        %7417 = vmatpush1.xpose.msra.mxu0 %v7412
        %7418 = vmatprep.subr.mxu0 0.0
        %7419 = vmatpush1.xpose.msra.mxu0 0.0
        %7420 = vmatprep.subr.mxu0 0.0
        %7421 = vmatpush1.xpose.msra.mxu0 0.0
        %7422 = vmatprep.subr.mxu0 0.0
        %7423 = vmatpush1.xpose.msra.mxu0 0.0
        %7424 = vmatprep.subr.mxu0 0.0
        %7425 = vmatpush1.xpose.msra.mxu0 0.0
        %7426 = vmatprep.subr.mxu0 0.0
        %7427 = vmatpush1.xpose.msra.mxu0 0.0
        %7428 = vmatprep.subr.mxu0 0.0
        %7429 = vmatpush1.xpose.msra.mxu0 0.0
        %7430 = vmatprep.subr.mxu0 0.0
        %7431 = vmatpush1.xpose.msra.mxu0 0.0
        %7432 = vmatprep.subr.mxu0 0.0
        %7433 = vmatpush1.xpose.msra.mxu0 0.0
        %7434 = vmatprep.subr.mxu0 0.0
        %7435 = vmatpush1.xpose.msra.mxu0 0.0
        %7436 = vmatprep.subr.mxu0 0.0
        %7437 = vmatpush1.xpose.msra.mxu0 0.0
        %7438 = vmatprep.subr.mxu0 0.0
        %7439 = vmatpush1.xpose.msra.mxu0 0.0
        %7440 = vmatprep.subr.mxu0 0.0
        %7441 = vmatpush1.xpose.msra.mxu0 0.0
        %7442 = vmatprep.subr.mxu0 0.0
        %7443 = vmatpush1.xpose.msra.mxu0 0.0
        %7444 = vmatprep.subr.mxu0 0.0
        %7445 = vmatpush1.xpose.msra.mxu0 0.0
        %7446 = vmatprep.subr.mxu0 0.0
        %7447 = vmatpush1.xpose.msra.mxu0 0.0
        %7448 = vmatprep.subr.mxu0 0.0
        %7449 = vmatpush1.xpose.msra.mxu0 0.0
        %7450 = vmatprep.subr.mxu0 0.0
        %7451 = vmatpush1.xpose.msra.mxu0 0.0
        %7452 = vmatprep.subr.mxu0 0.0
        %7453 = vmatpush1.xpose.msra.mxu0 0.0
        %7454 = vmatprep.subr.mxu0 0.0
        %7455 = vmatpush1.xpose.msra.mxu0 0.0
        %7456 = vmatprep.subr.mxu0 0.0
        %7457 = vmatpush1.xpose.msra.mxu0 0.0
        %7458 = vmatprep.subr.mxu0 0.0
        %7459 = vmatpush1.xpose.msra.mxu0 0.0
        %7460 = vmatprep.subr.mxu0 0.0
        %7461 = vmatpush1.xpose.msra.mxu0 0.0
        %7462 = vmatprep.subr.mxu0 0.0
        %7463 = vmatpush1.xpose.msra.mxu0 0.0
        %7464 = vmatprep.subr.mxu0 0.0
        %7465 = vmatpush1.xpose.msra.mxu0 0.0
        %7466 = vmatprep.subr.mxu0 0.0
        %7467 = vmatpush1.xpose.msra.mxu0 0.0
        %7468 = vmatprep.subr.mxu0 0.0
        %7469 = vmatpush1.xpose.msra.mxu0 0.0
        %7470 = vmatprep.subr.mxu0 0.0
        %7471 = vmatpush1.xpose.msra.mxu0 0.0
        %7472 = vmatprep.subr.mxu0 0.0
        %7473 = vmatpush1.xpose.msra.mxu0 0.0
        %7474 = vmatprep.subr.mxu0 0.0
        %7475 = vmatpush1.xpose.msra.mxu0 0.0
        %7476 = vmatprep.subr.mxu0 0.0
        %7477 = vmatpush1.xpose.msra.mxu0 0.0
        %7478 = vmatprep.mubr.f32.mxu0 0.0
        %7479 = vmatmul.mubr.f32.gmra.mrb[0].mxu0 %v7406
        %v7480 = vpop.f32.mrb[0].mxu0
        %v7481 = vadd.f32 0.0, %v7480
        %v7482 = vpop.f32.mrb[0].mxu0
        %7483 = vmatprep.mubr.f32.mxu0 0.0
        %7484 = vmatmul.mubr.f32.gmra.mrb[0].mxu0 %v7408
        %v7485 = vpop.f32.mrb[0].mxu0
        %v7486 = vadd.f32 0.0, %v7485
        %v7487 = vpop.f32.mrb[0].mxu0
        %7488 = vdwg.mxu0
        %7489 = vrot.lane.b32.xlu0 %v5418, 112
        %v7490 = vpop.permute.xlu0 %7489
        %7491 = vrot.lane.b32.xlu0 %v5423, 112
        %v7492 = vpop.permute.xlu0 %7491
        %7493 = vrot.lane.b32.xlu0 %v5418, 80
        %v7494 = vpop.permute.xlu0 %7493
        %7495 = vrot.lane.b32.xlu0 %v5423, 80
        %v7496 = vpop.permute.xlu0 %7495
        %v7497 = vsel %vm796, %v7490, 0
        %v7499 = vsel %vm796, %v7492, 0
        %v7501 = vsel %vm796, %v7494, 0
        %v7503 = vsel %vm796, %v7496, 0
        %7505 = vmatprep.subr.mxu0 0.0
        %7506 = vmatpush1.xpose.msra.mxu0 %v7501
        %7507 = vmatprep.subr.mxu0 0.0
        %7508 = vmatpush1.xpose.msra.mxu0 %v7503
        %7509 = vmatprep.subr.mxu0 0.0
        %7510 = vmatpush1.xpose.msra.mxu0 0.0
        %7511 = vmatprep.subr.mxu0 0.0
        %7512 = vmatpush1.xpose.msra.mxu0 0.0
        %7513 = vmatprep.subr.mxu0 0.0
        %7514 = vmatpush1.xpose.msra.mxu0 0.0
        %7515 = vmatprep.subr.mxu0 0.0
        %7516 = vmatpush1.xpose.msra.mxu0 0.0
        %7517 = vmatprep.subr.mxu0 0.0
        %7518 = vmatpush1.xpose.msra.mxu0 0.0
        %7519 = vmatprep.subr.mxu0 0.0
        %7520 = vmatpush1.xpose.msra.mxu0 0.0
        %7521 = vmatprep.subr.mxu0 0.0
        %7522 = vmatpush1.xpose.msra.mxu0 0.0
        %7523 = vmatprep.subr.mxu0 0.0
        %7524 = vmatpush1.xpose.msra.mxu0 0.0
        %7525 = vmatprep.subr.mxu0 0.0
        %7526 = vmatpush1.xpose.msra.mxu0 0.0
        %7527 = vmatprep.subr.mxu0 0.0
        %7528 = vmatpush1.xpose.msra.mxu0 0.0
        %7529 = vmatprep.subr.mxu0 0.0
        %7530 = vmatpush1.xpose.msra.mxu0 0.0
        %7531 = vmatprep.subr.mxu0 0.0
        %7532 = vmatpush1.xpose.msra.mxu0 0.0
        %7533 = vmatprep.subr.mxu0 0.0
        %7534 = vmatpush1.xpose.msra.mxu0 0.0
        %7535 = vmatprep.subr.mxu0 0.0
        %7536 = vmatpush1.xpose.msra.mxu0 0.0
        %7537 = vmatprep.subr.mxu0 0.0
        %7538 = vmatpush1.xpose.msra.mxu0 0.0
        %7539 = vmatprep.subr.mxu0 0.0
        %7540 = vmatpush1.xpose.msra.mxu0 0.0
        %7541 = vmatprep.subr.mxu0 0.0
        %7542 = vmatpush1.xpose.msra.mxu0 0.0
        %7543 = vmatprep.subr.mxu0 0.0
        %7544 = vmatpush1.xpose.msra.mxu0 0.0
        %7545 = vmatprep.subr.mxu0 0.0
        %7546 = vmatpush1.xpose.msra.mxu0 0.0
        %7547 = vmatprep.subr.mxu0 0.0
        %7548 = vmatpush1.xpose.msra.mxu0 0.0
        %7549 = vmatprep.subr.mxu0 0.0
        %7550 = vmatpush1.xpose.msra.mxu0 0.0
        %7551 = vmatprep.subr.mxu0 0.0
        %7552 = vmatpush1.xpose.msra.mxu0 0.0
        %7553 = vmatprep.subr.mxu0 0.0
        %7554 = vmatpush1.xpose.msra.mxu0 0.0
        %7555 = vmatprep.subr.mxu0 0.0
        %7556 = vmatpush1.xpose.msra.mxu0 0.0
        %7557 = vmatprep.subr.mxu0 0.0
        %7558 = vmatpush1.xpose.msra.mxu0 0.0
        %7559 = vmatprep.subr.mxu0 0.0
        %7560 = vmatpush1.xpose.msra.mxu0 0.0
        %7561 = vmatprep.subr.mxu0 0.0
        %7562 = vmatpush1.xpose.msra.mxu0 0.0
        %7563 = vmatprep.subr.mxu0 0.0
        %7564 = vmatpush1.xpose.msra.mxu0 0.0
        %7565 = vmatprep.subr.mxu0 0.0
        %7566 = vmatpush1.xpose.msra.mxu0 0.0
        %7567 = vmatprep.subr.mxu0 0.0
        %7568 = vmatpush1.xpose.msra.mxu0 0.0
        %7569 = vmatprep.mubr.f32.mxu0 0.0
        %7570 = vmatmul.mubr.f32.gmra.mrb[0].mxu0 %v7497
        %v7571 = vpop.f32.mrb[0].mxu0
        %v7572 = vadd.f32 0.0, %v7571
        %v7573 = vpop.f32.mrb[0].mxu0
        %7574 = vmatprep.mubr.f32.mxu0 0.0
        %7575 = vmatmul.mubr.f32.gmra.mrb[0].mxu0 %v7499
        %v7576 = vpop.f32.mrb[0].mxu0
        %v7577 = vadd.f32 0.0, %v7576
        %v7578 = vpop.f32.mrb[0].mxu0
        %7579 = vdwg.mxu0
        %7580 = vrot.lane.b32.xlu0 %v5428, 112
        %v7581 = vpop.permute.xlu0 %7580
        %7582 = vrot.lane.b32.xlu0 %v5433, 112
        %v7583 = vpop.permute.xlu0 %7582
        %7584 = vrot.lane.b32.xlu0 %v5428, 80
        %v7585 = vpop.permute.xlu0 %7584
        %7586 = vrot.lane.b32.xlu0 %v5433, 80
        %v7587 = vpop.permute.xlu0 %7586
        %v7588 = vsel %vm796, %v7581, 0
        %v7590 = vsel %vm796, %v7583, 0
        %v7592 = vsel %vm796, %v7585, 0
        %v7594 = vsel %vm796, %v7587, 0
        %7596 = vmatprep.subr.mxu0 0.0
        %7597 = vmatpush1.xpose.msra.mxu0 %v7592
        %7598 = vmatprep.subr.mxu0 0.0
        %7599 = vmatpush1.xpose.msra.mxu0 %v7594
        %7600 = vmatprep.subr.mxu0 0.0
        %7601 = vmatpush1.xpose.msra.mxu0 0.0
        %7602 = vmatprep.subr.mxu0 0.0
        %7603 = vmatpush1.xpose.msra.mxu0 0.0
        %7604 = vmatprep.subr.mxu0 0.0
        %7605 = vmatpush1.xpose.msra.mxu0 0.0
        %7606 = vmatprep.subr.mxu0 0.0
        %7607 = vmatpush1.xpose.msra.mxu0 0.0
        %7608 = vmatprep.subr.mxu0 0.0
        %7609 = vmatpush1.xpose.msra.mxu0 0.0
        %7610 = vmatprep.subr.mxu0 0.0
        %7611 = vmatpush1.xpose.msra.mxu0 0.0
        %7612 = vmatprep.subr.mxu0 0.0
        %7613 = vmatpush1.xpose.msra.mxu0 0.0
        %7614 = vmatprep.subr.mxu0 0.0
        %7615 = vmatpush1.xpose.msra.mxu0 0.0
        %7616 = vmatprep.subr.mxu0 0.0
        %7617 = vmatpush1.xpose.msra.mxu0 0.0
        %7618 = vmatprep.subr.mxu0 0.0
        %7619 = vmatpush1.xpose.msra.mxu0 0.0
        %7620 = vmatprep.subr.mxu0 0.0
        %7621 = vmatpush1.xpose.msra.mxu0 0.0
        %7622 = vmatprep.subr.mxu0 0.0
        %7623 = vmatpush1.xpose.msra.mxu0 0.0
        %7624 = vmatprep.subr.mxu0 0.0
        %7625 = vmatpush1.xpose.msra.mxu0 0.0
        %7626 = vmatprep.subr.mxu0 0.0
        %7627 = vmatpush1.xpose.msra.mxu0 0.0
        %7628 = vmatprep.subr.mxu0 0.0
        %7629 = vmatpush1.xpose.msra.mxu0 0.0
        %7630 = vmatprep.subr.mxu0 0.0
        %7631 = vmatpush1.xpose.msra.mxu0 0.0
        %7632 = vmatprep.subr.mxu0 0.0
        %7633 = vmatpush1.xpose.msra.mxu0 0.0
        %7634 = vmatprep.subr.mxu0 0.0
        %7635 = vmatpush1.xpose.msra.mxu0 0.0
        %7636 = vmatprep.subr.mxu0 0.0
        %7637 = vmatpush1.xpose.msra.mxu0 0.0
        %7638 = vmatprep.subr.mxu0 0.0
        %7639 = vmatpush1.xpose.msra.mxu0 0.0
        %7640 = vmatprep.subr.mxu0 0.0
        %7641 = vmatpush1.xpose.msra.mxu0 0.0
        %7642 = vmatprep.subr.mxu0 0.0
        %7643 = vmatpush1.xpose.msra.mxu0 0.0
        %7644 = vmatprep.subr.mxu0 0.0
        %7645 = vmatpush1.xpose.msra.mxu0 0.0
        %7646 = vmatprep.subr.mxu0 0.0
        %7647 = vmatpush1.xpose.msra.mxu0 0.0
        %7648 = vmatprep.subr.mxu0 0.0
        %7649 = vmatpush1.xpose.msra.mxu0 0.0
        %7650 = vmatprep.subr.mxu0 0.0
        %7651 = vmatpush1.xpose.msra.mxu0 0.0
        %7652 = vmatprep.subr.mxu0 0.0
        %7653 = vmatpush1.xpose.msra.mxu0 0.0
        %7654 = vmatprep.subr.mxu0 0.0
        %7655 = vmatpush1.xpose.msra.mxu0 0.0
        %7656 = vmatprep.subr.mxu0 0.0
        %7657 = vmatpush1.xpose.msra.mxu0 0.0
        %7658 = vmatprep.subr.mxu0 0.0
        %7659 = vmatpush1.xpose.msra.mxu0 0.0
        %7660 = vmatprep.mubr.f32.mxu0 0.0
        %7661 = vmatmul.mubr.f32.gmra.mrb[0].mxu0 %v7588
        %v7662 = vpop.f32.mrb[0].mxu0
        %v7663 = vadd.f32 0.0, %v7662
        %v7664 = vpop.f32.mrb[0].mxu0
        %7665 = vmatprep.mubr.f32.mxu0 0.0
        %7666 = vmatmul.mubr.f32.gmra.mrb[0].mxu0 %v7590
        %v7667 = vpop.f32.mrb[0].mxu0
        %v7668 = vadd.f32 0.0, %v7667
        %v7669 = vpop.f32.mrb[0].mxu0
        %7670 = vdwg.mxu0
        %v7671 = vmul.f32 %v7390, 0.35355338
        %v7672 = vmul.f32 %v7395, 0.35355338
        %v7673 = vmul.f32 %v7481, 0.35355338
        %v7674 = vmul.f32 %v7486, 0.35355338
        %v7675 = vmul.f32 %v7572, 0.35355338
        %v7676 = vmul.f32 %v7577, 0.35355338
        %v7677 = vmul.f32 %v7663, 0.35355338
        %v7678 = vmul.f32 %v7668, 0.35355338
        %v7679 = vsel %vm1155, %v7671, -inf
        %7680 = vmax.xlane.f32.xlu0 %v7679
        %v7681 = vpop.xlane.xlu0 %7680
        %v7682 = vsel %vm1155, %v7672, -inf
        %7683 = vmax.xlane.f32.xlu0 %v7682
        %v7684 = vpop.xlane.xlu0 %7683
        %v7685 = vsel %vm1155, %v7673, -inf
        %7686 = vmax.xlane.f32.xlu0 %v7685
        %v7687 = vpop.xlane.xlu0 %7686
        %v7688 = vsel %vm1155, %v7674, -inf
        %7689 = vmax.xlane.f32.xlu0 %v7688
        %v7690 = vpop.xlane.xlu0 %7689
        %v7691 = vsel %vm1155, %v7675, -inf
        %7692 = vmax.xlane.f32.xlu0 %v7691
        %v7693 = vpop.xlane.xlu0 %7692
        %v7694 = vsel %vm1155, %v7676, -inf
        %7695 = vmax.xlane.f32.xlu0 %v7694
        %v7696 = vpop.xlane.xlu0 %7695
        %v7697 = vsel %vm1155, %v7677, -inf
        %7698 = vmax.xlane.f32.xlu0 %v7697
        %v7699 = vpop.xlane.xlu0 %7698
        %v7700 = vsel %vm1155, %v7678, -inf
        %7701 = vmax.xlane.f32.xlu0 %v7700
        %v7702 = vpop.xlane.xlu0 %7701
        %v7703 = vsub.f32 %v7671, %v7681
        %v7704 = vsub.f32 %v7672, %v7684
        %v7705 = vsub.f32 %v7673, %v7687
        %v7706 = vsub.f32 %v7674, %v7690
        %v7707 = vsub.f32 %v7675, %v7693
        %v7708 = vsub.f32 %v7676, %v7696
        %v7709 = vsub.f32 %v7677, %v7699
        %v7710 = vsub.f32 %v7678, %v7702
        %v7711 = vmul.f32 %v7703, 1.442695
        %v7712 = vpow.pop %v7711
        %v7713 = vmul.f32 %v7704, 1.442695
        %v7714 = vpow.pop %v7713
        %v7715 = vmul.f32 %v7705, 1.442695
        %v7716 = vpow.pop %v7715
        %v7717 = vmul.f32 %v7706, 1.442695
        %v7718 = vpow.pop %v7717
        %v7719 = vmul.f32 %v7707, 1.442695
        %v7720 = vpow.pop %v7719
        %v7721 = vmul.f32 %v7708, 1.442695
        %v7722 = vpow.pop %v7721
        %v7723 = vmul.f32 %v7709, 1.442695
        %v7724 = vpow.pop %v7723
        %v7725 = vmul.f32 %v7710, 1.442695
        %v7726 = vpow.pop %v7725
        %v7727 = vsel %vm1155, %v7712, 0.0
        %7728 = vadd.xlane.f32.xlu0 %v7727
        %v7729 = vpop.xlane.xlu0 %7728
        %v7730 = vsel %vm1155, %v7714, 0.0
        %7731 = vadd.xlane.f32.xlu0 %v7730
        %v7732 = vpop.xlane.xlu0 %7731
        %v7733 = vsel %vm1155, %v7716, 0.0
        %7734 = vadd.xlane.f32.xlu0 %v7733
        %v7735 = vpop.xlane.xlu0 %7734
        %v7736 = vsel %vm1155, %v7718, 0.0
        %7737 = vadd.xlane.f32.xlu0 %v7736
        %v7738 = vpop.xlane.xlu0 %7737
        %v7739 = vsel %vm1155, %v7720, 0.0
        %7740 = vadd.xlane.f32.xlu0 %v7739
        %v7741 = vpop.xlane.xlu0 %7740
        %v7742 = vsel %vm1155, %v7722, 0.0
        %7743 = vadd.xlane.f32.xlu0 %v7742
        %v7744 = vpop.xlane.xlu0 %7743
        %v7745 = vsel %vm1155, %v7724, 0.0
        %7746 = vadd.xlane.f32.xlu0 %v7745
        %v7747 = vpop.xlane.xlu0 %7746
        %v7748 = vsel %vm1155, %v7726, 0.0
        %7749 = vadd.xlane.f32.xlu0 %v7748
        %v7750 = vpop.xlane.xlu0 %7749
        %v7751 = vrcp.pop %v7729
        %v7752 = vmul.f32 %v7712, %v7751
        %v7753 = vrcp.pop %v7732
        %v7754 = vmul.f32 %v7714, %v7753
        %v7755 = vrcp.pop %v7735
        %v7756 = vmul.f32 %v7716, %v7755
        %v7757 = vrcp.pop %v7738
        %v7758 = vmul.f32 %v7718, %v7757
        %v7759 = vrcp.pop %v7741
        %v7760 = vmul.f32 %v7720, %v7759
        %v7761 = vrcp.pop %v7744
        %v7762 = vmul.f32 %v7722, %v7761
        %v7763 = vrcp.pop %v7747
        %v7764 = vmul.f32 %v7724, %v7763
        %v7765 = vrcp.pop %v7750
        %v7766 = vmul.f32 %v7726, %v7765
        %7767 = vrot.lane.b32.xlu0 %v5398, 48
        %v7768 = vpop.permute.xlu0 %7767
        %7769 = vrot.lane.b32.xlu0 %v5403, 48
        %v7770 = vpop.permute.xlu0 %7769
        %v7774 = vsel %vm1155, %v7752, 0
        %v7777 = vsel %vm1155, %v7754, 0
        %7779 = vmatprep.subr.mxu0 0.0
        %7780 = vmatpush1.msra.mxu0 %v7768
        %7781 = vmatprep.subr.mxu0 0.0
        %7782 = vmatpush1.msra.mxu0 %v7770
        %7783 = vmatprep.subr.mxu0 0.0
        %7784 = vmatpush1.msra.mxu0 0.0
        %7785 = vmatprep.subr.mxu0 0.0
        %7786 = vmatpush1.msra.mxu0 0.0
        %7787 = vmatprep.subr.mxu0 0.0
        %7788 = vmatpush1.msra.mxu0 0.0
        %7789 = vmatprep.subr.mxu0 0.0
        %7790 = vmatpush1.msra.mxu0 0.0
        %7791 = vmatprep.subr.mxu0 0.0
        %7792 = vmatpush1.msra.mxu0 0.0
        %7793 = vmatprep.subr.mxu0 0.0
        %7794 = vmatpush1.msra.mxu0 0.0
        %7795 = vmatprep.subr.mxu0 0.0
        %7796 = vmatpush1.msra.mxu0 0.0
        %7797 = vmatprep.subr.mxu0 0.0
        %7798 = vmatpush1.msra.mxu0 0.0
        %7799 = vmatprep.subr.mxu0 0.0
        %7800 = vmatpush1.msra.mxu0 0.0
        %7801 = vmatprep.subr.mxu0 0.0
        %7802 = vmatpush1.msra.mxu0 0.0
        %7803 = vmatprep.subr.mxu0 0.0
        %7804 = vmatpush1.msra.mxu0 0.0
        %7805 = vmatprep.subr.mxu0 0.0
        %7806 = vmatpush1.msra.mxu0 0.0
        %7807 = vmatprep.subr.mxu0 0.0
        %7808 = vmatpush1.msra.mxu0 0.0
        %7809 = vmatprep.subr.mxu0 0.0
        %7810 = vmatpush1.msra.mxu0 0.0
        %7811 = vmatprep.subr.mxu0 0.0
        %7812 = vmatpush1.msra.mxu0 0.0
        %7813 = vmatprep.subr.mxu0 0.0
        %7814 = vmatpush1.msra.mxu0 0.0
        %7815 = vmatprep.subr.mxu0 0.0
        %7816 = vmatpush1.msra.mxu0 0.0
        %7817 = vmatprep.subr.mxu0 0.0
        %7818 = vmatpush1.msra.mxu0 0.0
        %7819 = vmatprep.subr.mxu0 0.0
        %7820 = vmatpush1.msra.mxu0 0.0
        %7821 = vmatprep.subr.mxu0 0.0
        %7822 = vmatpush1.msra.mxu0 0.0
        %7823 = vmatprep.subr.mxu0 0.0
        %7824 = vmatpush1.msra.mxu0 0.0
        %7825 = vmatprep.subr.mxu0 0.0
        %7826 = vmatpush1.msra.mxu0 0.0
        %7827 = vmatprep.subr.mxu0 0.0
        %7828 = vmatpush1.msra.mxu0 0.0
        %7829 = vmatprep.subr.mxu0 0.0
        %7830 = vmatpush1.msra.mxu0 0.0
        %7831 = vmatprep.subr.mxu0 0.0
        %7832 = vmatpush1.msra.mxu0 0.0
        %7833 = vmatprep.subr.mxu0 0.0
        %7834 = vmatpush1.msra.mxu0 0.0
        %7835 = vmatprep.subr.mxu0 0.0
        %7836 = vmatpush1.msra.mxu0 0.0
        %7837 = vmatprep.subr.mxu0 0.0
        %7838 = vmatpush1.msra.mxu0 0.0
        %7839 = vmatprep.subr.mxu0 0.0
        %7840 = vmatpush1.msra.mxu0 0.0
        %7841 = vmatprep.subr.mxu0 0.0
        %7842 = vmatpush1.msra.mxu0 0.0
        %7843 = vmatprep.mubr.f32.mxu0 0.0
        %7844 = vmatmul.mubr.f32.gmra.mrb[0].mxu0 %v7774
        %v7845 = vpop.f32.mrb[0].mxu0
        %v7846 = vadd.f32 0.0, %v7845
        %v7847 = vpop.f32.mrb[0].mxu0
        %7848 = vmatprep.mubr.f32.mxu0 0.0
        %7849 = vmatmul.mubr.f32.gmra.mrb[0].mxu0 %v7777
        %v7850 = vpop.f32.mrb[0].mxu0
        %v7851 = vadd.f32 0.0, %v7850
        %v7852 = vpop.f32.mrb[0].mxu0
        %7853 = vdwg.mxu0
        %7854 = vrot.lane.b32.xlu0 %v5408, 48
        %v7855 = vpop.permute.xlu0 %7854
        %7856 = vrot.lane.b32.xlu0 %v5413, 48
        %v7857 = vpop.permute.xlu0 %7856
        %v7861 = vsel %vm1155, %v7756, 0
        %v7864 = vsel %vm1155, %v7758, 0
        %7866 = vmatprep.subr.mxu0 0.0
        %7867 = vmatpush1.msra.mxu0 %v7855
        %7868 = vmatprep.subr.mxu0 0.0
        %7869 = vmatpush1.msra.mxu0 %v7857
        %7870 = vmatprep.subr.mxu0 0.0
        %7871 = vmatpush1.msra.mxu0 0.0
        %7872 = vmatprep.subr.mxu0 0.0
        %7873 = vmatpush1.msra.mxu0 0.0
        %7874 = vmatprep.subr.mxu0 0.0
        %7875 = vmatpush1.msra.mxu0 0.0
        %7876 = vmatprep.subr.mxu0 0.0
        %7877 = vmatpush1.msra.mxu0 0.0
        %7878 = vmatprep.subr.mxu0 0.0
        %7879 = vmatpush1.msra.mxu0 0.0
        %7880 = vmatprep.subr.mxu0 0.0
        %7881 = vmatpush1.msra.mxu0 0.0
        %7882 = vmatprep.subr.mxu0 0.0
        %7883 = vmatpush1.msra.mxu0 0.0
        %7884 = vmatprep.subr.mxu0 0.0
        %7885 = vmatpush1.msra.mxu0 0.0
        %7886 = vmatprep.subr.mxu0 0.0
        %7887 = vmatpush1.msra.mxu0 0.0
        %7888 = vmatprep.subr.mxu0 0.0
        %7889 = vmatpush1.msra.mxu0 0.0
        %7890 = vmatprep.subr.mxu0 0.0
        %7891 = vmatpush1.msra.mxu0 0.0
        %7892 = vmatprep.subr.mxu0 0.0
        %7893 = vmatpush1.msra.mxu0 0.0
        %7894 = vmatprep.subr.mxu0 0.0
        %7895 = vmatpush1.msra.mxu0 0.0
        %7896 = vmatprep.subr.mxu0 0.0
        %7897 = vmatpush1.msra.mxu0 0.0
        %7898 = vmatprep.subr.mxu0 0.0
        %7899 = vmatpush1.msra.mxu0 0.0
        %7900 = vmatprep.subr.mxu0 0.0
        %7901 = vmatpush1.msra.mxu0 0.0
        %7902 = vmatprep.subr.mxu0 0.0
        %7903 = vmatpush1.msra.mxu0 0.0
        %7904 = vmatprep.subr.mxu0 0.0
        %7905 = vmatpush1.msra.mxu0 0.0
        %7906 = vmatprep.subr.mxu0 0.0
        %7907 = vmatpush1.msra.mxu0 0.0
        %7908 = vmatprep.subr.mxu0 0.0
        %7909 = vmatpush1.msra.mxu0 0.0
        %7910 = vmatprep.subr.mxu0 0.0
        %7911 = vmatpush1.msra.mxu0 0.0
        %7912 = vmatprep.subr.mxu0 0.0
        %7913 = vmatpush1.msra.mxu0 0.0
        %7914 = vmatprep.subr.mxu0 0.0
        %7915 = vmatpush1.msra.mxu0 0.0
        %7916 = vmatprep.subr.mxu0 0.0
        %7917 = vmatpush1.msra.mxu0 0.0
        %7918 = vmatprep.subr.mxu0 0.0
        %7919 = vmatpush1.msra.mxu0 0.0
        %7920 = vmatprep.subr.mxu0 0.0
        %7921 = vmatpush1.msra.mxu0 0.0
        %7922 = vmatprep.subr.mxu0 0.0
        %7923 = vmatpush1.msra.mxu0 0.0
        %7924 = vmatprep.subr.mxu0 0.0
        %7925 = vmatpush1.msra.mxu0 0.0
        %7926 = vmatprep.subr.mxu0 0.0
        %7927 = vmatpush1.msra.mxu0 0.0
        %7928 = vmatprep.subr.mxu0 0.0
        %7929 = vmatpush1.msra.mxu0 0.0
        %7930 = vmatprep.mubr.f32.mxu0 0.0
        %7931 = vmatmul.mubr.f32.gmra.mrb[0].mxu0 %v7861
        %v7932 = vpop.f32.mrb[0].mxu0
        %v7933 = vadd.f32 0.0, %v7932
        %v7934 = vpop.f32.mrb[0].mxu0
        %7935 = vmatprep.mubr.f32.mxu0 0.0
        %7936 = vmatmul.mubr.f32.gmra.mrb[0].mxu0 %v7864
        %v7937 = vpop.f32.mrb[0].mxu0
        %v7938 = vadd.f32 0.0, %v7937
        %v7939 = vpop.f32.mrb[0].mxu0
        %7940 = vdwg.mxu0
        %7941 = vrot.lane.b32.xlu0 %v5418, 48
        %v7942 = vpop.permute.xlu0 %7941
        %7943 = vrot.lane.b32.xlu0 %v5423, 48
        %v7944 = vpop.permute.xlu0 %7943
        %v7948 = vsel %vm1155, %v7760, 0
        %v7951 = vsel %vm1155, %v7762, 0
        %7953 = vmatprep.subr.mxu0 0.0
        %7954 = vmatpush1.msra.mxu0 %v7942
        %7955 = vmatprep.subr.mxu0 0.0
        %7956 = vmatpush1.msra.mxu0 %v7944
        %7957 = vmatprep.subr.mxu0 0.0
        %7958 = vmatpush1.msra.mxu0 0.0
        %7959 = vmatprep.subr.mxu0 0.0
        %7960 = vmatpush1.msra.mxu0 0.0
        %7961 = vmatprep.subr.mxu0 0.0
        %7962 = vmatpush1.msra.mxu0 0.0
        %7963 = vmatprep.subr.mxu0 0.0
        %7964 = vmatpush1.msra.mxu0 0.0
        %7965 = vmatprep.subr.mxu0 0.0
        %7966 = vmatpush1.msra.mxu0 0.0
        %7967 = vmatprep.subr.mxu0 0.0
        %7968 = vmatpush1.msra.mxu0 0.0
        %7969 = vmatprep.subr.mxu0 0.0
        %7970 = vmatpush1.msra.mxu0 0.0
        %7971 = vmatprep.subr.mxu0 0.0
        %7972 = vmatpush1.msra.mxu0 0.0
        %7973 = vmatprep.subr.mxu0 0.0
        %7974 = vmatpush1.msra.mxu0 0.0
        %7975 = vmatprep.subr.mxu0 0.0
        %7976 = vmatpush1.msra.mxu0 0.0
        %7977 = vmatprep.subr.mxu0 0.0
        %7978 = vmatpush1.msra.mxu0 0.0
        %7979 = vmatprep.subr.mxu0 0.0
        %7980 = vmatpush1.msra.mxu0 0.0
        %7981 = vmatprep.subr.mxu0 0.0
        %7982 = vmatpush1.msra.mxu0 0.0
        %7983 = vmatprep.subr.mxu0 0.0
        %7984 = vmatpush1.msra.mxu0 0.0
        %7985 = vmatprep.subr.mxu0 0.0
        %7986 = vmatpush1.msra.mxu0 0.0
        %7987 = vmatprep.subr.mxu0 0.0
        %7988 = vmatpush1.msra.mxu0 0.0
        %7989 = vmatprep.subr.mxu0 0.0
        %7990 = vmatpush1.msra.mxu0 0.0
        %7991 = vmatprep.subr.mxu0 0.0
        %7992 = vmatpush1.msra.mxu0 0.0
        %7993 = vmatprep.subr.mxu0 0.0
        %7994 = vmatpush1.msra.mxu0 0.0
        %7995 = vmatprep.subr.mxu0 0.0
        %7996 = vmatpush1.msra.mxu0 0.0
        %7997 = vmatprep.subr.mxu0 0.0
        %7998 = vmatpush1.msra.mxu0 0.0
        %7999 = vmatprep.subr.mxu0 0.0
        %8000 = vmatpush1.msra.mxu0 0.0
        %8001 = vmatprep.subr.mxu0 0.0
        %8002 = vmatpush1.msra.mxu0 0.0
        %8003 = vmatprep.subr.mxu0 0.0
        %8004 = vmatpush1.msra.mxu0 0.0
        %8005 = vmatprep.subr.mxu0 0.0
        %8006 = vmatpush1.msra.mxu0 0.0
        %8007 = vmatprep.subr.mxu0 0.0
        %8008 = vmatpush1.msra.mxu0 0.0
        %8009 = vmatprep.subr.mxu0 0.0
        %8010 = vmatpush1.msra.mxu0 0.0
        %8011 = vmatprep.subr.mxu0 0.0
        %8012 = vmatpush1.msra.mxu0 0.0
        %8013 = vmatprep.subr.mxu0 0.0
        %8014 = vmatpush1.msra.mxu0 0.0
        %8015 = vmatprep.subr.mxu0 0.0
        %8016 = vmatpush1.msra.mxu0 0.0
        %8017 = vmatprep.mubr.f32.mxu0 0.0
        %8018 = vmatmul.mubr.f32.gmra.mrb[0].mxu0 %v7948
        %v8019 = vpop.f32.mrb[0].mxu0
        %v8020 = vadd.f32 0.0, %v8019
        %v8021 = vpop.f32.mrb[0].mxu0
        %8022 = vmatprep.mubr.f32.mxu0 0.0
        %8023 = vmatmul.mubr.f32.gmra.mrb[0].mxu0 %v7951
        %v8024 = vpop.f32.mrb[0].mxu0
        %v8025 = vadd.f32 0.0, %v8024
        %v8026 = vpop.f32.mrb[0].mxu0
        %8027 = vdwg.mxu0
        %8028 = vrot.lane.b32.xlu0 %v5428, 48
        %v8029 = vpop.permute.xlu0 %8028
        %8030 = vrot.lane.b32.xlu0 %v5433, 48
        %v8031 = vpop.permute.xlu0 %8030
        %v8035 = vsel %vm1155, %v7764, 0
        %v8038 = vsel %vm1155, %v7766, 0
        %8040 = vmatprep.subr.mxu0 0.0
        %8041 = vmatpush1.msra.mxu0 %v8029
        %8042 = vmatprep.subr.mxu0 0.0
        %8043 = vmatpush1.msra.mxu0 %v8031
        %8044 = vmatprep.subr.mxu0 0.0
        %8045 = vmatpush1.msra.mxu0 0.0
        %8046 = vmatprep.subr.mxu0 0.0
        %8047 = vmatpush1.msra.mxu0 0.0
        %8048 = vmatprep.subr.mxu0 0.0
        %8049 = vmatpush1.msra.mxu0 0.0
        %8050 = vmatprep.subr.mxu0 0.0
        %8051 = vmatpush1.msra.mxu0 0.0
        %8052 = vmatprep.subr.mxu0 0.0
        %8053 = vmatpush1.msra.mxu0 0.0
        %8054 = vmatprep.subr.mxu0 0.0
        %8055 = vmatpush1.msra.mxu0 0.0
        %8056 = vmatprep.subr.mxu0 0.0
        %8057 = vmatpush1.msra.mxu0 0.0
        %8058 = vmatprep.subr.mxu0 0.0
        %8059 = vmatpush1.msra.mxu0 0.0
        %8060 = vmatprep.subr.mxu0 0.0
        %8061 = vmatpush1.msra.mxu0 0.0
        %8062 = vmatprep.subr.mxu0 0.0
        %8063 = vmatpush1.msra.mxu0 0.0
        %8064 = vmatprep.subr.mxu0 0.0
        %8065 = vmatpush1.msra.mxu0 0.0
        %8066 = vmatprep.subr.mxu0 0.0
        %8067 = vmatpush1.msra.mxu0 0.0
        %8068 = vmatprep.subr.mxu0 0.0
        %8069 = vmatpush1.msra.mxu0 0.0
        %8070 = vmatprep.subr.mxu0 0.0
        %8071 = vmatpush1.msra.mxu0 0.0
        %8072 = vmatprep.subr.mxu0 0.0
        %8073 = vmatpush1.msra.mxu0 0.0
        %8074 = vmatprep.subr.mxu0 0.0
        %8075 = vmatpush1.msra.mxu0 0.0
        %8076 = vmatprep.subr.mxu0 0.0
        %8077 = vmatpush1.msra.mxu0 0.0
        %8078 = vmatprep.subr.mxu0 0.0
        %8079 = vmatpush1.msra.mxu0 0.0
        %8080 = vmatprep.subr.mxu0 0.0
        %8081 = vmatpush1.msra.mxu0 0.0
        %8082 = vmatprep.subr.mxu0 0.0
        %8083 = vmatpush1.msra.mxu0 0.0
        %8084 = vmatprep.subr.mxu0 0.0
        %8085 = vmatpush1.msra.mxu0 0.0
        %8086 = vmatprep.subr.mxu0 0.0
        %8087 = vmatpush1.msra.mxu0 0.0
        %8088 = vmatprep.subr.mxu0 0.0
        %8089 = vmatpush1.msra.mxu0 0.0
        %8090 = vmatprep.subr.mxu0 0.0
        %8091 = vmatpush1.msra.mxu0 0.0
        %8092 = vmatprep.subr.mxu0 0.0
        %8093 = vmatpush1.msra.mxu0 0.0
        %8094 = vmatprep.subr.mxu0 0.0
        %8095 = vmatpush1.msra.mxu0 0.0
        %8096 = vmatprep.subr.mxu0 0.0
        %8097 = vmatpush1.msra.mxu0 0.0
        %8098 = vmatprep.subr.mxu0 0.0
        %8099 = vmatpush1.msra.mxu0 0.0
        %8100 = vmatprep.subr.mxu0 0.0
        %8101 = vmatpush1.msra.mxu0 0.0
        %8102 = vmatprep.subr.mxu0 0.0
        %8103 = vmatpush1.msra.mxu0 0.0
        %8104 = vmatprep.mubr.f32.mxu0 0.0
        %8105 = vmatmul.mubr.f32.gmra.mrb[0].mxu0 %v8035
        %v8106 = vpop.f32.mrb[0].mxu0
        %v8107 = vadd.f32 0.0, %v8106
        %v8108 = vpop.f32.mrb[0].mxu0
        %8109 = vmatprep.mubr.f32.mxu0 0.0
        %8110 = vmatmul.mubr.f32.gmra.mrb[0].mxu0 %v8038
        %v8111 = vpop.f32.mrb[0].mxu0
        %v8112 = vadd.f32 0.0, %v8111
        %v8113 = vpop.f32.mrb[0].mxu0
        %8114 = vdwg.mxu0
        %v8116 = vsel %vm796, %v7846, 0
        %v8119 = vsel %vm796, %v7851, 0
        %v8122 = vsel %vm796, %v7933, 0
        %v8125 = vsel %vm796, %v7938, 0
        %v8128 = vsel %vm796, %v8020, 0
        %v8131 = vsel %vm796, %v8025, 0
        %v8134 = vsel %vm796, %v8107, 0
        %v8137 = vsel %vm796, %v8112, 0
        %8139 = vmatprep.subr.mxu0 0.0
        %8140 = vmatpush1.msra.mxu0 %v5439
        %8141 = vmatprep.subr.mxu0 0.0
        %8142 = vmatpush1.msra.mxu0 0.0
        %8143 = vmatprep.subr.mxu0 0.0
        %8144 = vmatpush1.msra.mxu0 0.0
        %8145 = vmatprep.subr.mxu0 0.0
        %8146 = vmatpush1.msra.mxu0 0.0
        %8147 = vmatprep.subr.mxu0 0.0
        %8148 = vmatpush1.msra.mxu0 0.0
        %8149 = vmatprep.subr.mxu0 0.0
        %8150 = vmatpush1.msra.mxu0 0.0
        %8151 = vmatprep.subr.mxu0 0.0
        %8152 = vmatpush1.msra.mxu0 0.0
        %8153 = vmatprep.subr.mxu0 0.0
        %8154 = vmatpush1.msra.mxu0 0.0
        %8155 = vmatprep.subr.mxu0 0.0
        %8156 = vmatpush1.msra.mxu0 0.0
        %8157 = vmatprep.subr.mxu0 0.0
        %8158 = vmatpush1.msra.mxu0 0.0
        %8159 = vmatprep.subr.mxu0 0.0
        %8160 = vmatpush1.msra.mxu0 0.0
        %8161 = vmatprep.subr.mxu0 0.0
        %8162 = vmatpush1.msra.mxu0 0.0
        %8163 = vmatprep.subr.mxu0 0.0
        %8164 = vmatpush1.msra.mxu0 0.0
        %8165 = vmatprep.subr.mxu0 0.0
        %8166 = vmatpush1.msra.mxu0 0.0
        %8167 = vmatprep.subr.mxu0 0.0
        %8168 = vmatpush1.msra.mxu0 0.0
        %8169 = vmatprep.subr.mxu0 0.0
        %8170 = vmatpush1.msra.mxu0 0.0
        %8171 = vmatprep.subr.mxu0 0.0
        %8172 = vmatpush1.msra.mxu0 0.0
        %8173 = vmatprep.subr.mxu0 0.0
        %8174 = vmatpush1.msra.mxu0 0.0
        %8175 = vmatprep.subr.mxu0 0.0
        %8176 = vmatpush1.msra.mxu0 0.0
        %8177 = vmatprep.subr.mxu0 0.0
        %8178 = vmatpush1.msra.mxu0 0.0
        %8179 = vmatprep.subr.mxu0 0.0
        %8180 = vmatpush1.msra.mxu0 0.0
        %8181 = vmatprep.subr.mxu0 0.0
        %8182 = vmatpush1.msra.mxu0 0.0
        %8183 = vmatprep.subr.mxu0 0.0
        %8184 = vmatpush1.msra.mxu0 0.0
        %8185 = vmatprep.subr.mxu0 0.0
        %8186 = vmatpush1.msra.mxu0 0.0
        %8187 = vmatprep.subr.mxu0 0.0
        %8188 = vmatpush1.msra.mxu0 0.0
        %8189 = vmatprep.subr.mxu0 0.0
        %8190 = vmatpush1.msra.mxu0 0.0
        %8191 = vmatprep.subr.mxu0 0.0
        %8192 = vmatpush1.msra.mxu0 0.0
        %8193 = vmatprep.subr.mxu0 0.0
        %8194 = vmatpush1.msra.mxu0 0.0
        %8195 = vmatprep.subr.mxu0 0.0
        %8196 = vmatpush1.msra.mxu0 0.0
        %8197 = vmatprep.subr.mxu0 0.0
        %8198 = vmatpush1.msra.mxu0 0.0
        %8199 = vmatprep.subr.mxu0 0.0
        %8200 = vmatpush1.msra.mxu0 0.0
        %8201 = vmatprep.subr.mxu0 0.0
        %8202 = vmatpush1.msra.mxu0 0.0
        %8203 = vmatprep.mubr.f32.mxu0 0.0
        %8204 = vmatmul.mubr.f32.gmra.mrb[0].mxu0 %v8116
        %v8205 = vpop.f32.mrb[0].mxu0
        %v8206 = vadd.f32 0.0, %v8205
        %v8207 = vpop.f32.mrb[0].mxu0
        %8208 = vmatprep.mubr.f32.mxu0 0.0
        %8209 = vmatmul.mubr.f32.gmra.mrb[0].mxu0 %v8119
        %v8210 = vpop.f32.mrb[0].mxu0
        %v8211 = vadd.f32 0.0, %v8210
        %v8212 = vpop.f32.mrb[0].mxu0
        %8213 = vmatprep.mubr.f32.mxu0 0.0
        %8214 = vmatmul.mubr.f32.gmra.mrb[0].mxu0 %v8122
        %v8215 = vpop.f32.mrb[0].mxu0
        %v8216 = vadd.f32 0.0, %v8215
        %v8217 = vpop.f32.mrb[0].mxu0
        %8218 = vmatprep.mubr.f32.mxu0 0.0
        %8219 = vmatmul.mubr.f32.gmra.mrb[0].mxu0 %v8125
        %v8220 = vpop.f32.mrb[0].mxu0
        %v8221 = vadd.f32 0.0, %v8220
        %v8222 = vpop.f32.mrb[0].mxu0
        %8223 = vmatprep.mubr.f32.mxu0 0.0
        %8224 = vmatmul.mubr.f32.gmra.mrb[0].mxu0 %v8128
        %v8225 = vpop.f32.mrb[0].mxu0
        %v8226 = vadd.f32 0.0, %v8225
        %v8227 = vpop.f32.mrb[0].mxu0
        %8228 = vmatprep.mubr.f32.mxu0 0.0
        %8229 = vmatmul.mubr.f32.gmra.mrb[0].mxu0 %v8131
        %v8230 = vpop.f32.mrb[0].mxu0
        %v8231 = vadd.f32 0.0, %v8230
        %v8232 = vpop.f32.mrb[0].mxu0
        %8233 = vmatprep.mubr.f32.mxu0 0.0
        %8234 = vmatmul.mubr.f32.gmra.mrb[0].mxu0 %v8134
        %v8235 = vpop.f32.mrb[0].mxu0
        %v8236 = vadd.f32 0.0, %v8235
        %v8237 = vpop.f32.mrb[0].mxu0
        %8238 = vmatprep.mubr.f32.mxu0 0.0
        %8239 = vmatmul.mubr.f32.gmra.mrb[0].mxu0 %v8137
        %v8240 = vpop.f32.mrb[0].mxu0
        %v8241 = vadd.f32 0.0, %v8240
        %v8242 = vpop.f32.mrb[0].mxu0
        %8243 = vdwg.mxu0
        %v8244 = vadd.f32 %v7269, %v8206
        %v8245 = vadd.f32 %v7274, %v8211
        %v8246 = vadd.f32 %v7279, %v8216
        %v8247 = vadd.f32 %v7284, %v8221
        %v8248 = vadd.f32 %v7289, %v8226
        %v8249 = vadd.f32 %v7294, %v8231
        %v8250 = vadd.f32 %v7299, %v8236
        %v8251 = vadd.f32 %v7304, %v8241
        %8252 = vrot.lane.b32.xlu0 %v5398, 104
        %v8253 = vpop.permute.xlu0 %8252
        %8254 = vrot.lane.b32.xlu0 %v5403, 104
        %v8255 = vpop.permute.xlu0 %8254
        %8256 = vrot.lane.b32.xlu0 %v5398, 72
        %v8257 = vpop.permute.xlu0 %8256
        %8258 = vrot.lane.b32.xlu0 %v5403, 72
        %v8259 = vpop.permute.xlu0 %8258
        %v8260 = vsel %vm796, %v8253, 0
        %v8262 = vsel %vm796, %v8255, 0
        %v8264 = vsel %vm796, %v8257, 0
        %v8266 = vsel %vm796, %v8259, 0
        %8268 = vmatprep.subr.mxu0 0.0
        %8269 = vmatpush1.xpose.msra.mxu0 %v8264
        %8270 = vmatprep.subr.mxu0 0.0
        %8271 = vmatpush1.xpose.msra.mxu0 %v8266
        %8272 = vmatprep.subr.mxu0 0.0
        %8273 = vmatpush1.xpose.msra.mxu0 0.0
        %8274 = vmatprep.subr.mxu0 0.0
        %8275 = vmatpush1.xpose.msra.mxu0 0.0
        %8276 = vmatprep.subr.mxu0 0.0
        %8277 = vmatpush1.xpose.msra.mxu0 0.0
        %8278 = vmatprep.subr.mxu0 0.0
        %8279 = vmatpush1.xpose.msra.mxu0 0.0
        %8280 = vmatprep.subr.mxu0 0.0
        %8281 = vmatpush1.xpose.msra.mxu0 0.0
        %8282 = vmatprep.subr.mxu0 0.0
        %8283 = vmatpush1.xpose.msra.mxu0 0.0
        %8284 = vmatprep.subr.mxu0 0.0
        %8285 = vmatpush1.xpose.msra.mxu0 0.0
        %8286 = vmatprep.subr.mxu0 0.0
        %8287 = vmatpush1.xpose.msra.mxu0 0.0
        %8288 = vmatprep.subr.mxu0 0.0
        %8289 = vmatpush1.xpose.msra.mxu0 0.0
        %8290 = vmatprep.subr.mxu0 0.0
        %8291 = vmatpush1.xpose.msra.mxu0 0.0
        %8292 = vmatprep.subr.mxu0 0.0
        %8293 = vmatpush1.xpose.msra.mxu0 0.0
        %8294 = vmatprep.subr.mxu0 0.0
        %8295 = vmatpush1.xpose.msra.mxu0 0.0
        %8296 = vmatprep.subr.mxu0 0.0
        %8297 = vmatpush1.xpose.msra.mxu0 0.0
        %8298 = vmatprep.subr.mxu0 0.0
        %8299 = vmatpush1.xpose.msra.mxu0 0.0
        %8300 = vmatprep.subr.mxu0 0.0
        %8301 = vmatpush1.xpose.msra.mxu0 0.0
        %8302 = vmatprep.subr.mxu0 0.0
        %8303 = vmatpush1.xpose.msra.mxu0 0.0
        %8304 = vmatprep.subr.mxu0 0.0
        %8305 = vmatpush1.xpose.msra.mxu0 0.0
        %8306 = vmatprep.subr.mxu0 0.0
        %8307 = vmatpush1.xpose.msra.mxu0 0.0
        %8308 = vmatprep.subr.mxu0 0.0
        %8309 = vmatpush1.xpose.msra.mxu0 0.0
        %8310 = vmatprep.subr.mxu0 0.0
        %8311 = vmatpush1.xpose.msra.mxu0 0.0
        %8312 = vmatprep.subr.mxu0 0.0
        %8313 = vmatpush1.xpose.msra.mxu0 0.0
        %8314 = vmatprep.subr.mxu0 0.0
        %8315 = vmatpush1.xpose.msra.mxu0 0.0
        %8316 = vmatprep.subr.mxu0 0.0
        %8317 = vmatpush1.xpose.msra.mxu0 0.0
        %8318 = vmatprep.subr.mxu0 0.0
        %8319 = vmatpush1.xpose.msra.mxu0 0.0
        %8320 = vmatprep.subr.mxu0 0.0
        %8321 = vmatpush1.xpose.msra.mxu0 0.0
        %8322 = vmatprep.subr.mxu0 0.0
        %8323 = vmatpush1.xpose.msra.mxu0 0.0
        %8324 = vmatprep.subr.mxu0 0.0
        %8325 = vmatpush1.xpose.msra.mxu0 0.0
        %8326 = vmatprep.subr.mxu0 0.0
        %8327 = vmatpush1.xpose.msra.mxu0 0.0
        %8328 = vmatprep.subr.mxu0 0.0
        %8329 = vmatpush1.xpose.msra.mxu0 0.0
        %8330 = vmatprep.subr.mxu0 0.0
        %8331 = vmatpush1.xpose.msra.mxu0 0.0
        %8332 = vmatprep.mubr.f32.mxu0 0.0
        %8333 = vmatmul.mubr.f32.gmra.mrb[0].mxu0 %v8260
        %v8334 = vpop.f32.mrb[0].mxu0
        %v8335 = vadd.f32 0.0, %v8334
        %v8336 = vpop.f32.mrb[0].mxu0
        %8337 = vmatprep.mubr.f32.mxu0 0.0
        %8338 = vmatmul.mubr.f32.gmra.mrb[0].mxu0 %v8262
        %v8339 = vpop.f32.mrb[0].mxu0
        %v8340 = vadd.f32 0.0, %v8339
        %v8341 = vpop.f32.mrb[0].mxu0
        %8342 = vdwg.mxu0
        %8343 = vrot.lane.b32.xlu0 %v5408, 104
        %v8344 = vpop.permute.xlu0 %8343
        %8345 = vrot.lane.b32.xlu0 %v5413, 104
        %v8346 = vpop.permute.xlu0 %8345
        %8347 = vrot.lane.b32.xlu0 %v5408, 72
        %v8348 = vpop.permute.xlu0 %8347
        %8349 = vrot.lane.b32.xlu0 %v5413, 72
        %v8350 = vpop.permute.xlu0 %8349
        %v8351 = vsel %vm796, %v8344, 0
        %v8353 = vsel %vm796, %v8346, 0
        %v8355 = vsel %vm796, %v8348, 0
        %v8357 = vsel %vm796, %v8350, 0
        %8359 = vmatprep.subr.mxu0 0.0
        %8360 = vmatpush1.xpose.msra.mxu0 %v8355
        %8361 = vmatprep.subr.mxu0 0.0
        %8362 = vmatpush1.xpose.msra.mxu0 %v8357
        %8363 = vmatprep.subr.mxu0 0.0
        %8364 = vmatpush1.xpose.msra.mxu0 0.0
        %8365 = vmatprep.subr.mxu0 0.0
        %8366 = vmatpush1.xpose.msra.mxu0 0.0
        %8367 = vmatprep.subr.mxu0 0.0
        %8368 = vmatpush1.xpose.msra.mxu0 0.0
        %8369 = vmatprep.subr.mxu0 0.0
        %8370 = vmatpush1.xpose.msra.mxu0 0.0
        %8371 = vmatprep.subr.mxu0 0.0
        %8372 = vmatpush1.xpose.msra.mxu0 0.0
        %8373 = vmatprep.subr.mxu0 0.0
        %8374 = vmatpush1.xpose.msra.mxu0 0.0
        %8375 = vmatprep.subr.mxu0 0.0
        %8376 = vmatpush1.xpose.msra.mxu0 0.0
        %8377 = vmatprep.subr.mxu0 0.0
        %8378 = vmatpush1.xpose.msra.mxu0 0.0
        %8379 = vmatprep.subr.mxu0 0.0
        %8380 = vmatpush1.xpose.msra.mxu0 0.0
        %8381 = vmatprep.subr.mxu0 0.0
        %8382 = vmatpush1.xpose.msra.mxu0 0.0
        %8383 = vmatprep.subr.mxu0 0.0
        %8384 = vmatpush1.xpose.msra.mxu0 0.0
        %8385 = vmatprep.subr.mxu0 0.0
        %8386 = vmatpush1.xpose.msra.mxu0 0.0
        %8387 = vmatprep.subr.mxu0 0.0
        %8388 = vmatpush1.xpose.msra.mxu0 0.0
        %8389 = vmatprep.subr.mxu0 0.0
        %8390 = vmatpush1.xpose.msra.mxu0 0.0
        %8391 = vmatprep.subr.mxu0 0.0
        %8392 = vmatpush1.xpose.msra.mxu0 0.0
        %8393 = vmatprep.subr.mxu0 0.0
        %8394 = vmatpush1.xpose.msra.mxu0 0.0
        %8395 = vmatprep.subr.mxu0 0.0
        %8396 = vmatpush1.xpose.msra.mxu0 0.0
        %8397 = vmatprep.subr.mxu0 0.0
        %8398 = vmatpush1.xpose.msra.mxu0 0.0
        %8399 = vmatprep.subr.mxu0 0.0
        %8400 = vmatpush1.xpose.msra.mxu0 0.0
        %8401 = vmatprep.subr.mxu0 0.0
        %8402 = vmatpush1.xpose.msra.mxu0 0.0
        %8403 = vmatprep.subr.mxu0 0.0
        %8404 = vmatpush1.xpose.msra.mxu0 0.0
        %8405 = vmatprep.subr.mxu0 0.0
        %8406 = vmatpush1.xpose.msra.mxu0 0.0
        %8407 = vmatprep.subr.mxu0 0.0
        %8408 = vmatpush1.xpose.msra.mxu0 0.0
        %8409 = vmatprep.subr.mxu0 0.0
        %8410 = vmatpush1.xpose.msra.mxu0 0.0
        %8411 = vmatprep.subr.mxu0 0.0
        %8412 = vmatpush1.xpose.msra.mxu0 0.0
        %8413 = vmatprep.subr.mxu0 0.0
        %8414 = vmatpush1.xpose.msra.mxu0 0.0
        %8415 = vmatprep.subr.mxu0 0.0
        %8416 = vmatpush1.xpose.msra.mxu0 0.0
        %8417 = vmatprep.subr.mxu0 0.0
        %8418 = vmatpush1.xpose.msra.mxu0 0.0
        %8419 = vmatprep.subr.mxu0 0.0
        %8420 = vmatpush1.xpose.msra.mxu0 0.0
        %8421 = vmatprep.subr.mxu0 0.0
        %8422 = vmatpush1.xpose.msra.mxu0 0.0
        %8423 = vmatprep.mubr.f32.mxu0 0.0
        %8424 = vmatmul.mubr.f32.gmra.mrb[0].mxu0 %v8351
        %v8425 = vpop.f32.mrb[0].mxu0
        %v8426 = vadd.f32 0.0, %v8425
        %v8427 = vpop.f32.mrb[0].mxu0
        %8428 = vmatprep.mubr.f32.mxu0 0.0
        %8429 = vmatmul.mubr.f32.gmra.mrb[0].mxu0 %v8353
        %v8430 = vpop.f32.mrb[0].mxu0
        %v8431 = vadd.f32 0.0, %v8430
        %v8432 = vpop.f32.mrb[0].mxu0
        %8433 = vdwg.mxu0
        %8434 = vrot.lane.b32.xlu0 %v5418, 104
        %v8435 = vpop.permute.xlu0 %8434
        %8436 = vrot.lane.b32.xlu0 %v5423, 104
        %v8437 = vpop.permute.xlu0 %8436
        %8438 = vrot.lane.b32.xlu0 %v5418, 72
        %v8439 = vpop.permute.xlu0 %8438
        %8440 = vrot.lane.b32.xlu0 %v5423, 72
        %v8441 = vpop.permute.xlu0 %8440
        %v8442 = vsel %vm796, %v8435, 0
        %v8444 = vsel %vm796, %v8437, 0
        %v8446 = vsel %vm796, %v8439, 0
        %v8448 = vsel %vm796, %v8441, 0
        %8450 = vmatprep.subr.mxu0 0.0
        %8451 = vmatpush1.xpose.msra.mxu0 %v8446
        %8452 = vmatprep.subr.mxu0 0.0
        %8453 = vmatpush1.xpose.msra.mxu0 %v8448
        %8454 = vmatprep.subr.mxu0 0.0
        %8455 = vmatpush1.xpose.msra.mxu0 0.0
        %8456 = vmatprep.subr.mxu0 0.0
        %8457 = vmatpush1.xpose.msra.mxu0 0.0
        %8458 = vmatprep.subr.mxu0 0.0
        %8459 = vmatpush1.xpose.msra.mxu0 0.0
        %8460 = vmatprep.subr.mxu0 0.0
        %8461 = vmatpush1.xpose.msra.mxu0 0.0
        %8462 = vmatprep.subr.mxu0 0.0
        %8463 = vmatpush1.xpose.msra.mxu0 0.0
        %8464 = vmatprep.subr.mxu0 0.0
        %8465 = vmatpush1.xpose.msra.mxu0 0.0
        %8466 = vmatprep.subr.mxu0 0.0
        %8467 = vmatpush1.xpose.msra.mxu0 0.0
        %8468 = vmatprep.subr.mxu0 0.0
        %8469 = vmatpush1.xpose.msra.mxu0 0.0
        %8470 = vmatprep.subr.mxu0 0.0
        %8471 = vmatpush1.xpose.msra.mxu0 0.0
        %8472 = vmatprep.subr.mxu0 0.0
        %8473 = vmatpush1.xpose.msra.mxu0 0.0
        %8474 = vmatprep.subr.mxu0 0.0
        %8475 = vmatpush1.xpose.msra.mxu0 0.0
        %8476 = vmatprep.subr.mxu0 0.0
        %8477 = vmatpush1.xpose.msra.mxu0 0.0
        %8478 = vmatprep.subr.mxu0 0.0
        %8479 = vmatpush1.xpose.msra.mxu0 0.0
        %8480 = vmatprep.subr.mxu0 0.0
        %8481 = vmatpush1.xpose.msra.mxu0 0.0
        %8482 = vmatprep.subr.mxu0 0.0
        %8483 = vmatpush1.xpose.msra.mxu0 0.0
        %8484 = vmatprep.subr.mxu0 0.0
        %8485 = vmatpush1.xpose.msra.mxu0 0.0
        %8486 = vmatprep.subr.mxu0 0.0
        %8487 = vmatpush1.xpose.msra.mxu0 0.0
        %8488 = vmatprep.subr.mxu0 0.0
        %8489 = vmatpush1.xpose.msra.mxu0 0.0
        %8490 = vmatprep.subr.mxu0 0.0
        %8491 = vmatpush1.xpose.msra.mxu0 0.0
        %8492 = vmatprep.subr.mxu0 0.0
        %8493 = vmatpush1.xpose.msra.mxu0 0.0
        %8494 = vmatprep.subr.mxu0 0.0
        %8495 = vmatpush1.xpose.msra.mxu0 0.0
        %8496 = vmatprep.subr.mxu0 0.0
        %8497 = vmatpush1.xpose.msra.mxu0 0.0
        %8498 = vmatprep.subr.mxu0 0.0
        %8499 = vmatpush1.xpose.msra.mxu0 0.0
        %8500 = vmatprep.subr.mxu0 0.0
        %8501 = vmatpush1.xpose.msra.mxu0 0.0
        %8502 = vmatprep.subr.mxu0 0.0
        %8503 = vmatpush1.xpose.msra.mxu0 0.0
        %8504 = vmatprep.subr.mxu0 0.0
        %8505 = vmatpush1.xpose.msra.mxu0 0.0
        %8506 = vmatprep.subr.mxu0 0.0
        %8507 = vmatpush1.xpose.msra.mxu0 0.0
        %8508 = vmatprep.subr.mxu0 0.0
        %8509 = vmatpush1.xpose.msra.mxu0 0.0
        %8510 = vmatprep.subr.mxu0 0.0
        %8511 = vmatpush1.xpose.msra.mxu0 0.0
        %8512 = vmatprep.subr.mxu0 0.0
        %8513 = vmatpush1.xpose.msra.mxu0 0.0
        %8514 = vmatprep.mubr.f32.mxu0 0.0
        %8515 = vmatmul.mubr.f32.gmra.mrb[0].mxu0 %v8442
        %v8516 = vpop.f32.mrb[0].mxu0
        %v8517 = vadd.f32 0.0, %v8516
        %v8518 = vpop.f32.mrb[0].mxu0
        %8519 = vmatprep.mubr.f32.mxu0 0.0
        %8520 = vmatmul.mubr.f32.gmra.mrb[0].mxu0 %v8444
        %v8521 = vpop.f32.mrb[0].mxu0
        %v8522 = vadd.f32 0.0, %v8521
        %v8523 = vpop.f32.mrb[0].mxu0
        %8524 = vdwg.mxu0
        %8525 = vrot.lane.b32.xlu0 %v5428, 104
        %v8526 = vpop.permute.xlu0 %8525
        %8527 = vrot.lane.b32.xlu0 %v5433, 104
        %v8528 = vpop.permute.xlu0 %8527
        %8529 = vrot.lane.b32.xlu0 %v5428, 72
        %v8530 = vpop.permute.xlu0 %8529
        %8531 = vrot.lane.b32.xlu0 %v5433, 72
        %v8532 = vpop.permute.xlu0 %8531
        %v8533 = vsel %vm796, %v8526, 0
        %v8535 = vsel %vm796, %v8528, 0
        %v8537 = vsel %vm796, %v8530, 0
        %v8539 = vsel %vm796, %v8532, 0
        %8541 = vmatprep.subr.mxu0 0.0
        %8542 = vmatpush1.xpose.msra.mxu0 %v8537
        %8543 = vmatprep.subr.mxu0 0.0
        %8544 = vmatpush1.xpose.msra.mxu0 %v8539
        %8545 = vmatprep.subr.mxu0 0.0
        %8546 = vmatpush1.xpose.msra.mxu0 0.0
        %8547 = vmatprep.subr.mxu0 0.0
        %8548 = vmatpush1.xpose.msra.mxu0 0.0
        %8549 = vmatprep.subr.mxu0 0.0
        %8550 = vmatpush1.xpose.msra.mxu0 0.0
        %8551 = vmatprep.subr.mxu0 0.0
        %8552 = vmatpush1.xpose.msra.mxu0 0.0
        %8553 = vmatprep.subr.mxu0 0.0
        %8554 = vmatpush1.xpose.msra.mxu0 0.0
        %8555 = vmatprep.subr.mxu0 0.0
        %8556 = vmatpush1.xpose.msra.mxu0 0.0
        %8557 = vmatprep.subr.mxu0 0.0
        %8558 = vmatpush1.xpose.msra.mxu0 0.0
        %8559 = vmatprep.subr.mxu0 0.0
        %8560 = vmatpush1.xpose.msra.mxu0 0.0
        %8561 = vmatprep.subr.mxu0 0.0
        %8562 = vmatpush1.xpose.msra.mxu0 0.0
        %8563 = vmatprep.subr.mxu0 0.0
        %8564 = vmatpush1.xpose.msra.mxu0 0.0
        %8565 = vmatprep.subr.mxu0 0.0
        %8566 = vmatpush1.xpose.msra.mxu0 0.0
        %8567 = vmatprep.subr.mxu0 0.0
        %8568 = vmatpush1.xpose.msra.mxu0 0.0
        %8569 = vmatprep.subr.mxu0 0.0
        %8570 = vmatpush1.xpose.msra.mxu0 0.0
        %8571 = vmatprep.subr.mxu0 0.0
        %8572 = vmatpush1.xpose.msra.mxu0 0.0
        %8573 = vmatprep.subr.mxu0 0.0
        %8574 = vmatpush1.xpose.msra.mxu0 0.0
        %8575 = vmatprep.subr.mxu0 0.0
        %8576 = vmatpush1.xpose.msra.mxu0 0.0
        %8577 = vmatprep.subr.mxu0 0.0
        %8578 = vmatpush1.xpose.msra.mxu0 0.0
        %8579 = vmatprep.subr.mxu0 0.0
        %8580 = vmatpush1.xpose.msra.mxu0 0.0
        %8581 = vmatprep.subr.mxu0 0.0
        %8582 = vmatpush1.xpose.msra.mxu0 0.0
        %8583 = vmatprep.subr.mxu0 0.0
        %8584 = vmatpush1.xpose.msra.mxu0 0.0
        %8585 = vmatprep.subr.mxu0 0.0
        %8586 = vmatpush1.xpose.msra.mxu0 0.0
        %8587 = vmatprep.subr.mxu0 0.0
        %8588 = vmatpush1.xpose.msra.mxu0 0.0
        %8589 = vmatprep.subr.mxu0 0.0
        %8590 = vmatpush1.xpose.msra.mxu0 0.0
        %8591 = vmatprep.subr.mxu0 0.0
        %8592 = vmatpush1.xpose.msra.mxu0 0.0
        %8593 = vmatprep.subr.mxu0 0.0
        %8594 = vmatpush1.xpose.msra.mxu0 0.0
        %8595 = vmatprep.subr.mxu0 0.0
        %8596 = vmatpush1.xpose.msra.mxu0 0.0
        %8597 = vmatprep.subr.mxu0 0.0
        %8598 = vmatpush1.xpose.msra.mxu0 0.0
        %8599 = vmatprep.subr.mxu0 0.0
        %8600 = vmatpush1.xpose.msra.mxu0 0.0
        %8601 = vmatprep.subr.mxu0 0.0
        %8602 = vmatpush1.xpose.msra.mxu0 0.0
        %8603 = vmatprep.subr.mxu0 0.0
        %8604 = vmatpush1.xpose.msra.mxu0 0.0
        %8605 = vmatprep.mubr.f32.mxu0 0.0
        %8606 = vmatmul.mubr.f32.gmra.mrb[0].mxu0 %v8533
        %v8607 = vpop.f32.mrb[0].mxu0
        %v8608 = vadd.f32 0.0, %v8607
        %v8609 = vpop.f32.mrb[0].mxu0
        %8610 = vmatprep.mubr.f32.mxu0 0.0
        %8611 = vmatmul.mubr.f32.gmra.mrb[0].mxu0 %v8535
        %v8612 = vpop.f32.mrb[0].mxu0
        %v8613 = vadd.f32 0.0, %v8612
        %v8614 = vpop.f32.mrb[0].mxu0
        %8615 = vdwg.mxu0
        %v8616 = vmul.f32 %v8335, 0.35355338
        %v8617 = vmul.f32 %v8340, 0.35355338
        %v8618 = vmul.f32 %v8426, 0.35355338
        %v8619 = vmul.f32 %v8431, 0.35355338
        %v8620 = vmul.f32 %v8517, 0.35355338
        %v8621 = vmul.f32 %v8522, 0.35355338
        %v8622 = vmul.f32 %v8608, 0.35355338
        %v8623 = vmul.f32 %v8613, 0.35355338
        %v8624 = vsel %vm1155, %v8616, -inf
        %8625 = vmax.xlane.f32.xlu0 %v8624
        %v8626 = vpop.xlane.xlu0 %8625
        %v8627 = vsel %vm1155, %v8617, -inf
        %8628 = vmax.xlane.f32.xlu0 %v8627
        %v8629 = vpop.xlane.xlu0 %8628
        %v8630 = vsel %vm1155, %v8618, -inf
        %8631 = vmax.xlane.f32.xlu0 %v8630
        %v8632 = vpop.xlane.xlu0 %8631
        %v8633 = vsel %vm1155, %v8619, -inf
        %8634 = vmax.xlane.f32.xlu0 %v8633
        %v8635 = vpop.xlane.xlu0 %8634
        %v8636 = vsel %vm1155, %v8620, -inf
        %8637 = vmax.xlane.f32.xlu0 %v8636
        %v8638 = vpop.xlane.xlu0 %8637
        %v8639 = vsel %vm1155, %v8621, -inf
        %8640 = vmax.xlane.f32.xlu0 %v8639
        %v8641 = vpop.xlane.xlu0 %8640
        %v8642 = vsel %vm1155, %v8622, -inf
        %8643 = vmax.xlane.f32.xlu0 %v8642
        %v8644 = vpop.xlane.xlu0 %8643
        %v8645 = vsel %vm1155, %v8623, -inf
        %8646 = vmax.xlane.f32.xlu0 %v8645
        %v8647 = vpop.xlane.xlu0 %8646
        %v8648 = vsub.f32 %v8616, %v8626
        %v8649 = vsub.f32 %v8617, %v8629
        %v8650 = vsub.f32 %v8618, %v8632
        %v8651 = vsub.f32 %v8619, %v8635
        %v8652 = vsub.f32 %v8620, %v8638
        %v8653 = vsub.f32 %v8621, %v8641
        %v8654 = vsub.f32 %v8622, %v8644
        %v8655 = vsub.f32 %v8623, %v8647
        %v8656 = vmul.f32 %v8648, 1.442695
        %v8657 = vpow.pop %v8656
        %v8658 = vmul.f32 %v8649, 1.442695
        %v8659 = vpow.pop %v8658
        %v8660 = vmul.f32 %v8650, 1.442695
        %v8661 = vpow.pop %v8660
        %v8662 = vmul.f32 %v8651, 1.442695
        %v8663 = vpow.pop %v8662
        %v8664 = vmul.f32 %v8652, 1.442695
        %v8665 = vpow.pop %v8664
        %v8666 = vmul.f32 %v8653, 1.442695
        %v8667 = vpow.pop %v8666
        %v8668 = vmul.f32 %v8654, 1.442695
        %v8669 = vpow.pop %v8668
        %v8670 = vmul.f32 %v8655, 1.442695
        %v8671 = vpow.pop %v8670
        %v8672 = vsel %vm1155, %v8657, 0.0
        %8673 = vadd.xlane.f32.xlu0 %v8672
        %v8674 = vpop.xlane.xlu0 %8673
        %v8675 = vsel %vm1155, %v8659, 0.0
        %8676 = vadd.xlane.f32.xlu0 %v8675
        %v8677 = vpop.xlane.xlu0 %8676
        %v8678 = vsel %vm1155, %v8661, 0.0
        %8679 = vadd.xlane.f32.xlu0 %v8678
        %v8680 = vpop.xlane.xlu0 %8679
        %v8681 = vsel %vm1155, %v8663, 0.0
        %8682 = vadd.xlane.f32.xlu0 %v8681
        %v8683 = vpop.xlane.xlu0 %8682
        %v8684 = vsel %vm1155, %v8665, 0.0
        %8685 = vadd.xlane.f32.xlu0 %v8684
        %v8686 = vpop.xlane.xlu0 %8685
        %v8687 = vsel %vm1155, %v8667, 0.0
        %8688 = vadd.xlane.f32.xlu0 %v8687
        %v8689 = vpop.xlane.xlu0 %8688
        %v8690 = vsel %vm1155, %v8669, 0.0
        %8691 = vadd.xlane.f32.xlu0 %v8690
        %v8692 = vpop.xlane.xlu0 %8691
        %v8693 = vsel %vm1155, %v8671, 0.0
        %8694 = vadd.xlane.f32.xlu0 %v8693
        %v8695 = vpop.xlane.xlu0 %8694
        %v8696 = vrcp.pop %v8674
        %v8697 = vmul.f32 %v8657, %v8696
        %v8698 = vrcp.pop %v8677
        %v8699 = vmul.f32 %v8659, %v8698
        %v8700 = vrcp.pop %v8680
        %v8701 = vmul.f32 %v8661, %v8700
        %v8702 = vrcp.pop %v8683
        %v8703 = vmul.f32 %v8663, %v8702
        %v8704 = vrcp.pop %v8686
        %v8705 = vmul.f32 %v8665, %v8704
        %v8706 = vrcp.pop %v8689
        %v8707 = vmul.f32 %v8667, %v8706
        %v8708 = vrcp.pop %v8692
        %v8709 = vmul.f32 %v8669, %v8708
        %v8710 = vrcp.pop %v8695
        %v8711 = vmul.f32 %v8671, %v8710
        %8712 = vrot.lane.b32.xlu0 %v5398, 40
        %v8713 = vpop.permute.xlu0 %8712
        %8714 = vrot.lane.b32.xlu0 %v5403, 40
        %v8715 = vpop.permute.xlu0 %8714
        %v8719 = vsel %vm1155, %v8697, 0
        %v8722 = vsel %vm1155, %v8699, 0
        %8724 = vmatprep.subr.mxu0 0.0
        %8725 = vmatpush1.msra.mxu0 %v8713
        %8726 = vmatprep.subr.mxu0 0.0
        %8727 = vmatpush1.msra.mxu0 %v8715
        %8728 = vmatprep.subr.mxu0 0.0
        %8729 = vmatpush1.msra.mxu0 0.0
        %8730 = vmatprep.subr.mxu0 0.0
        %8731 = vmatpush1.msra.mxu0 0.0
        %8732 = vmatprep.subr.mxu0 0.0
        %8733 = vmatpush1.msra.mxu0 0.0
        %8734 = vmatprep.subr.mxu0 0.0
        %8735 = vmatpush1.msra.mxu0 0.0
        %8736 = vmatprep.subr.mxu0 0.0
        %8737 = vmatpush1.msra.mxu0 0.0
        %8738 = vmatprep.subr.mxu0 0.0
        %8739 = vmatpush1.msra.mxu0 0.0
        %8740 = vmatprep.subr.mxu0 0.0
        %8741 = vmatpush1.msra.mxu0 0.0
        %8742 = vmatprep.subr.mxu0 0.0
        %8743 = vmatpush1.msra.mxu0 0.0
        %8744 = vmatprep.subr.mxu0 0.0
        %8745 = vmatpush1.msra.mxu0 0.0
        %8746 = vmatprep.subr.mxu0 0.0
        %8747 = vmatpush1.msra.mxu0 0.0
        %8748 = vmatprep.subr.mxu0 0.0
        %8749 = vmatpush1.msra.mxu0 0.0
        %8750 = vmatprep.subr.mxu0 0.0
        %8751 = vmatpush1.msra.mxu0 0.0
        %8752 = vmatprep.subr.mxu0 0.0
        %8753 = vmatpush1.msra.mxu0 0.0
        %8754 = vmatprep.subr.mxu0 0.0
        %8755 = vmatpush1.msra.mxu0 0.0
        %8756 = vmatprep.subr.mxu0 0.0
        %8757 = vmatpush1.msra.mxu0 0.0
        %8758 = vmatprep.subr.mxu0 0.0
        %8759 = vmatpush1.msra.mxu0 0.0
        %8760 = vmatprep.subr.mxu0 0.0
        %8761 = vmatpush1.msra.mxu0 0.0
        %8762 = vmatprep.subr.mxu0 0.0
        %8763 = vmatpush1.msra.mxu0 0.0
        %8764 = vmatprep.subr.mxu0 0.0
        %8765 = vmatpush1.msra.mxu0 0.0
        %8766 = vmatprep.subr.mxu0 0.0
        %8767 = vmatpush1.msra.mxu0 0.0
        %8768 = vmatprep.subr.mxu0 0.0
        %8769 = vmatpush1.msra.mxu0 0.0
        %8770 = vmatprep.subr.mxu0 0.0
        %8771 = vmatpush1.msra.mxu0 0.0
        %8772 = vmatprep.subr.mxu0 0.0
        %8773 = vmatpush1.msra.mxu0 0.0
        %8774 = vmatprep.subr.mxu0 0.0
        %8775 = vmatpush1.msra.mxu0 0.0
        %8776 = vmatprep.subr.mxu0 0.0
        %8777 = vmatpush1.msra.mxu0 0.0
        %8778 = vmatprep.subr.mxu0 0.0
        %8779 = vmatpush1.msra.mxu0 0.0
        %8780 = vmatprep.subr.mxu0 0.0
        %8781 = vmatpush1.msra.mxu0 0.0
        %8782 = vmatprep.subr.mxu0 0.0
        %8783 = vmatpush1.msra.mxu0 0.0
        %8784 = vmatprep.subr.mxu0 0.0
        %8785 = vmatpush1.msra.mxu0 0.0
        %8786 = vmatprep.subr.mxu0 0.0
        %8787 = vmatpush1.msra.mxu0 0.0
        %8788 = vmatprep.mubr.f32.mxu0 0.0
        %8789 = vmatmul.mubr.f32.gmra.mrb[0].mxu0 %v8719
        %v8790 = vpop.f32.mrb[0].mxu0
        %v8791 = vadd.f32 0.0, %v8790
        %v8792 = vpop.f32.mrb[0].mxu0
        %8793 = vmatprep.mubr.f32.mxu0 0.0
        %8794 = vmatmul.mubr.f32.gmra.mrb[0].mxu0 %v8722
        %v8795 = vpop.f32.mrb[0].mxu0
        %v8796 = vadd.f32 0.0, %v8795
        %v8797 = vpop.f32.mrb[0].mxu0
        %8798 = vdwg.mxu0
        %8799 = vrot.lane.b32.xlu0 %v5408, 40
        %v8800 = vpop.permute.xlu0 %8799
        %8801 = vrot.lane.b32.xlu0 %v5413, 40
        %v8802 = vpop.permute.xlu0 %8801
        %v8806 = vsel %vm1155, %v8701, 0
        %v8809 = vsel %vm1155, %v8703, 0
        %8811 = vmatprep.subr.mxu0 0.0
        %8812 = vmatpush1.msra.mxu0 %v8800
        %8813 = vmatprep.subr.mxu0 0.0
        %8814 = vmatpush1.msra.mxu0 %v8802
        %8815 = vmatprep.subr.mxu0 0.0
        %8816 = vmatpush1.msra.mxu0 0.0
        %8817 = vmatprep.subr.mxu0 0.0
        %8818 = vmatpush1.msra.mxu0 0.0
        %8819 = vmatprep.subr.mxu0 0.0
        %8820 = vmatpush1.msra.mxu0 0.0
        %8821 = vmatprep.subr.mxu0 0.0
        %8822 = vmatpush1.msra.mxu0 0.0
        %8823 = vmatprep.subr.mxu0 0.0
        %8824 = vmatpush1.msra.mxu0 0.0
        %8825 = vmatprep.subr.mxu0 0.0
        %8826 = vmatpush1.msra.mxu0 0.0
        %8827 = vmatprep.subr.mxu0 0.0
        %8828 = vmatpush1.msra.mxu0 0.0
        %8829 = vmatprep.subr.mxu0 0.0
        %8830 = vmatpush1.msra.mxu0 0.0
        %8831 = vmatprep.subr.mxu0 0.0
        %8832 = vmatpush1.msra.mxu0 0.0
        %8833 = vmatprep.subr.mxu0 0.0
        %8834 = vmatpush1.msra.mxu0 0.0
        %8835 = vmatprep.subr.mxu0 0.0
        %8836 = vmatpush1.msra.mxu0 0.0
        %8837 = vmatprep.subr.mxu0 0.0
        %8838 = vmatpush1.msra.mxu0 0.0
        %8839 = vmatprep.subr.mxu0 0.0
        %8840 = vmatpush1.msra.mxu0 0.0
        %8841 = vmatprep.subr.mxu0 0.0
        %8842 = vmatpush1.msra.mxu0 0.0
        %8843 = vmatprep.subr.mxu0 0.0
        %8844 = vmatpush1.msra.mxu0 0.0
        %8845 = vmatprep.subr.mxu0 0.0
        %8846 = vmatpush1.msra.mxu0 0.0
        %8847 = vmatprep.subr.mxu0 0.0
        %8848 = vmatpush1.msra.mxu0 0.0
        %8849 = vmatprep.subr.mxu0 0.0
        %8850 = vmatpush1.msra.mxu0 0.0
        %8851 = vmatprep.subr.mxu0 0.0
        %8852 = vmatpush1.msra.mxu0 0.0
        %8853 = vmatprep.subr.mxu0 0.0
        %8854 = vmatpush1.msra.mxu0 0.0
        %8855 = vmatprep.subr.mxu0 0.0
        %8856 = vmatpush1.msra.mxu0 0.0
        %8857 = vmatprep.subr.mxu0 0.0
        %8858 = vmatpush1.msra.mxu0 0.0
        %8859 = vmatprep.subr.mxu0 0.0
        %8860 = vmatpush1.msra.mxu0 0.0
        %8861 = vmatprep.subr.mxu0 0.0
        %8862 = vmatpush1.msra.mxu0 0.0
        %8863 = vmatprep.subr.mxu0 0.0
        %8864 = vmatpush1.msra.mxu0 0.0
        %8865 = vmatprep.subr.mxu0 0.0
        %8866 = vmatpush1.msra.mxu0 0.0
        %8867 = vmatprep.subr.mxu0 0.0
        %8868 = vmatpush1.msra.mxu0 0.0
        %8869 = vmatprep.subr.mxu0 0.0
        %8870 = vmatpush1.msra.mxu0 0.0
        %8871 = vmatprep.subr.mxu0 0.0
        %8872 = vmatpush1.msra.mxu0 0.0
        %8873 = vmatprep.subr.mxu0 0.0
        %8874 = vmatpush1.msra.mxu0 0.0
        %8875 = vmatprep.mubr.f32.mxu0 0.0
        %8876 = vmatmul.mubr.f32.gmra.mrb[0].mxu0 %v8806
        %v8877 = vpop.f32.mrb[0].mxu0
        %v8878 = vadd.f32 0.0, %v8877
        %v8879 = vpop.f32.mrb[0].mxu0
        %8880 = vmatprep.mubr.f32.mxu0 0.0
        %8881 = vmatmul.mubr.f32.gmra.mrb[0].mxu0 %v8809
        %v8882 = vpop.f32.mrb[0].mxu0
        %v8883 = vadd.f32 0.0, %v8882
        %v8884 = vpop.f32.mrb[0].mxu0
        %8885 = vdwg.mxu0
        %8886 = vrot.lane.b32.xlu0 %v5418, 40
        %v8887 = vpop.permute.xlu0 %8886
        %8888 = vrot.lane.b32.xlu0 %v5423, 40
        %v8889 = vpop.permute.xlu0 %8888
        %v8893 = vsel %vm1155, %v8705, 0
        %v8896 = vsel %vm1155, %v8707, 0
        %8898 = vmatprep.subr.mxu0 0.0
        %8899 = vmatpush1.msra.mxu0 %v8887
        %8900 = vmatprep.subr.mxu0 0.0
        %8901 = vmatpush1.msra.mxu0 %v8889
        %8902 = vmatprep.subr.mxu0 0.0
        %8903 = vmatpush1.msra.mxu0 0.0
        %8904 = vmatprep.subr.mxu0 0.0
        %8905 = vmatpush1.msra.mxu0 0.0
        %8906 = vmatprep.subr.mxu0 0.0
        %8907 = vmatpush1.msra.mxu0 0.0
        %8908 = vmatprep.subr.mxu0 0.0
        %8909 = vmatpush1.msra.mxu0 0.0
        %8910 = vmatprep.subr.mxu0 0.0
        %8911 = vmatpush1.msra.mxu0 0.0
        %8912 = vmatprep.subr.mxu0 0.0
        %8913 = vmatpush1.msra.mxu0 0.0
        %8914 = vmatprep.subr.mxu0 0.0
        %8915 = vmatpush1.msra.mxu0 0.0
        %8916 = vmatprep.subr.mxu0 0.0
        %8917 = vmatpush1.msra.mxu0 0.0
        %8918 = vmatprep.subr.mxu0 0.0
        %8919 = vmatpush1.msra.mxu0 0.0
        %8920 = vmatprep.subr.mxu0 0.0
        %8921 = vmatpush1.msra.mxu0 0.0
        %8922 = vmatprep.subr.mxu0 0.0
        %8923 = vmatpush1.msra.mxu0 0.0
        %8924 = vmatprep.subr.mxu0 0.0
        %8925 = vmatpush1.msra.mxu0 0.0
        %8926 = vmatprep.subr.mxu0 0.0
        %8927 = vmatpush1.msra.mxu0 0.0
        %8928 = vmatprep.subr.mxu0 0.0
        %8929 = vmatpush1.msra.mxu0 0.0
        %8930 = vmatprep.subr.mxu0 0.0
        %8931 = vmatpush1.msra.mxu0 0.0
        %8932 = vmatprep.subr.mxu0 0.0
        %8933 = vmatpush1.msra.mxu0 0.0
        %8934 = vmatprep.subr.mxu0 0.0
        %8935 = vmatpush1.msra.mxu0 0.0
        %8936 = vmatprep.subr.mxu0 0.0
        %8937 = vmatpush1.msra.mxu0 0.0
        %8938 = vmatprep.subr.mxu0 0.0
        %8939 = vmatpush1.msra.mxu0 0.0
        %8940 = vmatprep.subr.mxu0 0.0
        %8941 = vmatpush1.msra.mxu0 0.0
        %8942 = vmatprep.subr.mxu0 0.0
        %8943 = vmatpush1.msra.mxu0 0.0
        %8944 = vmatprep.subr.mxu0 0.0
        %8945 = vmatpush1.msra.mxu0 0.0
        %8946 = vmatprep.subr.mxu0 0.0
        %8947 = vmatpush1.msra.mxu0 0.0
        %8948 = vmatprep.subr.mxu0 0.0
        %8949 = vmatpush1.msra.mxu0 0.0
        %8950 = vmatprep.subr.mxu0 0.0
        %8951 = vmatpush1.msra.mxu0 0.0
        %8952 = vmatprep.subr.mxu0 0.0
        %8953 = vmatpush1.msra.mxu0 0.0
        %8954 = vmatprep.subr.mxu0 0.0
        %8955 = vmatpush1.msra.mxu0 0.0
        %8956 = vmatprep.subr.mxu0 0.0
        %8957 = vmatpush1.msra.mxu0 0.0
        %8958 = vmatprep.subr.mxu0 0.0
        %8959 = vmatpush1.msra.mxu0 0.0
        %8960 = vmatprep.subr.mxu0 0.0
        %8961 = vmatpush1.msra.mxu0 0.0
        %8962 = vmatprep.mubr.f32.mxu0 0.0
        %8963 = vmatmul.mubr.f32.gmra.mrb[0].mxu0 %v8893
        %v8964 = vpop.f32.mrb[0].mxu0
        %v8965 = vadd.f32 0.0, %v8964
        %v8966 = vpop.f32.mrb[0].mxu0
        %8967 = vmatprep.mubr.f32.mxu0 0.0
        %8968 = vmatmul.mubr.f32.gmra.mrb[0].mxu0 %v8896
        %v8969 = vpop.f32.mrb[0].mxu0
        %v8970 = vadd.f32 0.0, %v8969
        %v8971 = vpop.f32.mrb[0].mxu0
        %8972 = vdwg.mxu0
        %8973 = vrot.lane.b32.xlu0 %v5428, 40
        %v8974 = vpop.permute.xlu0 %8973
        %8975 = vrot.lane.b32.xlu0 %v5433, 40
        %v8976 = vpop.permute.xlu0 %8975
        %v8980 = vsel %vm1155, %v8709, 0
        %v8983 = vsel %vm1155, %v8711, 0
        %8985 = vmatprep.subr.mxu0 0.0
        %8986 = vmatpush1.msra.mxu0 %v8974
        %8987 = vmatprep.subr.mxu0 0.0
        %8988 = vmatpush1.msra.mxu0 %v8976
        %8989 = vmatprep.subr.mxu0 0.0
        %8990 = vmatpush1.msra.mxu0 0.0
        %8991 = vmatprep.subr.mxu0 0.0
        %8992 = vmatpush1.msra.mxu0 0.0
        %8993 = vmatprep.subr.mxu0 0.0
        %8994 = vmatpush1.msra.mxu0 0.0
        %8995 = vmatprep.subr.mxu0 0.0
        %8996 = vmatpush1.msra.mxu0 0.0
        %8997 = vmatprep.subr.mxu0 0.0
        %8998 = vmatpush1.msra.mxu0 0.0
        %8999 = vmatprep.subr.mxu0 0.0
        %9000 = vmatpush1.msra.mxu0 0.0
        %9001 = vmatprep.subr.mxu0 0.0
        %9002 = vmatpush1.msra.mxu0 0.0
        %9003 = vmatprep.subr.mxu0 0.0
        %9004 = vmatpush1.msra.mxu0 0.0
        %9005 = vmatprep.subr.mxu0 0.0
        %9006 = vmatpush1.msra.mxu0 0.0
        %9007 = vmatprep.subr.mxu0 0.0
        %9008 = vmatpush1.msra.mxu0 0.0
        %9009 = vmatprep.subr.mxu0 0.0
        %9010 = vmatpush1.msra.mxu0 0.0
        %9011 = vmatprep.subr.mxu0 0.0
        %9012 = vmatpush1.msra.mxu0 0.0
        %9013 = vmatprep.subr.mxu0 0.0
        %9014 = vmatpush1.msra.mxu0 0.0
        %9015 = vmatprep.subr.mxu0 0.0
        %9016 = vmatpush1.msra.mxu0 0.0
        %9017 = vmatprep.subr.mxu0 0.0
        %9018 = vmatpush1.msra.mxu0 0.0
        %9019 = vmatprep.subr.mxu0 0.0
        %9020 = vmatpush1.msra.mxu0 0.0
        %9021 = vmatprep.subr.mxu0 0.0
        %9022 = vmatpush1.msra.mxu0 0.0
        %9023 = vmatprep.subr.mxu0 0.0
        %9024 = vmatpush1.msra.mxu0 0.0
        %9025 = vmatprep.subr.mxu0 0.0
        %9026 = vmatpush1.msra.mxu0 0.0
        %9027 = vmatprep.subr.mxu0 0.0
        %9028 = vmatpush1.msra.mxu0 0.0
        %9029 = vmatprep.subr.mxu0 0.0
        %9030 = vmatpush1.msra.mxu0 0.0
        %9031 = vmatprep.subr.mxu0 0.0
        %9032 = vmatpush1.msra.mxu0 0.0
        %9033 = vmatprep.subr.mxu0 0.0
        %9034 = vmatpush1.msra.mxu0 0.0
        %9035 = vmatprep.subr.mxu0 0.0
        %9036 = vmatpush1.msra.mxu0 0.0
        %9037 = vmatprep.subr.mxu0 0.0
        %9038 = vmatpush1.msra.mxu0 0.0
        %9039 = vmatprep.subr.mxu0 0.0
        %9040 = vmatpush1.msra.mxu0 0.0
        %9041 = vmatprep.subr.mxu0 0.0
        %9042 = vmatpush1.msra.mxu0 0.0
        %9043 = vmatprep.subr.mxu0 0.0
        %9044 = vmatpush1.msra.mxu0 0.0
        %9045 = vmatprep.subr.mxu0 0.0
        %9046 = vmatpush1.msra.mxu0 0.0
        %9047 = vmatprep.subr.mxu0 0.0
        %9048 = vmatpush1.msra.mxu0 0.0
        %9049 = vmatprep.mubr.f32.mxu0 0.0
        %9050 = vmatmul.mubr.f32.gmra.mrb[0].mxu0 %v8980
        %v9051 = vpop.f32.mrb[0].mxu0
        %v9052 = vadd.f32 0.0, %v9051
        %v9053 = vpop.f32.mrb[0].mxu0
        %9054 = vmatprep.mubr.f32.mxu0 0.0
        %9055 = vmatmul.mubr.f32.gmra.mrb[0].mxu0 %v8983
        %v9056 = vpop.f32.mrb[0].mxu0
        %v9057 = vadd.f32 0.0, %v9056
        %v9058 = vpop.f32.mrb[0].mxu0
        %9059 = vdwg.mxu0
        %v9061 = vsel %vm796, %v8791, 0
        %v9064 = vsel %vm796, %v8796, 0
        %v9067 = vsel %vm796, %v8878, 0
        %v9070 = vsel %vm796, %v8883, 0
        %v9073 = vsel %vm796, %v8965, 0
        %v9076 = vsel %vm796, %v8970, 0
        %v9079 = vsel %vm796, %v9052, 0
        %v9082 = vsel %vm796, %v9057, 0
        %9084 = vmatprep.subr.mxu0 0.0
        %9085 = vmatpush1.msra.mxu0 %v5440
        %9086 = vmatprep.subr.mxu0 0.0
        %9087 = vmatpush1.msra.mxu0 0.0
        %9088 = vmatprep.subr.mxu0 0.0
        %9089 = vmatpush1.msra.mxu0 0.0
        %9090 = vmatprep.subr.mxu0 0.0
        %9091 = vmatpush1.msra.mxu0 0.0
        %9092 = vmatprep.subr.mxu0 0.0
        %9093 = vmatpush1.msra.mxu0 0.0
        %9094 = vmatprep.subr.mxu0 0.0
        %9095 = vmatpush1.msra.mxu0 0.0
        %9096 = vmatprep.subr.mxu0 0.0
        %9097 = vmatpush1.msra.mxu0 0.0
        %9098 = vmatprep.subr.mxu0 0.0
        %9099 = vmatpush1.msra.mxu0 0.0
        %9100 = vmatprep.subr.mxu0 0.0
        %9101 = vmatpush1.msra.mxu0 0.0
        %9102 = vmatprep.subr.mxu0 0.0
        %9103 = vmatpush1.msra.mxu0 0.0
        %9104 = vmatprep.subr.mxu0 0.0
        %9105 = vmatpush1.msra.mxu0 0.0
        %9106 = vmatprep.subr.mxu0 0.0
        %9107 = vmatpush1.msra.mxu0 0.0
        %9108 = vmatprep.subr.mxu0 0.0
        %9109 = vmatpush1.msra.mxu0 0.0
        %9110 = vmatprep.subr.mxu0 0.0
        %9111 = vmatpush1.msra.mxu0 0.0
        %9112 = vmatprep.subr.mxu0 0.0
        %9113 = vmatpush1.msra.mxu0 0.0
        %9114 = vmatprep.subr.mxu0 0.0
        %9115 = vmatpush1.msra.mxu0 0.0
        %9116 = vmatprep.subr.mxu0 0.0
        %9117 = vmatpush1.msra.mxu0 0.0
        %9118 = vmatprep.subr.mxu0 0.0
        %9119 = vmatpush1.msra.mxu0 0.0
        %9120 = vmatprep.subr.mxu0 0.0
        %9121 = vmatpush1.msra.mxu0 0.0
        %9122 = vmatprep.subr.mxu0 0.0
        %9123 = vmatpush1.msra.mxu0 0.0
        %9124 = vmatprep.subr.mxu0 0.0
        %9125 = vmatpush1.msra.mxu0 0.0
        %9126 = vmatprep.subr.mxu0 0.0
        %9127 = vmatpush1.msra.mxu0 0.0
        %9128 = vmatprep.subr.mxu0 0.0
        %9129 = vmatpush1.msra.mxu0 0.0
        %9130 = vmatprep.subr.mxu0 0.0
        %9131 = vmatpush1.msra.mxu0 0.0
        %9132 = vmatprep.subr.mxu0 0.0
        %9133 = vmatpush1.msra.mxu0 0.0
        %9134 = vmatprep.subr.mxu0 0.0
        %9135 = vmatpush1.msra.mxu0 0.0
        %9136 = vmatprep.subr.mxu0 0.0
        %9137 = vmatpush1.msra.mxu0 0.0
        %9138 = vmatprep.subr.mxu0 0.0
        %9139 = vmatpush1.msra.mxu0 0.0
        %9140 = vmatprep.subr.mxu0 0.0
        %9141 = vmatpush1.msra.mxu0 0.0
        %9142 = vmatprep.subr.mxu0 0.0
        %9143 = vmatpush1.msra.mxu0 0.0
        %9144 = vmatprep.subr.mxu0 0.0
        %9145 = vmatpush1.msra.mxu0 0.0
        %9146 = vmatprep.subr.mxu0 0.0
        %9147 = vmatpush1.msra.mxu0 0.0
        %9148 = vmatprep.mubr.f32.mxu0 0.0
        %9149 = vmatmul.mubr.f32.gmra.mrb[0].mxu0 %v9061
        %v9150 = vpop.f32.mrb[0].mxu0
        %v9151 = vadd.f32 0.0, %v9150
        %v9152 = vpop.f32.mrb[0].mxu0
        %9153 = vmatprep.mubr.f32.mxu0 0.0
        %9154 = vmatmul.mubr.f32.gmra.mrb[0].mxu0 %v9064
        %v9155 = vpop.f32.mrb[0].mxu0
        %v9156 = vadd.f32 0.0, %v9155
        %v9157 = vpop.f32.mrb[0].mxu0
        %9158 = vmatprep.mubr.f32.mxu0 0.0
        %9159 = vmatmul.mubr.f32.gmra.mrb[0].mxu0 %v9067
        %v9160 = vpop.f32.mrb[0].mxu0
        %v9161 = vadd.f32 0.0, %v9160
        %v9162 = vpop.f32.mrb[0].mxu0
        %9163 = vmatprep.mubr.f32.mxu0 0.0
        %9164 = vmatmul.mubr.f32.gmra.mrb[0].mxu0 %v9070
        %v9165 = vpop.f32.mrb[0].mxu0
        %v9166 = vadd.f32 0.0, %v9165
        %v9167 = vpop.f32.mrb[0].mxu0
        %9168 = vmatprep.mubr.f32.mxu0 0.0
        %9169 = vmatmul.mubr.f32.gmra.mrb[0].mxu0 %v9073
        %v9170 = vpop.f32.mrb[0].mxu0
        %v9171 = vadd.f32 0.0, %v9170
        %v9172 = vpop.f32.mrb[0].mxu0
        %9173 = vmatprep.mubr.f32.mxu0 0.0
        %9174 = vmatmul.mubr.f32.gmra.mrb[0].mxu0 %v9076
        %v9175 = vpop.f32.mrb[0].mxu0
        %v9176 = vadd.f32 0.0, %v9175
        %v9177 = vpop.f32.mrb[0].mxu0
        %9178 = vmatprep.mubr.f32.mxu0 0.0
        %9179 = vmatmul.mubr.f32.gmra.mrb[0].mxu0 %v9079
        %v9180 = vpop.f32.mrb[0].mxu0
        %v9181 = vadd.f32 0.0, %v9180
        %v9182 = vpop.f32.mrb[0].mxu0
        %9183 = vmatprep.mubr.f32.mxu0 0.0
        %9184 = vmatmul.mubr.f32.gmra.mrb[0].mxu0 %v9082
        %v9185 = vpop.f32.mrb[0].mxu0
        %v9186 = vadd.f32 0.0, %v9185
        %v9187 = vpop.f32.mrb[0].mxu0
        %9188 = vdwg.mxu0
        %v9189 = vadd.f32 %v8244, %v9151
        %v9190 = vadd.f32 %v8245, %v9156
        %v9191 = vadd.f32 %v8246, %v9161
        %v9192 = vadd.f32 %v8247, %v9166
        %v9193 = vadd.f32 %v8248, %v9171
        %v9194 = vadd.f32 %v8249, %v9176
        %v9195 = vadd.f32 %v8250, %v9181
        %v9196 = vadd.f32 %v8251, %v9186
        %v9197 = vadd.f32 %v5150, %v9189
        %v9198 = vadd.f32 %v5151, %v9190
        %v9199 = vadd.f32 %v5152, %v9191
        %v9200 = vadd.f32 %v5153, %v9192
        %v9201 = vadd.f32 %v5154, %v9193
        %v9202 = vadd.f32 %v5155, %v9194
        %v9203 = vadd.f32 %v5156, %v9195
        %v9204 = vadd.f32 %v5157, %v9196
        %s9205 = scalar_lea.vmem %s6, 1
        %v9206 = vld [vmem:[%s9205] sm:$0x1]
        %v9208 = vlaneseq
        %v9209 = vshrl.u32 %v9208, 7
        %v9210 = vsub.s32 0, %v9209
        %v9211 = vrot.slane %v9206, %v9210
        %v9213 = vadd.f32 %v9197, %v9211
        %v9214 = vadd.f32 %v9198, %v9211
        %v9215 = vadd.f32 %v9199, %v9211
        %v9216 = vadd.f32 %v9200, %v9211
        %v9217 = vadd.f32 %v9201, %v9211
        %v9218 = vadd.f32 %v9202, %v9211
        %v9219 = vadd.f32 %v9203, %v9211
        %v9220 = vadd.f32 %v9204, %v9211
        %s9221 = scalar_lea.vmem %s7, 1
        %v9222 = vld [vmem:[%s9221] sm:$0x1]
        %s9223 = scalar_lea.vmem [#allocation5], 1
        %v9224 = vld [vmem:[%s9223] sm:$0x1]
        %v9225 = vsel %vm512, %v9213, 0.0
        %9226 = vadd.xlane.f32.xlu0 %v9225
        %v9227 = vpop.xlane.xlu0 %9226
        %v9228 = vsel %vm512, %v9214, 0.0
        %9229 = vadd.xlane.f32.xlu0 %v9228
        %v9230 = vpop.xlane.xlu0 %9229
        %v9231 = vsel %vm512, %v9215, 0.0
        %9232 = vadd.xlane.f32.xlu0 %v9231
        %v9233 = vpop.xlane.xlu0 %9232
        %v9234 = vsel %vm512, %v9216, 0.0
        %9235 = vadd.xlane.f32.xlu0 %v9234
        %v9236 = vpop.xlane.xlu0 %9235
        %v9237 = vsel %vm512, %v9217, 0.0
        %9238 = vadd.xlane.f32.xlu0 %v9237
        %v9239 = vpop.xlane.xlu0 %9238
        %v9240 = vsel %vm512, %v9218, 0.0
        %9241 = vadd.xlane.f32.xlu0 %v9240
        %v9242 = vpop.xlane.xlu0 %9241
        %v9243 = vsel %vm512, %v9219, 0.0
        %9244 = vadd.xlane.f32.xlu0 %v9243
        %v9245 = vpop.xlane.xlu0 %9244
        %v9246 = vsel %vm512, %v9220, 0.0
        %9247 = vadd.xlane.f32.xlu0 %v9246
        %v9248 = vpop.xlane.xlu0 %9247
        %v9249 = vmul.f32 %v9227, %v537
        %v9250 = vmul.f32 %v9230, %v537
        %v9251 = vmul.f32 %v9233, %v537
        %v9252 = vmul.f32 %v9236, %v537
        %v9253 = vmul.f32 %v9239, %v537
        %v9254 = vmul.f32 %v9242, %v537
        %v9255 = vmul.f32 %v9245, %v537
        %v9256 = vmul.f32 %v9248, %v537
        %v9257 = vsub.f32 %v9213, %v9249
        %v9258 = vsub.f32 %v9214, %v9250
        %v9259 = vsub.f32 %v9215, %v9251
        %v9260 = vsub.f32 %v9216, %v9252
        %v9261 = vsub.f32 %v9217, %v9253
        %v9262 = vsub.f32 %v9218, %v9254
        %v9263 = vsub.f32 %v9219, %v9255
        %v9264 = vsub.f32 %v9220, %v9256
        %v9265 = vmul.f32 %v9257, %v9257
        %v9266 = vmul.f32 %v9258, %v9258
        %v9267 = vmul.f32 %v9259, %v9259
        %v9268 = vmul.f32 %v9260, %v9260
        %v9269 = vmul.f32 %v9261, %v9261
        %v9270 = vmul.f32 %v9262, %v9262
        %v9271 = vmul.f32 %v9263, %v9263
        %v9272 = vmul.f32 %v9264, %v9264
        %v9273 = vsel %vm512, %v9265, 0.0
        %9274 = vadd.xlane.f32.xlu0 %v9273
        %v9275 = vpop.xlane.xlu0 %9274
        %v9276 = vsel %vm512, %v9266, 0.0
        %9277 = vadd.xlane.f32.xlu0 %v9276
        %v9278 = vpop.xlane.xlu0 %9277
        %v9279 = vsel %vm512, %v9267, 0.0
        %9280 = vadd.xlane.f32.xlu0 %v9279
        %v9281 = vpop.xlane.xlu0 %9280
        %v9282 = vsel %vm512, %v9268, 0.0
        %9283 = vadd.xlane.f32.xlu0 %v9282
        %v9284 = vpop.xlane.xlu0 %9283
        %v9285 = vsel %vm512, %v9269, 0.0
        %9286 = vadd.xlane.f32.xlu0 %v9285
        %v9287 = vpop.xlane.xlu0 %9286
        %v9288 = vsel %vm512, %v9270, 0.0
        %9289 = vadd.xlane.f32.xlu0 %v9288
        %v9290 = vpop.xlane.xlu0 %9289
        %v9291 = vsel %vm512, %v9271, 0.0
        %9292 = vadd.xlane.f32.xlu0 %v9291
        %v9293 = vpop.xlane.xlu0 %9292
        %v9294 = vsel %vm512, %v9272, 0.0
        %9295 = vadd.xlane.f32.xlu0 %v9294
        %v9296 = vpop.xlane.xlu0 %9295
        %v9297 = vmul.f32 %v9275, %v537
        %v9298 = vmul.f32 %v9278, %v537
        %v9299 = vmul.f32 %v9281, %v537
        %v9300 = vmul.f32 %v9284, %v537
        %v9301 = vmul.f32 %v9287, %v537
        %v9302 = vmul.f32 %v9290, %v537
        %v9303 = vmul.f32 %v9293, %v537
        %v9304 = vmul.f32 %v9296, %v537
        %v9305 = vadd.f32 %v9297, 1e-05
        %v9306 = vadd.f32 %v9298, 1e-05
        %v9307 = vadd.f32 %v9299, 1e-05
        %v9308 = vadd.f32 %v9300, 1e-05
        %v9309 = vadd.f32 %v9301, 1e-05
        %v9310 = vadd.f32 %v9302, 1e-05
        %v9311 = vadd.f32 %v9303, 1e-05
        %v9312 = vadd.f32 %v9304, 1e-05
        %v9313 = vrsqrt.pop %v9305
        %v9314 = vrsqrt.pop %v9306
        %v9315 = vrsqrt.pop %v9307
        %v9316 = vrsqrt.pop %v9308
        %v9317 = vrsqrt.pop %v9309
        %v9318 = vrsqrt.pop %v9310
        %v9319 = vrsqrt.pop %v9311
        %v9320 = vrsqrt.pop %v9312
        %v9321 = vmul.f32 %v9257, %v9313
        %v9322 = vmul.f32 %v9258, %v9314
        %v9323 = vmul.f32 %v9259, %v9315
        %v9324 = vmul.f32 %v9260, %v9316
        %v9325 = vmul.f32 %v9261, %v9317
        %v9326 = vmul.f32 %v9262, %v9318
        %v9327 = vmul.f32 %v9263, %v9319
        %v9328 = vmul.f32 %v9264, %v9320
        %v9330 = vlaneseq
        %v9331 = vshrl.u32 %v9330, 7
        %v9332 = vsub.s32 0, %v9331
        %v9333 = vrot.slane %v9222, %v9332
        %v9335 = vmul.f32 %v9321, %v9333
        %v9336 = vmul.f32 %v9322, %v9333
        %v9337 = vmul.f32 %v9323, %v9333
        %v9338 = vmul.f32 %v9324, %v9333
        %v9339 = vmul.f32 %v9325, %v9333
        %v9340 = vmul.f32 %v9326, %v9333
        %v9341 = vmul.f32 %v9327, %v9333
        %v9342 = vmul.f32 %v9328, %v9333
        %v9344 = vlaneseq
        %v9345 = vshrl.u32 %v9344, 7
        %v9346 = vsub.s32 0, %v9345
        %v9347 = vrot.slane %v9224, %v9346
        %v9349 = vadd.f32 %v9335, %v9347
        %v9350 = vadd.f32 %v9336, %v9347
        %v9351 = vadd.f32 %v9337, %v9347
        %v9352 = vadd.f32 %v9338, %v9347
        %v9353 = vadd.f32 %v9339, %v9347
        %v9354 = vadd.f32 %v9340, %v9347
        %v9355 = vadd.f32 %v9341, %v9347
        %v9356 = vadd.f32 %v9342, %v9347
        %s9357 = scalar_lea.vmem %s9, 32
        %v9358 = vld [vmem:[%s9357] sm:$0xff]
        %v9359 = vld [vmem:[%s9357 + $0x8] sm:$0xff]
        %v9360 = vld [vmem:[%s9357 + $0x10] sm:$0xff]
        %v9361 = vld [vmem:[%s9357 + $0x18] sm:$0xff]
        %s9362 = scalar_lea.vmem %s10, 1
        %v9363 = vld [vmem:[%s9362] sm:$0x1]
        %v9365 = vlaneseq
        %v9366 = vshrl.u32 %v9365, 7
        %v9367 = vsub.s32 0, %v9366
        %v9368 = vrot.slane %v9363, %v9367
        %v9371 = vsel %vm512, %v9349, 0
        %v9374 = vsel %vm512, %v9350, 0
        %v9377 = vsel %vm512, %v9351, 0
        %v9380 = vsel %vm512, %v9352, 0
        %v9383 = vsel %vm512, %v9353, 0
        %v9386 = vsel %vm512, %v9354, 0
        %v9389 = vsel %vm512, %v9355, 0
        %v9392 = vsel %vm512, %v9356, 0
        %9394 = vmatprep.subr.mxu0 0.0
        %9395 = vmatpush1.msra.mxu0 %v9358
        %9396 = vmatprep.subr.mxu0 0.0
        %9397 = vmatpush1.msra.mxu0 %v9359
        %9398 = vmatprep.subr.mxu0 0.0
        %9399 = vmatpush1.msra.mxu0 %v9360
        %9400 = vmatprep.subr.mxu0 0.0
        %9401 = vmatpush1.msra.mxu0 %v9361
        %9402 = vmatprep.subr.mxu0 0.0
        %9403 = vmatpush1.msra.mxu0 0.0
        %9404 = vmatprep.subr.mxu0 0.0
        %9405 = vmatpush1.msra.mxu0 0.0
        %9406 = vmatprep.subr.mxu0 0.0
        %9407 = vmatpush1.msra.mxu0 0.0
        %9408 = vmatprep.subr.mxu0 0.0
        %9409 = vmatpush1.msra.mxu0 0.0
        %9410 = vmatprep.subr.mxu0 0.0
        %9411 = vmatpush1.msra.mxu0 0.0
        %9412 = vmatprep.subr.mxu0 0.0
        %9413 = vmatpush1.msra.mxu0 0.0
        %9414 = vmatprep.subr.mxu0 0.0
        %9415 = vmatpush1.msra.mxu0 0.0
        %9416 = vmatprep.subr.mxu0 0.0
        %9417 = vmatpush1.msra.mxu0 0.0
        %9418 = vmatprep.subr.mxu0 0.0
        %9419 = vmatpush1.msra.mxu0 0.0
        %9420 = vmatprep.subr.mxu0 0.0
        %9421 = vmatpush1.msra.mxu0 0.0
        %9422 = vmatprep.subr.mxu0 0.0
        %9423 = vmatpush1.msra.mxu0 0.0
        %9424 = vmatprep.subr.mxu0 0.0
        %9425 = vmatpush1.msra.mxu0 0.0
        %9426 = vmatprep.subr.mxu0 0.0
        %9427 = vmatpush1.msra.mxu0 0.0
        %9428 = vmatprep.subr.mxu0 0.0
        %9429 = vmatpush1.msra.mxu0 0.0
        %9430 = vmatprep.subr.mxu0 0.0
        %9431 = vmatpush1.msra.mxu0 0.0
        %9432 = vmatprep.subr.mxu0 0.0
        %9433 = vmatpush1.msra.mxu0 0.0
        %9434 = vmatprep.subr.mxu0 0.0
        %9435 = vmatpush1.msra.mxu0 0.0
        %9436 = vmatprep.subr.mxu0 0.0
        %9437 = vmatpush1.msra.mxu0 0.0
        %9438 = vmatprep.subr.mxu0 0.0
        %9439 = vmatpush1.msra.mxu0 0.0
        %9440 = vmatprep.subr.mxu0 0.0
        %9441 = vmatpush1.msra.mxu0 0.0
        %9442 = vmatprep.subr.mxu0 0.0
        %9443 = vmatpush1.msra.mxu0 0.0
        %9444 = vmatprep.subr.mxu0 0.0
        %9445 = vmatpush1.msra.mxu0 0.0
        %9446 = vmatprep.subr.mxu0 0.0
        %9447 = vmatpush1.msra.mxu0 0.0
        %9448 = vmatprep.subr.mxu0 0.0
        %9449 = vmatpush1.msra.mxu0 0.0
        %9450 = vmatprep.subr.mxu0 0.0
        %9451 = vmatpush1.msra.mxu0 0.0
        %9452 = vmatprep.subr.mxu0 0.0
        %9453 = vmatpush1.msra.mxu0 0.0
        %9454 = vmatprep.subr.mxu0 0.0
        %9455 = vmatpush1.msra.mxu0 0.0
        %9456 = vmatprep.subr.mxu0 0.0
        %9457 = vmatpush1.msra.mxu0 0.0
        %9458 = vmatprep.mubr.f32.mxu0 0.0
        %9459 = vmatmul.mubr.f32.gmra.mrb[0].mxu0 %v9371
        %v9460 = vpop.f32.mrb[0].mxu0
        %v9461 = vadd.f32 %v9368, %v9460
        %v9462 = vpop.f32.mrb[0].mxu0
        %9463 = vmatprep.mubr.f32.mxu0 0.0
        %9464 = vmatmul.mubr.f32.gmra.mrb[0].mxu0 %v9374
        %v9465 = vpop.f32.mrb[0].mxu0
        %v9466 = vadd.f32 %v9368, %v9465
        %v9467 = vpop.f32.mrb[0].mxu0
        %9468 = vmatprep.mubr.f32.mxu0 0.0
        %9469 = vmatmul.mubr.f32.gmra.mrb[0].mxu0 %v9377
        %v9470 = vpop.f32.mrb[0].mxu0
        %v9471 = vadd.f32 %v9368, %v9470
        %v9472 = vpop.f32.mrb[0].mxu0
        %9473 = vmatprep.mubr.f32.mxu0 0.0
        %9474 = vmatmul.mubr.f32.gmra.mrb[0].mxu0 %v9380
        %v9475 = vpop.f32.mrb[0].mxu0
        %v9476 = vadd.f32 %v9368, %v9475
        %v9477 = vpop.f32.mrb[0].mxu0
        %9478 = vmatprep.mubr.f32.mxu0 0.0
        %9479 = vmatmul.mubr.f32.gmra.mrb[0].mxu0 %v9383
        %v9480 = vpop.f32.mrb[0].mxu0
        %v9481 = vadd.f32 %v9368, %v9480
        %v9482 = vpop.f32.mrb[0].mxu0
        %9483 = vmatprep.mubr.f32.mxu0 0.0
        %9484 = vmatmul.mubr.f32.gmra.mrb[0].mxu0 %v9386
        %v9485 = vpop.f32.mrb[0].mxu0
        %v9486 = vadd.f32 %v9368, %v9485
        %v9487 = vpop.f32.mrb[0].mxu0
        %9488 = vmatprep.mubr.f32.mxu0 0.0
        %9489 = vmatmul.mubr.f32.gmra.mrb[0].mxu0 %v9389
        %v9490 = vpop.f32.mrb[0].mxu0
        %v9491 = vadd.f32 %v9368, %v9490
        %v9492 = vpop.f32.mrb[0].mxu0
        %9493 = vmatprep.mubr.f32.mxu0 0.0
        %9494 = vmatmul.mubr.f32.gmra.mrb[0].mxu0 %v9392
        %v9495 = vpop.f32.mrb[0].mxu0
        %v9496 = vadd.f32 %v9368, %v9495
        %v9497 = vpop.f32.mrb[0].mxu0
        %9498 = vdwg.mxu0
        %v9499 = vmul.f32 %v9461, %v9461
        %v9500 = vmul.f32 %v9466, %v9466
        %v9501 = vmul.f32 %v9471, %v9471
        %v9502 = vmul.f32 %v9476, %v9476
        %v9503 = vmul.f32 %v9481, %v9481
        %v9504 = vmul.f32 %v9486, %v9486
        %v9505 = vmul.f32 %v9491, %v9491
        %v9506 = vmul.f32 %v9496, %v9496
        %v9507 = vmul.f32 %v9461, %v9499
        %v9508 = vmul.f32 %v9466, %v9500
        %v9509 = vmul.f32 %v9471, %v9501
        %v9510 = vmul.f32 %v9476, %v9502
        %v9511 = vmul.f32 %v9481, %v9503
        %v9512 = vmul.f32 %v9486, %v9504
        %v9513 = vmul.f32 %v9491, %v9505
        %v9514 = vmul.f32 %v9496, %v9506
        %v9515 = vmul.f32 %v9507, 0.044715
        %v9516 = vmul.f32 %v9508, 0.044715
        %v9517 = vmul.f32 %v9509, 0.044715
        %v9518 = vmul.f32 %v9510, 0.044715
        %v9519 = vmul.f32 %v9511, 0.044715
        %v9520 = vmul.f32 %v9512, 0.044715
        %v9521 = vmul.f32 %v9513, 0.044715
        %v9522 = vmul.f32 %v9514, 0.044715
        %v9523 = vadd.f32 %v9461, %v9515
        %v9524 = vadd.f32 %v9466, %v9516
        %v9525 = vadd.f32 %v9471, %v9517
        %v9526 = vadd.f32 %v9476, %v9518
        %v9527 = vadd.f32 %v9481, %v9519
        %v9528 = vadd.f32 %v9486, %v9520
        %v9529 = vadd.f32 %v9491, %v9521
        %v9530 = vadd.f32 %v9496, %v9522
        %v9531 = vmul.f32 %v9523, 0.7978846
        %v9532 = vmul.f32 %v9524, 0.7978846
        %v9533 = vmul.f32 %v9525, 0.7978846
        %v9534 = vmul.f32 %v9526, 0.7978846
        %v9535 = vmul.f32 %v9527, 0.7978846
        %v9536 = vmul.f32 %v9528, 0.7978846
        %v9537 = vmul.f32 %v9529, 0.7978846
        %v9538 = vmul.f32 %v9530, 0.7978846
        %v9539 = vtanh.pop %v9531
        %v9540 = vtanh.pop %v9532
        %v9541 = vtanh.pop %v9533
        %v9542 = vtanh.pop %v9534
        %v9543 = vtanh.pop %v9535
        %v9544 = vtanh.pop %v9536
        %v9545 = vtanh.pop %v9537
        %v9546 = vtanh.pop %v9538
        %v9547 = vadd.f32 %v9539, 1.0
        %v9548 = vadd.f32 %v9540, 1.0
        %v9549 = vadd.f32 %v9541, 1.0
        %v9550 = vadd.f32 %v9542, 1.0
        %v9551 = vadd.f32 %v9543, 1.0
        %v9552 = vadd.f32 %v9544, 1.0
        %v9553 = vadd.f32 %v9545, 1.0
        %v9554 = vadd.f32 %v9546, 1.0
        %v9555 = vmul.f32 %v9547, 0.5
        %v9556 = vmul.f32 %v9548, 0.5
        %v9557 = vmul.f32 %v9549, 0.5
        %v9558 = vmul.f32 %v9550, 0.5
        %v9559 = vmul.f32 %v9551, 0.5
        %v9560 = vmul.f32 %v9552, 0.5
        %v9561 = vmul.f32 %v9553, 0.5
        %v9562 = vmul.f32 %v9554, 0.5
        %v9563 = vmul.f32 %v9461, %v9555
        %v9564 = vmul.f32 %v9466, %v9556
        %v9565 = vmul.f32 %v9471, %v9557
        %v9566 = vmul.f32 %v9476, %v9558
        %v9567 = vmul.f32 %v9481, %v9559
        %v9568 = vmul.f32 %v9486, %v9560
        %v9569 = vmul.f32 %v9491, %v9561
        %v9570 = vmul.f32 %v9496, %v9562
        %s9571 = scalar_lea.vmem %s11, 128
        %v9572 = vld [vmem:[%s9571] sm:$0xff]
        %v9573 = vld [vmem:[%s9571 + $0x8] sm:$0xff]
        %v9574 = vld [vmem:[%s9571 + $0x10] sm:$0xff]
        %v9575 = vld [vmem:[%s9571 + $0x18] sm:$0xff]
        %v9576 = vld [vmem:[%s9571 + $0x20] sm:$0xff]
        %v9577 = vld [vmem:[%s9571 + $0x28] sm:$0xff]
        %v9578 = vld [vmem:[%s9571 + $0x30] sm:$0xff]
        %v9579 = vld [vmem:[%s9571 + $0x38] sm:$0xff]
        %v9580 = vld [vmem:[%s9571 + $0x40] sm:$0xff]
        %v9581 = vld [vmem:[%s9571 + $0x48] sm:$0xff]
        %v9582 = vld [vmem:[%s9571 + $0x50] sm:$0xff]
        %v9583 = vld [vmem:[%s9571 + $0x58] sm:$0xff]
        %v9584 = vld [vmem:[%s9571 + $0x60] sm:$0xff]
        %v9585 = vld [vmem:[%s9571 + $0x68] sm:$0xff]
        %v9586 = vld [vmem:[%s9571 + $0x70] sm:$0xff]
        %v9587 = vld [vmem:[%s9571 + $0x78] sm:$0xff]
        %9588 = vmatprep.subr.mxu0 0.0
        %9589 = vmatpush1.msra.mxu0 %v9572
        %9590 = vmatprep.subr.mxu0 0.0
        %9591 = vmatpush1.msra.mxu0 %v9573
        %9592 = vmatprep.subr.mxu0 0.0
        %9593 = vmatpush1.msra.mxu0 %v9574
        %9594 = vmatprep.subr.mxu0 0.0
        %9595 = vmatpush1.msra.mxu0 %v9575
        %9596 = vmatprep.subr.mxu0 0.0
        %9597 = vmatpush1.msra.mxu0 %v9576
        %9598 = vmatprep.subr.mxu0 0.0
        %9599 = vmatpush1.msra.mxu0 %v9577
        %9600 = vmatprep.subr.mxu0 0.0
        %9601 = vmatpush1.msra.mxu0 %v9578
        %9602 = vmatprep.subr.mxu0 0.0
        %9603 = vmatpush1.msra.mxu0 %v9579
        %9604 = vmatprep.subr.mxu0 0.0
        %9605 = vmatpush1.msra.mxu0 %v9580
        %9606 = vmatprep.subr.mxu0 0.0
        %9607 = vmatpush1.msra.mxu0 %v9581
        %9608 = vmatprep.subr.mxu0 0.0
        %9609 = vmatpush1.msra.mxu0 %v9582
        %9610 = vmatprep.subr.mxu0 0.0
        %9611 = vmatpush1.msra.mxu0 %v9583
        %9612 = vmatprep.subr.mxu0 0.0
        %9613 = vmatpush1.msra.mxu0 %v9584
        %9614 = vmatprep.subr.mxu0 0.0
        %9615 = vmatpush1.msra.mxu0 %v9585
        %9616 = vmatprep.subr.mxu0 0.0
        %9617 = vmatpush1.msra.mxu0 %v9586
        %9618 = vmatprep.subr.mxu0 0.0
        %9619 = vmatpush1.msra.mxu0 %v9587
        %9620 = vmatprep.subr.mxu0 0.0
        %9621 = vmatpush1.msra.mxu0 0.0
        %9622 = vmatprep.subr.mxu0 0.0
        %9623 = vmatpush1.msra.mxu0 0.0
        %9624 = vmatprep.subr.mxu0 0.0
        %9625 = vmatpush1.msra.mxu0 0.0
        %9626 = vmatprep.subr.mxu0 0.0
        %9627 = vmatpush1.msra.mxu0 0.0
        %9628 = vmatprep.subr.mxu0 0.0
        %9629 = vmatpush1.msra.mxu0 0.0
        %9630 = vmatprep.subr.mxu0 0.0
        %9631 = vmatpush1.msra.mxu0 0.0
        %9632 = vmatprep.subr.mxu0 0.0
        %9633 = vmatpush1.msra.mxu0 0.0
        %9634 = vmatprep.subr.mxu0 0.0
        %9635 = vmatpush1.msra.mxu0 0.0
        %9636 = vmatprep.subr.mxu0 0.0
        %9637 = vmatpush1.msra.mxu0 0.0
        %9638 = vmatprep.subr.mxu0 0.0
        %9639 = vmatpush1.msra.mxu0 0.0
        %9640 = vmatprep.subr.mxu0 0.0
        %9641 = vmatpush1.msra.mxu0 0.0
        %9642 = vmatprep.subr.mxu0 0.0
        %9643 = vmatpush1.msra.mxu0 0.0
        %9644 = vmatprep.subr.mxu0 0.0
        %9645 = vmatpush1.msra.mxu0 0.0
        %9646 = vmatprep.subr.mxu0 0.0
        %9647 = vmatpush1.msra.mxu0 0.0
        %9648 = vmatprep.subr.mxu0 0.0
        %9649 = vmatpush1.msra.mxu0 0.0
        %9650 = vmatprep.subr.mxu0 0.0
        %9651 = vmatpush1.msra.mxu0 0.0
        %9652 = vmatprep.mubr.f32.mxu0 0.0
        %9653 = vmatmul.mubr.f32.gmra.mrb[0].mxu0 %v9563
        %v9654 = vpop.f32.mrb[0].mxu0
        %v9655 = vadd.f32 0.0, %v9654
        %v9656 = vpop.f32.mrb[0].mxu0
        %9657 = vmatprep.mubr.f32.mxu0 0.0
        %9658 = vmatmul.mubr.f32.gmra.mrb[0].mxu0 %v9564
        %v9659 = vpop.f32.mrb[0].mxu0
        %v9660 = vadd.f32 0.0, %v9659
        %v9661 = vpop.f32.mrb[0].mxu0
        %9662 = vmatprep.mubr.f32.mxu0 0.0
        %9663 = vmatmul.mubr.f32.gmra.mrb[0].mxu0 %v9565
        %v9664 = vpop.f32.mrb[0].mxu0
        %v9665 = vadd.f32 0.0, %v9664
        %v9666 = vpop.f32.mrb[0].mxu0
        %9667 = vmatprep.mubr.f32.mxu0 0.0
        %9668 = vmatmul.mubr.f32.gmra.mrb[0].mxu0 %v9566
        %v9669 = vpop.f32.mrb[0].mxu0
        %v9670 = vadd.f32 0.0, %v9669
        %v9671 = vpop.f32.mrb[0].mxu0
        %9672 = vmatprep.mubr.f32.mxu0 0.0
        %9673 = vmatmul.mubr.f32.gmra.mrb[0].mxu0 %v9567
        %v9674 = vpop.f32.mrb[0].mxu0
        %v9675 = vadd.f32 0.0, %v9674
        %v9676 = vpop.f32.mrb[0].mxu0
        %9677 = vmatprep.mubr.f32.mxu0 0.0
        %9678 = vmatmul.mubr.f32.gmra.mrb[0].mxu0 %v9568
        %v9679 = vpop.f32.mrb[0].mxu0
        %v9680 = vadd.f32 0.0, %v9679
        %v9681 = vpop.f32.mrb[0].mxu0
        %9682 = vmatprep.mubr.f32.mxu0 0.0
        %9683 = vmatmul.mubr.f32.gmra.mrb[0].mxu0 %v9569
        %v9684 = vpop.f32.mrb[0].mxu0
        %v9685 = vadd.f32 0.0, %v9684
        %v9686 = vpop.f32.mrb[0].mxu0
        %9687 = vmatprep.mubr.f32.mxu0 0.0
        %9688 = vmatmul.mubr.f32.gmra.mrb[0].mxu0 %v9570
        %v9689 = vpop.f32.mrb[0].mxu0
        %v9690 = vadd.f32 0.0, %v9689
        %v9691 = vpop.f32.mrb[0].mxu0
        %9692 = vdwg.mxu0
        %v9693 = vadd.f32 %v9213, %v9655
        %v9694 = vadd.f32 %v9214, %v9660
        %v9695 = vadd.f32 %v9215, %v9665
        %v9696 = vadd.f32 %v9216, %v9670
        %v9697 = vadd.f32 %v9217, %v9675
        %v9698 = vadd.f32 %v9218, %v9680
        %v9699 = vadd.f32 %v9219, %v9685
        %v9700 = vadd.f32 %v9220, %v9690
        %s9701 = scalar_lea.vmem %s12, 1
        %v9702 = vld [vmem:[%s9701] sm:$0x1]
        %v9704 = vlaneseq
        %v9705 = vshrl.u32 %v9704, 7
        %v9706 = vsub.s32 0, %v9705
        %v9707 = vrot.slane %v9702, %v9706
        %v9709 = vadd.f32 %v9693, %v9707
        %v9710 = vadd.f32 %v9694, %v9707
        %v9711 = vadd.f32 %v9695, %v9707
        %v9712 = vadd.f32 %v9696, %v9707
        %v9713 = vadd.f32 %v9697, %v9707
        %v9714 = vadd.f32 %v9698, %v9707
        %v9715 = vadd.f32 %v9699, %v9707
        %v9716 = vadd.f32 %v9700, %v9707
        %v9718 = vrot.slane %v9711, 4
        %v9721 = vrot.slane %v9709, 4
        %v9724 = vrot.slane %v9712, 4
        %v9727 = vrot.slane %v9710, 4
        %v9730 = vrot.slane %v9715, 4
        %v9733 = vrot.slane %v9713, 4
        %v9736 = vrot.slane %v9716, 4
        %v9739 = vrot.slane %v9714, 4
        %v9741 = vsel %vm501, %v9709, %v9718
        %v9742 = vsel %vm501, %v9721, %v9711
        %v9743 = vsel %vm501, %v9710, %v9724
        %v9744 = vsel %vm501, %v9727, %v9712
        %v9745 = vsel %vm501, %v9713, %v9730
        %v9746 = vsel %vm501, %v9733, %v9715
        %v9747 = vsel %vm501, %v9714, %v9736
        %v9748 = vsel %vm501, %v9739, %v9716
        %v9757 = vrot.slane %v9747, 6
        %v9758 = vrot.slane %v9748, 6
        %v9759 = vrot.slane %v9741, 6
        %v9760 = vrot.slane %v9742, 6
        %v9761 = vrot.slane %v9743, 6
        %v9762 = vrot.slane %v9744, 6
        %v9763 = vrot.slane %v9745, 6
        %v9764 = vrot.slane %v9746, 6
        %vm9773 = vcmask 1041408
        %v9774 = vsel %vm9773, %v9757, %v9757
        %v9775 = vsel %vm9773, %v9758, %v9758
        %v9776 = vsel %vm9773, %v9759, %v9759
        %v9777 = vsel %vm9773, %v9760, %v9760
        %v9778 = vsel %vm9773, %v9761, %v9761
        %v9779 = vsel %vm9773, %v9762, %v9762
        %v9780 = vsel %vm9773, %v9763, %v9763
        %v9781 = vsel %vm9773, %v9764, %v9764
        %9782 = vst.msk [vmem:[%s463] sm:$0xff] %vm512, %v9774
        %9783 = vst.msk [vmem:[%s463 + $0x8] sm:$0xff] %vm512, %v9775
        %9784 = vst.msk [vmem:[%s463 + $0x10] sm:$0xff] %vm512, %v9776
        %9785 = vst.msk [vmem:[%s463 + $0x18] sm:$0xff] %vm512, %v9777
        %9786 = vst.msk [vmem:[%s463 + $0x20] sm:$0xff] %vm512, %v9778
        %9787 = vst.msk [vmem:[%s463 + $0x28] sm:$0xff] %vm512, %v9779
        %9788 = vst.msk [vmem:[%s463 + $0x30] sm:$0xff] %vm512, %v9780
        %9789 = vst.msk [vmem:[%s463 + $0x38] sm:$0xff] %vm512, %v9781
        %s9790 = sand.u32 %s315, 1
        %s9791 = scalar_lea.sflag [#allocation4], %s9790
        %s9792 = sand.u32 %s315, 1
        %s9793 = smul.addr %s9792, 64
        %s9794 = scalar_lea.vmem [#allocation7], %s9793
        // Predicated region
        $region81: #{swin_stage_forward.1} parent=71 // pred_check
          %p9795 = pneg %p325
        $region82: #{swin_stage_forward.1} parent=71 // pred_check_branch
          %9797 = sbr.rel (%p9795) target = $region84
        $region83: #{swin_stage_forward.1} parent=71 // pred_region
          %s9799 = ssub.s32 1024, 1024
          %9800 = vsyncadd %s9791, %s9799
          %s9801 = smul.addr %s29, 8
          %s9802 = smul.addr %s9801, 128
          %s9803 = scalar_lea.hbm %s13, %s9802
          %s9804 = sshll.u32 %s9794, 4
          %s9805 = int_to_ptr.vmem [resolvable:$true] %s9804
          %9810 = dma.vmem_to_hbm [thread:$0]  %s9805, 1024, %s9803, %s9791, 128, 128, 8
        $region84: #{swin_stage_forward.1} parent=71 // pred_fallthru
          _
      $region72: #{swin_stage_forward.1} parent=5 // pred_fallthru
        _
      %p9811 = scmp.le.s32.totalorder 2, %s24
      // Predicated region
      $region85: #{swin_stage_forward.1} parent=5 // pred_check
        %p9812 = pneg %p9811
      $region86: #{swin_stage_forward.1} parent=5 // pred_check_branch
        %9814 = sbr.rel (%p9812) target = $region88
      $region87: #{swin_stage_forward.1} parent=5 // pred_region
        %s9815 = ssub.s32 %s24, 2
        // Predicated region
        $region89: #{swin_stage_forward.1} parent=87 // pred_check
          %p9816 = pneg %p331
        $region90: #{swin_stage_forward.1} parent=87 // pred_check_branch
          %9818 = sbr.rel (%p9816) target = $region92
        $region91: #{swin_stage_forward.1} parent=87 // pred_region
          %s9819 = sand.u32 %s316, 1
          %s9820 = scalar_lea.sflag [#allocation4], %s9819
          %s9821 = sand.u32 %s316, 1
          %s9822 = smul.addr %s9821, 64
          %s9823 = scalar_lea.vmem [#allocation7], %s9822
          %9824 = dma.done %s9820, 1024
        $region92: #{swin_stage_forward.1} parent=87 // pred_fallthru
          _
      $region88: #{swin_stage_forward.1} parent=5 // pred_fallthru
        _
    $region6: #{swin_stage_forward.1} parent=1 // loop_footer
      %s28 = sadd.s32 1, %s24
    $region7: #{swin_stage_forward.1} parent=1 // loop_footer_branch
      %23 = sbr.rel target = $region3
    $region8: #{swin_stage_forward.1} parent=1 // loop_exit
      _
    %9825 = vsyncpa [#allocation3], 1
    %s9826 = scalar_lea.sflag [#allocation3], 1
    %9827 = vsyncpa %s9826, 1
    %9828 = vsyncpa [#allocation6], 1
    %9829 = vsyncpa [#allocation4], 1
    %s9830 = scalar_lea.sflag [#allocation4], 1
    %9831 = vsyncpa %s9830, 1

</llo_original>
